<compile_context>
chip_gen: v7x
topology: tpu7x:2x2x1
jax: 0.10.0
libtpu: 0.0.40
codegen_flags: <defaults>
</compile_context>

<pallas_src>
import math

import jax
import jax.numpy as jnp
from jax import lax
from jax.experimental import pallas as pl
from jax.experimental.pallas import tpu as pltpu

_EPS = 1e-5  # torch.nn.LayerNorm default eps


# ----------------------------- in-kernel math helpers -----------------------------
def _erf(x):
    # Abramowitz & Stegun 7.1.26 rational approximation (|err| < 1.5e-7); only uses ops with
    # guaranteed Mosaic lowerings (exp -> EUP, abs/where/mul-add -> VPU).
    a1, a2, a3, a4, a5 = 0.254829592, -0.284496736, 1.421413741, -1.453152027, 1.061405429
    p = 0.3275911
    sgn = jnp.where(x >= 0.0, 1.0, -1.0)
    ax = jnp.abs(x)
    t = 1.0 / (1.0 + p * ax)
    poly = ((((a5 * t + a4) * t + a3) * t + a2) * t + a1) * t
    return sgn * (1.0 - poly * jnp.exp(-ax * ax))


def _gelu_exact(x):
    # matches torch.nn.GELU() (erf formulation) to ~f32 precision
    return 0.5 * x * (1.0 + _erf(x * (1.0 / math.sqrt(2.0))))


def _layernorm(x, g, b):
    mu = jnp.mean(x, axis=-1, keepdims=True)
    xc = x - mu
    var = jnp.mean(xc * xc, axis=-1, keepdims=True)
    return xc * lax.rsqrt(var + _EPS) * g + b


# ------------------------------- fused SelfAttention kernel ------------------------
def _make_kernel(num_heads):
    def kernel(x_ref, g1_ref, b1_ref, wqkv_ref, bqkv_ref, wo_ref, bo_ref,
               g2_ref, b2_ref, w1_ref, bl1_ref, w2_ref, bl2_ref, o_ref):
        B, C, T = x_ref.shape          # input tile arrives channel-major: (B, C, T)
        R = B * T
        head_dim = C // num_heads
        scale = 1.0 / math.sqrt(head_dim)

        # ---- NCHW -> row-major, folded into the kernel ----
        # rows are batch-major: rows [b*T:(b+1)*T] are batch b's positions of this tile,
        # channels sit on the 128-lane axis (lane-dense matmuls / LayerNorms / stores).
        x2 = jnp.concatenate([x_ref[b].T for b in range(B)], axis=0)       # (R, C)

        # ---- LayerNorm (pre-attention) ----
        xn = _layernorm(x2, g1_ref[...], b1_ref[...])

        # ---- QKV projection: one (R, C) @ (C, 3C) MXU op (batch folded into M) ----
        qkv = jnp.dot(xn, wqkv_ref[...], preferred_element_type=jnp.float32) + bqkv_ref[...]
        q = qkv[:, 0 * C:1 * C].reshape(B, T, C)
        k = qkv[:, 1 * C:2 * C].reshape(B, T, C)
        v = qkv[:, 2 * C:3 * C].reshape(B, T, C)

        # ---- block-diagonal "same head" mask, 1/sqrt(head_dim) folded in, built in-kernel ----
        # (division-free: head id = number of head boundaries passed)
        ri = lax.broadcasted_iota(jnp.int32, (C, C), 0)
        ci = lax.broadcasted_iota(jnp.int32, (C, C), 1)
        rid = jnp.zeros((C, C), jnp.int32)
        cid = jnp.zeros((C, C), jnp.int32)
        for h in range(1, num_heads):
            rid = rid + (ri >= h * head_dim).astype(jnp.int32)
            cid = cid + (ci >= h * head_dim).astype(jnp.int32)
        hm = (rid == cid).astype(jnp.float32) * scale                      # (C, C)

        # ---- multi-head attention (PyTorch batch_first=False semantics) ----
        # Attention only couples the B batch entries at the same spatial position, so it is
        # elementwise across the T rows.  All B*B segmented head reductions are batched into
        # ONE MXU matmul against hm; scores stay head-broadcast at full (.., C) lane density.
        prod = (q[:, None, :, :] * k[None, :, :, :]).reshape(B * B * T, C)
        s = jnp.dot(prod, hm, preferred_element_type=jnp.float32).reshape(B, B, T, C)
        m = jnp.max(s, axis=1, keepdims=True)        # softmax max over j (axis 1)
        e = jnp.exp(s - m)                           # one batched EUP pass
        den = jnp.sum(e, axis=1).reshape(R, C)
        num = jnp.sum(e * v[None, :, :, :], axis=1).reshape(R, C)
        attn = num * pl.reciprocal(den, approx=True)                       # EUP vrcp

        y = jnp.dot(attn, wo_ref[...], preferred_element_type=jnp.float32) + bo_ref[...]

        # ---- residual 1: x = norm(x); x = x + y ----
        xr = xn + y

        # ---- seq2: LayerNorm -> Linear -> GELU -> Linear ----
        z = _layernorm(xr, g2_ref[...], b2_ref[...])
        z = jnp.dot(z, w1_ref[...], preferred_element_type=jnp.float32) + bl1_ref[...]
        z = _gelu_exact(z)
        z = jnp.dot(z, w2_ref[...], preferred_element_type=jnp.float32) + bl2_ref[...]

        # ---- residual 2: out = y + seq2(norm(x) + y) ----
        out = (y + z).astype(o_ref.dtype)            # (R, C)

        # ---- row-major -> NCHW on store (per-batch 2-D transposes, full-width stores) ----
        for b in range(B):
            o_ref[b] = out[b * T:(b + 1) * T, :].T

    return kernel


# ----------------------------------- wrapper ----------------------------------------
def _num_tensorcores_per_chip():
    try:
        kind = jax.devices()[0].device_kind.lower()
    except Exception:
        return 1
    # v7x exposes 2 TensorCores per chip; v3/v4 megacore also spans 2 cores.
    return 2 if any(t in kind for t in ("v7", "v4", "v3")) else 1


def _pick_tile(S, n_tc):
    # One grid step per TensorCore: grid=(1,) on single-TC v5e/v6e (no wasted grid-step
    # overhead, larger matmul M), grid=(n_tc,) on multi-TC chips.  A tile smaller than S must
    # keep T a multiple of 128 because T is the minor (lane) dim of the (B, C, T) input block.
    if n_tc > 1 and S % (128 * n_tc) == 0:
        t = S // n_tc
    else:
        t = S
    while t > 1024 and t % 256 == 0:   # VMEM headroom only matters at very large S
        t //= 2
    return t


def self_attention_forward(x_nchw, params, *, num_heads=4):
    B, C, H, W = x_nchw.shape
    assert H == W, "module reshapes back via int(sqrt(H*W))"
    assert C % num_heads == 0
    S = H * W
    assert S % 8 == 0, "spatial extent must be sublane-aligned"

    n_tc = _num_tensorcores_per_chip()
    T = _pick_tile(S, n_tc)
    grid = (S // T,)

    # XLA side stays transpose-free: only a free contiguous reshape; the kernel consumes
    # (B, C, T) blocks directly and transposes on the (idle) XLU.
    xs = x_nchw.reshape(B, C, S)

    g1 = params['ln1_g'].reshape(1, C)
    b1 = params['ln1_b'].reshape(1, C)
    wqkv = jnp.transpose(params['in_proj_w'])          # torch (3C, C) -> (C, 3C)
    bqkv = params['in_proj_b'].reshape(1, 3 * C)
    wo = jnp.transpose(params['out_proj_w'])           # (C, C)
    bo = params['out_proj_b'].reshape(1, C)
    g2 = params['ln2_g'].reshape(1, C)
    b2 = params['ln2_b'].reshape(1, C)
    w1 = jnp.transpose(params['lin1_w'])
    bl1 = params['lin1_b'].reshape(1, C)
    w2 = jnp.transpose(params['lin2_w'])
    bl2 = params['lin2_b'].reshape(1, C)

    def full(shape):
        return pl.BlockSpec(shape, lambda i, _s=shape: (0,) * len(_s))

    out = pl.pallas_call(
        _make_kernel(num_heads),
        out_shape=jax.ShapeDtypeStruct((B, C, S), jnp.float32),
        grid=grid,
        in_specs=[
            pl.BlockSpec((B, C, T), lambda i: (0, 0, i)),   # activation tile (channel-major)
            full((1, C)), full((1, C)),                     # LayerNorm 1 gamma/beta
            full((C, 3 * C)), full((1, 3 * C)),             # MHA in_proj (W^T, b)
            full((C, C)), full((1, C)),                     # MHA out_proj (W^T, b)
            full((1, C)), full((1, C)),                     # LayerNorm 2 gamma/beta
            full((C, C)), full((1, C)),                     # seq2 Linear 1 (W^T, b)
            full((C, C)), full((1, C)),                     # seq2 Linear 2 (W^T, b)
        ],
        out_specs=pl.BlockSpec((B, C, T), lambda i: (0, 0, i)),
        compiler_params=pltpu.CompilerParams(
            dimension_semantics=("parallel",),
            vmem_limit_bytes=32 * 1024 * 1024,
        ),
    )(xs, g1, b1, wqkv, bqkv, wo, bo, g2, b2, w1, bl1, w2, bl2)

    return out.reshape(B, C, H, W)


# --------------------------------- pure-JAX reference ------------------------------
def reference_forward(x, params, *, num_heads=4):
    B, C, H, W = x.shape
    S = H * W
    xs = x.reshape(B, C, S).transpose(0, 2, 1)  # (B, S, C)

    def ln(a, g, b):
        mu = a.mean(axis=-1, keepdims=True)
        var = ((a - mu) ** 2).mean(axis=-1, keepdims=True)
        return (a - mu) / jnp.sqrt(var + _EPS) * g + b

    xn = ln(xs, params['ln1_g'], params['ln1_b'])

    # torch.nn.MultiheadAttention (batch_first=False) on a (B, S, C) tensor:
    # dim0 = sequence (length B), dim1 = batch (size S), dim2 = embed.
    qkv = xn @ params['in_proj_w'].T + params['in_proj_b']
    q, k, v = jnp.split(qkv, 3, axis=-1)
    d = C // num_heads
    qh = q.reshape(B, S, num_heads, d)
    kh = k.reshape(B, S, num_heads, d)
    vh = v.reshape(B, S, num_heads, d)
    scores = jnp.einsum('ishd,jshd->shij', qh, kh) / math.sqrt(d)   # (S, heads, B, B)
    w = jax.nn.softmax(scores, axis=-1)
    ah = jnp.einsum('shij,jshd->ishd', w, vh).reshape(B, S, C)
    y = ah @ params['out_proj_w'].T + params['out_proj_b']

    xr = xn + y
    z = ln(xr, params['ln2_g'], params['ln2_b'])
    z = z @ params['lin1_w'].T + params['lin1_b']
    z = jax.nn.gelu(z, approximate=False)
    z = z @ params['lin2_w'].T + params['lin2_b']
    out = y + z
    return out.transpose(0, 2, 1).reshape(B, C, H, W)


if __name__ == "__main__":
    # in_size = C must be divisible by num_heads=4; C=128 keeps the lane axis dense.
    B, C, H, W = 2, 128, 16, 16
    num_heads = 4
    key = jax.random.PRNGKey(0)
    ks = jax.random.split(key, 16)

    s = 0.05
    params = {
        'ln1_g': 1.0 + s * jax.random.normal(ks[0], (C,), jnp.float32),
        'ln1_b': s * jax.random.normal(ks[1], (C,), jnp.float32),
        'in_proj_w': s * jax.random.normal(ks[2], (3 * C, C), jnp.float32),  # torch (3C, C)
        'in_proj_b': s * jax.random.normal(ks[3], (3 * C,), jnp.float32),
        'out_proj_w': s * jax.random.normal(ks[4], (C, C), jnp.float32),
        'out_proj_b': s * jax.random.normal(ks[5], (C,), jnp.float32),
        'ln2_g': 1.0 + s * jax.random.normal(ks[6], (C,), jnp.float32),
        'ln2_b': s * jax.random.normal(ks[7], (C,), jnp.float32),
        'lin1_w': s * jax.random.normal(ks[8], (C, C), jnp.float32),
        'lin1_b': s * jax.random.normal(ks[9], (C,), jnp.float32),
        'lin2_w': s * jax.random.normal(ks[10], (C, C), jnp.float32),
        'lin2_b': s * jax.random.normal(ks[11], (C,), jnp.float32),
    }
    x = jax.random.normal(ks[12], (B, C, H, W), jnp.float32)

    out = jax.block_until_ready(self_attention_forward(x, params, num_heads=num_heads))
    ref = jax.block_until_ready(reference_forward(x, params, num_heads=num_heads))

    assert out.shape == (B, C, H, W)
    err = float(jnp.max(jnp.abs(out - ref)))
    assert jnp.allclose(out, ref, atol=2e-3, rtol=2e-3), err
    print("KERNEL_OK")
</pallas_src>

<mosaic_0001>
module attributes {stable_mosaic.version = 11 : i64} {
  func.func @kernel(%arg0: i32, %arg1: memref<2x128x256xf32, #tpu.memory_space<vmem>>, %arg2: memref<1x128xf32, #tpu.memory_space<vmem>>, %arg3: memref<1x128xf32, #tpu.memory_space<vmem>>, %arg4: memref<128x384xf32, #tpu.memory_space<vmem>>, %arg5: memref<1x384xf32, #tpu.memory_space<vmem>>, %arg6: memref<128x128xf32, #tpu.memory_space<vmem>>, %arg7: memref<1x128xf32, #tpu.memory_space<vmem>>, %arg8: memref<1x128xf32, #tpu.memory_space<vmem>>, %arg9: memref<1x128xf32, #tpu.memory_space<vmem>>, %arg10: memref<128x128xf32, #tpu.memory_space<vmem>>, %arg11: memref<1x128xf32, #tpu.memory_space<vmem>>, %arg12: memref<128x128xf32, #tpu.memory_space<vmem>>, %arg13: memref<1x128xf32, #tpu.memory_space<vmem>>, %arg14: memref<2x128x256xf32, #tpu.memory_space<vmem>>) attributes {dimension_semantics = [#tpu.dimension_semantics<parallel>], iteration_bounds = array<i64: 1>, scalar_prefetch = 0 : i64, scratch_operands = 0 : i64, tpu.core_type = #tpu.core_type<tc>, window_params = [{transform_indices = @transform_0, window_bounds = array<i64: 2, 128, 256>}, {pipeline_mode = #tpu.pipeline_mode<synchronous>, transform_indices = @transform_1, window_bounds = array<i64: 1, 128>}, {pipeline_mode = #tpu.pipeline_mode<synchronous>, transform_indices = @transform_2, window_bounds = array<i64: 1, 128>}, {pipeline_mode = #tpu.pipeline_mode<synchronous>, transform_indices = @transform_3, window_bounds = array<i64: 128, 384>}, {pipeline_mode = #tpu.pipeline_mode<synchronous>, transform_indices = @transform_4, window_bounds = array<i64: 1, 384>}, {pipeline_mode = #tpu.pipeline_mode<synchronous>, transform_indices = @transform_5, window_bounds = array<i64: 128, 128>}, {pipeline_mode = #tpu.pipeline_mode<synchronous>, transform_indices = @transform_6, window_bounds = array<i64: 1, 128>}, {pipeline_mode = #tpu.pipeline_mode<synchronous>, transform_indices = @transform_7, window_bounds = array<i64: 1, 128>}, {pipeline_mode = #tpu.pipeline_mode<synchronous>, transform_indices = @transform_8, window_bounds = array<i64: 1, 128>}, {pipeline_mode = #tpu.pipeline_mode<synchronous>, transform_indices = @transform_9, window_bounds = array<i64: 128, 128>}, {pipeline_mode = #tpu.pipeline_mode<synchronous>, transform_indices = @transform_10, window_bounds = array<i64: 1, 128>}, {pipeline_mode = #tpu.pipeline_mode<synchronous>, transform_indices = @transform_11, window_bounds = array<i64: 128, 128>}, {pipeline_mode = #tpu.pipeline_mode<synchronous>, transform_indices = @transform_12, window_bounds = array<i64: 1, 128>}, {transform_indices = @transform_13, window_bounds = array<i64: 2, 128, 256>}]} {
    %c0 = arith.constant 0 : index
    %c0_0 = arith.constant 0 : index
    %c0_1 = arith.constant 0 : index
    %0 = vector.load %arg1[%c0, %c0_0, %c0_1] : memref<2x128x256xf32, #tpu.memory_space<vmem>>, vector<1x128x256xf32>
    %1 = vector.shape_cast %0 : vector<1x128x256xf32> to vector<128x256xf32>
    %2 = tpu.transpose %1, [1, 0] : vector<128x256xf32> -> vector<256x128xf32>
    %c1 = arith.constant 1 : index
    %c0_2 = arith.constant 0 : index
    %c0_3 = arith.constant 0 : index
    %3 = vector.load %arg1[%c1, %c0_2, %c0_3] : memref<2x128x256xf32, #tpu.memory_space<vmem>>, vector<1x128x256xf32>
    %4 = vector.shape_cast %3 : vector<1x128x256xf32> to vector<128x256xf32>
    %5 = tpu.transpose %4, [1, 0] : vector<128x256xf32> -> vector<256x128xf32>
    %6 = tpu.concatenate %2, %5 in 0 : vector<256x128xf32>, vector<256x128xf32> -> vector<512x128xf32>
    %c0_4 = arith.constant 0 : index
    %c0_5 = arith.constant 0 : index
    %7 = vector.load %arg2[%c0_4, %c0_5] : memref<1x128xf32, #tpu.memory_space<vmem>>, vector<1x128xf32>
    %c0_6 = arith.constant 0 : index
    %c0_7 = arith.constant 0 : index
    %8 = vector.load %arg3[%c0_6, %c0_7] : memref<1x128xf32, #tpu.memory_space<vmem>>, vector<1x128xf32>
    %cst = arith.constant dense<0.000000e+00> : vector<512xf32>
    %9 = vector.multi_reduction <add>, %6, %cst [1] : vector<512x128xf32> to vector<512xf32>
    %10 = vector.shape_cast %9 : vector<512xf32> to vector<512x1xf32>
    %cst_8 = arith.constant 1.280000e+02 : f32
    %11 = vector.broadcast %cst_8 : f32 to vector<512x1xf32>
    %12 = arith.divf %10, %11 : vector<512x1xf32>
    %13 = vector.broadcast %12 : vector<512x1xf32> to vector<512x128xf32>
    %14 = arith.subf %6, %13 : vector<512x128xf32>
    %15 = arith.mulf %14, %14 : vector<512x128xf32>
    %cst_9 = arith.constant dense<0.000000e+00> : vector<512xf32>
    %16 = vector.multi_reduction <add>, %15, %cst_9 [1] : vector<512x128xf32> to vector<512xf32>
    %17 = vector.shape_cast %16 : vector<512xf32> to vector<512x1xf32>
    %cst_10 = arith.constant 1.280000e+02 : f32
    %18 = vector.broadcast %cst_10 : f32 to vector<512x1xf32>
    %19 = arith.divf %17, %18 : vector<512x1xf32>
    %cst_11 = arith.constant 9.99999974E-6 : f32
    %20 = vector.broadcast %cst_11 : f32 to vector<512x1xf32>
    %21 = arith.addf %19, %20 : vector<512x1xf32>
    %22 = math.rsqrt %21 : vector<512x1xf32>
    %23 = vector.broadcast %22 : vector<512x1xf32> to vector<512x128xf32>
    %24 = arith.mulf %14, %23 : vector<512x128xf32>
    %25 = vector.broadcast %7 : vector<1x128xf32> to vector<512x128xf32>
    %26 = arith.mulf %24, %25 : vector<512x128xf32>
    %27 = vector.broadcast %8 : vector<1x128xf32> to vector<512x128xf32>
    %28 = arith.addf %26, %27 : vector<512x128xf32>
    %c0_12 = arith.constant 0 : index
    %c0_13 = arith.constant 0 : index
    %29 = vector.load %arg4[%c0_12, %c0_13] : memref<128x384xf32, #tpu.memory_space<vmem>>, vector<128x384xf32>
    %cst_14 = arith.constant dense<0.000000e+00> : vector<512x384xf32>
    %30 = tpu.matmul %28, %29, %cst_14 {dimension_numbers = #tpu.dot_dimension_numbers<[1], [0], [0], [1], [0, 0, 1, 1], [], []>} : vector<512x128xf32>, vector<128x384xf32>, vector<512x384xf32> -> vector<512x384xf32>
    %c0_15 = arith.constant 0 : index
    %c0_16 = arith.constant 0 : index
    %31 = vector.load %arg5[%c0_15, %c0_16] : memref<1x384xf32, #tpu.memory_space<vmem>>, vector<1x384xf32>
    %32 = vector.broadcast %31 : vector<1x384xf32> to vector<512x384xf32>
    %33 = arith.addf %30, %32 : vector<512x384xf32>
    %34 = vector.extract_strided_slice %33 {offsets = [0, 0], sizes = [512, 128], strides = [1, 1]} : vector<512x384xf32> to vector<512x128xf32>
    %35 = vector.shape_cast %34 : vector<512x128xf32> to vector<2x256x128xf32>
    %36 = vector.extract_strided_slice %33 {offsets = [0, 128], sizes = [512, 128], strides = [1, 1]} : vector<512x384xf32> to vector<512x128xf32>
    %37 = vector.shape_cast %36 : vector<512x128xf32> to vector<2x256x128xf32>
    %38 = vector.extract_strided_slice %33 {offsets = [0, 256], sizes = [512, 128], strides = [1, 1]} : vector<512x384xf32> to vector<512x128xf32>
    %39 = vector.shape_cast %38 : vector<512x128xf32> to vector<2x256x128xf32>
    %40 = tpu.iota {dimensions = array<i32: 0>} : vector<128x128xi32>
    %41 = tpu.iota {dimensions = array<i32: 1>} : vector<128x128xi32>
    %c0_i32 = arith.constant 0 : i32
    %42 = vector.broadcast %c0_i32 : i32 to vector<128x128xi32>
    %c0_i32_17 = arith.constant 0 : i32
    %43 = vector.broadcast %c0_i32_17 : i32 to vector<128x128xi32>
    %c32_i32 = arith.constant 32 : i32
    %44 = vector.broadcast %c32_i32 : i32 to vector<128x128xi32>
    %45 = arith.cmpi sge, %40, %44 : vector<128x128xi32>
    %46 = arith.extui %45 : vector<128x128xi1> to vector<128x128xi32>
    %47 = arith.addi %42, %46 : vector<128x128xi32>
    %c32_i32_18 = arith.constant 32 : i32
    %48 = vector.broadcast %c32_i32_18 : i32 to vector<128x128xi32>
    %49 = arith.cmpi sge, %41, %48 : vector<128x128xi32>
    %50 = arith.extui %49 : vector<128x128xi1> to vector<128x128xi32>
    %51 = arith.addi %43, %50 : vector<128x128xi32>
    %c64_i32 = arith.constant 64 : i32
    %52 = vector.broadcast %c64_i32 : i32 to vector<128x128xi32>
    %53 = arith.cmpi sge, %40, %52 : vector<128x128xi32>
    %54 = arith.extui %53 : vector<128x128xi1> to vector<128x128xi32>
    %55 = arith.addi %47, %54 : vector<128x128xi32>
    %c64_i32_19 = arith.constant 64 : i32
    %56 = vector.broadcast %c64_i32_19 : i32 to vector<128x128xi32>
    %57 = arith.cmpi sge, %41, %56 : vector<128x128xi32>
    %58 = arith.extui %57 : vector<128x128xi1> to vector<128x128xi32>
    %59 = arith.addi %51, %58 : vector<128x128xi32>
    %c96_i32 = arith.constant 96 : i32
    %60 = vector.broadcast %c96_i32 : i32 to vector<128x128xi32>
    %61 = arith.cmpi sge, %40, %60 : vector<128x128xi32>
    %62 = arith.extui %61 : vector<128x128xi1> to vector<128x128xi32>
    %63 = arith.addi %55, %62 : vector<128x128xi32>
    %c96_i32_20 = arith.constant 96 : i32
    %64 = vector.broadcast %c96_i32_20 : i32 to vector<128x128xi32>
    %65 = arith.cmpi sge, %41, %64 : vector<128x128xi32>
    %66 = arith.extui %65 : vector<128x128xi1> to vector<128x128xi32>
    %67 = arith.addi %59, %66 : vector<128x128xi32>
    %68 = arith.cmpi eq, %63, %67 : vector<128x128xi32>
    %69 = arith.extui %68 : vector<128x128xi1> to vector<128x128xi32>
    %70 = arith.sitofp %69 : vector<128x128xi32> to vector<128x128xf32>
    %cst_21 = arith.constant 0.176776692 : f32
    %71 = vector.broadcast %cst_21 : f32 to vector<128x128xf32>
    %72 = arith.mulf %70, %71 : vector<128x128xf32>
    %73 = vector.shape_cast %35 : vector<2x256x128xf32> to vector<2x1x256x128xf32>
    %74 = vector.shape_cast %37 : vector<2x256x128xf32> to vector<1x2x256x128xf32>
    %75 = vector.broadcast %73 : vector<2x1x256x128xf32> to vector<2x2x256x128xf32>
    %76 = vector.broadcast %74 : vector<1x2x256x128xf32> to vector<2x2x256x128xf32>
    %77 = arith.mulf %75, %76 : vector<2x2x256x128xf32>
    %78 = vector.shape_cast %77 : vector<2x2x256x128xf32> to vector<1024x128xf32>
    %cst_22 = arith.constant dense<0.000000e+00> : vector<1024x128xf32>
    %79 = tpu.matmul %78, %72, %cst_22 {dimension_numbers = #tpu.dot_dimension_numbers<[1], [0], [0], [1], [0, 0, 1, 1], [], []>} : vector<1024x128xf32>, vector<128x128xf32>, vector<1024x128xf32> -> vector<1024x128xf32>
    %80 = vector.shape_cast %79 : vector<1024x128xf32> to vector<2x2x256x128xf32>
    %cst_23 = arith.constant dense<0xFF800000> : vector<2x256x128xf32>
    %81 = vector.multi_reduction <maximumf>, %80, %cst_23 [1] : vector<2x2x256x128xf32> to vector<2x256x128xf32>
    %82 = vector.shape_cast %81 : vector<2x256x128xf32> to vector<2x1x256x128xf32>
    %83 = vector.broadcast %82 : vector<2x1x256x128xf32> to vector<2x2x256x128xf32>
    %84 = arith.subf %80, %83 : vector<2x2x256x128xf32>
    %85 = math.exp %84 : vector<2x2x256x128xf32>
    %cst_24 = arith.constant dense<0.000000e+00> : vector<2x256x128xf32>
    %86 = vector.multi_reduction <add>, %85, %cst_24 [1] : vector<2x2x256x128xf32> to vector<2x256x128xf32>
    %87 = vector.shape_cast %86 : vector<2x256x128xf32> to vector<512x128xf32>
    %88 = vector.shape_cast %39 : vector<2x256x128xf32> to vector<1x2x256x128xf32>
    %89 = vector.broadcast %88 : vector<1x2x256x128xf32> to vector<2x2x256x128xf32>
    %90 = arith.mulf %85, %89 : vector<2x2x256x128xf32>
    %cst_25 = arith.constant dense<0.000000e+00> : vector<2x256x128xf32>
    %91 = vector.multi_reduction <add>, %90, %cst_25 [1] : vector<2x2x256x128xf32> to vector<2x256x128xf32>
    %92 = vector.shape_cast %91 : vector<2x256x128xf32> to vector<512x128xf32>
    %93 = tpu.reciprocal %87 {approx = true} : vector<512x128xf32> -> vector<512x128xf32>
    %94 = arith.mulf %92, %93 : vector<512x128xf32>
    %c0_26 = arith.constant 0 : index
    %c0_27 = arith.constant 0 : index
    %95 = vector.load %arg6[%c0_26, %c0_27] : memref<128x128xf32, #tpu.memory_space<vmem>>, vector<128x128xf32>
    %cst_28 = arith.constant dense<0.000000e+00> : vector<512x128xf32>
    %96 = tpu.matmul %94, %95, %cst_28 {dimension_numbers = #tpu.dot_dimension_numbers<[1], [0], [0], [1], [0, 0, 1, 1], [], []>} : vector<512x128xf32>, vector<128x128xf32>, vector<512x128xf32> -> vector<512x128xf32>
    %c0_29 = arith.constant 0 : index
    %c0_30 = arith.constant 0 : index
    %97 = vector.load %arg7[%c0_29, %c0_30] : memref<1x128xf32, #tpu.memory_space<vmem>>, vector<1x128xf32>
    %98 = vector.broadcast %97 : vector<1x128xf32> to vector<512x128xf32>
    %99 = arith.addf %96, %98 : vector<512x128xf32>
    %100 = arith.addf %28, %99 : vector<512x128xf32>
    %c0_31 = arith.constant 0 : index
    %c0_32 = arith.constant 0 : index
    %101 = vector.load %arg8[%c0_31, %c0_32] : memref<1x128xf32, #tpu.memory_space<vmem>>, vector<1x128xf32>
    %c0_33 = arith.constant 0 : index
    %c0_34 = arith.constant 0 : index
    %102 = vector.load %arg9[%c0_33, %c0_34] : memref<1x128xf32, #tpu.memory_space<vmem>>, vector<1x128xf32>
    %cst_35 = arith.constant dense<0.000000e+00> : vector<512xf32>
    %103 = vector.multi_reduction <add>, %100, %cst_35 [1] : vector<512x128xf32> to vector<512xf32>
    %104 = vector.shape_cast %103 : vector<512xf32> to vector<512x1xf32>
    %cst_36 = arith.constant 1.280000e+02 : f32
    %105 = vector.broadcast %cst_36 : f32 to vector<512x1xf32>
    %106 = arith.divf %104, %105 : vector<512x1xf32>
    %107 = vector.broadcast %106 : vector<512x1xf32> to vector<512x128xf32>
    %108 = arith.subf %100, %107 : vector<512x128xf32>
    %109 = arith.mulf %108, %108 : vector<512x128xf32>
    %cst_37 = arith.constant dense<0.000000e+00> : vector<512xf32>
    %110 = vector.multi_reduction <add>, %109, %cst_37 [1] : vector<512x128xf32> to vector<512xf32>
    %111 = vector.shape_cast %110 : vector<512xf32> to vector<512x1xf32>
    %cst_38 = arith.constant 1.280000e+02 : f32
    %112 = vector.broadcast %cst_38 : f32 to vector<512x1xf32>
    %113 = arith.divf %111, %112 : vector<512x1xf32>
    %cst_39 = arith.constant 9.99999974E-6 : f32
    %114 = vector.broadcast %cst_39 : f32 to vector<512x1xf32>
    %115 = arith.addf %113, %114 : vector<512x1xf32>
    %116 = math.rsqrt %115 : vector<512x1xf32>
    %117 = vector.broadcast %116 : vector<512x1xf32> to vector<512x128xf32>
    %118 = arith.mulf %108, %117 : vector<512x128xf32>
    %119 = vector.broadcast %101 : vector<1x128xf32> to vector<512x128xf32>
    %120 = arith.mulf %118, %119 : vector<512x128xf32>
    %121 = vector.broadcast %102 : vector<1x128xf32> to vector<512x128xf32>
    %122 = arith.addf %120, %121 : vector<512x128xf32>
    %c0_40 = arith.constant 0 : index
    %c0_41 = arith.constant 0 : index
    %123 = vector.load %arg10[%c0_40, %c0_41] : memref<128x128xf32, #tpu.memory_space<vmem>>, vector<128x128xf32>
    %cst_42 = arith.constant dense<0.000000e+00> : vector<512x128xf32>
    %124 = tpu.matmul %122, %123, %cst_42 {dimension_numbers = #tpu.dot_dimension_numbers<[1], [0], [0], [1], [0, 0, 1, 1], [], []>} : vector<512x128xf32>, vector<128x128xf32>, vector<512x128xf32> -> vector<512x128xf32>
    %c0_43 = arith.constant 0 : index
    %c0_44 = arith.constant 0 : index
    %125 = vector.load %arg11[%c0_43, %c0_44] : memref<1x128xf32, #tpu.memory_space<vmem>>, vector<1x128xf32>
    %126 = vector.broadcast %125 : vector<1x128xf32> to vector<512x128xf32>
    %127 = arith.addf %124, %126 : vector<512x128xf32>
    %cst_45 = arith.constant 5.000000e-01 : f32
    %128 = vector.broadcast %cst_45 : f32 to vector<512x128xf32>
    %129 = arith.mulf %128, %127 : vector<512x128xf32>
    %cst_46 = arith.constant 0.707106769 : f32
    %130 = vector.broadcast %cst_46 : f32 to vector<512x128xf32>
    %131 = arith.mulf %127, %130 : vector<512x128xf32>
    %cst_47 = arith.constant 0.000000e+00 : f32
    %132 = vector.broadcast %cst_47 : f32 to vector<512x128xf32>
    %133 = arith.cmpf oge, %131, %132 : vector<512x128xf32>
    %cst_48 = arith.constant 1.000000e+00 : f32
    %cst_49 = arith.constant -1.000000e+00 : f32
    %134 = vector.broadcast %cst_48 : f32 to vector<512x128xf32>
    %135 = vector.broadcast %cst_49 : f32 to vector<512x128xf32>
    %136 = arith.select %133, %134, %135 : vector<512x128xi1>, vector<512x128xf32>
    %137 = math.absf %131 : vector<512x128xf32>
    %cst_50 = arith.constant 0.327591091 : f32
    %138 = vector.broadcast %cst_50 : f32 to vector<512x128xf32>
    %139 = arith.mulf %138, %137 : vector<512x128xf32>
    %cst_51 = arith.constant 1.000000e+00 : f32
    %140 = vector.broadcast %cst_51 : f32 to vector<512x128xf32>
    %141 = arith.addf %140, %139 : vector<512x128xf32>
    %cst_52 = arith.constant 1.000000e+00 : f32
    %142 = vector.broadcast %cst_52 : f32 to vector<512x128xf32>
    %143 = arith.divf %142, %141 : vector<512x128xf32>
    %cst_53 = arith.constant 1.06140542 : f32
    %144 = vector.broadcast %cst_53 : f32 to vector<512x128xf32>
    %145 = arith.mulf %144, %143 : vector<512x128xf32>
    %cst_54 = arith.constant -1.45315206 : f32
    %146 = vector.broadcast %cst_54 : f32 to vector<512x128xf32>
    %147 = arith.addf %145, %146 : vector<512x128xf32>
    %148 = arith.mulf %147, %143 : vector<512x128xf32>
    %cst_55 = arith.constant 1.42141378 : f32
    %149 = vector.broadcast %cst_55 : f32 to vector<512x128xf32>
    %150 = arith.addf %148, %149 : vector<512x128xf32>
    %151 = arith.mulf %150, %143 : vector<512x128xf32>
    %cst_56 = arith.constant -0.284496725 : f32
    %152 = vector.broadcast %cst_56 : f32 to vector<512x128xf32>
    %153 = arith.addf %151, %152 : vector<512x128xf32>
    %154 = arith.mulf %153, %143 : vector<512x128xf32>
    %cst_57 = arith.constant 0.254829586 : f32
    %155 = vector.broadcast %cst_57 : f32 to vector<512x128xf32>
    %156 = arith.addf %154, %155 : vector<512x128xf32>
    %157 = arith.mulf %156, %143 : vector<512x128xf32>
    %cst_58 = arith.constant 0.000000e+00 : f32
    %158 = vector.broadcast %cst_58 : f32 to vector<512x128xf32>
    %159 = arith.subf %158, %137 : vector<512x128xf32>
    %160 = arith.mulf %159, %137 : vector<512x128xf32>
    %161 = math.exp %160 : vector<512x128xf32>
    %162 = arith.mulf %157, %161 : vector<512x128xf32>
    %cst_59 = arith.constant 1.000000e+00 : f32
    %163 = vector.broadcast %cst_59 : f32 to vector<512x128xf32>
    %164 = arith.subf %163, %162 : vector<512x128xf32>
    %165 = arith.mulf %136, %164 : vector<512x128xf32>
    %cst_60 = arith.constant 1.000000e+00 : f32
    %166 = vector.broadcast %cst_60 : f32 to vector<512x128xf32>
    %167 = arith.addf %166, %165 : vector<512x128xf32>
    %168 = arith.mulf %129, %167 : vector<512x128xf32>
    %c0_61 = arith.constant 0 : index
    %c0_62 = arith.constant 0 : index
    %169 = vector.load %arg12[%c0_61, %c0_62] : memref<128x128xf32, #tpu.memory_space<vmem>>, vector<128x128xf32>
    %cst_63 = arith.constant dense<0.000000e+00> : vector<512x128xf32>
    %170 = tpu.matmul %168, %169, %cst_63 {dimension_numbers = #tpu.dot_dimension_numbers<[1], [0], [0], [1], [0, 0, 1, 1], [], []>} : vector<512x128xf32>, vector<128x128xf32>, vector<512x128xf32> -> vector<512x128xf32>
    %c0_64 = arith.constant 0 : index
    %c0_65 = arith.constant 0 : index
    %171 = vector.load %arg13[%c0_64, %c0_65] : memref<1x128xf32, #tpu.memory_space<vmem>>, vector<1x128xf32>
    %172 = vector.broadcast %171 : vector<1x128xf32> to vector<512x128xf32>
    %173 = arith.addf %170, %172 : vector<512x128xf32>
    %174 = arith.addf %99, %173 : vector<512x128xf32>
    %175 = vector.extract_strided_slice %174 {offsets = [0, 0], sizes = [256, 128], strides = [1, 1]} : vector<512x128xf32> to vector<256x128xf32>
    %176 = tpu.transpose %175, [1, 0] : vector<256x128xf32> -> vector<128x256xf32>
    %c0_66 = arith.constant 0 : index
    %c0_67 = arith.constant 0 : index
    %c0_68 = arith.constant 0 : index
    %177 = vector.load %arg14[%c0_66, %c0_67, %c0_68] : memref<2x128x256xf32, #tpu.memory_space<vmem>>, vector<1x128x256xf32>
    %178 = vector.shape_cast %177 : vector<1x128x256xf32> to vector<128x256xf32>
    %179 = vector.shape_cast %176 : vector<128x256xf32> to vector<1x128x256xf32>
    tpu.vector_store %arg14[%c0_66, %c0_67, %c0_68], %179 {strides = array<i32>} : memref<2x128x256xf32, #tpu.memory_space<vmem>>, vector<1x128x256xf32>,
    %180 = vector.extract_strided_slice %174 {offsets = [256, 0], sizes = [256, 128], strides = [1, 1]} : vector<512x128xf32> to vector<256x128xf32>
    %181 = tpu.transpose %180, [1, 0] : vector<256x128xf32> -> vector<128x256xf32>
    %c1_69 = arith.constant 1 : index
    %c0_70 = arith.constant 0 : index
    %c0_71 = arith.constant 0 : index
    %182 = vector.load %arg14[%c1_69, %c0_70, %c0_71] : memref<2x128x256xf32, #tpu.memory_space<vmem>>, vector<1x128x256xf32>
    %183 = vector.shape_cast %182 : vector<1x128x256xf32> to vector<128x256xf32>
    %184 = vector.shape_cast %181 : vector<128x256xf32> to vector<1x128x256xf32>
    tpu.vector_store %arg14[%c1_69, %c0_70, %c0_71], %184 {strides = array<i32>} : memref<2x128x256xf32, #tpu.memory_space<vmem>>, vector<1x128x256xf32>,
    return
  }
  func.func @transform_0(%arg0: i32) -> (i32, i32, i32) {
    %c0_i32 = arith.constant 0 : i32
    %c0_i32_0 = arith.constant 0 : i32
    %c0_i32_1 = arith.constant 0 : i32
    return %c0_i32, %c0_i32_0, %arg0 : i32, i32, i32
  }
  func.func @transform_1(%arg0: i32) -> (i32, i32) {
    %c0_i32 = arith.constant 0 : i32
    %c0_i32_0 = arith.constant 0 : i32
    %c0_i32_1 = arith.constant 0 : i32
    return %c0_i32, %c0_i32_0 : i32, i32
  }
  func.func @transform_2(%arg0: i32) -> (i32, i32) {
    %c0_i32 = arith.constant 0 : i32
    %c0_i32_0 = arith.constant 0 : i32
    %c0_i32_1 = arith.constant 0 : i32
    return %c0_i32, %c0_i32_0 : i32, i32
  }
  func.func @transform_3(%arg0: i32) -> (i32, i32) {
    %c0_i32 = arith.constant 0 : i32
    %c0_i32_0 = arith.constant 0 : i32
    %c0_i32_1 = arith.constant 0 : i32
    return %c0_i32, %c0_i32_0 : i32, i32
  }
  func.func @transform_4(%arg0: i32) -> (i32, i32) {
    %c0_i32 = arith.constant 0 : i32
    %c0_i32_0 = arith.constant 0 : i32
    %c0_i32_1 = arith.constant 0 : i32
    return %c0_i32, %c0_i32_0 : i32, i32
  }
  func.func @transform_5(%arg0: i32) -> (i32, i32) {
    %c0_i32 = arith.constant 0 : i32
    %c0_i32_0 = arith.constant 0 : i32
    %c0_i32_1 = arith.constant 0 : i32
    return %c0_i32, %c0_i32_0 : i32, i32
  }
  func.func @transform_6(%arg0: i32) -> (i32, i32) {
    %c0_i32 = arith.constant 0 : i32
    %c0_i32_0 = arith.constant 0 : i32
    %c0_i32_1 = arith.constant 0 : i32
    return %c0_i32, %c0_i32_0 : i32, i32
  }
  func.func @transform_7(%arg0: i32) -> (i32, i32) {
    %c0_i32 = arith.constant 0 : i32
    %c0_i32_0 = arith.constant 0 : i32
    %c0_i32_1 = arith.constant 0 : i32
    return %c0_i32, %c0_i32_0 : i32, i32
  }
  func.func @transform_8(%arg0: i32) -> (i32, i32) {
    %c0_i32 = arith.constant 0 : i32
    %c0_i32_0 = arith.constant 0 : i32
    %c0_i32_1 = arith.constant 0 : i32
    return %c0_i32, %c0_i32_0 : i32, i32
  }
  func.func @transform_9(%arg0: i32) -> (i32, i32) {
    %c0_i32 = arith.constant 0 : i32
    %c0_i32_0 = arith.constant 0 : i32
    %c0_i32_1 = arith.constant 0 : i32
    return %c0_i32, %c0_i32_0 : i32, i32
  }
  func.func @transform_10(%arg0: i32) -> (i32, i32) {
    %c0_i32 = arith.constant 0 : i32
    %c0_i32_0 = arith.constant 0 : i32
    %c0_i32_1 = arith.constant 0 : i32
    return %c0_i32, %c0_i32_0 : i32, i32
  }
  func.func @transform_11(%arg0: i32) -> (i32, i32) {
    %c0_i32 = arith.constant 0 : i32
    %c0_i32_0 = arith.constant 0 : i32
    %c0_i32_1 = arith.constant 0 : i32
    return %c0_i32, %c0_i32_0 : i32, i32
  }
  func.func @transform_12(%arg0: i32) -> (i32, i32) {
    %c0_i32 = arith.constant 0 : i32
    %c0_i32_0 = arith.constant 0 : i32
    %c0_i32_1 = arith.constant 0 : i32
    return %c0_i32, %c0_i32_0 : i32, i32
  }
  func.func @transform_13(%arg0: i32) -> (i32, i32, i32) {
    %c0_i32 = arith.constant 0 : i32
    %c0_i32_0 = arith.constant 0 : i32
    %c0_i32_1 = arith.constant 0 : i32
    return %c0_i32, %c0_i32_0, %arg0 : i32, i32, i32
  }
}

</mosaic_0001>

<llo_original>
// kernel: tpu_custom_call.1
$region0: #{tpu_custom_call.1}
  #allocation0 [shape = 'u32[]', space=smem, size = 0x4, offset = 0x4, fixed_abs, tag = 'smem constant byte address 0x4 - core index']
  #allocation1 [shape = 'u32[144,128]{1,0:T(1,128)}', space=vmem, size = 0x12000, scoped, tag = 'internal scratch']
  %s0 = inlined_call_operand.hbm [shape: f32[2,128,256], index: 0, kind: input, shape index: {}]
  %s1 = inlined_call_operand.vmem [shape: f32[1,128], index: 1, kind: input, shape index: {}]
  %s2 = inlined_call_operand.vmem [shape: f32[1,128], index: 2, kind: input, shape index: {}]
  %s3 = inlined_call_operand.hbm [shape: f32[128,384], index: 3, kind: input, shape index: {}]
  %s4 = inlined_call_operand.vmem [shape: f32[1,384], index: 4, kind: input, shape index: {}]
  %s5 = inlined_call_operand.hbm [shape: f32[128,128], index: 5, kind: input, shape index: {}]
  %s6 = inlined_call_operand.vmem [shape: f32[1,128], index: 6, kind: input, shape index: {}]
  %s7 = inlined_call_operand.vmem [shape: f32[1,128], index: 7, kind: input, shape index: {}]
  %s8 = inlined_call_operand.vmem [shape: f32[1,128], index: 8, kind: input, shape index: {}]
  %s9 = inlined_call_operand.hbm [shape: f32[128,128], index: 9, kind: input, shape index: {}]
  %s10 = inlined_call_operand.vmem [shape: f32[1,128], index: 10, kind: input, shape index: {}]
  %s11 = inlined_call_operand.hbm [shape: f32[128,128], index: 11, kind: input, shape index: {}]
  %s12 = inlined_call_operand.vmem [shape: f32[1,128], index: 12, kind: input, shape index: {}]
  %s13 = inlined_call_operand.hbm [shape: f32[2,128,256], index: 13, kind: output, shape index: {}]
  %s14 = sld [smem:[#allocation0]]
  $region82: #{tpu_custom_call.1} parent=0
    _
  %s16 = ssub.s32 1, %s14
  %s17 = scalar_select 0, %s16, %s14
  $region1: #{tpu_custom_call.1} parent=0
    #allocation2 [shape = 'u8[262144]{0}', space=vmem, size = 0x40000, scoped, tag = 'input window, operand 0, single buffered']
    #allocation3 [shape = 's32[1]{0}', space=sflag, size = 0x4, scoped, tag = 'scoped memory for tpu_custom_call.1']
    #allocation4 [shape = 's32[1]{0}', space=sflag, size = 0x4, scoped, tag = 'scoped memory for tpu_custom_call.1']
    #allocation5 [shape = 'u8[196608]{0}', space=vmem, size = 0x30000, scoped, tag = 'input window, operand 3, single buffered']
    #allocation6 [shape = 's32[1]{0}', space=sflag, size = 0x4, scoped, tag = 'scoped memory for tpu_custom_call.1']
    #allocation7 [shape = 'u8[65536]{0}', space=vmem, size = 0x10000, scoped, tag = 'input window, operand 5, single buffered']
    #allocation8 [shape = 'u8[65536]{0}', space=vmem, size = 0x10000, scoped, tag = 'input window, operand 9, single buffered']
    #allocation9 [shape = 's32[1]{0}', space=sflag, size = 0x4, scoped, tag = 'scoped memory for tpu_custom_call.1']
    #allocation10 [shape = 'u8[65536]{0}', space=vmem, size = 0x10000, scoped, tag = 'input window, operand 11, single buffered']
    #allocation11 [shape = 'u8[262144]{0}', space=vmem, size = 0x40000, scoped, tag = 'output window, operand 0, single buffered']
    %18 = vsyncpa [#allocation3], 0
    %19 = vsyncpa [#allocation6], 0
    %20 = vsyncpa [#allocation9], 0
    %21 = vsyncpa [#allocation4], 0
    // Predicated region
    $region2: #{tpu_custom_call.1} parent=1 // pred_check
      _
    $region3: #{tpu_custom_call.1} parent=1 // pred_check_branch
      %23 = sbr.rel (0) target = $region5
    $region4: #{tpu_custom_call.1} parent=1 // pred_region
      %s25 = ssub.s32 8192, 8192
      %26 = vsyncadd [#allocation3], %s25
      %s27 = sshll.u32 [#allocation2], 4
      %s28 = int_to_ptr.vmem [resolvable:$true] %s27
      %33 = dma.hbm_to_vmem [thread:$0]  %s0, 8192, %s28, [#allocation3], 256, 256, 16
    $region5: #{tpu_custom_call.1} parent=1 // pred_fallthru
      _
    // Predicated region
    $region6: #{tpu_custom_call.1} parent=1 // pred_check
      _
    $region7: #{tpu_custom_call.1} parent=1 // pred_check_branch
      %35 = sbr.rel (0) target = $region9
    $region8: #{tpu_custom_call.1} parent=1 // pred_region
      _
    $region9: #{tpu_custom_call.1} parent=1 // pred_fallthru
      _
    // Predicated region
    $region10: #{tpu_custom_call.1} parent=1 // pred_check
      _
    $region11: #{tpu_custom_call.1} parent=1 // pred_check_branch
      %37 = sbr.rel (0) target = $region13
    $region12: #{tpu_custom_call.1} parent=1 // pred_region
      _
    $region13: #{tpu_custom_call.1} parent=1 // pred_fallthru
      _
    // Predicated region
    $region14: #{tpu_custom_call.1} parent=1 // pred_check
      _
    $region15: #{tpu_custom_call.1} parent=1 // pred_check_branch
      %39 = sbr.rel (0) target = $region17
    $region16: #{tpu_custom_call.1} parent=1 // pred_region
      %s41 = ssub.s32 6144, 6144
      %42 = vsyncadd [#allocation6], %s41
      %s43 = sshll.u32 [#allocation5], 4
      %s44 = int_to_ptr.vmem [resolvable:$true] %s43
      %49 = dma.hbm_to_vmem [thread:$0]  %s3, 6144, %s44, [#allocation6], 384, 384, 24
    $region17: #{tpu_custom_call.1} parent=1 // pred_fallthru
      _
    // Predicated region
    $region18: #{tpu_custom_call.1} parent=1 // pred_check
      _
    $region19: #{tpu_custom_call.1} parent=1 // pred_check_branch
      %51 = sbr.rel (0) target = $region21
    $region20: #{tpu_custom_call.1} parent=1 // pred_region
      _
    $region21: #{tpu_custom_call.1} parent=1 // pred_fallthru
      _
    // Predicated region
    $region22: #{tpu_custom_call.1} parent=1 // pred_check
      _
    $region23: #{tpu_custom_call.1} parent=1 // pred_check_branch
      %53 = sbr.rel (0) target = $region25
    $region24: #{tpu_custom_call.1} parent=1 // pred_region
      %s55 = ssub.s32 2048, 2048
      %56 = vsyncadd [#allocation6], %s55
      %s57 = sshll.u32 [#allocation7], 4
      %s58 = int_to_ptr.vmem [resolvable:$true] %s57
      %63 = dma.hbm_to_vmem [thread:$0]  %s5, 2048, %s58, [#allocation6], 128, 128, 8
    $region25: #{tpu_custom_call.1} parent=1 // pred_fallthru
      _
    // Predicated region
    $region26: #{tpu_custom_call.1} parent=1 // pred_check
      _
    $region27: #{tpu_custom_call.1} parent=1 // pred_check_branch
      %65 = sbr.rel (0) target = $region29
    $region28: #{tpu_custom_call.1} parent=1 // pred_region
      _
    $region29: #{tpu_custom_call.1} parent=1 // pred_fallthru
      _
    // Predicated region
    $region30: #{tpu_custom_call.1} parent=1 // pred_check
      _
    $region31: #{tpu_custom_call.1} parent=1 // pred_check_branch
      %67 = sbr.rel (0) target = $region33
    $region32: #{tpu_custom_call.1} parent=1 // pred_region
      _
    $region33: #{tpu_custom_call.1} parent=1 // pred_fallthru
      _
    // Predicated region
    $region34: #{tpu_custom_call.1} parent=1 // pred_check
      _
    $region35: #{tpu_custom_call.1} parent=1 // pred_check_branch
      %69 = sbr.rel (0) target = $region37
    $region36: #{tpu_custom_call.1} parent=1 // pred_region
      _
    $region37: #{tpu_custom_call.1} parent=1 // pred_fallthru
      _
    // Predicated region
    $region38: #{tpu_custom_call.1} parent=1 // pred_check
      _
    $region39: #{tpu_custom_call.1} parent=1 // pred_check_branch
      %71 = sbr.rel (0) target = $region41
    $region40: #{tpu_custom_call.1} parent=1 // pred_region
      %s73 = ssub.s32 2048, 2048
      %74 = vsyncadd [#allocation9], %s73
      %s75 = sshll.u32 [#allocation8], 4
      %s76 = int_to_ptr.vmem [resolvable:$true] %s75
      %81 = dma.hbm_to_vmem [thread:$0]  %s9, 2048, %s76, [#allocation9], 128, 128, 8
    $region41: #{tpu_custom_call.1} parent=1 // pred_fallthru
      _
    // Predicated region
    $region42: #{tpu_custom_call.1} parent=1 // pred_check
      _
    $region43: #{tpu_custom_call.1} parent=1 // pred_check_branch
      %83 = sbr.rel (0) target = $region45
    $region44: #{tpu_custom_call.1} parent=1 // pred_region
      _
    $region45: #{tpu_custom_call.1} parent=1 // pred_fallthru
      _
    // Predicated region
    $region46: #{tpu_custom_call.1} parent=1 // pred_check
      _
    $region47: #{tpu_custom_call.1} parent=1 // pred_check_branch
      %85 = sbr.rel (0) target = $region49
    $region48: #{tpu_custom_call.1} parent=1 // pred_region
      %s87 = ssub.s32 2048, 2048
      %88 = vsyncadd [#allocation9], %s87
      %s89 = sshll.u32 [#allocation10], 4
      %s90 = int_to_ptr.vmem [resolvable:$true] %s89
      %95 = dma.hbm_to_vmem [thread:$0]  %s11, 2048, %s90, [#allocation9], 128, 128, 8
    $region49: #{tpu_custom_call.1} parent=1 // pred_fallthru
      _
    // Predicated region
    $region50: #{tpu_custom_call.1} parent=1 // pred_check
      _
    $region51: #{tpu_custom_call.1} parent=1 // pred_check_branch
      %97 = sbr.rel (0) target = $region53
    $region52: #{tpu_custom_call.1} parent=1 // pred_region
      _
    $region53: #{tpu_custom_call.1} parent=1 // pred_fallthru
      _
    // Predicated region
    $region54: #{tpu_custom_call.1} parent=1 // pred_check
      _
    $region55: #{tpu_custom_call.1} parent=1 // pred_check_branch
      %99 = sbr.rel (0) target = $region57
    $region56: #{tpu_custom_call.1} parent=1 // pred_region
      %100 = dma.done [#allocation3], 8192
    $region57: #{tpu_custom_call.1} parent=1 // pred_fallthru
      _
    // Predicated region
    $region58: #{tpu_custom_call.1} parent=1 // pred_check
      _
    $region59: #{tpu_custom_call.1} parent=1 // pred_check_branch
      %102 = sbr.rel (0) target = $region61
    $region60: #{tpu_custom_call.1} parent=1 // pred_region
      %103 = dma.done [#allocation6], 6144
    $region61: #{tpu_custom_call.1} parent=1 // pred_fallthru
      _
    // Predicated region
    $region62: #{tpu_custom_call.1} parent=1 // pred_check
      _
    $region63: #{tpu_custom_call.1} parent=1 // pred_check_branch
      %105 = sbr.rel (0) target = $region65
    $region64: #{tpu_custom_call.1} parent=1 // pred_region
      %106 = dma.done [#allocation6], 2048
    $region65: #{tpu_custom_call.1} parent=1 // pred_fallthru
      _
    // Predicated region
    $region66: #{tpu_custom_call.1} parent=1 // pred_check
      _
    $region67: #{tpu_custom_call.1} parent=1 // pred_check_branch
      %108 = sbr.rel (0) target = $region69
    $region68: #{tpu_custom_call.1} parent=1 // pred_region
      %109 = dma.done [#allocation9], 2048
    $region69: #{tpu_custom_call.1} parent=1 // pred_fallthru
      _
    // Predicated region
    $region70: #{tpu_custom_call.1} parent=1 // pred_check
      _
    $region71: #{tpu_custom_call.1} parent=1 // pred_check_branch
      %111 = sbr.rel (0) target = $region73
    $region72: #{tpu_custom_call.1} parent=1 // pred_region
      %112 = dma.done [#allocation9], 2048
    $region73: #{tpu_custom_call.1} parent=1 // pred_fallthru
      _
    %v113 = vld [vmem:[#allocation2] sm:$0xff]
    %v114 = vld [vmem:[#allocation2 + $0x8] sm:$0xff]
    %v115 = vld [vmem:[#allocation2 + $0x10] sm:$0xff]
    %v116 = vld [vmem:[#allocation2 + $0x18] sm:$0xff]
    %v117 = vld [vmem:[#allocation2 + $0x20] sm:$0xff]
    %v118 = vld [vmem:[#allocation2 + $0x28] sm:$0xff]
    %v119 = vld [vmem:[#allocation2 + $0x30] sm:$0xff]
    %v120 = vld [vmem:[#allocation2 + $0x38] sm:$0xff]
    %v121 = vld [vmem:[#allocation2 + $0x40] sm:$0xff]
    %v122 = vld [vmem:[#allocation2 + $0x48] sm:$0xff]
    %v123 = vld [vmem:[#allocation2 + $0x50] sm:$0xff]
    %v124 = vld [vmem:[#allocation2 + $0x58] sm:$0xff]
    %v125 = vld [vmem:[#allocation2 + $0x60] sm:$0xff]
    %v126 = vld [vmem:[#allocation2 + $0x68] sm:$0xff]
    %v127 = vld [vmem:[#allocation2 + $0x70] sm:$0xff]
    %v128 = vld [vmem:[#allocation2 + $0x78] sm:$0xff]
    %v129 = vld [vmem:[#allocation2 + $0x80] sm:$0xff]
    %v130 = vld [vmem:[#allocation2 + $0x88] sm:$0xff]
    %v131 = vld [vmem:[#allocation2 + $0x90] sm:$0xff]
    %v132 = vld [vmem:[#allocation2 + $0x98] sm:$0xff]
    %v133 = vld [vmem:[#allocation2 + $0xa0] sm:$0xff]
    %v134 = vld [vmem:[#allocation2 + $0xa8] sm:$0xff]
    %v135 = vld [vmem:[#allocation2 + $0xb0] sm:$0xff]
    %v136 = vld [vmem:[#allocation2 + $0xb8] sm:$0xff]
    %v137 = vld [vmem:[#allocation2 + $0xc0] sm:$0xff]
    %v138 = vld [vmem:[#allocation2 + $0xc8] sm:$0xff]
    %v139 = vld [vmem:[#allocation2 + $0xd0] sm:$0xff]
    %v140 = vld [vmem:[#allocation2 + $0xd8] sm:$0xff]
    %v141 = vld [vmem:[#allocation2 + $0xe0] sm:$0xff]
    %v142 = vld [vmem:[#allocation2 + $0xe8] sm:$0xff]
    %v143 = vld [vmem:[#allocation2 + $0xf0] sm:$0xff]
    %v144 = vld [vmem:[#allocation2 + $0xf8] sm:$0xff]
    %145 = vxpose.xlu0.b32.start [1/16] %v113, 128
    %146 = vxpose.xlu0.b32.cont [2/16] %v115, 128
    %147 = vxpose.xlu0.b32.cont [3/16] %v117, 128
    %148 = vxpose.xlu0.b32.cont [4/16] %v119, 128
    %149 = vxpose.xlu0.b32.cont [5/16] %v121, 128
    %150 = vxpose.xlu0.b32.cont [6/16] %v123, 128
    %151 = vxpose.xlu0.b32.cont [7/16] %v125, 128
    %152 = vxpose.xlu0.b32.cont [8/16] %v127, 128
    %153 = vxpose.xlu0.b32.cont [9/16] %v129, 128
    %154 = vxpose.xlu0.b32.cont [10/16] %v131, 128
    %155 = vxpose.xlu0.b32.cont [11/16] %v133, 128
    %156 = vxpose.xlu0.b32.cont [12/16] %v135, 128
    %157 = vxpose.xlu0.b32.cont [13/16] %v137, 128
    %158 = vxpose.xlu0.b32.cont [14/16] %v139, 128
    %159 = vxpose.xlu0.b32.cont [15/16] %v141, 128
    %160 = vxpose.xlu0.b32.end [16/16] %v143, 128
    %v161 = vpop.trf.xlu0
    %v162 = vpop.trf.xlu0
    %v163 = vpop.trf.xlu0
    %v164 = vpop.trf.xlu0
    %v165 = vpop.trf.xlu0
    %v166 = vpop.trf.xlu0
    %v167 = vpop.trf.xlu0
    %v168 = vpop.trf.xlu0
    %v169 = vpop.trf.xlu0
    %v170 = vpop.trf.xlu0
    %v171 = vpop.trf.xlu0
    %v172 = vpop.trf.xlu0
    %v173 = vpop.trf.xlu0
    %v174 = vpop.trf.xlu0
    %v175 = vpop.trf.xlu0
    %v176 = vpop.trf.xlu0
    %177 = vxpose.xlu0.b32.start [1/16] %v114, 128
    %178 = vxpose.xlu0.b32.cont [2/16] %v116, 128
    %179 = vxpose.xlu0.b32.cont [3/16] %v118, 128
    %180 = vxpose.xlu0.b32.cont [4/16] %v120, 128
    %181 = vxpose.xlu0.b32.cont [5/16] %v122, 128
    %182 = vxpose.xlu0.b32.cont [6/16] %v124, 128
    %183 = vxpose.xlu0.b32.cont [7/16] %v126, 128
    %184 = vxpose.xlu0.b32.cont [8/16] %v128, 128
    %185 = vxpose.xlu0.b32.cont [9/16] %v130, 128
    %186 = vxpose.xlu0.b32.cont [10/16] %v132, 128
    %187 = vxpose.xlu0.b32.cont [11/16] %v134, 128
    %188 = vxpose.xlu0.b32.cont [12/16] %v136, 128
    %189 = vxpose.xlu0.b32.cont [13/16] %v138, 128
    %190 = vxpose.xlu0.b32.cont [14/16] %v140, 128
    %191 = vxpose.xlu0.b32.cont [15/16] %v142, 128
    %192 = vxpose.xlu0.b32.end [16/16] %v144, 128
    %v193 = vpop.trf.xlu0
    %v194 = vpop.trf.xlu0
    %v195 = vpop.trf.xlu0
    %v196 = vpop.trf.xlu0
    %v197 = vpop.trf.xlu0
    %v198 = vpop.trf.xlu0
    %v199 = vpop.trf.xlu0
    %v200 = vpop.trf.xlu0
    %v201 = vpop.trf.xlu0
    %v202 = vpop.trf.xlu0
    %v203 = vpop.trf.xlu0
    %v204 = vpop.trf.xlu0
    %v205 = vpop.trf.xlu0
    %v206 = vpop.trf.xlu0
    %v207 = vpop.trf.xlu0
    %v208 = vpop.trf.xlu0
    %s209 = scalar_lea.vmem [#allocation2], 256
    %v210 = vld [vmem:[%s209] sm:$0xff]
    %v211 = vld [vmem:[%s209 + $0x8] sm:$0xff]
    %v212 = vld [vmem:[%s209 + $0x10] sm:$0xff]
    %v213 = vld [vmem:[%s209 + $0x18] sm:$0xff]
    %v214 = vld [vmem:[%s209 + $0x20] sm:$0xff]
    %v215 = vld [vmem:[%s209 + $0x28] sm:$0xff]
    %v216 = vld [vmem:[%s209 + $0x30] sm:$0xff]
    %v217 = vld [vmem:[%s209 + $0x38] sm:$0xff]
    %v218 = vld [vmem:[%s209 + $0x40] sm:$0xff]
    %v219 = vld [vmem:[%s209 + $0x48] sm:$0xff]
    %v220 = vld [vmem:[%s209 + $0x50] sm:$0xff]
    %v221 = vld [vmem:[%s209 + $0x58] sm:$0xff]
    %v222 = vld [vmem:[%s209 + $0x60] sm:$0xff]
    %v223 = vld [vmem:[%s209 + $0x68] sm:$0xff]
    %v224 = vld [vmem:[%s209 + $0x70] sm:$0xff]
    %v225 = vld [vmem:[%s209 + $0x78] sm:$0xff]
    %v226 = vld [vmem:[%s209 + $0x80] sm:$0xff]
    %v227 = vld [vmem:[%s209 + $0x88] sm:$0xff]
    %v228 = vld [vmem:[%s209 + $0x90] sm:$0xff]
    %v229 = vld [vmem:[%s209 + $0x98] sm:$0xff]
    %v230 = vld [vmem:[%s209 + $0xa0] sm:$0xff]
    %v231 = vld [vmem:[%s209 + $0xa8] sm:$0xff]
    %v232 = vld [vmem:[%s209 + $0xb0] sm:$0xff]
    %v233 = vld [vmem:[%s209 + $0xb8] sm:$0xff]
    %v234 = vld [vmem:[%s209 + $0xc0] sm:$0xff]
    %v235 = vld [vmem:[%s209 + $0xc8] sm:$0xff]
    %v236 = vld [vmem:[%s209 + $0xd0] sm:$0xff]
    %v237 = vld [vmem:[%s209 + $0xd8] sm:$0xff]
    %v238 = vld [vmem:[%s209 + $0xe0] sm:$0xff]
    %v239 = vld [vmem:[%s209 + $0xe8] sm:$0xff]
    %v240 = vld [vmem:[%s209 + $0xf0] sm:$0xff]
    %v241 = vld [vmem:[%s209 + $0xf8] sm:$0xff]
    %242 = vxpose.xlu0.b32.start [1/16] %v210, 128
    %243 = vxpose.xlu0.b32.cont [2/16] %v212, 128
    %244 = vxpose.xlu0.b32.cont [3/16] %v214, 128
    %245 = vxpose.xlu0.b32.cont [4/16] %v216, 128
    %246 = vxpose.xlu0.b32.cont [5/16] %v218, 128
    %247 = vxpose.xlu0.b32.cont [6/16] %v220, 128
    %248 = vxpose.xlu0.b32.cont [7/16] %v222, 128
    %249 = vxpose.xlu0.b32.cont [8/16] %v224, 128
    %250 = vxpose.xlu0.b32.cont [9/16] %v226, 128
    %251 = vxpose.xlu0.b32.cont [10/16] %v228, 128
    %252 = vxpose.xlu0.b32.cont [11/16] %v230, 128
    %253 = vxpose.xlu0.b32.cont [12/16] %v232, 128
    %254 = vxpose.xlu0.b32.cont [13/16] %v234, 128
    %255 = vxpose.xlu0.b32.cont [14/16] %v236, 128
    %256 = vxpose.xlu0.b32.cont [15/16] %v238, 128
    %257 = vxpose.xlu0.b32.end [16/16] %v240, 128
    %v258 = vpop.trf.xlu0
    %v259 = vpop.trf.xlu0
    %v260 = vpop.trf.xlu0
    %v261 = vpop.trf.xlu0
    %v262 = vpop.trf.xlu0
    %v263 = vpop.trf.xlu0
    %v264 = vpop.trf.xlu0
    %v265 = vpop.trf.xlu0
    %v266 = vpop.trf.xlu0
    %v267 = vpop.trf.xlu0
    %v268 = vpop.trf.xlu0
    %v269 = vpop.trf.xlu0
    %v270 = vpop.trf.xlu0
    %v271 = vpop.trf.xlu0
    %v272 = vpop.trf.xlu0
    %v273 = vpop.trf.xlu0
    %274 = vxpose.xlu0.b32.start [1/16] %v211, 128
    %275 = vxpose.xlu0.b32.cont [2/16] %v213, 128
    %276 = vxpose.xlu0.b32.cont [3/16] %v215, 128
    %277 = vxpose.xlu0.b32.cont [4/16] %v217, 128
    %278 = vxpose.xlu0.b32.cont [5/16] %v219, 128
    %279 = vxpose.xlu0.b32.cont [6/16] %v221, 128
    %280 = vxpose.xlu0.b32.cont [7/16] %v223, 128
    %281 = vxpose.xlu0.b32.cont [8/16] %v225, 128
    %282 = vxpose.xlu0.b32.cont [9/16] %v227, 128
    %283 = vxpose.xlu0.b32.cont [10/16] %v229, 128
    %284 = vxpose.xlu0.b32.cont [11/16] %v231, 128
    %285 = vxpose.xlu0.b32.cont [12/16] %v233, 128
    %286 = vxpose.xlu0.b32.cont [13/16] %v235, 128
    %287 = vxpose.xlu0.b32.cont [14/16] %v237, 128
    %288 = vxpose.xlu0.b32.cont [15/16] %v239, 128
    %289 = vxpose.xlu0.b32.end [16/16] %v241, 128
    %v290 = vpop.trf.xlu0
    %v291 = vpop.trf.xlu0
    %v292 = vpop.trf.xlu0
    %v293 = vpop.trf.xlu0
    %v294 = vpop.trf.xlu0
    %v295 = vpop.trf.xlu0
    %v296 = vpop.trf.xlu0
    %v297 = vpop.trf.xlu0
    %v298 = vpop.trf.xlu0
    %v299 = vpop.trf.xlu0
    %v300 = vpop.trf.xlu0
    %v301 = vpop.trf.xlu0
    %v302 = vpop.trf.xlu0
    %v303 = vpop.trf.xlu0
    %v304 = vpop.trf.xlu0
    %v305 = vpop.trf.xlu0
    %v306 = vld [vmem:[%s1] sm:$0x1]
    %v307 = vld [vmem:[%s2] sm:$0x1]
    %308 = vadd.xlane.f32.xlu0 %v161
    %v309 = vpop.xlane.xlu0 %308
    %310 = vadd.xlane.f32.xlu0 %v162
    %v311 = vpop.xlane.xlu0 %310
    %312 = vadd.xlane.f32.xlu0 %v163
    %v313 = vpop.xlane.xlu0 %312
    %314 = vadd.xlane.f32.xlu0 %v164
    %v315 = vpop.xlane.xlu0 %314
    %316 = vadd.xlane.f32.xlu0 %v165
    %v317 = vpop.xlane.xlu0 %316
    %318 = vadd.xlane.f32.xlu0 %v166
    %v319 = vpop.xlane.xlu0 %318
    %320 = vadd.xlane.f32.xlu0 %v167
    %v321 = vpop.xlane.xlu0 %320
    %322 = vadd.xlane.f32.xlu0 %v168
    %v323 = vpop.xlane.xlu0 %322
    %324 = vadd.xlane.f32.xlu0 %v169
    %v325 = vpop.xlane.xlu0 %324
    %326 = vadd.xlane.f32.xlu0 %v170
    %v327 = vpop.xlane.xlu0 %326
    %328 = vadd.xlane.f32.xlu0 %v171
    %v329 = vpop.xlane.xlu0 %328
    %330 = vadd.xlane.f32.xlu0 %v172
    %v331 = vpop.xlane.xlu0 %330
    %332 = vadd.xlane.f32.xlu0 %v173
    %v333 = vpop.xlane.xlu0 %332
    %334 = vadd.xlane.f32.xlu0 %v174
    %v335 = vpop.xlane.xlu0 %334
    %336 = vadd.xlane.f32.xlu0 %v175
    %v337 = vpop.xlane.xlu0 %336
    %338 = vadd.xlane.f32.xlu0 %v176
    %v339 = vpop.xlane.xlu0 %338
    %340 = vadd.xlane.f32.xlu0 %v193
    %v341 = vpop.xlane.xlu0 %340
    %342 = vadd.xlane.f32.xlu0 %v194
    %v343 = vpop.xlane.xlu0 %342
    %344 = vadd.xlane.f32.xlu0 %v195
    %v345 = vpop.xlane.xlu0 %344
    %346 = vadd.xlane.f32.xlu0 %v196
    %v347 = vpop.xlane.xlu0 %346
    %348 = vadd.xlane.f32.xlu0 %v197
    %v349 = vpop.xlane.xlu0 %348
    %350 = vadd.xlane.f32.xlu0 %v198
    %v351 = vpop.xlane.xlu0 %350
    %352 = vadd.xlane.f32.xlu0 %v199
    %v353 = vpop.xlane.xlu0 %352
    %354 = vadd.xlane.f32.xlu0 %v200
    %v355 = vpop.xlane.xlu0 %354
    %356 = vadd.xlane.f32.xlu0 %v201
    %v357 = vpop.xlane.xlu0 %356
    %358 = vadd.xlane.f32.xlu0 %v202
    %v359 = vpop.xlane.xlu0 %358
    %360 = vadd.xlane.f32.xlu0 %v203
    %v361 = vpop.xlane.xlu0 %360
    %362 = vadd.xlane.f32.xlu0 %v204
    %v363 = vpop.xlane.xlu0 %362
    %364 = vadd.xlane.f32.xlu0 %v205
    %v365 = vpop.xlane.xlu0 %364
    %366 = vadd.xlane.f32.xlu0 %v206
    %v367 = vpop.xlane.xlu0 %366
    %368 = vadd.xlane.f32.xlu0 %v207
    %v369 = vpop.xlane.xlu0 %368
    %370 = vadd.xlane.f32.xlu0 %v208
    %v371 = vpop.xlane.xlu0 %370
    %372 = vadd.xlane.f32.xlu0 %v258
    %v373 = vpop.xlane.xlu0 %372
    %374 = vadd.xlane.f32.xlu0 %v259
    %v375 = vpop.xlane.xlu0 %374
    %376 = vadd.xlane.f32.xlu0 %v260
    %v377 = vpop.xlane.xlu0 %376
    %378 = vadd.xlane.f32.xlu0 %v261
    %v379 = vpop.xlane.xlu0 %378
    %380 = vadd.xlane.f32.xlu0 %v262
    %v381 = vpop.xlane.xlu0 %380
    %382 = vadd.xlane.f32.xlu0 %v263
    %v383 = vpop.xlane.xlu0 %382
    %384 = vadd.xlane.f32.xlu0 %v264
    %v385 = vpop.xlane.xlu0 %384
    %386 = vadd.xlane.f32.xlu0 %v265
    %v387 = vpop.xlane.xlu0 %386
    %388 = vadd.xlane.f32.xlu0 %v266
    %v389 = vpop.xlane.xlu0 %388
    %390 = vadd.xlane.f32.xlu0 %v267
    %v391 = vpop.xlane.xlu0 %390
    %392 = vadd.xlane.f32.xlu0 %v268
    %v393 = vpop.xlane.xlu0 %392
    %394 = vadd.xlane.f32.xlu0 %v269
    %v395 = vpop.xlane.xlu0 %394
    %396 = vadd.xlane.f32.xlu0 %v270
    %v397 = vpop.xlane.xlu0 %396
    %398 = vadd.xlane.f32.xlu0 %v271
    %v399 = vpop.xlane.xlu0 %398
    %400 = vadd.xlane.f32.xlu0 %v272
    %v401 = vpop.xlane.xlu0 %400
    %402 = vadd.xlane.f32.xlu0 %v273
    %v403 = vpop.xlane.xlu0 %402
    %404 = vadd.xlane.f32.xlu0 %v290
    %v405 = vpop.xlane.xlu0 %404
    %406 = vadd.xlane.f32.xlu0 %v291
    %v407 = vpop.xlane.xlu0 %406
    %408 = vadd.xlane.f32.xlu0 %v292
    %v409 = vpop.xlane.xlu0 %408
    %410 = vadd.xlane.f32.xlu0 %v293
    %v411 = vpop.xlane.xlu0 %410
    %412 = vadd.xlane.f32.xlu0 %v294
    %v413 = vpop.xlane.xlu0 %412
    %414 = vadd.xlane.f32.xlu0 %v295
    %v415 = vpop.xlane.xlu0 %414
    %416 = vadd.xlane.f32.xlu0 %v296
    %v417 = vpop.xlane.xlu0 %416
    %418 = vadd.xlane.f32.xlu0 %v297
    %v419 = vpop.xlane.xlu0 %418
    %420 = vadd.xlane.f32.xlu0 %v298
    %v421 = vpop.xlane.xlu0 %420
    %422 = vadd.xlane.f32.xlu0 %v299
    %v423 = vpop.xlane.xlu0 %422
    %424 = vadd.xlane.f32.xlu0 %v300
    %v425 = vpop.xlane.xlu0 %424
    %426 = vadd.xlane.f32.xlu0 %v301
    %v427 = vpop.xlane.xlu0 %426
    %428 = vadd.xlane.f32.xlu0 %v302
    %v429 = vpop.xlane.xlu0 %428
    %430 = vadd.xlane.f32.xlu0 %v303
    %v431 = vpop.xlane.xlu0 %430
    %432 = vadd.xlane.f32.xlu0 %v304
    %v433 = vpop.xlane.xlu0 %432
    %434 = vadd.xlane.f32.xlu0 %v305
    %v435 = vpop.xlane.xlu0 %434
    %v436 = vrcp.pop 128.0
    %v437 = vmul.f32 %v309, %v436
    %v438 = vmul.f32 %v311, %v436
    %v439 = vmul.f32 %v313, %v436
    %v440 = vmul.f32 %v315, %v436
    %v441 = vmul.f32 %v317, %v436
    %v442 = vmul.f32 %v319, %v436
    %v443 = vmul.f32 %v321, %v436
    %v444 = vmul.f32 %v323, %v436
    %v445 = vmul.f32 %v325, %v436
    %v446 = vmul.f32 %v327, %v436
    %v447 = vmul.f32 %v329, %v436
    %v448 = vmul.f32 %v331, %v436
    %v449 = vmul.f32 %v333, %v436
    %v450 = vmul.f32 %v335, %v436
    %v451 = vmul.f32 %v337, %v436
    %v452 = vmul.f32 %v339, %v436
    %v453 = vmul.f32 %v341, %v436
    %v454 = vmul.f32 %v343, %v436
    %v455 = vmul.f32 %v345, %v436
    %v456 = vmul.f32 %v347, %v436
    %v457 = vmul.f32 %v349, %v436
    %v458 = vmul.f32 %v351, %v436
    %v459 = vmul.f32 %v353, %v436
    %v460 = vmul.f32 %v355, %v436
    %v461 = vmul.f32 %v357, %v436
    %v462 = vmul.f32 %v359, %v436
    %v463 = vmul.f32 %v361, %v436
    %v464 = vmul.f32 %v363, %v436
    %v465 = vmul.f32 %v365, %v436
    %v466 = vmul.f32 %v367, %v436
    %v467 = vmul.f32 %v369, %v436
    %v468 = vmul.f32 %v371, %v436
    %v469 = vmul.f32 %v373, %v436
    %v470 = vmul.f32 %v375, %v436
    %v471 = vmul.f32 %v377, %v436
    %v472 = vmul.f32 %v379, %v436
    %v473 = vmul.f32 %v381, %v436
    %v474 = vmul.f32 %v383, %v436
    %v475 = vmul.f32 %v385, %v436
    %v476 = vmul.f32 %v387, %v436
    %v477 = vmul.f32 %v389, %v436
    %v478 = vmul.f32 %v391, %v436
    %v479 = vmul.f32 %v393, %v436
    %v480 = vmul.f32 %v395, %v436
    %v481 = vmul.f32 %v397, %v436
    %v482 = vmul.f32 %v399, %v436
    %v483 = vmul.f32 %v401, %v436
    %v484 = vmul.f32 %v403, %v436
    %v485 = vmul.f32 %v405, %v436
    %v486 = vmul.f32 %v407, %v436
    %v487 = vmul.f32 %v409, %v436
    %v488 = vmul.f32 %v411, %v436
    %v489 = vmul.f32 %v413, %v436
    %v490 = vmul.f32 %v415, %v436
    %v491 = vmul.f32 %v417, %v436
    %v492 = vmul.f32 %v419, %v436
    %v493 = vmul.f32 %v421, %v436
    %v494 = vmul.f32 %v423, %v436
    %v495 = vmul.f32 %v425, %v436
    %v496 = vmul.f32 %v427, %v436
    %v497 = vmul.f32 %v429, %v436
    %v498 = vmul.f32 %v431, %v436
    %v499 = vmul.f32 %v433, %v436
    %v500 = vmul.f32 %v435, %v436
    %v501 = vsub.f32 %v161, %v437
    %v502 = vsub.f32 %v162, %v438
    %v503 = vsub.f32 %v163, %v439
    %v504 = vsub.f32 %v164, %v440
    %v505 = vsub.f32 %v165, %v441
    %v506 = vsub.f32 %v166, %v442
    %v507 = vsub.f32 %v167, %v443
    %v508 = vsub.f32 %v168, %v444
    %v509 = vsub.f32 %v169, %v445
    %v510 = vsub.f32 %v170, %v446
    %v511 = vsub.f32 %v171, %v447
    %v512 = vsub.f32 %v172, %v448
    %v513 = vsub.f32 %v173, %v449
    %v514 = vsub.f32 %v174, %v450
    %v515 = vsub.f32 %v175, %v451
    %v516 = vsub.f32 %v176, %v452
    %v517 = vsub.f32 %v193, %v453
    %v518 = vsub.f32 %v194, %v454
    %v519 = vsub.f32 %v195, %v455
    %v520 = vsub.f32 %v196, %v456
    %v521 = vsub.f32 %v197, %v457
    %v522 = vsub.f32 %v198, %v458
    %v523 = vsub.f32 %v199, %v459
    %v524 = vsub.f32 %v200, %v460
    %v525 = vsub.f32 %v201, %v461
    %v526 = vsub.f32 %v202, %v462
    %v527 = vsub.f32 %v203, %v463
    %v528 = vsub.f32 %v204, %v464
    %v529 = vsub.f32 %v205, %v465
    %v530 = vsub.f32 %v206, %v466
    %v531 = vsub.f32 %v207, %v467
    %v532 = vsub.f32 %v208, %v468
    %v533 = vsub.f32 %v258, %v469
    %v534 = vsub.f32 %v259, %v470
    %v535 = vsub.f32 %v260, %v471
    %v536 = vsub.f32 %v261, %v472
    %v537 = vsub.f32 %v262, %v473
    %v538 = vsub.f32 %v263, %v474
    %v539 = vsub.f32 %v264, %v475
    %v540 = vsub.f32 %v265, %v476
    %v541 = vsub.f32 %v266, %v477
    %v542 = vsub.f32 %v267, %v478
    %v543 = vsub.f32 %v268, %v479
    %v544 = vsub.f32 %v269, %v480
    %v545 = vsub.f32 %v270, %v481
    %v546 = vsub.f32 %v271, %v482
    %v547 = vsub.f32 %v272, %v483
    %v548 = vsub.f32 %v273, %v484
    %v549 = vsub.f32 %v290, %v485
    %v550 = vsub.f32 %v291, %v486
    %v551 = vsub.f32 %v292, %v487
    %v552 = vsub.f32 %v293, %v488
    %v553 = vsub.f32 %v294, %v489
    %v554 = vsub.f32 %v295, %v490
    %v555 = vsub.f32 %v296, %v491
    %v556 = vsub.f32 %v297, %v492
    %v557 = vsub.f32 %v298, %v493
    %v558 = vsub.f32 %v299, %v494
    %v559 = vsub.f32 %v300, %v495
    %v560 = vsub.f32 %v301, %v496
    %v561 = vsub.f32 %v302, %v497
    %v562 = vsub.f32 %v303, %v498
    %v563 = vsub.f32 %v304, %v499
    %v564 = vsub.f32 %v305, %v500
    %v565 = vmul.f32 %v501, %v501
    %v566 = vmul.f32 %v502, %v502
    %v567 = vmul.f32 %v503, %v503
    %v568 = vmul.f32 %v504, %v504
    %v569 = vmul.f32 %v505, %v505
    %v570 = vmul.f32 %v506, %v506
    %v571 = vmul.f32 %v507, %v507
    %v572 = vmul.f32 %v508, %v508
    %v573 = vmul.f32 %v509, %v509
    %v574 = vmul.f32 %v510, %v510
    %v575 = vmul.f32 %v511, %v511
    %v576 = vmul.f32 %v512, %v512
    %v577 = vmul.f32 %v513, %v513
    %v578 = vmul.f32 %v514, %v514
    %v579 = vmul.f32 %v515, %v515
    %v580 = vmul.f32 %v516, %v516
    %v581 = vmul.f32 %v517, %v517
    %v582 = vmul.f32 %v518, %v518
    %v583 = vmul.f32 %v519, %v519
    %v584 = vmul.f32 %v520, %v520
    %v585 = vmul.f32 %v521, %v521
    %v586 = vmul.f32 %v522, %v522
    %v587 = vmul.f32 %v523, %v523
    %v588 = vmul.f32 %v524, %v524
    %v589 = vmul.f32 %v525, %v525
    %v590 = vmul.f32 %v526, %v526
    %v591 = vmul.f32 %v527, %v527
    %v592 = vmul.f32 %v528, %v528
    %v593 = vmul.f32 %v529, %v529
    %v594 = vmul.f32 %v530, %v530
    %v595 = vmul.f32 %v531, %v531
    %v596 = vmul.f32 %v532, %v532
    %v597 = vmul.f32 %v533, %v533
    %v598 = vmul.f32 %v534, %v534
    %v599 = vmul.f32 %v535, %v535
    %v600 = vmul.f32 %v536, %v536
    %v601 = vmul.f32 %v537, %v537
    %v602 = vmul.f32 %v538, %v538
    %v603 = vmul.f32 %v539, %v539
    %v604 = vmul.f32 %v540, %v540
    %v605 = vmul.f32 %v541, %v541
    %v606 = vmul.f32 %v542, %v542
    %v607 = vmul.f32 %v543, %v543
    %v608 = vmul.f32 %v544, %v544
    %v609 = vmul.f32 %v545, %v545
    %v610 = vmul.f32 %v546, %v546
    %v611 = vmul.f32 %v547, %v547
    %v612 = vmul.f32 %v548, %v548
    %v613 = vmul.f32 %v549, %v549
    %v614 = vmul.f32 %v550, %v550
    %v615 = vmul.f32 %v551, %v551
    %v616 = vmul.f32 %v552, %v552
    %v617 = vmul.f32 %v553, %v553
    %v618 = vmul.f32 %v554, %v554
    %v619 = vmul.f32 %v555, %v555
    %v620 = vmul.f32 %v556, %v556
    %v621 = vmul.f32 %v557, %v557
    %v622 = vmul.f32 %v558, %v558
    %v623 = vmul.f32 %v559, %v559
    %v624 = vmul.f32 %v560, %v560
    %v625 = vmul.f32 %v561, %v561
    %v626 = vmul.f32 %v562, %v562
    %v627 = vmul.f32 %v563, %v563
    %v628 = vmul.f32 %v564, %v564
    %629 = vadd.xlane.f32.xlu0 %v565
    %v630 = vpop.xlane.xlu0 %629
    %631 = vadd.xlane.f32.xlu0 %v566
    %v632 = vpop.xlane.xlu0 %631
    %633 = vadd.xlane.f32.xlu0 %v567
    %v634 = vpop.xlane.xlu0 %633
    %635 = vadd.xlane.f32.xlu0 %v568
    %v636 = vpop.xlane.xlu0 %635
    %637 = vadd.xlane.f32.xlu0 %v569
    %v638 = vpop.xlane.xlu0 %637
    %639 = vadd.xlane.f32.xlu0 %v570
    %v640 = vpop.xlane.xlu0 %639
    %641 = vadd.xlane.f32.xlu0 %v571
    %v642 = vpop.xlane.xlu0 %641
    %643 = vadd.xlane.f32.xlu0 %v572
    %v644 = vpop.xlane.xlu0 %643
    %645 = vadd.xlane.f32.xlu0 %v573
    %v646 = vpop.xlane.xlu0 %645
    %647 = vadd.xlane.f32.xlu0 %v574
    %v648 = vpop.xlane.xlu0 %647
    %649 = vadd.xlane.f32.xlu0 %v575
    %v650 = vpop.xlane.xlu0 %649
    %651 = vadd.xlane.f32.xlu0 %v576
    %v652 = vpop.xlane.xlu0 %651
    %653 = vadd.xlane.f32.xlu0 %v577
    %v654 = vpop.xlane.xlu0 %653
    %655 = vadd.xlane.f32.xlu0 %v578
    %v656 = vpop.xlane.xlu0 %655
    %657 = vadd.xlane.f32.xlu0 %v579
    %v658 = vpop.xlane.xlu0 %657
    %659 = vadd.xlane.f32.xlu0 %v580
    %v660 = vpop.xlane.xlu0 %659
    %661 = vadd.xlane.f32.xlu0 %v581
    %v662 = vpop.xlane.xlu0 %661
    %663 = vadd.xlane.f32.xlu0 %v582
    %v664 = vpop.xlane.xlu0 %663
    %665 = vadd.xlane.f32.xlu0 %v583
    %v666 = vpop.xlane.xlu0 %665
    %667 = vadd.xlane.f32.xlu0 %v584
    %v668 = vpop.xlane.xlu0 %667
    %669 = vadd.xlane.f32.xlu0 %v585
    %v670 = vpop.xlane.xlu0 %669
    %671 = vadd.xlane.f32.xlu0 %v586
    %v672 = vpop.xlane.xlu0 %671
    %673 = vadd.xlane.f32.xlu0 %v587
    %v674 = vpop.xlane.xlu0 %673
    %675 = vadd.xlane.f32.xlu0 %v588
    %v676 = vpop.xlane.xlu0 %675
    %677 = vadd.xlane.f32.xlu0 %v589
    %v678 = vpop.xlane.xlu0 %677
    %679 = vadd.xlane.f32.xlu0 %v590
    %v680 = vpop.xlane.xlu0 %679
    %681 = vadd.xlane.f32.xlu0 %v591
    %v682 = vpop.xlane.xlu0 %681
    %683 = vadd.xlane.f32.xlu0 %v592
    %v684 = vpop.xlane.xlu0 %683
    %685 = vadd.xlane.f32.xlu0 %v593
    %v686 = vpop.xlane.xlu0 %685
    %687 = vadd.xlane.f32.xlu0 %v594
    %v688 = vpop.xlane.xlu0 %687
    %689 = vadd.xlane.f32.xlu0 %v595
    %v690 = vpop.xlane.xlu0 %689
    %691 = vadd.xlane.f32.xlu0 %v596
    %v692 = vpop.xlane.xlu0 %691
    %693 = vadd.xlane.f32.xlu0 %v597
    %v694 = vpop.xlane.xlu0 %693
    %695 = vadd.xlane.f32.xlu0 %v598
    %v696 = vpop.xlane.xlu0 %695
    %697 = vadd.xlane.f32.xlu0 %v599
    %v698 = vpop.xlane.xlu0 %697
    %699 = vadd.xlane.f32.xlu0 %v600
    %v700 = vpop.xlane.xlu0 %699
    %701 = vadd.xlane.f32.xlu0 %v601
    %v702 = vpop.xlane.xlu0 %701
    %703 = vadd.xlane.f32.xlu0 %v602
    %v704 = vpop.xlane.xlu0 %703
    %705 = vadd.xlane.f32.xlu0 %v603
    %v706 = vpop.xlane.xlu0 %705
    %707 = vadd.xlane.f32.xlu0 %v604
    %v708 = vpop.xlane.xlu0 %707
    %709 = vadd.xlane.f32.xlu0 %v605
    %v710 = vpop.xlane.xlu0 %709
    %711 = vadd.xlane.f32.xlu0 %v606
    %v712 = vpop.xlane.xlu0 %711
    %713 = vadd.xlane.f32.xlu0 %v607
    %v714 = vpop.xlane.xlu0 %713
    %715 = vadd.xlane.f32.xlu0 %v608
    %v716 = vpop.xlane.xlu0 %715
    %717 = vadd.xlane.f32.xlu0 %v609
    %v718 = vpop.xlane.xlu0 %717
    %719 = vadd.xlane.f32.xlu0 %v610
    %v720 = vpop.xlane.xlu0 %719
    %721 = vadd.xlane.f32.xlu0 %v611
    %v722 = vpop.xlane.xlu0 %721
    %723 = vadd.xlane.f32.xlu0 %v612
    %v724 = vpop.xlane.xlu0 %723
    %725 = vadd.xlane.f32.xlu0 %v613
    %v726 = vpop.xlane.xlu0 %725
    %727 = vadd.xlane.f32.xlu0 %v614
    %v728 = vpop.xlane.xlu0 %727
    %729 = vadd.xlane.f32.xlu0 %v615
    %v730 = vpop.xlane.xlu0 %729
    %731 = vadd.xlane.f32.xlu0 %v616
    %v732 = vpop.xlane.xlu0 %731
    %733 = vadd.xlane.f32.xlu0 %v617
    %v734 = vpop.xlane.xlu0 %733
    %735 = vadd.xlane.f32.xlu0 %v618
    %v736 = vpop.xlane.xlu0 %735
    %737 = vadd.xlane.f32.xlu0 %v619
    %v738 = vpop.xlane.xlu0 %737
    %739 = vadd.xlane.f32.xlu0 %v620
    %v740 = vpop.xlane.xlu0 %739
    %741 = vadd.xlane.f32.xlu0 %v621
    %v742 = vpop.xlane.xlu0 %741
    %743 = vadd.xlane.f32.xlu0 %v622
    %v744 = vpop.xlane.xlu0 %743
    %745 = vadd.xlane.f32.xlu0 %v623
    %v746 = vpop.xlane.xlu0 %745
    %747 = vadd.xlane.f32.xlu0 %v624
    %v748 = vpop.xlane.xlu0 %747
    %749 = vadd.xlane.f32.xlu0 %v625
    %v750 = vpop.xlane.xlu0 %749
    %751 = vadd.xlane.f32.xlu0 %v626
    %v752 = vpop.xlane.xlu0 %751
    %753 = vadd.xlane.f32.xlu0 %v627
    %v754 = vpop.xlane.xlu0 %753
    %755 = vadd.xlane.f32.xlu0 %v628
    %v756 = vpop.xlane.xlu0 %755
    %v757 = vmul.f32 %v630, %v436
    %v758 = vmul.f32 %v632, %v436
    %v759 = vmul.f32 %v634, %v436
    %v760 = vmul.f32 %v636, %v436
    %v761 = vmul.f32 %v638, %v436
    %v762 = vmul.f32 %v640, %v436
    %v763 = vmul.f32 %v642, %v436
    %v764 = vmul.f32 %v644, %v436
    %v765 = vmul.f32 %v646, %v436
    %v766 = vmul.f32 %v648, %v436
    %v767 = vmul.f32 %v650, %v436
    %v768 = vmul.f32 %v652, %v436
    %v769 = vmul.f32 %v654, %v436
    %v770 = vmul.f32 %v656, %v436
    %v771 = vmul.f32 %v658, %v436
    %v772 = vmul.f32 %v660, %v436
    %v773 = vmul.f32 %v662, %v436
    %v774 = vmul.f32 %v664, %v436
    %v775 = vmul.f32 %v666, %v436
    %v776 = vmul.f32 %v668, %v436
    %v777 = vmul.f32 %v670, %v436
    %v778 = vmul.f32 %v672, %v436
    %v779 = vmul.f32 %v674, %v436
    %v780 = vmul.f32 %v676, %v436
    %v781 = vmul.f32 %v678, %v436
    %v782 = vmul.f32 %v680, %v436
    %v783 = vmul.f32 %v682, %v436
    %v784 = vmul.f32 %v684, %v436
    %v785 = vmul.f32 %v686, %v436
    %v786 = vmul.f32 %v688, %v436
    %v787 = vmul.f32 %v690, %v436
    %v788 = vmul.f32 %v692, %v436
    %v789 = vmul.f32 %v694, %v436
    %v790 = vmul.f32 %v696, %v436
    %v791 = vmul.f32 %v698, %v436
    %v792 = vmul.f32 %v700, %v436
    %v793 = vmul.f32 %v702, %v436
    %v794 = vmul.f32 %v704, %v436
    %v795 = vmul.f32 %v706, %v436
    %v796 = vmul.f32 %v708, %v436
    %v797 = vmul.f32 %v710, %v436
    %v798 = vmul.f32 %v712, %v436
    %v799 = vmul.f32 %v714, %v436
    %v800 = vmul.f32 %v716, %v436
    %v801 = vmul.f32 %v718, %v436
    %v802 = vmul.f32 %v720, %v436
    %v803 = vmul.f32 %v722, %v436
    %v804 = vmul.f32 %v724, %v436
    %v805 = vmul.f32 %v726, %v436
    %v806 = vmul.f32 %v728, %v436
    %v807 = vmul.f32 %v730, %v436
    %v808 = vmul.f32 %v732, %v436
    %v809 = vmul.f32 %v734, %v436
    %v810 = vmul.f32 %v736, %v436
    %v811 = vmul.f32 %v738, %v436
    %v812 = vmul.f32 %v740, %v436
    %v813 = vmul.f32 %v742, %v436
    %v814 = vmul.f32 %v744, %v436
    %v815 = vmul.f32 %v746, %v436
    %v816 = vmul.f32 %v748, %v436
    %v817 = vmul.f32 %v750, %v436
    %v818 = vmul.f32 %v752, %v436
    %v819 = vmul.f32 %v754, %v436
    %v820 = vmul.f32 %v756, %v436
    %v821 = vadd.f32 %v757, 1e-05
    %v822 = vadd.f32 %v758, 1e-05
    %v823 = vadd.f32 %v759, 1e-05
    %v824 = vadd.f32 %v760, 1e-05
    %v825 = vadd.f32 %v761, 1e-05
    %v826 = vadd.f32 %v762, 1e-05
    %v827 = vadd.f32 %v763, 1e-05
    %v828 = vadd.f32 %v764, 1e-05
    %v829 = vadd.f32 %v765, 1e-05
    %v830 = vadd.f32 %v766, 1e-05
    %v831 = vadd.f32 %v767, 1e-05
    %v832 = vadd.f32 %v768, 1e-05
    %v833 = vadd.f32 %v769, 1e-05
    %v834 = vadd.f32 %v770, 1e-05
    %v835 = vadd.f32 %v771, 1e-05
    %v836 = vadd.f32 %v772, 1e-05
    %v837 = vadd.f32 %v773, 1e-05
    %v838 = vadd.f32 %v774, 1e-05
    %v839 = vadd.f32 %v775, 1e-05
    %v840 = vadd.f32 %v776, 1e-05
    %v841 = vadd.f32 %v777, 1e-05
    %v842 = vadd.f32 %v778, 1e-05
    %v843 = vadd.f32 %v779, 1e-05
    %v844 = vadd.f32 %v780, 1e-05
    %v845 = vadd.f32 %v781, 1e-05
    %v846 = vadd.f32 %v782, 1e-05
    %v847 = vadd.f32 %v783, 1e-05
    %v848 = vadd.f32 %v784, 1e-05
    %v849 = vadd.f32 %v785, 1e-05
    %v850 = vadd.f32 %v786, 1e-05
    %v851 = vadd.f32 %v787, 1e-05
    %v852 = vadd.f32 %v788, 1e-05
    %v853 = vadd.f32 %v789, 1e-05
    %v854 = vadd.f32 %v790, 1e-05
    %v855 = vadd.f32 %v791, 1e-05
    %v856 = vadd.f32 %v792, 1e-05
    %v857 = vadd.f32 %v793, 1e-05
    %v858 = vadd.f32 %v794, 1e-05
    %v859 = vadd.f32 %v795, 1e-05
    %v860 = vadd.f32 %v796, 1e-05
    %v861 = vadd.f32 %v797, 1e-05
    %v862 = vadd.f32 %v798, 1e-05
    %v863 = vadd.f32 %v799, 1e-05
    %v864 = vadd.f32 %v800, 1e-05
    %v865 = vadd.f32 %v801, 1e-05
    %v866 = vadd.f32 %v802, 1e-05
    %v867 = vadd.f32 %v803, 1e-05
    %v868 = vadd.f32 %v804, 1e-05
    %v869 = vadd.f32 %v805, 1e-05
    %v870 = vadd.f32 %v806, 1e-05
    %v871 = vadd.f32 %v807, 1e-05
    %v872 = vadd.f32 %v808, 1e-05
    %v873 = vadd.f32 %v809, 1e-05
    %v874 = vadd.f32 %v810, 1e-05
    %v875 = vadd.f32 %v811, 1e-05
    %v876 = vadd.f32 %v812, 1e-05
    %v877 = vadd.f32 %v813, 1e-05
    %v878 = vadd.f32 %v814, 1e-05
    %v879 = vadd.f32 %v815, 1e-05
    %v880 = vadd.f32 %v816, 1e-05
    %v881 = vadd.f32 %v817, 1e-05
    %v882 = vadd.f32 %v818, 1e-05
    %v883 = vadd.f32 %v819, 1e-05
    %v884 = vadd.f32 %v820, 1e-05
    %v885 = vrsqrt.pop %v821
    %v886 = vrsqrt.pop %v822
    %v887 = vrsqrt.pop %v823
    %v888 = vrsqrt.pop %v824
    %v889 = vrsqrt.pop %v825
    %v890 = vrsqrt.pop %v826
    %v891 = vrsqrt.pop %v827
    %v892 = vrsqrt.pop %v828
    %v893 = vrsqrt.pop %v829
    %v894 = vrsqrt.pop %v830
    %v895 = vrsqrt.pop %v831
    %v896 = vrsqrt.pop %v832
    %v897 = vrsqrt.pop %v833
    %v898 = vrsqrt.pop %v834
    %v899 = vrsqrt.pop %v835
    %v900 = vrsqrt.pop %v836
    %v901 = vrsqrt.pop %v837
    %v902 = vrsqrt.pop %v838
    %v903 = vrsqrt.pop %v839
    %v904 = vrsqrt.pop %v840
    %v905 = vrsqrt.pop %v841
    %v906 = vrsqrt.pop %v842
    %v907 = vrsqrt.pop %v843
    %v908 = vrsqrt.pop %v844
    %v909 = vrsqrt.pop %v845
    %v910 = vrsqrt.pop %v846
    %v911 = vrsqrt.pop %v847
    %v912 = vrsqrt.pop %v848
    %v913 = vrsqrt.pop %v849
    %v914 = vrsqrt.pop %v850
    %v915 = vrsqrt.pop %v851
    %v916 = vrsqrt.pop %v852
    %v917 = vrsqrt.pop %v853
    %v918 = vrsqrt.pop %v854
    %v919 = vrsqrt.pop %v855
    %v920 = vrsqrt.pop %v856
    %v921 = vrsqrt.pop %v857
    %v922 = vrsqrt.pop %v858
    %v923 = vrsqrt.pop %v859
    %v924 = vrsqrt.pop %v860
    %v925 = vrsqrt.pop %v861
    %v926 = vrsqrt.pop %v862
    %v927 = vrsqrt.pop %v863
    %v928 = vrsqrt.pop %v864
    %v929 = vrsqrt.pop %v865
    %v930 = vrsqrt.pop %v866
    %v931 = vrsqrt.pop %v867
    %v932 = vrsqrt.pop %v868
    %v933 = vrsqrt.pop %v869
    %v934 = vrsqrt.pop %v870
    %v935 = vrsqrt.pop %v871
    %v936 = vrsqrt.pop %v872
    %v937 = vrsqrt.pop %v873
    %v938 = vrsqrt.pop %v874
    %v939 = vrsqrt.pop %v875
    %v940 = vrsqrt.pop %v876
    %v941 = vrsqrt.pop %v877
    %v942 = vrsqrt.pop %v878
    %v943 = vrsqrt.pop %v879
    %v944 = vrsqrt.pop %v880
    %v945 = vrsqrt.pop %v881
    %v946 = vrsqrt.pop %v882
    %v947 = vrsqrt.pop %v883
    %v948 = vrsqrt.pop %v884
    %v949 = vmul.f32 %v501, %v885
    %v950 = vmul.f32 %v502, %v886
    %v951 = vmul.f32 %v503, %v887
    %v952 = vmul.f32 %v504, %v888
    %v953 = vmul.f32 %v505, %v889
    %v954 = vmul.f32 %v506, %v890
    %v955 = vmul.f32 %v507, %v891
    %v956 = vmul.f32 %v508, %v892
    %v957 = vmul.f32 %v509, %v893
    %v958 = vmul.f32 %v510, %v894
    %v959 = vmul.f32 %v511, %v895
    %v960 = vmul.f32 %v512, %v896
    %v961 = vmul.f32 %v513, %v897
    %v962 = vmul.f32 %v514, %v898
    %v963 = vmul.f32 %v515, %v899
    %v964 = vmul.f32 %v516, %v900
    %v965 = vmul.f32 %v517, %v901
    %v966 = vmul.f32 %v518, %v902
    %v967 = vmul.f32 %v519, %v903
    %v968 = vmul.f32 %v520, %v904
    %v969 = vmul.f32 %v521, %v905
    %v970 = vmul.f32 %v522, %v906
    %v971 = vmul.f32 %v523, %v907
    %v972 = vmul.f32 %v524, %v908
    %v973 = vmul.f32 %v525, %v909
    %v974 = vmul.f32 %v526, %v910
    %v975 = vmul.f32 %v527, %v911
    %v976 = vmul.f32 %v528, %v912
    %v977 = vmul.f32 %v529, %v913
    %v978 = vmul.f32 %v530, %v914
    %v979 = vmul.f32 %v531, %v915
    %v980 = vmul.f32 %v532, %v916
    %v981 = vmul.f32 %v533, %v917
    %v982 = vmul.f32 %v534, %v918
    %v983 = vmul.f32 %v535, %v919
    %v984 = vmul.f32 %v536, %v920
    %v985 = vmul.f32 %v537, %v921
    %v986 = vmul.f32 %v538, %v922
    %v987 = vmul.f32 %v539, %v923
    %v988 = vmul.f32 %v540, %v924
    %v989 = vmul.f32 %v541, %v925
    %v990 = vmul.f32 %v542, %v926
    %v991 = vmul.f32 %v543, %v927
    %v992 = vmul.f32 %v544, %v928
    %v993 = vmul.f32 %v545, %v929
    %v994 = vmul.f32 %v546, %v930
    %v995 = vmul.f32 %v547, %v931
    %v996 = vmul.f32 %v548, %v932
    %v997 = vmul.f32 %v549, %v933
    %v998 = vmul.f32 %v550, %v934
    %v999 = vmul.f32 %v551, %v935
    %v1000 = vmul.f32 %v552, %v936
    %v1001 = vmul.f32 %v553, %v937
    %v1002 = vmul.f32 %v554, %v938
    %v1003 = vmul.f32 %v555, %v939
    %v1004 = vmul.f32 %v556, %v940
    %v1005 = vmul.f32 %v557, %v941
    %v1006 = vmul.f32 %v558, %v942
    %v1007 = vmul.f32 %v559, %v943
    %v1008 = vmul.f32 %v560, %v944
    %v1009 = vmul.f32 %v561, %v945
    %v1010 = vmul.f32 %v562, %v946
    %v1011 = vmul.f32 %v563, %v947
    %v1012 = vmul.f32 %v564, %v948
    %v1014 = vlaneseq
    %v1015 = vshrl.u32 %v1014, 7
    %v1016 = vsub.s32 0, %v1015
    %v1017 = vrot.slane %v306, %v1016
    %v1019 = vmul.f32 %v949, %v1017
    %v1020 = vmul.f32 %v950, %v1017
    %v1021 = vmul.f32 %v951, %v1017
    %v1022 = vmul.f32 %v952, %v1017
    %v1023 = vmul.f32 %v953, %v1017
    %v1024 = vmul.f32 %v954, %v1017
    %v1025 = vmul.f32 %v955, %v1017
    %v1026 = vmul.f32 %v956, %v1017
    %v1027 = vmul.f32 %v957, %v1017
    %v1028 = vmul.f32 %v958, %v1017
    %v1029 = vmul.f32 %v959, %v1017
    %v1030 = vmul.f32 %v960, %v1017
    %v1031 = vmul.f32 %v961, %v1017
    %v1032 = vmul.f32 %v962, %v1017
    %v1033 = vmul.f32 %v963, %v1017
    %v1034 = vmul.f32 %v964, %v1017
    %v1035 = vmul.f32 %v965, %v1017
    %v1036 = vmul.f32 %v966, %v1017
    %v1037 = vmul.f32 %v967, %v1017
    %v1038 = vmul.f32 %v968, %v1017
    %v1039 = vmul.f32 %v969, %v1017
    %v1040 = vmul.f32 %v970, %v1017
    %v1041 = vmul.f32 %v971, %v1017
    %v1042 = vmul.f32 %v972, %v1017
    %v1043 = vmul.f32 %v973, %v1017
    %v1044 = vmul.f32 %v974, %v1017
    %v1045 = vmul.f32 %v975, %v1017
    %v1046 = vmul.f32 %v976, %v1017
    %v1047 = vmul.f32 %v977, %v1017
    %v1048 = vmul.f32 %v978, %v1017
    %v1049 = vmul.f32 %v979, %v1017
    %v1050 = vmul.f32 %v980, %v1017
    %v1051 = vmul.f32 %v981, %v1017
    %v1052 = vmul.f32 %v982, %v1017
    %v1053 = vmul.f32 %v983, %v1017
    %v1054 = vmul.f32 %v984, %v1017
    %v1055 = vmul.f32 %v985, %v1017
    %v1056 = vmul.f32 %v986, %v1017
    %v1057 = vmul.f32 %v987, %v1017
    %v1058 = vmul.f32 %v988, %v1017
    %v1059 = vmul.f32 %v989, %v1017
    %v1060 = vmul.f32 %v990, %v1017
    %v1061 = vmul.f32 %v991, %v1017
    %v1062 = vmul.f32 %v992, %v1017
    %v1063 = vmul.f32 %v993, %v1017
    %v1064 = vmul.f32 %v994, %v1017
    %v1065 = vmul.f32 %v995, %v1017
    %v1066 = vmul.f32 %v996, %v1017
    %v1067 = vmul.f32 %v997, %v1017
    %v1068 = vmul.f32 %v998, %v1017
    %v1069 = vmul.f32 %v999, %v1017
    %v1070 = vmul.f32 %v1000, %v1017
    %v1071 = vmul.f32 %v1001, %v1017
    %v1072 = vmul.f32 %v1002, %v1017
    %v1073 = vmul.f32 %v1003, %v1017
    %v1074 = vmul.f32 %v1004, %v1017
    %v1075 = vmul.f32 %v1005, %v1017
    %v1076 = vmul.f32 %v1006, %v1017
    %v1077 = vmul.f32 %v1007, %v1017
    %v1078 = vmul.f32 %v1008, %v1017
    %v1079 = vmul.f32 %v1009, %v1017
    %v1080 = vmul.f32 %v1010, %v1017
    %v1081 = vmul.f32 %v1011, %v1017
    %v1082 = vmul.f32 %v1012, %v1017
    %v1084 = vlaneseq
    %v1085 = vshrl.u32 %v1084, 7
    %v1086 = vsub.s32 0, %v1085
    %v1087 = vrot.slane %v307, %v1086
    %v1089 = vadd.f32 %v1019, %v1087
    %v1090 = vadd.f32 %v1020, %v1087
    %v1091 = vadd.f32 %v1021, %v1087
    %v1092 = vadd.f32 %v1022, %v1087
    %v1093 = vadd.f32 %v1023, %v1087
    %v1094 = vadd.f32 %v1024, %v1087
    %v1095 = vadd.f32 %v1025, %v1087
    %v1096 = vadd.f32 %v1026, %v1087
    %v1097 = vadd.f32 %v1027, %v1087
    %v1098 = vadd.f32 %v1028, %v1087
    %v1099 = vadd.f32 %v1029, %v1087
    %v1100 = vadd.f32 %v1030, %v1087
    %v1101 = vadd.f32 %v1031, %v1087
    %v1102 = vadd.f32 %v1032, %v1087
    %v1103 = vadd.f32 %v1033, %v1087
    %v1104 = vadd.f32 %v1034, %v1087
    %v1105 = vadd.f32 %v1035, %v1087
    %v1106 = vadd.f32 %v1036, %v1087
    %v1107 = vadd.f32 %v1037, %v1087
    %v1108 = vadd.f32 %v1038, %v1087
    %v1109 = vadd.f32 %v1039, %v1087
    %v1110 = vadd.f32 %v1040, %v1087
    %v1111 = vadd.f32 %v1041, %v1087
    %v1112 = vadd.f32 %v1042, %v1087
    %v1113 = vadd.f32 %v1043, %v1087
    %v1114 = vadd.f32 %v1044, %v1087
    %v1115 = vadd.f32 %v1045, %v1087
    %v1116 = vadd.f32 %v1046, %v1087
    %v1117 = vadd.f32 %v1047, %v1087
    %v1118 = vadd.f32 %v1048, %v1087
    %v1119 = vadd.f32 %v1049, %v1087
    %v1120 = vadd.f32 %v1050, %v1087
    %v1121 = vadd.f32 %v1051, %v1087
    %v1122 = vadd.f32 %v1052, %v1087
    %v1123 = vadd.f32 %v1053, %v1087
    %v1124 = vadd.f32 %v1054, %v1087
    %v1125 = vadd.f32 %v1055, %v1087
    %v1126 = vadd.f32 %v1056, %v1087
    %v1127 = vadd.f32 %v1057, %v1087
    %v1128 = vadd.f32 %v1058, %v1087
    %v1129 = vadd.f32 %v1059, %v1087
    %v1130 = vadd.f32 %v1060, %v1087
    %v1131 = vadd.f32 %v1061, %v1087
    %v1132 = vadd.f32 %v1062, %v1087
    %v1133 = vadd.f32 %v1063, %v1087
    %v1134 = vadd.f32 %v1064, %v1087
    %v1135 = vadd.f32 %v1065, %v1087
    %v1136 = vadd.f32 %v1066, %v1087
    %v1137 = vadd.f32 %v1067, %v1087
    %v1138 = vadd.f32 %v1068, %v1087
    %v1139 = vadd.f32 %v1069, %v1087
    %v1140 = vadd.f32 %v1070, %v1087
    %v1141 = vadd.f32 %v1071, %v1087
    %v1142 = vadd.f32 %v1072, %v1087
    %v1143 = vadd.f32 %v1073, %v1087
    %v1144 = vadd.f32 %v1074, %v1087
    %v1145 = vadd.f32 %v1075, %v1087
    %v1146 = vadd.f32 %v1076, %v1087
    %v1147 = vadd.f32 %v1077, %v1087
    %v1148 = vadd.f32 %v1078, %v1087
    %v1149 = vadd.f32 %v1079, %v1087
    %v1150 = vadd.f32 %v1080, %v1087
    %v1151 = vadd.f32 %v1081, %v1087
    %v1152 = vadd.f32 %v1082, %v1087
    %v1153 = vld [vmem:[#allocation5] sm:$0xff]
    %v1154 = vld [vmem:[#allocation5 + $0x8] sm:$0xff]
    %v1155 = vld [vmem:[#allocation5 + $0x10] sm:$0xff]
    %v1156 = vld [vmem:[#allocation5 + $0x18] sm:$0xff]
    %v1157 = vld [vmem:[#allocation5 + $0x20] sm:$0xff]
    %v1158 = vld [vmem:[#allocation5 + $0x28] sm:$0xff]
    %v1159 = vld [vmem:[#allocation5 + $0x30] sm:$0xff]
    %v1160 = vld [vmem:[#allocation5 + $0x38] sm:$0xff]
    %v1161 = vld [vmem:[#allocation5 + $0x40] sm:$0xff]
    %v1162 = vld [vmem:[#allocation5 + $0x48] sm:$0xff]
    %v1163 = vld [vmem:[#allocation5 + $0x50] sm:$0xff]
    %v1164 = vld [vmem:[#allocation5 + $0x58] sm:$0xff]
    %v1165 = vld [vmem:[#allocation5 + $0x60] sm:$0xff]
    %v1166 = vld [vmem:[#allocation5 + $0x68] sm:$0xff]
    %v1167 = vld [vmem:[#allocation5 + $0x70] sm:$0xff]
    %v1168 = vld [vmem:[#allocation5 + $0x78] sm:$0xff]
    %v1169 = vld [vmem:[#allocation5 + $0x80] sm:$0xff]
    %v1170 = vld [vmem:[#allocation5 + $0x88] sm:$0xff]
    %v1171 = vld [vmem:[#allocation5 + $0x90] sm:$0xff]
    %v1172 = vld [vmem:[#allocation5 + $0x98] sm:$0xff]
    %v1173 = vld [vmem:[#allocation5 + $0xa0] sm:$0xff]
    %v1174 = vld [vmem:[#allocation5 + $0xa8] sm:$0xff]
    %v1175 = vld [vmem:[#allocation5 + $0xb0] sm:$0xff]
    %v1176 = vld [vmem:[#allocation5 + $0xb8] sm:$0xff]
    %v1177 = vld [vmem:[#allocation5 + $0xc0] sm:$0xff]
    %v1178 = vld [vmem:[#allocation5 + $0xc8] sm:$0xff]
    %v1179 = vld [vmem:[#allocation5 + $0xd0] sm:$0xff]
    %v1180 = vld [vmem:[#allocation5 + $0xd8] sm:$0xff]
    %v1181 = vld [vmem:[#allocation5 + $0xe0] sm:$0xff]
    %v1182 = vld [vmem:[#allocation5 + $0xe8] sm:$0xff]
    %v1183 = vld [vmem:[#allocation5 + $0xf0] sm:$0xff]
    %v1184 = vld [vmem:[#allocation5 + $0xf8] sm:$0xff]
    %v1185 = vld [vmem:[#allocation5 + $0x100] sm:$0xff]
    %v1186 = vld [vmem:[#allocation5 + $0x108] sm:$0xff]
    %v1187 = vld [vmem:[#allocation5 + $0x110] sm:$0xff]
    %v1188 = vld [vmem:[#allocation5 + $0x118] sm:$0xff]
    %v1189 = vld [vmem:[#allocation5 + $0x120] sm:$0xff]
    %v1190 = vld [vmem:[#allocation5 + $0x128] sm:$0xff]
    %v1191 = vld [vmem:[#allocation5 + $0x130] sm:$0xff]
    %v1192 = vld [vmem:[#allocation5 + $0x138] sm:$0xff]
    %v1193 = vld [vmem:[#allocation5 + $0x140] sm:$0xff]
    %v1194 = vld [vmem:[#allocation5 + $0x148] sm:$0xff]
    %v1195 = vld [vmem:[#allocation5 + $0x150] sm:$0xff]
    %v1196 = vld [vmem:[#allocation5 + $0x158] sm:$0xff]
    %v1197 = vld [vmem:[#allocation5 + $0x160] sm:$0xff]
    %v1198 = vld [vmem:[#allocation5 + $0x168] sm:$0xff]
    %v1199 = vld [vmem:[#allocation5 + $0x170] sm:$0xff]
    %v1200 = vld [vmem:[#allocation5 + $0x178] sm:$0xff]
    %v1201 = vld [vmem:[%s4] sm:$0x7]
    %v1203 = vlaneseq
    %v1204 = vshrl.u32 %v1203, 7
    %v1205 = vsub.s32 0, %v1204
    %v1206 = vrot.slane %v1201, %v1205
    %v1207 = vlaneseq
    %v1208 = vshrl.u32 %v1207, 7
    %v1209 = vsub.s32 1, %v1208
    %v1210 = vrot.slane %v1201, %v1209
    %v1211 = vlaneseq
    %v1212 = vshrl.u32 %v1211, 7
    %v1213 = vsub.s32 2, %v1212
    %v1214 = vrot.slane %v1201, %v1213
    %1218 = vmatprep.subr.mxu0 %v1154
    %1219 = vmatpush1.msra.mxu0 %v1153
    %1220 = vmatprep.subr.mxu0 %v1157
    %1221 = vmatpush1.msra.mxu0 %v1156
    %1222 = vmatprep.subr.mxu0 %v1160
    %1223 = vmatpush1.msra.mxu0 %v1159
    %1224 = vmatprep.subr.mxu0 %v1163
    %1225 = vmatpush1.msra.mxu0 %v1162
    %1226 = vmatprep.subr.mxu0 %v1166
    %1227 = vmatpush1.msra.mxu0 %v1165
    %1228 = vmatprep.subr.mxu0 %v1169
    %1229 = vmatpush1.msra.mxu0 %v1168
    %1230 = vmatprep.subr.mxu0 %v1172
    %1231 = vmatpush1.msra.mxu0 %v1171
    %1232 = vmatprep.subr.mxu0 %v1175
    %1233 = vmatpush1.msra.mxu0 %v1174
    %1234 = vmatprep.subr.mxu0 %v1178
    %1235 = vmatpush1.msra.mxu0 %v1177
    %1236 = vmatprep.subr.mxu0 %v1181
    %1237 = vmatpush1.msra.mxu0 %v1180
    %1238 = vmatprep.subr.mxu0 %v1184
    %1239 = vmatpush1.msra.mxu0 %v1183
    %1240 = vmatprep.subr.mxu0 %v1187
    %1241 = vmatpush1.msra.mxu0 %v1186
    %1242 = vmatprep.subr.mxu0 %v1190
    %1243 = vmatpush1.msra.mxu0 %v1189
    %1244 = vmatprep.subr.mxu0 %v1193
    %1245 = vmatpush1.msra.mxu0 %v1192
    %1246 = vmatprep.subr.mxu0 %v1196
    %1247 = vmatpush1.msra.mxu0 %v1195
    %1248 = vmatprep.subr.mxu0 %v1199
    %1249 = vmatpush1.msra.mxu0 %v1198
    %1250 = vmatprep.subr.mxu0 0.0
    %1251 = vmatpush1.msra.mxu0 0.0
    %1252 = vmatprep.subr.mxu0 0.0
    %1253 = vmatpush1.msra.mxu0 0.0
    %1254 = vmatprep.subr.mxu0 0.0
    %1255 = vmatpush1.msra.mxu0 0.0
    %1256 = vmatprep.subr.mxu0 0.0
    %1257 = vmatpush1.msra.mxu0 0.0
    %1258 = vmatprep.subr.mxu0 0.0
    %1259 = vmatpush1.msra.mxu0 0.0
    %1260 = vmatprep.subr.mxu0 0.0
    %1261 = vmatpush1.msra.mxu0 0.0
    %1262 = vmatprep.subr.mxu0 0.0
    %1263 = vmatpush1.msra.mxu0 0.0
    %1264 = vmatprep.subr.mxu0 0.0
    %1265 = vmatpush1.msra.mxu0 0.0
    %1266 = vmatprep.subr.mxu0 0.0
    %1267 = vmatpush1.msra.mxu0 0.0
    %1268 = vmatprep.subr.mxu0 0.0
    %1269 = vmatpush1.msra.mxu0 0.0
    %1270 = vmatprep.subr.mxu0 0.0
    %1271 = vmatpush1.msra.mxu0 0.0
    %1272 = vmatprep.subr.mxu0 0.0
    %1273 = vmatpush1.msra.mxu0 0.0
    %1274 = vmatprep.subr.mxu0 0.0
    %1275 = vmatpush1.msra.mxu0 0.0
    %1276 = vmatprep.subr.mxu0 0.0
    %1277 = vmatpush1.msra.mxu0 0.0
    %1278 = vmatprep.subr.mxu0 0.0
    %1279 = vmatpush1.msra.mxu0 0.0
    %1280 = vmatprep.subr.mxu0 0.0
    %1281 = vmatpush1.msra.mxu0 0.0
    %1282 = vmatprep.mubr.f32.mxu0 0.0
    %1283 = vmatmul.mubr.f32.gmra.mrb[0].mxu0 %v1089
    %v1284 = vpop.f32.mrb[0].mxu0
    %v1285 = vadd.f32 %v1206, %v1284
    %v1286 = vpop.f32.mrb[0].mxu0
    %v1287 = vadd.f32 %v1210, %v1286
    %1288 = vmatprep.mubr.f32.mxu0 0.0
    %1289 = vmatmul.mubr.f32.gmra.mrb[0].mxu0 %v1090
    %v1290 = vpop.f32.mrb[0].mxu0
    %v1291 = vadd.f32 %v1206, %v1290
    %v1292 = vpop.f32.mrb[0].mxu0
    %v1293 = vadd.f32 %v1210, %v1292
    %1294 = vmatprep.mubr.f32.mxu0 0.0
    %1295 = vmatmul.mubr.f32.gmra.mrb[0].mxu0 %v1091
    %v1296 = vpop.f32.mrb[0].mxu0
    %v1297 = vadd.f32 %v1206, %v1296
    %v1298 = vpop.f32.mrb[0].mxu0
    %v1299 = vadd.f32 %v1210, %v1298
    %1300 = vmatprep.mubr.f32.mxu0 0.0
    %1301 = vmatmul.mubr.f32.gmra.mrb[0].mxu0 %v1092
    %v1302 = vpop.f32.mrb[0].mxu0
    %v1303 = vadd.f32 %v1206, %v1302
    %v1304 = vpop.f32.mrb[0].mxu0
    %v1305 = vadd.f32 %v1210, %v1304
    %1306 = vmatprep.mubr.f32.mxu0 0.0
    %1307 = vmatmul.mubr.f32.gmra.mrb[0].mxu0 %v1093
    %v1308 = vpop.f32.mrb[0].mxu0
    %v1309 = vadd.f32 %v1206, %v1308
    %v1310 = vpop.f32.mrb[0].mxu0
    %v1311 = vadd.f32 %v1210, %v1310
    %1312 = vmatprep.mubr.f32.mxu0 0.0
    %1313 = vmatmul.mubr.f32.gmra.mrb[0].mxu0 %v1094
    %v1314 = vpop.f32.mrb[0].mxu0
    %v1315 = vadd.f32 %v1206, %v1314
    %v1316 = vpop.f32.mrb[0].mxu0
    %v1317 = vadd.f32 %v1210, %v1316
    %1318 = vmatprep.mubr.f32.mxu0 0.0
    %1319 = vmatmul.mubr.f32.gmra.mrb[0].mxu0 %v1095
    %v1320 = vpop.f32.mrb[0].mxu0
    %v1321 = vadd.f32 %v1206, %v1320
    %v1322 = vpop.f32.mrb[0].mxu0
    %v1323 = vadd.f32 %v1210, %v1322
    %1324 = vmatprep.mubr.f32.mxu0 0.0
    %1325 = vmatmul.mubr.f32.gmra.mrb[0].mxu0 %v1096
    %v1326 = vpop.f32.mrb[0].mxu0
    %v1327 = vadd.f32 %v1206, %v1326
    %v1328 = vpop.f32.mrb[0].mxu0
    %v1329 = vadd.f32 %v1210, %v1328
    %1330 = vmatprep.mubr.f32.mxu0 0.0
    %1331 = vmatmul.mubr.f32.gmra.mrb[0].mxu0 %v1097
    %v1332 = vpop.f32.mrb[0].mxu0
    %v1333 = vadd.f32 %v1206, %v1332
    %v1334 = vpop.f32.mrb[0].mxu0
    %v1335 = vadd.f32 %v1210, %v1334
    %1336 = vmatprep.mubr.f32.mxu0 0.0
    %1337 = vmatmul.mubr.f32.gmra.mrb[0].mxu0 %v1098
    %v1338 = vpop.f32.mrb[0].mxu0
    %v1339 = vadd.f32 %v1206, %v1338
    %v1340 = vpop.f32.mrb[0].mxu0
    %v1341 = vadd.f32 %v1210, %v1340
    %1342 = vmatprep.mubr.f32.mxu0 0.0
    %1343 = vmatmul.mubr.f32.gmra.mrb[0].mxu0 %v1099
    %v1344 = vpop.f32.mrb[0].mxu0
    %v1345 = vadd.f32 %v1206, %v1344
    %v1346 = vpop.f32.mrb[0].mxu0
    %v1347 = vadd.f32 %v1210, %v1346
    %1348 = vmatprep.mubr.f32.mxu0 0.0
    %1349 = vmatmul.mubr.f32.gmra.mrb[0].mxu0 %v1100
    %v1350 = vpop.f32.mrb[0].mxu0
    %v1351 = vadd.f32 %v1206, %v1350
    %v1352 = vpop.f32.mrb[0].mxu0
    %v1353 = vadd.f32 %v1210, %v1352
    %1354 = vmatprep.mubr.f32.mxu0 0.0
    %1355 = vmatmul.mubr.f32.gmra.mrb[0].mxu0 %v1101
    %v1356 = vpop.f32.mrb[0].mxu0
    %v1357 = vadd.f32 %v1206, %v1356
    %v1358 = vpop.f32.mrb[0].mxu0
    %v1359 = vadd.f32 %v1210, %v1358
    %1360 = vmatprep.mubr.f32.mxu0 0.0
    %1361 = vmatmul.mubr.f32.gmra.mrb[0].mxu0 %v1102
    %v1362 = vpop.f32.mrb[0].mxu0
    %v1363 = vadd.f32 %v1206, %v1362
    %v1364 = vpop.f32.mrb[0].mxu0
    %v1365 = vadd.f32 %v1210, %v1364
    %1366 = vmatprep.mubr.f32.mxu0 0.0
    %1367 = vmatmul.mubr.f32.gmra.mrb[0].mxu0 %v1103
    %v1368 = vpop.f32.mrb[0].mxu0
    %v1369 = vadd.f32 %v1206, %v1368
    %v1370 = vpop.f32.mrb[0].mxu0
    %v1371 = vadd.f32 %v1210, %v1370
    %1372 = vmatprep.mubr.f32.mxu0 0.0
    %1373 = vmatmul.mubr.f32.gmra.mrb[0].mxu0 %v1104
    %v1374 = vpop.f32.mrb[0].mxu0
    %v1375 = vadd.f32 %v1206, %v1374
    %v1376 = vpop.f32.mrb[0].mxu0
    %v1377 = vadd.f32 %v1210, %v1376
    %1378 = vmatprep.mubr.f32.mxu0 0.0
    %1379 = vmatmul.mubr.f32.gmra.mrb[0].mxu0 %v1105
    %v1380 = vpop.f32.mrb[0].mxu0
    %v1381 = vadd.f32 %v1206, %v1380
    %v1382 = vpop.f32.mrb[0].mxu0
    %v1383 = vadd.f32 %v1210, %v1382
    %1384 = vmatprep.mubr.f32.mxu0 0.0
    %1385 = vmatmul.mubr.f32.gmra.mrb[0].mxu0 %v1106
    %v1386 = vpop.f32.mrb[0].mxu0
    %v1387 = vadd.f32 %v1206, %v1386
    %v1388 = vpop.f32.mrb[0].mxu0
    %v1389 = vadd.f32 %v1210, %v1388
    %1390 = vmatprep.mubr.f32.mxu0 0.0
    %1391 = vmatmul.mubr.f32.gmra.mrb[0].mxu0 %v1107
    %v1392 = vpop.f32.mrb[0].mxu0
    %v1393 = vadd.f32 %v1206, %v1392
    %v1394 = vpop.f32.mrb[0].mxu0
    %v1395 = vadd.f32 %v1210, %v1394
    %1396 = vmatprep.mubr.f32.mxu0 0.0
    %1397 = vmatmul.mubr.f32.gmra.mrb[0].mxu0 %v1108
    %v1398 = vpop.f32.mrb[0].mxu0
    %v1399 = vadd.f32 %v1206, %v1398
    %v1400 = vpop.f32.mrb[0].mxu0
    %v1401 = vadd.f32 %v1210, %v1400
    %1402 = vmatprep.mubr.f32.mxu0 0.0
    %1403 = vmatmul.mubr.f32.gmra.mrb[0].mxu0 %v1109
    %v1404 = vpop.f32.mrb[0].mxu0
    %v1405 = vadd.f32 %v1206, %v1404
    %v1406 = vpop.f32.mrb[0].mxu0
    %v1407 = vadd.f32 %v1210, %v1406
    %1408 = vmatprep.mubr.f32.mxu0 0.0
    %1409 = vmatmul.mubr.f32.gmra.mrb[0].mxu0 %v1110
    %v1410 = vpop.f32.mrb[0].mxu0
    %v1411 = vadd.f32 %v1206, %v1410
    %v1412 = vpop.f32.mrb[0].mxu0
    %v1413 = vadd.f32 %v1210, %v1412
    %1414 = vmatprep.mubr.f32.mxu0 0.0
    %1415 = vmatmul.mubr.f32.gmra.mrb[0].mxu0 %v1111
    %v1416 = vpop.f32.mrb[0].mxu0
    %v1417 = vadd.f32 %v1206, %v1416
    %v1418 = vpop.f32.mrb[0].mxu0
    %v1419 = vadd.f32 %v1210, %v1418
    %1420 = vmatprep.mubr.f32.mxu0 0.0
    %1421 = vmatmul.mubr.f32.gmra.mrb[0].mxu0 %v1112
    %v1422 = vpop.f32.mrb[0].mxu0
    %v1423 = vadd.f32 %v1206, %v1422
    %v1424 = vpop.f32.mrb[0].mxu0
    %v1425 = vadd.f32 %v1210, %v1424
    %1426 = vmatprep.mubr.f32.mxu0 0.0
    %1427 = vmatmul.mubr.f32.gmra.mrb[0].mxu0 %v1113
    %v1428 = vpop.f32.mrb[0].mxu0
    %v1429 = vadd.f32 %v1206, %v1428
    %v1430 = vpop.f32.mrb[0].mxu0
    %v1431 = vadd.f32 %v1210, %v1430
    %1432 = vmatprep.mubr.f32.mxu0 0.0
    %1433 = vmatmul.mubr.f32.gmra.mrb[0].mxu0 %v1114
    %v1434 = vpop.f32.mrb[0].mxu0
    %v1435 = vadd.f32 %v1206, %v1434
    %v1436 = vpop.f32.mrb[0].mxu0
    %v1437 = vadd.f32 %v1210, %v1436
    %1438 = vmatprep.mubr.f32.mxu0 0.0
    %1439 = vmatmul.mubr.f32.gmra.mrb[0].mxu0 %v1115
    %v1440 = vpop.f32.mrb[0].mxu0
    %v1441 = vadd.f32 %v1206, %v1440
    %v1442 = vpop.f32.mrb[0].mxu0
    %v1443 = vadd.f32 %v1210, %v1442
    %1444 = vmatprep.mubr.f32.mxu0 0.0
    %1445 = vmatmul.mubr.f32.gmra.mrb[0].mxu0 %v1116
    %v1446 = vpop.f32.mrb[0].mxu0
    %v1447 = vadd.f32 %v1206, %v1446
    %v1448 = vpop.f32.mrb[0].mxu0
    %v1449 = vadd.f32 %v1210, %v1448
    %1450 = vmatprep.mubr.f32.mxu0 0.0
    %1451 = vmatmul.mubr.f32.gmra.mrb[0].mxu0 %v1117
    %v1452 = vpop.f32.mrb[0].mxu0
    %v1453 = vadd.f32 %v1206, %v1452
    %v1454 = vpop.f32.mrb[0].mxu0
    %v1455 = vadd.f32 %v1210, %v1454
    %1456 = vmatprep.mubr.f32.mxu0 0.0
    %1457 = vmatmul.mubr.f32.gmra.mrb[0].mxu0 %v1118
    %v1458 = vpop.f32.mrb[0].mxu0
    %v1459 = vadd.f32 %v1206, %v1458
    %v1460 = vpop.f32.mrb[0].mxu0
    %v1461 = vadd.f32 %v1210, %v1460
    %1462 = vmatprep.mubr.f32.mxu0 0.0
    %1463 = vmatmul.mubr.f32.gmra.mrb[0].mxu0 %v1119
    %v1464 = vpop.f32.mrb[0].mxu0
    %v1465 = vadd.f32 %v1206, %v1464
    %v1466 = vpop.f32.mrb[0].mxu0
    %v1467 = vadd.f32 %v1210, %v1466
    %1468 = vmatprep.mubr.f32.mxu0 0.0
    %1469 = vmatmul.mubr.f32.gmra.mrb[0].mxu0 %v1120
    %v1470 = vpop.f32.mrb[0].mxu0
    %v1471 = vadd.f32 %v1206, %v1470
    %v1472 = vpop.f32.mrb[0].mxu0
    %v1473 = vadd.f32 %v1210, %v1472
    %1474 = vmatprep.mubr.f32.mxu0 0.0
    %1475 = vmatmul.mubr.f32.gmra.mrb[0].mxu0 %v1121
    %v1476 = vpop.f32.mrb[0].mxu0
    %v1477 = vadd.f32 %v1206, %v1476
    %v1478 = vpop.f32.mrb[0].mxu0
    %v1479 = vadd.f32 %v1210, %v1478
    %1480 = vmatprep.mubr.f32.mxu0 0.0
    %1481 = vmatmul.mubr.f32.gmra.mrb[0].mxu0 %v1122
    %v1482 = vpop.f32.mrb[0].mxu0
    %v1483 = vadd.f32 %v1206, %v1482
    %v1484 = vpop.f32.mrb[0].mxu0
    %v1485 = vadd.f32 %v1210, %v1484
    %1486 = vmatprep.mubr.f32.mxu0 0.0
    %1487 = vmatmul.mubr.f32.gmra.mrb[0].mxu0 %v1123
    %v1488 = vpop.f32.mrb[0].mxu0
    %v1489 = vadd.f32 %v1206, %v1488
    %v1490 = vpop.f32.mrb[0].mxu0
    %v1491 = vadd.f32 %v1210, %v1490
    %1492 = vmatprep.mubr.f32.mxu0 0.0
    %1493 = vmatmul.mubr.f32.gmra.mrb[0].mxu0 %v1124
    %v1494 = vpop.f32.mrb[0].mxu0
    %v1495 = vadd.f32 %v1206, %v1494
    %v1496 = vpop.f32.mrb[0].mxu0
    %v1497 = vadd.f32 %v1210, %v1496
    %1498 = vmatprep.mubr.f32.mxu0 0.0
    %1499 = vmatmul.mubr.f32.gmra.mrb[0].mxu0 %v1125
    %v1500 = vpop.f32.mrb[0].mxu0
    %v1501 = vadd.f32 %v1206, %v1500
    %v1502 = vpop.f32.mrb[0].mxu0
    %v1503 = vadd.f32 %v1210, %v1502
    %1504 = vmatprep.mubr.f32.mxu0 0.0
    %1505 = vmatmul.mubr.f32.gmra.mrb[0].mxu0 %v1126
    %v1506 = vpop.f32.mrb[0].mxu0
    %v1507 = vadd.f32 %v1206, %v1506
    %v1508 = vpop.f32.mrb[0].mxu0
    %v1509 = vadd.f32 %v1210, %v1508
    %1510 = vmatprep.mubr.f32.mxu0 0.0
    %1511 = vmatmul.mubr.f32.gmra.mrb[0].mxu0 %v1127
    %v1512 = vpop.f32.mrb[0].mxu0
    %v1513 = vadd.f32 %v1206, %v1512
    %v1514 = vpop.f32.mrb[0].mxu0
    %v1515 = vadd.f32 %v1210, %v1514
    %1516 = vmatprep.mubr.f32.mxu0 0.0
    %1517 = vmatmul.mubr.f32.gmra.mrb[0].mxu0 %v1128
    %v1518 = vpop.f32.mrb[0].mxu0
    %v1519 = vadd.f32 %v1206, %v1518
    %v1520 = vpop.f32.mrb[0].mxu0
    %v1521 = vadd.f32 %v1210, %v1520
    %1522 = vmatprep.mubr.f32.mxu0 0.0
    %1523 = vmatmul.mubr.f32.gmra.mrb[0].mxu0 %v1129
    %v1524 = vpop.f32.mrb[0].mxu0
    %v1525 = vadd.f32 %v1206, %v1524
    %v1526 = vpop.f32.mrb[0].mxu0
    %v1527 = vadd.f32 %v1210, %v1526
    %1528 = vmatprep.mubr.f32.mxu0 0.0
    %1529 = vmatmul.mubr.f32.gmra.mrb[0].mxu0 %v1130
    %v1530 = vpop.f32.mrb[0].mxu0
    %v1531 = vadd.f32 %v1206, %v1530
    %v1532 = vpop.f32.mrb[0].mxu0
    %v1533 = vadd.f32 %v1210, %v1532
    %1534 = vmatprep.mubr.f32.mxu0 0.0
    %1535 = vmatmul.mubr.f32.gmra.mrb[0].mxu0 %v1131
    %v1536 = vpop.f32.mrb[0].mxu0
    %v1537 = vadd.f32 %v1206, %v1536
    %v1538 = vpop.f32.mrb[0].mxu0
    %v1539 = vadd.f32 %v1210, %v1538
    %1540 = vmatprep.mubr.f32.mxu0 0.0
    %1541 = vmatmul.mubr.f32.gmra.mrb[0].mxu0 %v1132
    %v1542 = vpop.f32.mrb[0].mxu0
    %v1543 = vadd.f32 %v1206, %v1542
    %v1544 = vpop.f32.mrb[0].mxu0
    %v1545 = vadd.f32 %v1210, %v1544
    %1546 = vmatprep.mubr.f32.mxu0 0.0
    %1547 = vmatmul.mubr.f32.gmra.mrb[0].mxu0 %v1133
    %v1548 = vpop.f32.mrb[0].mxu0
    %v1549 = vadd.f32 %v1206, %v1548
    %v1550 = vpop.f32.mrb[0].mxu0
    %v1551 = vadd.f32 %v1210, %v1550
    %1552 = vmatprep.mubr.f32.mxu0 0.0
    %1553 = vmatmul.mubr.f32.gmra.mrb[0].mxu0 %v1134
    %v1554 = vpop.f32.mrb[0].mxu0
    %v1555 = vadd.f32 %v1206, %v1554
    %v1556 = vpop.f32.mrb[0].mxu0
    %v1557 = vadd.f32 %v1210, %v1556
    %1558 = vmatprep.mubr.f32.mxu0 0.0
    %1559 = vmatmul.mubr.f32.gmra.mrb[0].mxu0 %v1135
    %v1560 = vpop.f32.mrb[0].mxu0
    %v1561 = vadd.f32 %v1206, %v1560
    %v1562 = vpop.f32.mrb[0].mxu0
    %v1563 = vadd.f32 %v1210, %v1562
    %1564 = vmatprep.mubr.f32.mxu0 0.0
    %1565 = vmatmul.mubr.f32.gmra.mrb[0].mxu0 %v1136
    %v1566 = vpop.f32.mrb[0].mxu0
    %v1567 = vadd.f32 %v1206, %v1566
    %v1568 = vpop.f32.mrb[0].mxu0
    %v1569 = vadd.f32 %v1210, %v1568
    %1570 = vmatprep.mubr.f32.mxu0 0.0
    %1571 = vmatmul.mubr.f32.gmra.mrb[0].mxu0 %v1137
    %v1572 = vpop.f32.mrb[0].mxu0
    %v1573 = vadd.f32 %v1206, %v1572
    %v1574 = vpop.f32.mrb[0].mxu0
    %v1575 = vadd.f32 %v1210, %v1574
    %1576 = vmatprep.mubr.f32.mxu0 0.0
    %1577 = vmatmul.mubr.f32.gmra.mrb[0].mxu0 %v1138
    %v1578 = vpop.f32.mrb[0].mxu0
    %v1579 = vadd.f32 %v1206, %v1578
    %v1580 = vpop.f32.mrb[0].mxu0
    %v1581 = vadd.f32 %v1210, %v1580
    %1582 = vmatprep.mubr.f32.mxu0 0.0
    %1583 = vmatmul.mubr.f32.gmra.mrb[0].mxu0 %v1139
    %v1584 = vpop.f32.mrb[0].mxu0
    %v1585 = vadd.f32 %v1206, %v1584
    %v1586 = vpop.f32.mrb[0].mxu0
    %v1587 = vadd.f32 %v1210, %v1586
    %1588 = vmatprep.mubr.f32.mxu0 0.0
    %1589 = vmatmul.mubr.f32.gmra.mrb[0].mxu0 %v1140
    %v1590 = vpop.f32.mrb[0].mxu0
    %v1591 = vadd.f32 %v1206, %v1590
    %v1592 = vpop.f32.mrb[0].mxu0
    %v1593 = vadd.f32 %v1210, %v1592
    %1594 = vmatprep.mubr.f32.mxu0 0.0
    %1595 = vmatmul.mubr.f32.gmra.mrb[0].mxu0 %v1141
    %v1596 = vpop.f32.mrb[0].mxu0
    %v1597 = vadd.f32 %v1206, %v1596
    %v1598 = vpop.f32.mrb[0].mxu0
    %v1599 = vadd.f32 %v1210, %v1598
    %1600 = vmatprep.mubr.f32.mxu0 0.0
    %1601 = vmatmul.mubr.f32.gmra.mrb[0].mxu0 %v1142
    %v1602 = vpop.f32.mrb[0].mxu0
    %v1603 = vadd.f32 %v1206, %v1602
    %v1604 = vpop.f32.mrb[0].mxu0
    %v1605 = vadd.f32 %v1210, %v1604
    %1606 = vmatprep.mubr.f32.mxu0 0.0
    %1607 = vmatmul.mubr.f32.gmra.mrb[0].mxu0 %v1143
    %v1608 = vpop.f32.mrb[0].mxu0
    %v1609 = vadd.f32 %v1206, %v1608
    %v1610 = vpop.f32.mrb[0].mxu0
    %v1611 = vadd.f32 %v1210, %v1610
    %1612 = vmatprep.mubr.f32.mxu0 0.0
    %1613 = vmatmul.mubr.f32.gmra.mrb[0].mxu0 %v1144
    %v1614 = vpop.f32.mrb[0].mxu0
    %v1615 = vadd.f32 %v1206, %v1614
    %v1616 = vpop.f32.mrb[0].mxu0
    %v1617 = vadd.f32 %v1210, %v1616
    %1618 = vmatprep.mubr.f32.mxu0 0.0
    %1619 = vmatmul.mubr.f32.gmra.mrb[0].mxu0 %v1145
    %v1620 = vpop.f32.mrb[0].mxu0
    %v1621 = vadd.f32 %v1206, %v1620
    %v1622 = vpop.f32.mrb[0].mxu0
    %v1623 = vadd.f32 %v1210, %v1622
    %1624 = vmatprep.mubr.f32.mxu0 0.0
    %1625 = vmatmul.mubr.f32.gmra.mrb[0].mxu0 %v1146
    %v1626 = vpop.f32.mrb[0].mxu0
    %v1627 = vadd.f32 %v1206, %v1626
    %v1628 = vpop.f32.mrb[0].mxu0
    %v1629 = vadd.f32 %v1210, %v1628
    %1630 = vmatprep.mubr.f32.mxu0 0.0
    %1631 = vmatmul.mubr.f32.gmra.mrb[0].mxu0 %v1147
    %v1632 = vpop.f32.mrb[0].mxu0
    %v1633 = vadd.f32 %v1206, %v1632
    %v1634 = vpop.f32.mrb[0].mxu0
    %v1635 = vadd.f32 %v1210, %v1634
    %1636 = vmatprep.mubr.f32.mxu0 0.0
    %1637 = vmatmul.mubr.f32.gmra.mrb[0].mxu0 %v1148
    %v1638 = vpop.f32.mrb[0].mxu0
    %v1639 = vadd.f32 %v1206, %v1638
    %v1640 = vpop.f32.mrb[0].mxu0
    %v1641 = vadd.f32 %v1210, %v1640
    %1642 = vmatprep.mubr.f32.mxu0 0.0
    %1643 = vmatmul.mubr.f32.gmra.mrb[0].mxu0 %v1149
    %v1644 = vpop.f32.mrb[0].mxu0
    %v1645 = vadd.f32 %v1206, %v1644
    %v1646 = vpop.f32.mrb[0].mxu0
    %v1647 = vadd.f32 %v1210, %v1646
    %1648 = vmatprep.mubr.f32.mxu0 0.0
    %1649 = vmatmul.mubr.f32.gmra.mrb[0].mxu0 %v1150
    %v1650 = vpop.f32.mrb[0].mxu0
    %v1651 = vadd.f32 %v1206, %v1650
    %v1652 = vpop.f32.mrb[0].mxu0
    %v1653 = vadd.f32 %v1210, %v1652
    %1654 = vmatprep.mubr.f32.mxu0 0.0
    %1655 = vmatmul.mubr.f32.gmra.mrb[0].mxu0 %v1151
    %v1656 = vpop.f32.mrb[0].mxu0
    %v1657 = vadd.f32 %v1206, %v1656
    %v1658 = vpop.f32.mrb[0].mxu0
    %v1659 = vadd.f32 %v1210, %v1658
    %1660 = vmatprep.mubr.f32.mxu0 0.0
    %1661 = vmatmul.mubr.f32.gmra.mrb[0].mxu0 %v1152
    %v1662 = vpop.f32.mrb[0].mxu0
    %v1663 = vadd.f32 %v1206, %v1662
    %v1664 = vpop.f32.mrb[0].mxu0
    %v1665 = vadd.f32 %v1210, %v1664
    %1666 = vdwg.mxu0
    %1667 = vmatprep.subr.mxu0 0.0
    %1668 = vmatpush1.msra.mxu0 %v1155
    %1669 = vmatprep.subr.mxu0 0.0
    %1670 = vmatpush1.msra.mxu0 %v1158
    %1671 = vmatprep.subr.mxu0 0.0
    %1672 = vmatpush1.msra.mxu0 %v1161
    %1673 = vmatprep.subr.mxu0 0.0
    %1674 = vmatpush1.msra.mxu0 %v1164
    %1675 = vmatprep.subr.mxu0 0.0
    %1676 = vmatpush1.msra.mxu0 %v1167
    %1677 = vmatprep.subr.mxu0 0.0
    %1678 = vmatpush1.msra.mxu0 %v1170
    %1679 = vmatprep.subr.mxu0 0.0
    %1680 = vmatpush1.msra.mxu0 %v1173
    %1681 = vmatprep.subr.mxu0 0.0
    %1682 = vmatpush1.msra.mxu0 %v1176
    %1683 = vmatprep.subr.mxu0 0.0
    %1684 = vmatpush1.msra.mxu0 %v1179
    %1685 = vmatprep.subr.mxu0 0.0
    %1686 = vmatpush1.msra.mxu0 %v1182
    %1687 = vmatprep.subr.mxu0 0.0
    %1688 = vmatpush1.msra.mxu0 %v1185
    %1689 = vmatprep.subr.mxu0 0.0
    %1690 = vmatpush1.msra.mxu0 %v1188
    %1691 = vmatprep.subr.mxu0 0.0
    %1692 = vmatpush1.msra.mxu0 %v1191
    %1693 = vmatprep.subr.mxu0 0.0
    %1694 = vmatpush1.msra.mxu0 %v1194
    %1695 = vmatprep.subr.mxu0 0.0
    %1696 = vmatpush1.msra.mxu0 %v1197
    %1697 = vmatprep.subr.mxu0 0.0
    %1698 = vmatpush1.msra.mxu0 %v1200
    %1699 = vmatprep.subr.mxu0 0.0
    %1700 = vmatpush1.msra.mxu0 0.0
    %1701 = vmatprep.subr.mxu0 0.0
    %1702 = vmatpush1.msra.mxu0 0.0
    %1703 = vmatprep.subr.mxu0 0.0
    %1704 = vmatpush1.msra.mxu0 0.0
    %1705 = vmatprep.subr.mxu0 0.0
    %1706 = vmatpush1.msra.mxu0 0.0
    %1707 = vmatprep.subr.mxu0 0.0
    %1708 = vmatpush1.msra.mxu0 0.0
    %1709 = vmatprep.subr.mxu0 0.0
    %1710 = vmatpush1.msra.mxu0 0.0
    %1711 = vmatprep.subr.mxu0 0.0
    %1712 = vmatpush1.msra.mxu0 0.0
    %1713 = vmatprep.subr.mxu0 0.0
    %1714 = vmatpush1.msra.mxu0 0.0
    %1715 = vmatprep.subr.mxu0 0.0
    %1716 = vmatpush1.msra.mxu0 0.0
    %1717 = vmatprep.subr.mxu0 0.0
    %1718 = vmatpush1.msra.mxu0 0.0
    %1719 = vmatprep.subr.mxu0 0.0
    %1720 = vmatpush1.msra.mxu0 0.0
    %1721 = vmatprep.subr.mxu0 0.0
    %1722 = vmatpush1.msra.mxu0 0.0
    %1723 = vmatprep.subr.mxu0 0.0
    %1724 = vmatpush1.msra.mxu0 0.0
    %1725 = vmatprep.subr.mxu0 0.0
    %1726 = vmatpush1.msra.mxu0 0.0
    %1727 = vmatprep.subr.mxu0 0.0
    %1728 = vmatpush1.msra.mxu0 0.0
    %1729 = vmatprep.subr.mxu0 0.0
    %1730 = vmatpush1.msra.mxu0 0.0
    %1731 = vmatprep.mubr.f32.mxu0 0.0
    %1732 = vmatmul.mubr.f32.gmra.mrb[0].mxu0 %v1089
    %v1733 = vpop.f32.mrb[0].mxu0
    %v1734 = vadd.f32 %v1214, %v1733
    %v1735 = vpop.f32.mrb[0].mxu0
    %1736 = vmatprep.mubr.f32.mxu0 0.0
    %1737 = vmatmul.mubr.f32.gmra.mrb[0].mxu0 %v1090
    %v1738 = vpop.f32.mrb[0].mxu0
    %v1739 = vadd.f32 %v1214, %v1738
    %v1740 = vpop.f32.mrb[0].mxu0
    %1741 = vmatprep.mubr.f32.mxu0 0.0
    %1742 = vmatmul.mubr.f32.gmra.mrb[0].mxu0 %v1091
    %v1743 = vpop.f32.mrb[0].mxu0
    %v1744 = vadd.f32 %v1214, %v1743
    %v1745 = vpop.f32.mrb[0].mxu0
    %1746 = vmatprep.mubr.f32.mxu0 0.0
    %1747 = vmatmul.mubr.f32.gmra.mrb[0].mxu0 %v1092
    %v1748 = vpop.f32.mrb[0].mxu0
    %v1749 = vadd.f32 %v1214, %v1748
    %v1750 = vpop.f32.mrb[0].mxu0
    %1751 = vmatprep.mubr.f32.mxu0 0.0
    %1752 = vmatmul.mubr.f32.gmra.mrb[0].mxu0 %v1093
    %v1753 = vpop.f32.mrb[0].mxu0
    %v1754 = vadd.f32 %v1214, %v1753
    %v1755 = vpop.f32.mrb[0].mxu0
    %1756 = vmatprep.mubr.f32.mxu0 0.0
    %1757 = vmatmul.mubr.f32.gmra.mrb[0].mxu0 %v1094
    %v1758 = vpop.f32.mrb[0].mxu0
    %v1759 = vadd.f32 %v1214, %v1758
    %v1760 = vpop.f32.mrb[0].mxu0
    %1761 = vmatprep.mubr.f32.mxu0 0.0
    %1762 = vmatmul.mubr.f32.gmra.mrb[0].mxu0 %v1095
    %v1763 = vpop.f32.mrb[0].mxu0
    %v1764 = vadd.f32 %v1214, %v1763
    %v1765 = vpop.f32.mrb[0].mxu0
    %1766 = vmatprep.mubr.f32.mxu0 0.0
    %1767 = vmatmul.mubr.f32.gmra.mrb[0].mxu0 %v1096
    %v1768 = vpop.f32.mrb[0].mxu0
    %v1769 = vadd.f32 %v1214, %v1768
    %v1770 = vpop.f32.mrb[0].mxu0
    %1771 = vmatprep.mubr.f32.mxu0 0.0
    %1772 = vmatmul.mubr.f32.gmra.mrb[0].mxu0 %v1097
    %v1773 = vpop.f32.mrb[0].mxu0
    %v1774 = vadd.f32 %v1214, %v1773
    %v1775 = vpop.f32.mrb[0].mxu0
    %1776 = vmatprep.mubr.f32.mxu0 0.0
    %1777 = vmatmul.mubr.f32.gmra.mrb[0].mxu0 %v1098
    %v1778 = vpop.f32.mrb[0].mxu0
    %v1779 = vadd.f32 %v1214, %v1778
    %v1780 = vpop.f32.mrb[0].mxu0
    %1781 = vmatprep.mubr.f32.mxu0 0.0
    %1782 = vmatmul.mubr.f32.gmra.mrb[0].mxu0 %v1099
    %v1783 = vpop.f32.mrb[0].mxu0
    %v1784 = vadd.f32 %v1214, %v1783
    %v1785 = vpop.f32.mrb[0].mxu0
    %1786 = vmatprep.mubr.f32.mxu0 0.0
    %1787 = vmatmul.mubr.f32.gmra.mrb[0].mxu0 %v1100
    %v1788 = vpop.f32.mrb[0].mxu0
    %v1789 = vadd.f32 %v1214, %v1788
    %v1790 = vpop.f32.mrb[0].mxu0
    %1791 = vmatprep.mubr.f32.mxu0 0.0
    %1792 = vmatmul.mubr.f32.gmra.mrb[0].mxu0 %v1101
    %v1793 = vpop.f32.mrb[0].mxu0
    %v1794 = vadd.f32 %v1214, %v1793
    %v1795 = vpop.f32.mrb[0].mxu0
    %1796 = vmatprep.mubr.f32.mxu0 0.0
    %1797 = vmatmul.mubr.f32.gmra.mrb[0].mxu0 %v1102
    %v1798 = vpop.f32.mrb[0].mxu0
    %v1799 = vadd.f32 %v1214, %v1798
    %v1800 = vpop.f32.mrb[0].mxu0
    %1801 = vmatprep.mubr.f32.mxu0 0.0
    %1802 = vmatmul.mubr.f32.gmra.mrb[0].mxu0 %v1103
    %v1803 = vpop.f32.mrb[0].mxu0
    %v1804 = vadd.f32 %v1214, %v1803
    %v1805 = vpop.f32.mrb[0].mxu0
    %1806 = vmatprep.mubr.f32.mxu0 0.0
    %1807 = vmatmul.mubr.f32.gmra.mrb[0].mxu0 %v1104
    %v1808 = vpop.f32.mrb[0].mxu0
    %v1809 = vadd.f32 %v1214, %v1808
    %v1810 = vpop.f32.mrb[0].mxu0
    %1811 = vmatprep.mubr.f32.mxu0 0.0
    %1812 = vmatmul.mubr.f32.gmra.mrb[0].mxu0 %v1105
    %v1813 = vpop.f32.mrb[0].mxu0
    %v1814 = vadd.f32 %v1214, %v1813
    %v1815 = vpop.f32.mrb[0].mxu0
    %1816 = vmatprep.mubr.f32.mxu0 0.0
    %1817 = vmatmul.mubr.f32.gmra.mrb[0].mxu0 %v1106
    %v1818 = vpop.f32.mrb[0].mxu0
    %v1819 = vadd.f32 %v1214, %v1818
    %v1820 = vpop.f32.mrb[0].mxu0
    %1821 = vmatprep.mubr.f32.mxu0 0.0
    %1822 = vmatmul.mubr.f32.gmra.mrb[0].mxu0 %v1107
    %v1823 = vpop.f32.mrb[0].mxu0
    %v1824 = vadd.f32 %v1214, %v1823
    %v1825 = vpop.f32.mrb[0].mxu0
    %1826 = vmatprep.mubr.f32.mxu0 0.0
    %1827 = vmatmul.mubr.f32.gmra.mrb[0].mxu0 %v1108
    %v1828 = vpop.f32.mrb[0].mxu0
    %v1829 = vadd.f32 %v1214, %v1828
    %v1830 = vpop.f32.mrb[0].mxu0
    %1831 = vmatprep.mubr.f32.mxu0 0.0
    %1832 = vmatmul.mubr.f32.gmra.mrb[0].mxu0 %v1109
    %v1833 = vpop.f32.mrb[0].mxu0
    %v1834 = vadd.f32 %v1214, %v1833
    %v1835 = vpop.f32.mrb[0].mxu0
    %1836 = vmatprep.mubr.f32.mxu0 0.0
    %1837 = vmatmul.mubr.f32.gmra.mrb[0].mxu0 %v1110
    %v1838 = vpop.f32.mrb[0].mxu0
    %v1839 = vadd.f32 %v1214, %v1838
    %v1840 = vpop.f32.mrb[0].mxu0
    %1841 = vmatprep.mubr.f32.mxu0 0.0
    %1842 = vmatmul.mubr.f32.gmra.mrb[0].mxu0 %v1111
    %v1843 = vpop.f32.mrb[0].mxu0
    %v1844 = vadd.f32 %v1214, %v1843
    %v1845 = vpop.f32.mrb[0].mxu0
    %1846 = vmatprep.mubr.f32.mxu0 0.0
    %1847 = vmatmul.mubr.f32.gmra.mrb[0].mxu0 %v1112
    %v1848 = vpop.f32.mrb[0].mxu0
    %v1849 = vadd.f32 %v1214, %v1848
    %v1850 = vpop.f32.mrb[0].mxu0
    %1851 = vmatprep.mubr.f32.mxu0 0.0
    %1852 = vmatmul.mubr.f32.gmra.mrb[0].mxu0 %v1113
    %v1853 = vpop.f32.mrb[0].mxu0
    %v1854 = vadd.f32 %v1214, %v1853
    %v1855 = vpop.f32.mrb[0].mxu0
    %1856 = vmatprep.mubr.f32.mxu0 0.0
    %1857 = vmatmul.mubr.f32.gmra.mrb[0].mxu0 %v1114
    %v1858 = vpop.f32.mrb[0].mxu0
    %v1859 = vadd.f32 %v1214, %v1858
    %v1860 = vpop.f32.mrb[0].mxu0
    %1861 = vmatprep.mubr.f32.mxu0 0.0
    %1862 = vmatmul.mubr.f32.gmra.mrb[0].mxu0 %v1115
    %v1863 = vpop.f32.mrb[0].mxu0
    %v1864 = vadd.f32 %v1214, %v1863
    %v1865 = vpop.f32.mrb[0].mxu0
    %1866 = vmatprep.mubr.f32.mxu0 0.0
    %1867 = vmatmul.mubr.f32.gmra.mrb[0].mxu0 %v1116
    %v1868 = vpop.f32.mrb[0].mxu0
    %v1869 = vadd.f32 %v1214, %v1868
    %v1870 = vpop.f32.mrb[0].mxu0
    %1871 = vmatprep.mubr.f32.mxu0 0.0
    %1872 = vmatmul.mubr.f32.gmra.mrb[0].mxu0 %v1117
    %v1873 = vpop.f32.mrb[0].mxu0
    %v1874 = vadd.f32 %v1214, %v1873
    %v1875 = vpop.f32.mrb[0].mxu0
    %1876 = vmatprep.mubr.f32.mxu0 0.0
    %1877 = vmatmul.mubr.f32.gmra.mrb[0].mxu0 %v1118
    %v1878 = vpop.f32.mrb[0].mxu0
    %v1879 = vadd.f32 %v1214, %v1878
    %v1880 = vpop.f32.mrb[0].mxu0
    %1881 = vmatprep.mubr.f32.mxu0 0.0
    %1882 = vmatmul.mubr.f32.gmra.mrb[0].mxu0 %v1119
    %v1883 = vpop.f32.mrb[0].mxu0
    %v1884 = vadd.f32 %v1214, %v1883
    %v1885 = vpop.f32.mrb[0].mxu0
    %1886 = vmatprep.mubr.f32.mxu0 0.0
    %1887 = vmatmul.mubr.f32.gmra.mrb[0].mxu0 %v1120
    %v1888 = vpop.f32.mrb[0].mxu0
    %v1889 = vadd.f32 %v1214, %v1888
    %v1890 = vpop.f32.mrb[0].mxu0
    %1891 = vmatprep.mubr.f32.mxu0 0.0
    %1892 = vmatmul.mubr.f32.gmra.mrb[0].mxu0 %v1121
    %v1893 = vpop.f32.mrb[0].mxu0
    %v1894 = vadd.f32 %v1214, %v1893
    %v1895 = vpop.f32.mrb[0].mxu0
    %1896 = vmatprep.mubr.f32.mxu0 0.0
    %1897 = vmatmul.mubr.f32.gmra.mrb[0].mxu0 %v1122
    %v1898 = vpop.f32.mrb[0].mxu0
    %v1899 = vadd.f32 %v1214, %v1898
    %v1900 = vpop.f32.mrb[0].mxu0
    %1901 = vmatprep.mubr.f32.mxu0 0.0
    %1902 = vmatmul.mubr.f32.gmra.mrb[0].mxu0 %v1123
    %v1903 = vpop.f32.mrb[0].mxu0
    %v1904 = vadd.f32 %v1214, %v1903
    %v1905 = vpop.f32.mrb[0].mxu0
    %1906 = vmatprep.mubr.f32.mxu0 0.0
    %1907 = vmatmul.mubr.f32.gmra.mrb[0].mxu0 %v1124
    %v1908 = vpop.f32.mrb[0].mxu0
    %v1909 = vadd.f32 %v1214, %v1908
    %v1910 = vpop.f32.mrb[0].mxu0
    %1911 = vmatprep.mubr.f32.mxu0 0.0
    %1912 = vmatmul.mubr.f32.gmra.mrb[0].mxu0 %v1125
    %v1913 = vpop.f32.mrb[0].mxu0
    %v1914 = vadd.f32 %v1214, %v1913
    %v1915 = vpop.f32.mrb[0].mxu0
    %1916 = vmatprep.mubr.f32.mxu0 0.0
    %1917 = vmatmul.mubr.f32.gmra.mrb[0].mxu0 %v1126
    %v1918 = vpop.f32.mrb[0].mxu0
    %v1919 = vadd.f32 %v1214, %v1918
    %v1920 = vpop.f32.mrb[0].mxu0
    %1921 = vmatprep.mubr.f32.mxu0 0.0
    %1922 = vmatmul.mubr.f32.gmra.mrb[0].mxu0 %v1127
    %v1923 = vpop.f32.mrb[0].mxu0
    %v1924 = vadd.f32 %v1214, %v1923
    %v1925 = vpop.f32.mrb[0].mxu0
    %1926 = vmatprep.mubr.f32.mxu0 0.0
    %1927 = vmatmul.mubr.f32.gmra.mrb[0].mxu0 %v1128
    %v1928 = vpop.f32.mrb[0].mxu0
    %v1929 = vadd.f32 %v1214, %v1928
    %v1930 = vpop.f32.mrb[0].mxu0
    %1931 = vmatprep.mubr.f32.mxu0 0.0
    %1932 = vmatmul.mubr.f32.gmra.mrb[0].mxu0 %v1129
    %v1933 = vpop.f32.mrb[0].mxu0
    %v1934 = vadd.f32 %v1214, %v1933
    %v1935 = vpop.f32.mrb[0].mxu0
    %1936 = vmatprep.mubr.f32.mxu0 0.0
    %1937 = vmatmul.mubr.f32.gmra.mrb[0].mxu0 %v1130
    %v1938 = vpop.f32.mrb[0].mxu0
    %v1939 = vadd.f32 %v1214, %v1938
    %v1940 = vpop.f32.mrb[0].mxu0
    %1941 = vmatprep.mubr.f32.mxu0 0.0
    %1942 = vmatmul.mubr.f32.gmra.mrb[0].mxu0 %v1131
    %v1943 = vpop.f32.mrb[0].mxu0
    %v1944 = vadd.f32 %v1214, %v1943
    %v1945 = vpop.f32.mrb[0].mxu0
    %1946 = vmatprep.mubr.f32.mxu0 0.0
    %1947 = vmatmul.mubr.f32.gmra.mrb[0].mxu0 %v1132
    %v1948 = vpop.f32.mrb[0].mxu0
    %v1949 = vadd.f32 %v1214, %v1948
    %v1950 = vpop.f32.mrb[0].mxu0
    %1951 = vmatprep.mubr.f32.mxu0 0.0
    %1952 = vmatmul.mubr.f32.gmra.mrb[0].mxu0 %v1133
    %v1953 = vpop.f32.mrb[0].mxu0
    %v1954 = vadd.f32 %v1214, %v1953
    %v1955 = vpop.f32.mrb[0].mxu0
    %1956 = vmatprep.mubr.f32.mxu0 0.0
    %1957 = vmatmul.mubr.f32.gmra.mrb[0].mxu0 %v1134
    %v1958 = vpop.f32.mrb[0].mxu0
    %v1959 = vadd.f32 %v1214, %v1958
    %v1960 = vpop.f32.mrb[0].mxu0
    %1961 = vmatprep.mubr.f32.mxu0 0.0
    %1962 = vmatmul.mubr.f32.gmra.mrb[0].mxu0 %v1135
    %v1963 = vpop.f32.mrb[0].mxu0
    %v1964 = vadd.f32 %v1214, %v1963
    %v1965 = vpop.f32.mrb[0].mxu0
    %1966 = vmatprep.mubr.f32.mxu0 0.0
    %1967 = vmatmul.mubr.f32.gmra.mrb[0].mxu0 %v1136
    %v1968 = vpop.f32.mrb[0].mxu0
    %v1969 = vadd.f32 %v1214, %v1968
    %v1970 = vpop.f32.mrb[0].mxu0
    %1971 = vmatprep.mubr.f32.mxu0 0.0
    %1972 = vmatmul.mubr.f32.gmra.mrb[0].mxu0 %v1137
    %v1973 = vpop.f32.mrb[0].mxu0
    %v1974 = vadd.f32 %v1214, %v1973
    %v1975 = vpop.f32.mrb[0].mxu0
    %1976 = vmatprep.mubr.f32.mxu0 0.0
    %1977 = vmatmul.mubr.f32.gmra.mrb[0].mxu0 %v1138
    %v1978 = vpop.f32.mrb[0].mxu0
    %v1979 = vadd.f32 %v1214, %v1978
    %v1980 = vpop.f32.mrb[0].mxu0
    %1981 = vmatprep.mubr.f32.mxu0 0.0
    %1982 = vmatmul.mubr.f32.gmra.mrb[0].mxu0 %v1139
    %v1983 = vpop.f32.mrb[0].mxu0
    %v1984 = vadd.f32 %v1214, %v1983
    %v1985 = vpop.f32.mrb[0].mxu0
    %1986 = vmatprep.mubr.f32.mxu0 0.0
    %1987 = vmatmul.mubr.f32.gmra.mrb[0].mxu0 %v1140
    %v1988 = vpop.f32.mrb[0].mxu0
    %v1989 = vadd.f32 %v1214, %v1988
    %v1990 = vpop.f32.mrb[0].mxu0
    %1991 = vmatprep.mubr.f32.mxu0 0.0
    %1992 = vmatmul.mubr.f32.gmra.mrb[0].mxu0 %v1141
    %v1993 = vpop.f32.mrb[0].mxu0
    %v1994 = vadd.f32 %v1214, %v1993
    %v1995 = vpop.f32.mrb[0].mxu0
    %1996 = vmatprep.mubr.f32.mxu0 0.0
    %1997 = vmatmul.mubr.f32.gmra.mrb[0].mxu0 %v1142
    %v1998 = vpop.f32.mrb[0].mxu0
    %v1999 = vadd.f32 %v1214, %v1998
    %v2000 = vpop.f32.mrb[0].mxu0
    %2001 = vmatprep.mubr.f32.mxu0 0.0
    %2002 = vmatmul.mubr.f32.gmra.mrb[0].mxu0 %v1143
    %v2003 = vpop.f32.mrb[0].mxu0
    %v2004 = vadd.f32 %v1214, %v2003
    %v2005 = vpop.f32.mrb[0].mxu0
    %2006 = vmatprep.mubr.f32.mxu0 0.0
    %2007 = vmatmul.mubr.f32.gmra.mrb[0].mxu0 %v1144
    %v2008 = vpop.f32.mrb[0].mxu0
    %v2009 = vadd.f32 %v1214, %v2008
    %v2010 = vpop.f32.mrb[0].mxu0
    %2011 = vmatprep.mubr.f32.mxu0 0.0
    %2012 = vmatmul.mubr.f32.gmra.mrb[0].mxu0 %v1145
    %v2013 = vpop.f32.mrb[0].mxu0
    %v2014 = vadd.f32 %v1214, %v2013
    %v2015 = vpop.f32.mrb[0].mxu0
    %2016 = vmatprep.mubr.f32.mxu0 0.0
    %2017 = vmatmul.mubr.f32.gmra.mrb[0].mxu0 %v1146
    %v2018 = vpop.f32.mrb[0].mxu0
    %v2019 = vadd.f32 %v1214, %v2018
    %v2020 = vpop.f32.mrb[0].mxu0
    %2021 = vmatprep.mubr.f32.mxu0 0.0
    %2022 = vmatmul.mubr.f32.gmra.mrb[0].mxu0 %v1147
    %v2023 = vpop.f32.mrb[0].mxu0
    %v2024 = vadd.f32 %v1214, %v2023
    %v2025 = vpop.f32.mrb[0].mxu0
    %2026 = vmatprep.mubr.f32.mxu0 0.0
    %2027 = vmatmul.mubr.f32.gmra.mrb[0].mxu0 %v1148
    %v2028 = vpop.f32.mrb[0].mxu0
    %v2029 = vadd.f32 %v1214, %v2028
    %v2030 = vpop.f32.mrb[0].mxu0
    %2031 = vmatprep.mubr.f32.mxu0 0.0
    %2032 = vmatmul.mubr.f32.gmra.mrb[0].mxu0 %v1149
    %v2033 = vpop.f32.mrb[0].mxu0
    %v2034 = vadd.f32 %v1214, %v2033
    %v2035 = vpop.f32.mrb[0].mxu0
    %2036 = vmatprep.mubr.f32.mxu0 0.0
    %2037 = vmatmul.mubr.f32.gmra.mrb[0].mxu0 %v1150
    %v2038 = vpop.f32.mrb[0].mxu0
    %v2039 = vadd.f32 %v1214, %v2038
    %v2040 = vpop.f32.mrb[0].mxu0
    %2041 = vmatprep.mubr.f32.mxu0 0.0
    %2042 = vmatmul.mubr.f32.gmra.mrb[0].mxu0 %v1151
    %v2043 = vpop.f32.mrb[0].mxu0
    %v2044 = vadd.f32 %v1214, %v2043
    %v2045 = vpop.f32.mrb[0].mxu0
    %2046 = vmatprep.mubr.f32.mxu0 0.0
    %2047 = vmatmul.mubr.f32.gmra.mrb[0].mxu0 %v1152
    %v2048 = vpop.f32.mrb[0].mxu0
    %v2049 = vadd.f32 %v1214, %v2048
    %v2050 = vpop.f32.mrb[0].mxu0
    %2051 = vdwg.mxu0
    %v2052 = vlaneseq
    %v2053 = vshrl.u32 %v2052, 7
    %v2054 = vadd.s32 %v2053, 8
    %v2055 = vadd.s32 %v2053, 16
    %v2056 = vadd.s32 %v2053, 24
    %v2057 = vadd.s32 %v2053, 32
    %v2058 = vadd.s32 %v2053, 40
    %v2059 = vadd.s32 %v2053, 48
    %v2060 = vadd.s32 %v2053, 56
    %v2061 = vadd.s32 %v2053, 64
    %v2062 = vadd.s32 %v2053, 72
    %v2063 = vadd.s32 %v2053, 80
    %v2064 = vadd.s32 %v2053, 88
    %v2065 = vadd.s32 %v2053, 96
    %v2066 = vadd.s32 %v2053, 104
    %v2067 = vadd.s32 %v2053, 112
    %v2068 = vadd.s32 %v2053, 120
    %v2069 = vlaneseq
    %v2070 = vand.u32 %v2069, 127
    %vm2071 = vcmp.ge.s32.totalorder %v2053, 32
    %vm2072 = vcmp.ge.s32.totalorder %v2054, 32
    %vm2073 = vcmp.ge.s32.totalorder %v2055, 32
    %vm2074 = vcmp.ge.s32.totalorder %v2056, 32
    %vm2075 = vcmp.ge.s32.totalorder %v2057, 32
    %vm2076 = vcmp.ge.s32.totalorder %v2058, 32
    %vm2077 = vcmp.ge.s32.totalorder %v2059, 32
    %vm2078 = vcmp.ge.s32.totalorder %v2060, 32
    %vm2079 = vcmp.ge.s32.totalorder %v2061, 32
    %vm2080 = vcmp.ge.s32.totalorder %v2062, 32
    %vm2081 = vcmp.ge.s32.totalorder %v2063, 32
    %vm2082 = vcmp.ge.s32.totalorder %v2064, 32
    %vm2083 = vcmp.ge.s32.totalorder %v2065, 32
    %vm2084 = vcmp.ge.s32.totalorder %v2066, 32
    %vm2085 = vcmp.ge.s32.totalorder %v2067, 32
    %vm2086 = vcmp.ge.s32.totalorder %v2068, 32
    %v2087 = vsel %vm2071, 1, 0
    %v2088 = vsel %vm2072, 1, 0
    %v2089 = vsel %vm2073, 1, 0
    %v2090 = vsel %vm2074, 1, 0
    %v2091 = vsel %vm2075, 1, 0
    %v2092 = vsel %vm2076, 1, 0
    %v2093 = vsel %vm2077, 1, 0
    %v2094 = vsel %vm2078, 1, 0
    %v2095 = vsel %vm2079, 1, 0
    %v2096 = vsel %vm2080, 1, 0
    %v2097 = vsel %vm2081, 1, 0
    %v2098 = vsel %vm2082, 1, 0
    %v2099 = vsel %vm2083, 1, 0
    %v2100 = vsel %vm2084, 1, 0
    %v2101 = vsel %vm2085, 1, 0
    %v2102 = vsel %vm2086, 1, 0
    %vm2103 = vcmp.ge.s32.totalorder %v2070, 32
    %v2104 = vsel %vm2103, 1, 0
    %vm2105 = vcmp.ge.s32.totalorder %v2053, 64
    %vm2106 = vcmp.ge.s32.totalorder %v2054, 64
    %vm2107 = vcmp.ge.s32.totalorder %v2055, 64
    %vm2108 = vcmp.ge.s32.totalorder %v2056, 64
    %vm2109 = vcmp.ge.s32.totalorder %v2057, 64
    %vm2110 = vcmp.ge.s32.totalorder %v2058, 64
    %vm2111 = vcmp.ge.s32.totalorder %v2059, 64
    %vm2112 = vcmp.ge.s32.totalorder %v2060, 64
    %vm2113 = vcmp.ge.s32.totalorder %v2061, 64
    %vm2114 = vcmp.ge.s32.totalorder %v2062, 64
    %vm2115 = vcmp.ge.s32.totalorder %v2063, 64
    %vm2116 = vcmp.ge.s32.totalorder %v2064, 64
    %vm2117 = vcmp.ge.s32.totalorder %v2065, 64
    %vm2118 = vcmp.ge.s32.totalorder %v2066, 64
    %vm2119 = vcmp.ge.s32.totalorder %v2067, 64
    %vm2120 = vcmp.ge.s32.totalorder %v2068, 64
    %v2121 = vsel %vm2105, 1, 0
    %v2122 = vsel %vm2106, 1, 0
    %v2123 = vsel %vm2107, 1, 0
    %v2124 = vsel %vm2108, 1, 0
    %v2125 = vsel %vm2109, 1, 0
    %v2126 = vsel %vm2110, 1, 0
    %v2127 = vsel %vm2111, 1, 0
    %v2128 = vsel %vm2112, 1, 0
    %v2129 = vsel %vm2113, 1, 0
    %v2130 = vsel %vm2114, 1, 0
    %v2131 = vsel %vm2115, 1, 0
    %v2132 = vsel %vm2116, 1, 0
    %v2133 = vsel %vm2117, 1, 0
    %v2134 = vsel %vm2118, 1, 0
    %v2135 = vsel %vm2119, 1, 0
    %v2136 = vsel %vm2120, 1, 0
    %v2137 = vadd.s32 %v2087, %v2121
    %v2138 = vadd.s32 %v2088, %v2122
    %v2139 = vadd.s32 %v2089, %v2123
    %v2140 = vadd.s32 %v2090, %v2124
    %v2141 = vadd.s32 %v2091, %v2125
    %v2142 = vadd.s32 %v2092, %v2126
    %v2143 = vadd.s32 %v2093, %v2127
    %v2144 = vadd.s32 %v2094, %v2128
    %v2145 = vadd.s32 %v2095, %v2129
    %v2146 = vadd.s32 %v2096, %v2130
    %v2147 = vadd.s32 %v2097, %v2131
    %v2148 = vadd.s32 %v2098, %v2132
    %v2149 = vadd.s32 %v2099, %v2133
    %v2150 = vadd.s32 %v2100, %v2134
    %v2151 = vadd.s32 %v2101, %v2135
    %v2152 = vadd.s32 %v2102, %v2136
    %vm2153 = vcmp.ge.s32.totalorder %v2070, 64
    %v2154 = vsel %vm2153, 1, 0
    %v2155 = vadd.s32 %v2104, %v2154
    %vm2156 = vcmp.ge.s32.totalorder %v2053, 96
    %vm2157 = vcmp.ge.s32.totalorder %v2054, 96
    %vm2158 = vcmp.ge.s32.totalorder %v2055, 96
    %vm2159 = vcmp.ge.s32.totalorder %v2056, 96
    %vm2160 = vcmp.ge.s32.totalorder %v2057, 96
    %vm2161 = vcmp.ge.s32.totalorder %v2058, 96
    %vm2162 = vcmp.ge.s32.totalorder %v2059, 96
    %vm2163 = vcmp.ge.s32.totalorder %v2060, 96
    %vm2164 = vcmp.ge.s32.totalorder %v2061, 96
    %vm2165 = vcmp.ge.s32.totalorder %v2062, 96
    %vm2166 = vcmp.ge.s32.totalorder %v2063, 96
    %vm2167 = vcmp.ge.s32.totalorder %v2064, 96
    %vm2168 = vcmp.ge.s32.totalorder %v2065, 96
    %vm2169 = vcmp.ge.s32.totalorder %v2066, 96
    %vm2170 = vcmp.ge.s32.totalorder %v2067, 96
    %vm2171 = vcmp.ge.s32.totalorder %v2068, 96
    %v2172 = vsel %vm2156, 1, 0
    %v2173 = vsel %vm2157, 1, 0
    %v2174 = vsel %vm2158, 1, 0
    %v2175 = vsel %vm2159, 1, 0
    %v2176 = vsel %vm2160, 1, 0
    %v2177 = vsel %vm2161, 1, 0
    %v2178 = vsel %vm2162, 1, 0
    %v2179 = vsel %vm2163, 1, 0
    %v2180 = vsel %vm2164, 1, 0
    %v2181 = vsel %vm2165, 1, 0
    %v2182 = vsel %vm2166, 1, 0
    %v2183 = vsel %vm2167, 1, 0
    %v2184 = vsel %vm2168, 1, 0
    %v2185 = vsel %vm2169, 1, 0
    %v2186 = vsel %vm2170, 1, 0
    %v2187 = vsel %vm2171, 1, 0
    %v2188 = vadd.s32 %v2137, %v2172
    %v2189 = vadd.s32 %v2138, %v2173
    %v2190 = vadd.s32 %v2139, %v2174
    %v2191 = vadd.s32 %v2140, %v2175
    %v2192 = vadd.s32 %v2141, %v2176
    %v2193 = vadd.s32 %v2142, %v2177
    %v2194 = vadd.s32 %v2143, %v2178
    %v2195 = vadd.s32 %v2144, %v2179
    %v2196 = vadd.s32 %v2145, %v2180
    %v2197 = vadd.s32 %v2146, %v2181
    %v2198 = vadd.s32 %v2147, %v2182
    %v2199 = vadd.s32 %v2148, %v2183
    %v2200 = vadd.s32 %v2149, %v2184
    %v2201 = vadd.s32 %v2150, %v2185
    %v2202 = vadd.s32 %v2151, %v2186
    %v2203 = vadd.s32 %v2152, %v2187
    %vm2204 = vcmp.ge.s32.totalorder %v2070, 96
    %v2205 = vsel %vm2204, 1, 0
    %v2206 = vadd.s32 %v2155, %v2205
    %vm2207 = vcmp.eq.s32.totalorder %v2188, %v2206
    %vm2208 = vcmp.eq.s32.totalorder %v2189, %v2206
    %vm2209 = vcmp.eq.s32.totalorder %v2190, %v2206
    %vm2210 = vcmp.eq.s32.totalorder %v2191, %v2206
    %vm2211 = vcmp.eq.s32.totalorder %v2192, %v2206
    %vm2212 = vcmp.eq.s32.totalorder %v2193, %v2206
    %vm2213 = vcmp.eq.s32.totalorder %v2194, %v2206
    %vm2214 = vcmp.eq.s32.totalorder %v2195, %v2206
    %vm2215 = vcmp.eq.s32.totalorder %v2196, %v2206
    %vm2216 = vcmp.eq.s32.totalorder %v2197, %v2206
    %vm2217 = vcmp.eq.s32.totalorder %v2198, %v2206
    %vm2218 = vcmp.eq.s32.totalorder %v2199, %v2206
    %vm2219 = vcmp.eq.s32.totalorder %v2200, %v2206
    %vm2220 = vcmp.eq.s32.totalorder %v2201, %v2206
    %vm2221 = vcmp.eq.s32.totalorder %v2202, %v2206
    %vm2222 = vcmp.eq.s32.totalorder %v2203, %v2206
    %v2223 = vsel %vm2207, 1, 0
    %v2224 = vsel %vm2208, 1, 0
    %v2225 = vsel %vm2209, 1, 0
    %v2226 = vsel %vm2210, 1, 0
    %v2227 = vsel %vm2211, 1, 0
    %v2228 = vsel %vm2212, 1, 0
    %v2229 = vsel %vm2213, 1, 0
    %v2230 = vsel %vm2214, 1, 0
    %v2231 = vsel %vm2215, 1, 0
    %v2232 = vsel %vm2216, 1, 0
    %v2233 = vsel %vm2217, 1, 0
    %v2234 = vsel %vm2218, 1, 0
    %v2235 = vsel %vm2219, 1, 0
    %v2236 = vsel %vm2220, 1, 0
    %v2237 = vsel %vm2221, 1, 0
    %v2238 = vsel %vm2222, 1, 0
    %v2239 = vcvt.s32.f32 %v2223
    %v2240 = vcvt.s32.f32 %v2224
    %v2241 = vcvt.s32.f32 %v2225
    %v2242 = vcvt.s32.f32 %v2226
    %v2243 = vcvt.s32.f32 %v2227
    %v2244 = vcvt.s32.f32 %v2228
    %v2245 = vcvt.s32.f32 %v2229
    %v2246 = vcvt.s32.f32 %v2230
    %v2247 = vcvt.s32.f32 %v2231
    %v2248 = vcvt.s32.f32 %v2232
    %v2249 = vcvt.s32.f32 %v2233
    %v2250 = vcvt.s32.f32 %v2234
    %v2251 = vcvt.s32.f32 %v2235
    %v2252 = vcvt.s32.f32 %v2236
    %v2253 = vcvt.s32.f32 %v2237
    %v2254 = vcvt.s32.f32 %v2238
    %v2255 = vmul.f32 %v2239, 0.17677669
    %v2256 = vmul.f32 %v2240, 0.17677669
    %v2257 = vmul.f32 %v2241, 0.17677669
    %v2258 = vmul.f32 %v2242, 0.17677669
    %v2259 = vmul.f32 %v2243, 0.17677669
    %v2260 = vmul.f32 %v2244, 0.17677669
    %v2261 = vmul.f32 %v2245, 0.17677669
    %v2262 = vmul.f32 %v2246, 0.17677669
    %v2263 = vmul.f32 %v2247, 0.17677669
    %v2264 = vmul.f32 %v2248, 0.17677669
    %v2265 = vmul.f32 %v2249, 0.17677669
    %v2266 = vmul.f32 %v2250, 0.17677669
    %v2267 = vmul.f32 %v2251, 0.17677669
    %v2268 = vmul.f32 %v2252, 0.17677669
    %v2269 = vmul.f32 %v2253, 0.17677669
    %v2270 = vmul.f32 %v2254, 0.17677669
    %v2271 = vmul.f32 %v1285, %v1287
    %v2272 = vmul.f32 %v1291, %v1293
    %v2273 = vmul.f32 %v1297, %v1299
    %v2274 = vmul.f32 %v1303, %v1305
    %v2275 = vmul.f32 %v1309, %v1311
    %v2276 = vmul.f32 %v1315, %v1317
    %v2277 = vmul.f32 %v1321, %v1323
    %v2278 = vmul.f32 %v1327, %v1329
    %v2279 = vmul.f32 %v1333, %v1335
    %v2280 = vmul.f32 %v1339, %v1341
    %v2281 = vmul.f32 %v1345, %v1347
    %v2282 = vmul.f32 %v1351, %v1353
    %v2283 = vmul.f32 %v1357, %v1359
    %v2284 = vmul.f32 %v1363, %v1365
    %v2285 = vmul.f32 %v1369, %v1371
    %v2286 = vmul.f32 %v1375, %v1377
    %v2287 = vmul.f32 %v1381, %v1383
    %v2288 = vmul.f32 %v1387, %v1389
    %v2289 = vmul.f32 %v1393, %v1395
    %v2290 = vmul.f32 %v1399, %v1401
    %v2291 = vmul.f32 %v1405, %v1407
    %v2292 = vmul.f32 %v1411, %v1413
    %v2293 = vmul.f32 %v1417, %v1419
    %v2294 = vmul.f32 %v1423, %v1425
    %v2295 = vmul.f32 %v1429, %v1431
    %v2296 = vmul.f32 %v1435, %v1437
    %v2297 = vmul.f32 %v1441, %v1443
    %v2298 = vmul.f32 %v1447, %v1449
    %v2299 = vmul.f32 %v1453, %v1455
    %v2300 = vmul.f32 %v1459, %v1461
    %v2301 = vmul.f32 %v1465, %v1467
    %v2302 = vmul.f32 %v1471, %v1473
    %v2303 = vmul.f32 %v1285, %v1479
    %v2304 = vmul.f32 %v1291, %v1485
    %v2305 = vmul.f32 %v1297, %v1491
    %v2306 = vmul.f32 %v1303, %v1497
    %v2307 = vmul.f32 %v1309, %v1503
    %v2308 = vmul.f32 %v1315, %v1509
    %v2309 = vmul.f32 %v1321, %v1515
    %v2310 = vmul.f32 %v1327, %v1521
    %v2311 = vmul.f32 %v1333, %v1527
    %v2312 = vmul.f32 %v1339, %v1533
    %v2313 = vmul.f32 %v1345, %v1539
    %v2314 = vmul.f32 %v1351, %v1545
    %v2315 = vmul.f32 %v1357, %v1551
    %v2316 = vmul.f32 %v1363, %v1557
    %v2317 = vmul.f32 %v1369, %v1563
    %v2318 = vmul.f32 %v1375, %v1569
    %v2319 = vmul.f32 %v1381, %v1575
    %v2320 = vmul.f32 %v1387, %v1581
    %v2321 = vmul.f32 %v1393, %v1587
    %v2322 = vmul.f32 %v1399, %v1593
    %v2323 = vmul.f32 %v1405, %v1599
    %v2324 = vmul.f32 %v1411, %v1605
    %v2325 = vmul.f32 %v1417, %v1611
    %v2326 = vmul.f32 %v1423, %v1617
    %v2327 = vmul.f32 %v1429, %v1623
    %v2328 = vmul.f32 %v1435, %v1629
    %v2329 = vmul.f32 %v1441, %v1635
    %v2330 = vmul.f32 %v1447, %v1641
    %v2331 = vmul.f32 %v1453, %v1647
    %v2332 = vmul.f32 %v1459, %v1653
    %v2333 = vmul.f32 %v1465, %v1659
    %v2334 = vmul.f32 %v1471, %v1665
    %v2335 = vmul.f32 %v1477, %v1287
    %v2336 = vmul.f32 %v1483, %v1293
    %v2337 = vmul.f32 %v1489, %v1299
    %v2338 = vmul.f32 %v1495, %v1305
    %v2339 = vmul.f32 %v1501, %v1311
    %v2340 = vmul.f32 %v1507, %v1317
    %v2341 = vmul.f32 %v1513, %v1323
    %v2342 = vmul.f32 %v1519, %v1329
    %v2343 = vmul.f32 %v1525, %v1335
    %v2344 = vmul.f32 %v1531, %v1341
    %v2345 = vmul.f32 %v1537, %v1347
    %v2346 = vmul.f32 %v1543, %v1353
    %v2347 = vmul.f32 %v1549, %v1359
    %v2348 = vmul.f32 %v1555, %v1365
    %v2349 = vmul.f32 %v1561, %v1371
    %v2350 = vmul.f32 %v1567, %v1377
    %v2351 = vmul.f32 %v1573, %v1383
    %v2352 = vmul.f32 %v1579, %v1389
    %v2353 = vmul.f32 %v1585, %v1395
    %v2354 = vmul.f32 %v1591, %v1401
    %v2355 = vmul.f32 %v1597, %v1407
    %v2356 = vmul.f32 %v1603, %v1413
    %v2357 = vmul.f32 %v1609, %v1419
    %v2358 = vmul.f32 %v1615, %v1425
    %v2359 = vmul.f32 %v1621, %v1431
    %v2360 = vmul.f32 %v1627, %v1437
    %v2361 = vmul.f32 %v1633, %v1443
    %v2362 = vmul.f32 %v1639, %v1449
    %v2363 = vmul.f32 %v1645, %v1455
    %v2364 = vmul.f32 %v1651, %v1461
    %v2365 = vmul.f32 %v1657, %v1467
    %v2366 = vmul.f32 %v1663, %v1473
    %v2367 = vmul.f32 %v1477, %v1479
    %v2368 = vmul.f32 %v1483, %v1485
    %v2369 = vmul.f32 %v1489, %v1491
    %v2370 = vmul.f32 %v1495, %v1497
    %v2371 = vmul.f32 %v1501, %v1503
    %v2372 = vmul.f32 %v1507, %v1509
    %v2373 = vmul.f32 %v1513, %v1515
    %v2374 = vmul.f32 %v1519, %v1521
    %v2375 = vmul.f32 %v1525, %v1527
    %v2376 = vmul.f32 %v1531, %v1533
    %v2377 = vmul.f32 %v1537, %v1539
    %v2378 = vmul.f32 %v1543, %v1545
    %v2379 = vmul.f32 %v1549, %v1551
    %v2380 = vmul.f32 %v1555, %v1557
    %v2381 = vmul.f32 %v1561, %v1563
    %v2382 = vmul.f32 %v1567, %v1569
    %v2383 = vmul.f32 %v1573, %v1575
    %v2384 = vmul.f32 %v1579, %v1581
    %v2385 = vmul.f32 %v1585, %v1587
    %v2386 = vmul.f32 %v1591, %v1593
    %v2387 = vmul.f32 %v1597, %v1599
    %v2388 = vmul.f32 %v1603, %v1605
    %v2389 = vmul.f32 %v1609, %v1611
    %v2390 = vmul.f32 %v1615, %v1617
    %v2391 = vmul.f32 %v1621, %v1623
    %v2392 = vmul.f32 %v1627, %v1629
    %v2393 = vmul.f32 %v1633, %v1635
    %v2394 = vmul.f32 %v1639, %v1641
    %v2395 = vmul.f32 %v1645, %v1647
    %v2396 = vmul.f32 %v1651, %v1653
    %v2397 = vmul.f32 %v1657, %v1659
    %v2398 = vmul.f32 %v1663, %v1665
    %2399 = vmatprep.subr.mxu0 0.0
    %2400 = vmatpush1.msra.mxu0 %v2255
    %2401 = vmatprep.subr.mxu0 0.0
    %2402 = vmatpush1.msra.mxu0 %v2256
    %2403 = vmatprep.subr.mxu0 0.0
    %2404 = vmatpush1.msra.mxu0 %v2257
    %2405 = vmatprep.subr.mxu0 0.0
    %2406 = vmatpush1.msra.mxu0 %v2258
    %2407 = vmatprep.subr.mxu0 0.0
    %2408 = vmatpush1.msra.mxu0 %v2259
    %2409 = vmatprep.subr.mxu0 0.0
    %2410 = vmatpush1.msra.mxu0 %v2260
    %2411 = vmatprep.subr.mxu0 0.0
    %2412 = vmatpush1.msra.mxu0 %v2261
    %2413 = vmatprep.subr.mxu0 0.0
    %2414 = vmatpush1.msra.mxu0 %v2262
    %2415 = vmatprep.subr.mxu0 0.0
    %2416 = vmatpush1.msra.mxu0 %v2263
    %2417 = vmatprep.subr.mxu0 0.0
    %2418 = vmatpush1.msra.mxu0 %v2264
    %2419 = vmatprep.subr.mxu0 0.0
    %2420 = vmatpush1.msra.mxu0 %v2265
    %2421 = vmatprep.subr.mxu0 0.0
    %2422 = vmatpush1.msra.mxu0 %v2266
    %2423 = vmatprep.subr.mxu0 0.0
    %2424 = vmatpush1.msra.mxu0 %v2267
    %2425 = vmatprep.subr.mxu0 0.0
    %2426 = vmatpush1.msra.mxu0 %v2268
    %2427 = vmatprep.subr.mxu0 0.0
    %2428 = vmatpush1.msra.mxu0 %v2269
    %2429 = vmatprep.subr.mxu0 0.0
    %2430 = vmatpush1.msra.mxu0 %v2270
    %2431 = vmatprep.subr.mxu0 0.0
    %2432 = vmatpush1.msra.mxu0 0.0
    %2433 = vmatprep.subr.mxu0 0.0
    %2434 = vmatpush1.msra.mxu0 0.0
    %2435 = vmatprep.subr.mxu0 0.0
    %2436 = vmatpush1.msra.mxu0 0.0
    %2437 = vmatprep.subr.mxu0 0.0
    %2438 = vmatpush1.msra.mxu0 0.0
    %2439 = vmatprep.subr.mxu0 0.0
    %2440 = vmatpush1.msra.mxu0 0.0
    %2441 = vmatprep.subr.mxu0 0.0
    %2442 = vmatpush1.msra.mxu0 0.0
    %2443 = vmatprep.subr.mxu0 0.0
    %2444 = vmatpush1.msra.mxu0 0.0
    %2445 = vmatprep.subr.mxu0 0.0
    %2446 = vmatpush1.msra.mxu0 0.0
    %2447 = vmatprep.subr.mxu0 0.0
    %2448 = vmatpush1.msra.mxu0 0.0
    %2449 = vmatprep.subr.mxu0 0.0
    %2450 = vmatpush1.msra.mxu0 0.0
    %2451 = vmatprep.subr.mxu0 0.0
    %2452 = vmatpush1.msra.mxu0 0.0
    %2453 = vmatprep.subr.mxu0 0.0
    %2454 = vmatpush1.msra.mxu0 0.0
    %2455 = vmatprep.subr.mxu0 0.0
    %2456 = vmatpush1.msra.mxu0 0.0
    %2457 = vmatprep.subr.mxu0 0.0
    %2458 = vmatpush1.msra.mxu0 0.0
    %2459 = vmatprep.subr.mxu0 0.0
    %2460 = vmatpush1.msra.mxu0 0.0
    %2461 = vmatprep.subr.mxu0 0.0
    %2462 = vmatpush1.msra.mxu0 0.0
    %2463 = vmatprep.mubr.f32.mxu0 0.0
    %2464 = vmatmul.mubr.f32.gmra.mrb[0].mxu0 %v2271
    %v2465 = vpop.f32.mrb[0].mxu0
    %v2466 = vadd.f32 0.0, %v2465
    %v2467 = vpop.f32.mrb[0].mxu0
    %2468 = vmatprep.mubr.f32.mxu0 0.0
    %2469 = vmatmul.mubr.f32.gmra.mrb[0].mxu0 %v2272
    %v2470 = vpop.f32.mrb[0].mxu0
    %v2471 = vadd.f32 0.0, %v2470
    %v2472 = vpop.f32.mrb[0].mxu0
    %2473 = vmatprep.mubr.f32.mxu0 0.0
    %2474 = vmatmul.mubr.f32.gmra.mrb[0].mxu0 %v2273
    %v2475 = vpop.f32.mrb[0].mxu0
    %v2476 = vadd.f32 0.0, %v2475
    %v2477 = vpop.f32.mrb[0].mxu0
    %2478 = vmatprep.mubr.f32.mxu0 0.0
    %2479 = vmatmul.mubr.f32.gmra.mrb[0].mxu0 %v2274
    %v2480 = vpop.f32.mrb[0].mxu0
    %v2481 = vadd.f32 0.0, %v2480
    %v2482 = vpop.f32.mrb[0].mxu0
    %2483 = vmatprep.mubr.f32.mxu0 0.0
    %2484 = vmatmul.mubr.f32.gmra.mrb[0].mxu0 %v2275
    %v2485 = vpop.f32.mrb[0].mxu0
    %v2486 = vadd.f32 0.0, %v2485
    %v2487 = vpop.f32.mrb[0].mxu0
    %2488 = vmatprep.mubr.f32.mxu0 0.0
    %2489 = vmatmul.mubr.f32.gmra.mrb[0].mxu0 %v2276
    %v2490 = vpop.f32.mrb[0].mxu0
    %v2491 = vadd.f32 0.0, %v2490
    %v2492 = vpop.f32.mrb[0].mxu0
    %2493 = vmatprep.mubr.f32.mxu0 0.0
    %2494 = vmatmul.mubr.f32.gmra.mrb[0].mxu0 %v2277
    %v2495 = vpop.f32.mrb[0].mxu0
    %v2496 = vadd.f32 0.0, %v2495
    %v2497 = vpop.f32.mrb[0].mxu0
    %2498 = vmatprep.mubr.f32.mxu0 0.0
    %2499 = vmatmul.mubr.f32.gmra.mrb[0].mxu0 %v2278
    %v2500 = vpop.f32.mrb[0].mxu0
    %v2501 = vadd.f32 0.0, %v2500
    %v2502 = vpop.f32.mrb[0].mxu0
    %2503 = vmatprep.mubr.f32.mxu0 0.0
    %2504 = vmatmul.mubr.f32.gmra.mrb[0].mxu0 %v2279
    %v2505 = vpop.f32.mrb[0].mxu0
    %v2506 = vadd.f32 0.0, %v2505
    %v2507 = vpop.f32.mrb[0].mxu0
    %2508 = vmatprep.mubr.f32.mxu0 0.0
    %2509 = vmatmul.mubr.f32.gmra.mrb[0].mxu0 %v2280
    %v2510 = vpop.f32.mrb[0].mxu0
    %v2511 = vadd.f32 0.0, %v2510
    %v2512 = vpop.f32.mrb[0].mxu0
    %2513 = vmatprep.mubr.f32.mxu0 0.0
    %2514 = vmatmul.mubr.f32.gmra.mrb[0].mxu0 %v2281
    %v2515 = vpop.f32.mrb[0].mxu0
    %v2516 = vadd.f32 0.0, %v2515
    %v2517 = vpop.f32.mrb[0].mxu0
    %2518 = vmatprep.mubr.f32.mxu0 0.0
    %2519 = vmatmul.mubr.f32.gmra.mrb[0].mxu0 %v2282
    %v2520 = vpop.f32.mrb[0].mxu0
    %v2521 = vadd.f32 0.0, %v2520
    %v2522 = vpop.f32.mrb[0].mxu0
    %2523 = vmatprep.mubr.f32.mxu0 0.0
    %2524 = vmatmul.mubr.f32.gmra.mrb[0].mxu0 %v2283
    %v2525 = vpop.f32.mrb[0].mxu0
    %v2526 = vadd.f32 0.0, %v2525
    %v2527 = vpop.f32.mrb[0].mxu0
    %2528 = vmatprep.mubr.f32.mxu0 0.0
    %2529 = vmatmul.mubr.f32.gmra.mrb[0].mxu0 %v2284
    %v2530 = vpop.f32.mrb[0].mxu0
    %v2531 = vadd.f32 0.0, %v2530
    %v2532 = vpop.f32.mrb[0].mxu0
    %2533 = vmatprep.mubr.f32.mxu0 0.0
    %2534 = vmatmul.mubr.f32.gmra.mrb[0].mxu0 %v2285
    %v2535 = vpop.f32.mrb[0].mxu0
    %v2536 = vadd.f32 0.0, %v2535
    %v2537 = vpop.f32.mrb[0].mxu0
    %2538 = vmatprep.mubr.f32.mxu0 0.0
    %2539 = vmatmul.mubr.f32.gmra.mrb[0].mxu0 %v2286
    %v2540 = vpop.f32.mrb[0].mxu0
    %v2541 = vadd.f32 0.0, %v2540
    %v2542 = vpop.f32.mrb[0].mxu0
    %2543 = vmatprep.mubr.f32.mxu0 0.0
    %2544 = vmatmul.mubr.f32.gmra.mrb[0].mxu0 %v2287
    %v2545 = vpop.f32.mrb[0].mxu0
    %v2546 = vadd.f32 0.0, %v2545
    %v2547 = vpop.f32.mrb[0].mxu0
    %2548 = vmatprep.mubr.f32.mxu0 0.0
    %2549 = vmatmul.mubr.f32.gmra.mrb[0].mxu0 %v2288
    %v2550 = vpop.f32.mrb[0].mxu0
    %v2551 = vadd.f32 0.0, %v2550
    %v2552 = vpop.f32.mrb[0].mxu0
    %2553 = vmatprep.mubr.f32.mxu0 0.0
    %2554 = vmatmul.mubr.f32.gmra.mrb[0].mxu0 %v2289
    %v2555 = vpop.f32.mrb[0].mxu0
    %v2556 = vadd.f32 0.0, %v2555
    %v2557 = vpop.f32.mrb[0].mxu0
    %2558 = vmatprep.mubr.f32.mxu0 0.0
    %2559 = vmatmul.mubr.f32.gmra.mrb[0].mxu0 %v2290
    %v2560 = vpop.f32.mrb[0].mxu0
    %v2561 = vadd.f32 0.0, %v2560
    %v2562 = vpop.f32.mrb[0].mxu0
    %2563 = vmatprep.mubr.f32.mxu0 0.0
    %2564 = vmatmul.mubr.f32.gmra.mrb[0].mxu0 %v2291
    %v2565 = vpop.f32.mrb[0].mxu0
    %v2566 = vadd.f32 0.0, %v2565
    %v2567 = vpop.f32.mrb[0].mxu0
    %2568 = vmatprep.mubr.f32.mxu0 0.0
    %2569 = vmatmul.mubr.f32.gmra.mrb[0].mxu0 %v2292
    %v2570 = vpop.f32.mrb[0].mxu0
    %v2571 = vadd.f32 0.0, %v2570
    %v2572 = vpop.f32.mrb[0].mxu0
    %2573 = vmatprep.mubr.f32.mxu0 0.0
    %2574 = vmatmul.mubr.f32.gmra.mrb[0].mxu0 %v2293
    %v2575 = vpop.f32.mrb[0].mxu0
    %v2576 = vadd.f32 0.0, %v2575
    %v2577 = vpop.f32.mrb[0].mxu0
    %2578 = vmatprep.mubr.f32.mxu0 0.0
    %2579 = vmatmul.mubr.f32.gmra.mrb[0].mxu0 %v2294
    %v2580 = vpop.f32.mrb[0].mxu0
    %v2581 = vadd.f32 0.0, %v2580
    %v2582 = vpop.f32.mrb[0].mxu0
    %2583 = vmatprep.mubr.f32.mxu0 0.0
    %2584 = vmatmul.mubr.f32.gmra.mrb[0].mxu0 %v2295
    %v2585 = vpop.f32.mrb[0].mxu0
    %v2586 = vadd.f32 0.0, %v2585
    %v2587 = vpop.f32.mrb[0].mxu0
    %2588 = vmatprep.mubr.f32.mxu0 0.0
    %2589 = vmatmul.mubr.f32.gmra.mrb[0].mxu0 %v2296
    %v2590 = vpop.f32.mrb[0].mxu0
    %v2591 = vadd.f32 0.0, %v2590
    %v2592 = vpop.f32.mrb[0].mxu0
    %2593 = vmatprep.mubr.f32.mxu0 0.0
    %2594 = vmatmul.mubr.f32.gmra.mrb[0].mxu0 %v2297
    %v2595 = vpop.f32.mrb[0].mxu0
    %v2596 = vadd.f32 0.0, %v2595
    %v2597 = vpop.f32.mrb[0].mxu0
    %2598 = vmatprep.mubr.f32.mxu0 0.0
    %2599 = vmatmul.mubr.f32.gmra.mrb[0].mxu0 %v2298
    %v2600 = vpop.f32.mrb[0].mxu0
    %v2601 = vadd.f32 0.0, %v2600
    %v2602 = vpop.f32.mrb[0].mxu0
    %2603 = vmatprep.mubr.f32.mxu0 0.0
    %2604 = vmatmul.mubr.f32.gmra.mrb[0].mxu0 %v2299
    %v2605 = vpop.f32.mrb[0].mxu0
    %v2606 = vadd.f32 0.0, %v2605
    %v2607 = vpop.f32.mrb[0].mxu0
    %2608 = vmatprep.mubr.f32.mxu0 0.0
    %2609 = vmatmul.mubr.f32.gmra.mrb[0].mxu0 %v2300
    %v2610 = vpop.f32.mrb[0].mxu0
    %v2611 = vadd.f32 0.0, %v2610
    %v2612 = vpop.f32.mrb[0].mxu0
    %2613 = vmatprep.mubr.f32.mxu0 0.0
    %2614 = vmatmul.mubr.f32.gmra.mrb[0].mxu0 %v2301
    %v2615 = vpop.f32.mrb[0].mxu0
    %v2616 = vadd.f32 0.0, %v2615
    %v2617 = vpop.f32.mrb[0].mxu0
    %2618 = vmatprep.mubr.f32.mxu0 0.0
    %2619 = vmatmul.mubr.f32.gmra.mrb[0].mxu0 %v2302
    %v2620 = vpop.f32.mrb[0].mxu0
    %v2621 = vadd.f32 0.0, %v2620
    %v2622 = vpop.f32.mrb[0].mxu0
    %2623 = vmatprep.mubr.f32.mxu0 0.0
    %2624 = vmatmul.mubr.f32.gmra.mrb[0].mxu0 %v2303
    %v2625 = vpop.f32.mrb[0].mxu0
    %v2626 = vadd.f32 0.0, %v2625
    %v2627 = vpop.f32.mrb[0].mxu0
    %2628 = vmatprep.mubr.f32.mxu0 0.0
    %2629 = vmatmul.mubr.f32.gmra.mrb[0].mxu0 %v2304
    %v2630 = vpop.f32.mrb[0].mxu0
    %v2631 = vadd.f32 0.0, %v2630
    %v2632 = vpop.f32.mrb[0].mxu0
    %2633 = vmatprep.mubr.f32.mxu0 0.0
    %2634 = vmatmul.mubr.f32.gmra.mrb[0].mxu0 %v2305
    %v2635 = vpop.f32.mrb[0].mxu0
    %v2636 = vadd.f32 0.0, %v2635
    %v2637 = vpop.f32.mrb[0].mxu0
    %2638 = vmatprep.mubr.f32.mxu0 0.0
    %2639 = vmatmul.mubr.f32.gmra.mrb[0].mxu0 %v2306
    %v2640 = vpop.f32.mrb[0].mxu0
    %v2641 = vadd.f32 0.0, %v2640
    %v2642 = vpop.f32.mrb[0].mxu0
    %2643 = vmatprep.mubr.f32.mxu0 0.0
    %2644 = vmatmul.mubr.f32.gmra.mrb[0].mxu0 %v2307
    %v2645 = vpop.f32.mrb[0].mxu0
    %v2646 = vadd.f32 0.0, %v2645
    %v2647 = vpop.f32.mrb[0].mxu0
    %2648 = vmatprep.mubr.f32.mxu0 0.0
    %2649 = vmatmul.mubr.f32.gmra.mrb[0].mxu0 %v2308
    %v2650 = vpop.f32.mrb[0].mxu0
    %v2651 = vadd.f32 0.0, %v2650
    %v2652 = vpop.f32.mrb[0].mxu0
    %2653 = vmatprep.mubr.f32.mxu0 0.0
    %2654 = vmatmul.mubr.f32.gmra.mrb[0].mxu0 %v2309
    %v2655 = vpop.f32.mrb[0].mxu0
    %v2656 = vadd.f32 0.0, %v2655
    %v2657 = vpop.f32.mrb[0].mxu0
    %2658 = vmatprep.mubr.f32.mxu0 0.0
    %2659 = vmatmul.mubr.f32.gmra.mrb[0].mxu0 %v2310
    %v2660 = vpop.f32.mrb[0].mxu0
    %v2661 = vadd.f32 0.0, %v2660
    %v2662 = vpop.f32.mrb[0].mxu0
    %2663 = vmatprep.mubr.f32.mxu0 0.0
    %2664 = vmatmul.mubr.f32.gmra.mrb[0].mxu0 %v2311
    %v2665 = vpop.f32.mrb[0].mxu0
    %v2666 = vadd.f32 0.0, %v2665
    %v2667 = vpop.f32.mrb[0].mxu0
    %2668 = vmatprep.mubr.f32.mxu0 0.0
    %2669 = vmatmul.mubr.f32.gmra.mrb[0].mxu0 %v2312
    %v2670 = vpop.f32.mrb[0].mxu0
    %v2671 = vadd.f32 0.0, %v2670
    %v2672 = vpop.f32.mrb[0].mxu0
    %2673 = vmatprep.mubr.f32.mxu0 0.0
    %2674 = vmatmul.mubr.f32.gmra.mrb[0].mxu0 %v2313
    %v2675 = vpop.f32.mrb[0].mxu0
    %v2676 = vadd.f32 0.0, %v2675
    %v2677 = vpop.f32.mrb[0].mxu0
    %2678 = vmatprep.mubr.f32.mxu0 0.0
    %2679 = vmatmul.mubr.f32.gmra.mrb[0].mxu0 %v2314
    %v2680 = vpop.f32.mrb[0].mxu0
    %v2681 = vadd.f32 0.0, %v2680
    %v2682 = vpop.f32.mrb[0].mxu0
    %2683 = vmatprep.mubr.f32.mxu0 0.0
    %2684 = vmatmul.mubr.f32.gmra.mrb[0].mxu0 %v2315
    %v2685 = vpop.f32.mrb[0].mxu0
    %v2686 = vadd.f32 0.0, %v2685
    %v2687 = vpop.f32.mrb[0].mxu0
    %2688 = vmatprep.mubr.f32.mxu0 0.0
    %2689 = vmatmul.mubr.f32.gmra.mrb[0].mxu0 %v2316
    %v2690 = vpop.f32.mrb[0].mxu0
    %v2691 = vadd.f32 0.0, %v2690
    %v2692 = vpop.f32.mrb[0].mxu0
    %2693 = vmatprep.mubr.f32.mxu0 0.0
    %2694 = vmatmul.mubr.f32.gmra.mrb[0].mxu0 %v2317
    %v2695 = vpop.f32.mrb[0].mxu0
    %v2696 = vadd.f32 0.0, %v2695
    %v2697 = vpop.f32.mrb[0].mxu0
    %2698 = vmatprep.mubr.f32.mxu0 0.0
    %2699 = vmatmul.mubr.f32.gmra.mrb[0].mxu0 %v2318
    %v2700 = vpop.f32.mrb[0].mxu0
    %v2701 = vadd.f32 0.0, %v2700
    %v2702 = vpop.f32.mrb[0].mxu0
    %2703 = vmatprep.mubr.f32.mxu0 0.0
    %2704 = vmatmul.mubr.f32.gmra.mrb[0].mxu0 %v2319
    %v2705 = vpop.f32.mrb[0].mxu0
    %v2706 = vadd.f32 0.0, %v2705
    %v2707 = vpop.f32.mrb[0].mxu0
    %2708 = vmatprep.mubr.f32.mxu0 0.0
    %2709 = vmatmul.mubr.f32.gmra.mrb[0].mxu0 %v2320
    %v2710 = vpop.f32.mrb[0].mxu0
    %v2711 = vadd.f32 0.0, %v2710
    %v2712 = vpop.f32.mrb[0].mxu0
    %2713 = vmatprep.mubr.f32.mxu0 0.0
    %2714 = vmatmul.mubr.f32.gmra.mrb[0].mxu0 %v2321
    %v2715 = vpop.f32.mrb[0].mxu0
    %v2716 = vadd.f32 0.0, %v2715
    %v2717 = vpop.f32.mrb[0].mxu0
    %2718 = vmatprep.mubr.f32.mxu0 0.0
    %2719 = vmatmul.mubr.f32.gmra.mrb[0].mxu0 %v2322
    %v2720 = vpop.f32.mrb[0].mxu0
    %v2721 = vadd.f32 0.0, %v2720
    %v2722 = vpop.f32.mrb[0].mxu0
    %2723 = vmatprep.mubr.f32.mxu0 0.0
    %2724 = vmatmul.mubr.f32.gmra.mrb[0].mxu0 %v2323
    %v2725 = vpop.f32.mrb[0].mxu0
    %v2726 = vadd.f32 0.0, %v2725
    %v2727 = vpop.f32.mrb[0].mxu0
    %2728 = vmatprep.mubr.f32.mxu0 0.0
    %2729 = vmatmul.mubr.f32.gmra.mrb[0].mxu0 %v2324
    %v2730 = vpop.f32.mrb[0].mxu0
    %v2731 = vadd.f32 0.0, %v2730
    %v2732 = vpop.f32.mrb[0].mxu0
    %2733 = vmatprep.mubr.f32.mxu0 0.0
    %2734 = vmatmul.mubr.f32.gmra.mrb[0].mxu0 %v2325
    %v2735 = vpop.f32.mrb[0].mxu0
    %v2736 = vadd.f32 0.0, %v2735
    %v2737 = vpop.f32.mrb[0].mxu0
    %2738 = vmatprep.mubr.f32.mxu0 0.0
    %2739 = vmatmul.mubr.f32.gmra.mrb[0].mxu0 %v2326
    %v2740 = vpop.f32.mrb[0].mxu0
    %v2741 = vadd.f32 0.0, %v2740
    %v2742 = vpop.f32.mrb[0].mxu0
    %2743 = vmatprep.mubr.f32.mxu0 0.0
    %2744 = vmatmul.mubr.f32.gmra.mrb[0].mxu0 %v2327
    %v2745 = vpop.f32.mrb[0].mxu0
    %v2746 = vadd.f32 0.0, %v2745
    %v2747 = vpop.f32.mrb[0].mxu0
    %2748 = vmatprep.mubr.f32.mxu0 0.0
    %2749 = vmatmul.mubr.f32.gmra.mrb[0].mxu0 %v2328
    %v2750 = vpop.f32.mrb[0].mxu0
    %v2751 = vadd.f32 0.0, %v2750
    %v2752 = vpop.f32.mrb[0].mxu0
    %2753 = vmatprep.mubr.f32.mxu0 0.0
    %2754 = vmatmul.mubr.f32.gmra.mrb[0].mxu0 %v2329
    %v2755 = vpop.f32.mrb[0].mxu0
    %v2756 = vadd.f32 0.0, %v2755
    %v2757 = vpop.f32.mrb[0].mxu0
    %2758 = vmatprep.mubr.f32.mxu0 0.0
    %2759 = vmatmul.mubr.f32.gmra.mrb[0].mxu0 %v2330
    %v2760 = vpop.f32.mrb[0].mxu0
    %v2761 = vadd.f32 0.0, %v2760
    %v2762 = vpop.f32.mrb[0].mxu0
    %2763 = vmatprep.mubr.f32.mxu0 0.0
    %2764 = vmatmul.mubr.f32.gmra.mrb[0].mxu0 %v2331
    %v2765 = vpop.f32.mrb[0].mxu0
    %v2766 = vadd.f32 0.0, %v2765
    %v2767 = vpop.f32.mrb[0].mxu0
    %2768 = vmatprep.mubr.f32.mxu0 0.0
    %2769 = vmatmul.mubr.f32.gmra.mrb[0].mxu0 %v2332
    %v2770 = vpop.f32.mrb[0].mxu0
    %v2771 = vadd.f32 0.0, %v2770
    %v2772 = vpop.f32.mrb[0].mxu0
    %2773 = vmatprep.mubr.f32.mxu0 0.0
    %2774 = vmatmul.mubr.f32.gmra.mrb[0].mxu0 %v2333
    %v2775 = vpop.f32.mrb[0].mxu0
    %v2776 = vadd.f32 0.0, %v2775
    %v2777 = vpop.f32.mrb[0].mxu0
    %2778 = vmatprep.mubr.f32.mxu0 0.0
    %2779 = vmatmul.mubr.f32.gmra.mrb[0].mxu0 %v2334
    %v2780 = vpop.f32.mrb[0].mxu0
    %v2781 = vadd.f32 0.0, %v2780
    %v2782 = vpop.f32.mrb[0].mxu0
    %2783 = vmatprep.mubr.f32.mxu0 0.0
    %2784 = vmatmul.mubr.f32.gmra.mrb[0].mxu0 %v2335
    %v2785 = vpop.f32.mrb[0].mxu0
    %v2786 = vadd.f32 0.0, %v2785
    %v2787 = vpop.f32.mrb[0].mxu0
    %2788 = vmatprep.mubr.f32.mxu0 0.0
    %2789 = vmatmul.mubr.f32.gmra.mrb[0].mxu0 %v2336
    %v2790 = vpop.f32.mrb[0].mxu0
    %v2791 = vadd.f32 0.0, %v2790
    %v2792 = vpop.f32.mrb[0].mxu0
    %2793 = vmatprep.mubr.f32.mxu0 0.0
    %2794 = vmatmul.mubr.f32.gmra.mrb[0].mxu0 %v2337
    %v2795 = vpop.f32.mrb[0].mxu0
    %v2796 = vadd.f32 0.0, %v2795
    %v2797 = vpop.f32.mrb[0].mxu0
    %2798 = vmatprep.mubr.f32.mxu0 0.0
    %2799 = vmatmul.mubr.f32.gmra.mrb[0].mxu0 %v2338
    %v2800 = vpop.f32.mrb[0].mxu0
    %v2801 = vadd.f32 0.0, %v2800
    %v2802 = vpop.f32.mrb[0].mxu0
    %2803 = vmatprep.mubr.f32.mxu0 0.0
    %2804 = vmatmul.mubr.f32.gmra.mrb[0].mxu0 %v2339
    %v2805 = vpop.f32.mrb[0].mxu0
    %v2806 = vadd.f32 0.0, %v2805
    %v2807 = vpop.f32.mrb[0].mxu0
    %2808 = vmatprep.mubr.f32.mxu0 0.0
    %2809 = vmatmul.mubr.f32.gmra.mrb[0].mxu0 %v2340
    %v2810 = vpop.f32.mrb[0].mxu0
    %v2811 = vadd.f32 0.0, %v2810
    %v2812 = vpop.f32.mrb[0].mxu0
    %2813 = vmatprep.mubr.f32.mxu0 0.0
    %2814 = vmatmul.mubr.f32.gmra.mrb[0].mxu0 %v2341
    %v2815 = vpop.f32.mrb[0].mxu0
    %v2816 = vadd.f32 0.0, %v2815
    %v2817 = vpop.f32.mrb[0].mxu0
    %2818 = vmatprep.mubr.f32.mxu0 0.0
    %2819 = vmatmul.mubr.f32.gmra.mrb[0].mxu0 %v2342
    %v2820 = vpop.f32.mrb[0].mxu0
    %v2821 = vadd.f32 0.0, %v2820
    %v2822 = vpop.f32.mrb[0].mxu0
    %2823 = vmatprep.mubr.f32.mxu0 0.0
    %2824 = vmatmul.mubr.f32.gmra.mrb[0].mxu0 %v2343
    %v2825 = vpop.f32.mrb[0].mxu0
    %v2826 = vadd.f32 0.0, %v2825
    %v2827 = vpop.f32.mrb[0].mxu0
    %2828 = vmatprep.mubr.f32.mxu0 0.0
    %2829 = vmatmul.mubr.f32.gmra.mrb[0].mxu0 %v2344
    %v2830 = vpop.f32.mrb[0].mxu0
    %v2831 = vadd.f32 0.0, %v2830
    %v2832 = vpop.f32.mrb[0].mxu0
    %2833 = vmatprep.mubr.f32.mxu0 0.0
    %2834 = vmatmul.mubr.f32.gmra.mrb[0].mxu0 %v2345
    %v2835 = vpop.f32.mrb[0].mxu0
    %v2836 = vadd.f32 0.0, %v2835
    %v2837 = vpop.f32.mrb[0].mxu0
    %2838 = vmatprep.mubr.f32.mxu0 0.0
    %2839 = vmatmul.mubr.f32.gmra.mrb[0].mxu0 %v2346
    %v2840 = vpop.f32.mrb[0].mxu0
    %v2841 = vadd.f32 0.0, %v2840
    %v2842 = vpop.f32.mrb[0].mxu0
    %2843 = vmatprep.mubr.f32.mxu0 0.0
    %2844 = vmatmul.mubr.f32.gmra.mrb[0].mxu0 %v2347
    %v2845 = vpop.f32.mrb[0].mxu0
    %v2846 = vadd.f32 0.0, %v2845
    %v2847 = vpop.f32.mrb[0].mxu0
    %2848 = vmatprep.mubr.f32.mxu0 0.0
    %2849 = vmatmul.mubr.f32.gmra.mrb[0].mxu0 %v2348
    %v2850 = vpop.f32.mrb[0].mxu0
    %v2851 = vadd.f32 0.0, %v2850
    %v2852 = vpop.f32.mrb[0].mxu0
    %2853 = vmatprep.mubr.f32.mxu0 0.0
    %2854 = vmatmul.mubr.f32.gmra.mrb[0].mxu0 %v2349
    %v2855 = vpop.f32.mrb[0].mxu0
    %v2856 = vadd.f32 0.0, %v2855
    %v2857 = vpop.f32.mrb[0].mxu0
    %2858 = vmatprep.mubr.f32.mxu0 0.0
    %2859 = vmatmul.mubr.f32.gmra.mrb[0].mxu0 %v2350
    %v2860 = vpop.f32.mrb[0].mxu0
    %v2861 = vadd.f32 0.0, %v2860
    %v2862 = vpop.f32.mrb[0].mxu0
    %2863 = vmatprep.mubr.f32.mxu0 0.0
    %2864 = vmatmul.mubr.f32.gmra.mrb[0].mxu0 %v2351
    %v2865 = vpop.f32.mrb[0].mxu0
    %v2866 = vadd.f32 0.0, %v2865
    %v2867 = vpop.f32.mrb[0].mxu0
    %2868 = vmatprep.mubr.f32.mxu0 0.0
    %2869 = vmatmul.mubr.f32.gmra.mrb[0].mxu0 %v2352
    %v2870 = vpop.f32.mrb[0].mxu0
    %v2871 = vadd.f32 0.0, %v2870
    %v2872 = vpop.f32.mrb[0].mxu0
    %2873 = vmatprep.mubr.f32.mxu0 0.0
    %2874 = vmatmul.mubr.f32.gmra.mrb[0].mxu0 %v2353
    %v2875 = vpop.f32.mrb[0].mxu0
    %v2876 = vadd.f32 0.0, %v2875
    %v2877 = vpop.f32.mrb[0].mxu0
    %2878 = vmatprep.mubr.f32.mxu0 0.0
    %2879 = vmatmul.mubr.f32.gmra.mrb[0].mxu0 %v2354
    %v2880 = vpop.f32.mrb[0].mxu0
    %v2881 = vadd.f32 0.0, %v2880
    %v2882 = vpop.f32.mrb[0].mxu0
    %2883 = vmatprep.mubr.f32.mxu0 0.0
    %2884 = vmatmul.mubr.f32.gmra.mrb[0].mxu0 %v2355
    %v2885 = vpop.f32.mrb[0].mxu0
    %v2886 = vadd.f32 0.0, %v2885
    %v2887 = vpop.f32.mrb[0].mxu0
    %2888 = vmatprep.mubr.f32.mxu0 0.0
    %2889 = vmatmul.mubr.f32.gmra.mrb[0].mxu0 %v2356
    %v2890 = vpop.f32.mrb[0].mxu0
    %v2891 = vadd.f32 0.0, %v2890
    %v2892 = vpop.f32.mrb[0].mxu0
    %2893 = vmatprep.mubr.f32.mxu0 0.0
    %2894 = vmatmul.mubr.f32.gmra.mrb[0].mxu0 %v2357
    %v2895 = vpop.f32.mrb[0].mxu0
    %v2896 = vadd.f32 0.0, %v2895
    %v2897 = vpop.f32.mrb[0].mxu0
    %2898 = vmatprep.mubr.f32.mxu0 0.0
    %2899 = vmatmul.mubr.f32.gmra.mrb[0].mxu0 %v2358
    %v2900 = vpop.f32.mrb[0].mxu0
    %v2901 = vadd.f32 0.0, %v2900
    %v2902 = vpop.f32.mrb[0].mxu0
    %2903 = vmatprep.mubr.f32.mxu0 0.0
    %2904 = vmatmul.mubr.f32.gmra.mrb[0].mxu0 %v2359
    %v2905 = vpop.f32.mrb[0].mxu0
    %v2906 = vadd.f32 0.0, %v2905
    %v2907 = vpop.f32.mrb[0].mxu0
    %2908 = vmatprep.mubr.f32.mxu0 0.0
    %2909 = vmatmul.mubr.f32.gmra.mrb[0].mxu0 %v2360
    %v2910 = vpop.f32.mrb[0].mxu0
    %v2911 = vadd.f32 0.0, %v2910
    %v2912 = vpop.f32.mrb[0].mxu0
    %2913 = vmatprep.mubr.f32.mxu0 0.0
    %2914 = vmatmul.mubr.f32.gmra.mrb[0].mxu0 %v2361
    %v2915 = vpop.f32.mrb[0].mxu0
    %v2916 = vadd.f32 0.0, %v2915
    %v2917 = vpop.f32.mrb[0].mxu0
    %2918 = vmatprep.mubr.f32.mxu0 0.0
    %2919 = vmatmul.mubr.f32.gmra.mrb[0].mxu0 %v2362
    %v2920 = vpop.f32.mrb[0].mxu0
    %v2921 = vadd.f32 0.0, %v2920
    %v2922 = vpop.f32.mrb[0].mxu0
    %2923 = vmatprep.mubr.f32.mxu0 0.0
    %2924 = vmatmul.mubr.f32.gmra.mrb[0].mxu0 %v2363
    %v2925 = vpop.f32.mrb[0].mxu0
    %v2926 = vadd.f32 0.0, %v2925
    %v2927 = vpop.f32.mrb[0].mxu0
    %2928 = vmatprep.mubr.f32.mxu0 0.0
    %2929 = vmatmul.mubr.f32.gmra.mrb[0].mxu0 %v2364
    %v2930 = vpop.f32.mrb[0].mxu0
    %v2931 = vadd.f32 0.0, %v2930
    %v2932 = vpop.f32.mrb[0].mxu0
    %2933 = vmatprep.mubr.f32.mxu0 0.0
    %2934 = vmatmul.mubr.f32.gmra.mrb[0].mxu0 %v2365
    %v2935 = vpop.f32.mrb[0].mxu0
    %v2936 = vadd.f32 0.0, %v2935
    %v2937 = vpop.f32.mrb[0].mxu0
    %2938 = vmatprep.mubr.f32.mxu0 0.0
    %2939 = vmatmul.mubr.f32.gmra.mrb[0].mxu0 %v2366
    %v2940 = vpop.f32.mrb[0].mxu0
    %v2941 = vadd.f32 0.0, %v2940
    %v2942 = vpop.f32.mrb[0].mxu0
    %2943 = vmatprep.mubr.f32.mxu0 0.0
    %2944 = vmatmul.mubr.f32.gmra.mrb[0].mxu0 %v2367
    %v2945 = vpop.f32.mrb[0].mxu0
    %v2946 = vadd.f32 0.0, %v2945
    %v2947 = vpop.f32.mrb[0].mxu0
    %2948 = vmatprep.mubr.f32.mxu0 0.0
    %2949 = vmatmul.mubr.f32.gmra.mrb[0].mxu0 %v2368
    %v2950 = vpop.f32.mrb[0].mxu0
    %v2951 = vadd.f32 0.0, %v2950
    %v2952 = vpop.f32.mrb[0].mxu0
    %2953 = vmatprep.mubr.f32.mxu0 0.0
    %2954 = vmatmul.mubr.f32.gmra.mrb[0].mxu0 %v2369
    %v2955 = vpop.f32.mrb[0].mxu0
    %v2956 = vadd.f32 0.0, %v2955
    %v2957 = vpop.f32.mrb[0].mxu0
    %2958 = vmatprep.mubr.f32.mxu0 0.0
    %2959 = vmatmul.mubr.f32.gmra.mrb[0].mxu0 %v2370
    %v2960 = vpop.f32.mrb[0].mxu0
    %v2961 = vadd.f32 0.0, %v2960
    %v2962 = vpop.f32.mrb[0].mxu0
    %2963 = vmatprep.mubr.f32.mxu0 0.0
    %2964 = vmatmul.mubr.f32.gmra.mrb[0].mxu0 %v2371
    %v2965 = vpop.f32.mrb[0].mxu0
    %v2966 = vadd.f32 0.0, %v2965
    %v2967 = vpop.f32.mrb[0].mxu0
    %2968 = vmatprep.mubr.f32.mxu0 0.0
    %2969 = vmatmul.mubr.f32.gmra.mrb[0].mxu0 %v2372
    %v2970 = vpop.f32.mrb[0].mxu0
    %v2971 = vadd.f32 0.0, %v2970
    %v2972 = vpop.f32.mrb[0].mxu0
    %2973 = vmatprep.mubr.f32.mxu0 0.0
    %2974 = vmatmul.mubr.f32.gmra.mrb[0].mxu0 %v2373
    %v2975 = vpop.f32.mrb[0].mxu0
    %v2976 = vadd.f32 0.0, %v2975
    %v2977 = vpop.f32.mrb[0].mxu0
    %2978 = vmatprep.mubr.f32.mxu0 0.0
    %2979 = vmatmul.mubr.f32.gmra.mrb[0].mxu0 %v2374
    %v2980 = vpop.f32.mrb[0].mxu0
    %v2981 = vadd.f32 0.0, %v2980
    %v2982 = vpop.f32.mrb[0].mxu0
    %2983 = vmatprep.mubr.f32.mxu0 0.0
    %2984 = vmatmul.mubr.f32.gmra.mrb[0].mxu0 %v2375
    %v2985 = vpop.f32.mrb[0].mxu0
    %v2986 = vadd.f32 0.0, %v2985
    %v2987 = vpop.f32.mrb[0].mxu0
    %2988 = vmatprep.mubr.f32.mxu0 0.0
    %2989 = vmatmul.mubr.f32.gmra.mrb[0].mxu0 %v2376
    %v2990 = vpop.f32.mrb[0].mxu0
    %v2991 = vadd.f32 0.0, %v2990
    %v2992 = vpop.f32.mrb[0].mxu0
    %2993 = vmatprep.mubr.f32.mxu0 0.0
    %2994 = vmatmul.mubr.f32.gmra.mrb[0].mxu0 %v2377
    %v2995 = vpop.f32.mrb[0].mxu0
    %v2996 = vadd.f32 0.0, %v2995
    %v2997 = vpop.f32.mrb[0].mxu0
    %2998 = vmatprep.mubr.f32.mxu0 0.0
    %2999 = vmatmul.mubr.f32.gmra.mrb[0].mxu0 %v2378
    %v3000 = vpop.f32.mrb[0].mxu0
    %v3001 = vadd.f32 0.0, %v3000
    %v3002 = vpop.f32.mrb[0].mxu0
    %3003 = vmatprep.mubr.f32.mxu0 0.0
    %3004 = vmatmul.mubr.f32.gmra.mrb[0].mxu0 %v2379
    %v3005 = vpop.f32.mrb[0].mxu0
    %v3006 = vadd.f32 0.0, %v3005
    %v3007 = vpop.f32.mrb[0].mxu0
    %3008 = vmatprep.mubr.f32.mxu0 0.0
    %3009 = vmatmul.mubr.f32.gmra.mrb[0].mxu0 %v2380
    %v3010 = vpop.f32.mrb[0].mxu0
    %v3011 = vadd.f32 0.0, %v3010
    %v3012 = vpop.f32.mrb[0].mxu0
    %3013 = vmatprep.mubr.f32.mxu0 0.0
    %3014 = vmatmul.mubr.f32.gmra.mrb[0].mxu0 %v2381
    %v3015 = vpop.f32.mrb[0].mxu0
    %v3016 = vadd.f32 0.0, %v3015
    %v3017 = vpop.f32.mrb[0].mxu0
    %3018 = vmatprep.mubr.f32.mxu0 0.0
    %3019 = vmatmul.mubr.f32.gmra.mrb[0].mxu0 %v2382
    %v3020 = vpop.f32.mrb[0].mxu0
    %v3021 = vadd.f32 0.0, %v3020
    %v3022 = vpop.f32.mrb[0].mxu0
    %3023 = vmatprep.mubr.f32.mxu0 0.0
    %3024 = vmatmul.mubr.f32.gmra.mrb[0].mxu0 %v2383
    %v3025 = vpop.f32.mrb[0].mxu0
    %v3026 = vadd.f32 0.0, %v3025
    %v3027 = vpop.f32.mrb[0].mxu0
    %3028 = vmatprep.mubr.f32.mxu0 0.0
    %3029 = vmatmul.mubr.f32.gmra.mrb[0].mxu0 %v2384
    %v3030 = vpop.f32.mrb[0].mxu0
    %v3031 = vadd.f32 0.0, %v3030
    %v3032 = vpop.f32.mrb[0].mxu0
    %3033 = vmatprep.mubr.f32.mxu0 0.0
    %3034 = vmatmul.mubr.f32.gmra.mrb[0].mxu0 %v2385
    %v3035 = vpop.f32.mrb[0].mxu0
    %v3036 = vadd.f32 0.0, %v3035
    %v3037 = vpop.f32.mrb[0].mxu0
    %3038 = vmatprep.mubr.f32.mxu0 0.0
    %3039 = vmatmul.mubr.f32.gmra.mrb[0].mxu0 %v2386
    %v3040 = vpop.f32.mrb[0].mxu0
    %v3041 = vadd.f32 0.0, %v3040
    %v3042 = vpop.f32.mrb[0].mxu0
    %3043 = vmatprep.mubr.f32.mxu0 0.0
    %3044 = vmatmul.mubr.f32.gmra.mrb[0].mxu0 %v2387
    %v3045 = vpop.f32.mrb[0].mxu0
    %v3046 = vadd.f32 0.0, %v3045
    %v3047 = vpop.f32.mrb[0].mxu0
    %3048 = vmatprep.mubr.f32.mxu0 0.0
    %3049 = vmatmul.mubr.f32.gmra.mrb[0].mxu0 %v2388
    %v3050 = vpop.f32.mrb[0].mxu0
    %v3051 = vadd.f32 0.0, %v3050
    %v3052 = vpop.f32.mrb[0].mxu0
    %3053 = vmatprep.mubr.f32.mxu0 0.0
    %3054 = vmatmul.mubr.f32.gmra.mrb[0].mxu0 %v2389
    %v3055 = vpop.f32.mrb[0].mxu0
    %v3056 = vadd.f32 0.0, %v3055
    %v3057 = vpop.f32.mrb[0].mxu0
    %3058 = vmatprep.mubr.f32.mxu0 0.0
    %3059 = vmatmul.mubr.f32.gmra.mrb[0].mxu0 %v2390
    %v3060 = vpop.f32.mrb[0].mxu0
    %v3061 = vadd.f32 0.0, %v3060
    %v3062 = vpop.f32.mrb[0].mxu0
    %3063 = vmatprep.mubr.f32.mxu0 0.0
    %3064 = vmatmul.mubr.f32.gmra.mrb[0].mxu0 %v2391
    %v3065 = vpop.f32.mrb[0].mxu0
    %v3066 = vadd.f32 0.0, %v3065
    %v3067 = vpop.f32.mrb[0].mxu0
    %3068 = vmatprep.mubr.f32.mxu0 0.0
    %3069 = vmatmul.mubr.f32.gmra.mrb[0].mxu0 %v2392
    %v3070 = vpop.f32.mrb[0].mxu0
    %v3071 = vadd.f32 0.0, %v3070
    %v3072 = vpop.f32.mrb[0].mxu0
    %3073 = vmatprep.mubr.f32.mxu0 0.0
    %3074 = vmatmul.mubr.f32.gmra.mrb[0].mxu0 %v2393
    %v3075 = vpop.f32.mrb[0].mxu0
    %v3076 = vadd.f32 0.0, %v3075
    %v3077 = vpop.f32.mrb[0].mxu0
    %3078 = vmatprep.mubr.f32.mxu0 0.0
    %3079 = vmatmul.mubr.f32.gmra.mrb[0].mxu0 %v2394
    %v3080 = vpop.f32.mrb[0].mxu0
    %v3081 = vadd.f32 0.0, %v3080
    %v3082 = vpop.f32.mrb[0].mxu0
    %3083 = vmatprep.mubr.f32.mxu0 0.0
    %3084 = vmatmul.mubr.f32.gmra.mrb[0].mxu0 %v2395
    %v3085 = vpop.f32.mrb[0].mxu0
    %v3086 = vadd.f32 0.0, %v3085
    %v3087 = vpop.f32.mrb[0].mxu0
    %3088 = vmatprep.mubr.f32.mxu0 0.0
    %3089 = vmatmul.mubr.f32.gmra.mrb[0].mxu0 %v2396
    %v3090 = vpop.f32.mrb[0].mxu0
    %v3091 = vadd.f32 0.0, %v3090
    %v3092 = vpop.f32.mrb[0].mxu0
    %3093 = vmatprep.mubr.f32.mxu0 0.0
    %3094 = vmatmul.mubr.f32.gmra.mrb[0].mxu0 %v2397
    %v3095 = vpop.f32.mrb[0].mxu0
    %v3096 = vadd.f32 0.0, %v3095
    %v3097 = vpop.f32.mrb[0].mxu0
    %3098 = vmatprep.mubr.f32.mxu0 0.0
    %3099 = vmatmul.mubr.f32.gmra.mrb[0].mxu0 %v2398
    %v3100 = vpop.f32.mrb[0].mxu0
    %v3101 = vadd.f32 0.0, %v3100
    %v3102 = vpop.f32.mrb[0].mxu0
    %3103 = vdwg.mxu0
    %v3104 = vmax.f32 %v2466, %v2626
    %v3105 = vmax.f32 %v2471, %v2631
    %v3106 = vmax.f32 %v2476, %v2636
    %v3107 = vmax.f32 %v2481, %v2641
    %v3108 = vmax.f32 %v2486, %v2646
    %v3109 = vmax.f32 %v2491, %v2651
    %v3110 = vmax.f32 %v2496, %v2656
    %v3111 = vmax.f32 %v2501, %v2661
    %v3112 = vmax.f32 %v2506, %v2666
    %v3113 = vmax.f32 %v2511, %v2671
    %v3114 = vmax.f32 %v2516, %v2676
    %v3115 = vmax.f32 %v2521, %v2681
    %v3116 = vmax.f32 %v2526, %v2686
    %v3117 = vmax.f32 %v2531, %v2691
    %v3118 = vmax.f32 %v2536, %v2696
    %v3119 = vmax.f32 %v2541, %v2701
    %v3120 = vmax.f32 %v2546, %v2706
    %v3121 = vmax.f32 %v2551, %v2711
    %v3122 = vmax.f32 %v2556, %v2716
    %v3123 = vmax.f32 %v2561, %v2721
    %v3124 = vmax.f32 %v2566, %v2726
    %v3125 = vmax.f32 %v2571, %v2731
    %v3126 = vmax.f32 %v2576, %v2736
    %v3127 = vmax.f32 %v2581, %v2741
    %v3128 = vmax.f32 %v2586, %v2746
    %v3129 = vmax.f32 %v2591, %v2751
    %v3130 = vmax.f32 %v2596, %v2756
    %v3131 = vmax.f32 %v2601, %v2761
    %v3132 = vmax.f32 %v2606, %v2766
    %v3133 = vmax.f32 %v2611, %v2771
    %v3134 = vmax.f32 %v2616, %v2776
    %v3135 = vmax.f32 %v2621, %v2781
    %v3136 = vmax.f32 %v2786, %v2946
    %v3137 = vmax.f32 %v2791, %v2951
    %v3138 = vmax.f32 %v2796, %v2956
    %v3139 = vmax.f32 %v2801, %v2961
    %v3140 = vmax.f32 %v2806, %v2966
    %v3141 = vmax.f32 %v2811, %v2971
    %v3142 = vmax.f32 %v2816, %v2976
    %v3143 = vmax.f32 %v2821, %v2981
    %v3144 = vmax.f32 %v2826, %v2986
    %v3145 = vmax.f32 %v2831, %v2991
    %v3146 = vmax.f32 %v2836, %v2996
    %v3147 = vmax.f32 %v2841, %v3001
    %v3148 = vmax.f32 %v2846, %v3006
    %v3149 = vmax.f32 %v2851, %v3011
    %v3150 = vmax.f32 %v2856, %v3016
    %v3151 = vmax.f32 %v2861, %v3021
    %v3152 = vmax.f32 %v2866, %v3026
    %v3153 = vmax.f32 %v2871, %v3031
    %v3154 = vmax.f32 %v2876, %v3036
    %v3155 = vmax.f32 %v2881, %v3041
    %v3156 = vmax.f32 %v2886, %v3046
    %v3157 = vmax.f32 %v2891, %v3051
    %v3158 = vmax.f32 %v2896, %v3056
    %v3159 = vmax.f32 %v2901, %v3061
    %v3160 = vmax.f32 %v2906, %v3066
    %v3161 = vmax.f32 %v2911, %v3071
    %v3162 = vmax.f32 %v2916, %v3076
    %v3163 = vmax.f32 %v2921, %v3081
    %v3164 = vmax.f32 %v2926, %v3086
    %v3165 = vmax.f32 %v2931, %v3091
    %v3166 = vmax.f32 %v2936, %v3096
    %v3167 = vmax.f32 %v2941, %v3101
    %v3168 = vsub.f32 %v2466, %v3104
    %v3169 = vsub.f32 %v2471, %v3105
    %v3170 = vsub.f32 %v2476, %v3106
    %v3171 = vsub.f32 %v2481, %v3107
    %v3172 = vsub.f32 %v2486, %v3108
    %v3173 = vsub.f32 %v2491, %v3109
    %v3174 = vsub.f32 %v2496, %v3110
    %v3175 = vsub.f32 %v2501, %v3111
    %v3176 = vsub.f32 %v2506, %v3112
    %v3177 = vsub.f32 %v2511, %v3113
    %v3178 = vsub.f32 %v2516, %v3114
    %v3179 = vsub.f32 %v2521, %v3115
    %v3180 = vsub.f32 %v2526, %v3116
    %v3181 = vsub.f32 %v2531, %v3117
    %v3182 = vsub.f32 %v2536, %v3118
    %v3183 = vsub.f32 %v2541, %v3119
    %v3184 = vsub.f32 %v2546, %v3120
    %v3185 = vsub.f32 %v2551, %v3121
    %v3186 = vsub.f32 %v2556, %v3122
    %v3187 = vsub.f32 %v2561, %v3123
    %v3188 = vsub.f32 %v2566, %v3124
    %v3189 = vsub.f32 %v2571, %v3125
    %v3190 = vsub.f32 %v2576, %v3126
    %v3191 = vsub.f32 %v2581, %v3127
    %v3192 = vsub.f32 %v2586, %v3128
    %v3193 = vsub.f32 %v2591, %v3129
    %v3194 = vsub.f32 %v2596, %v3130
    %v3195 = vsub.f32 %v2601, %v3131
    %v3196 = vsub.f32 %v2606, %v3132
    %v3197 = vsub.f32 %v2611, %v3133
    %v3198 = vsub.f32 %v2616, %v3134
    %v3199 = vsub.f32 %v2621, %v3135
    %v3200 = vsub.f32 %v2626, %v3104
    %v3201 = vsub.f32 %v2631, %v3105
    %v3202 = vsub.f32 %v2636, %v3106
    %v3203 = vsub.f32 %v2641, %v3107
    %v3204 = vsub.f32 %v2646, %v3108
    %v3205 = vsub.f32 %v2651, %v3109
    %v3206 = vsub.f32 %v2656, %v3110
    %v3207 = vsub.f32 %v2661, %v3111
    %v3208 = vsub.f32 %v2666, %v3112
    %v3209 = vsub.f32 %v2671, %v3113
    %v3210 = vsub.f32 %v2676, %v3114
    %v3211 = vsub.f32 %v2681, %v3115
    %v3212 = vsub.f32 %v2686, %v3116
    %v3213 = vsub.f32 %v2691, %v3117
    %v3214 = vsub.f32 %v2696, %v3118
    %v3215 = vsub.f32 %v2701, %v3119
    %v3216 = vsub.f32 %v2706, %v3120
    %v3217 = vsub.f32 %v2711, %v3121
    %v3218 = vsub.f32 %v2716, %v3122
    %v3219 = vsub.f32 %v2721, %v3123
    %v3220 = vsub.f32 %v2726, %v3124
    %v3221 = vsub.f32 %v2731, %v3125
    %v3222 = vsub.f32 %v2736, %v3126
    %v3223 = vsub.f32 %v2741, %v3127
    %v3224 = vsub.f32 %v2746, %v3128
    %v3225 = vsub.f32 %v2751, %v3129
    %v3226 = vsub.f32 %v2756, %v3130
    %v3227 = vsub.f32 %v2761, %v3131
    %v3228 = vsub.f32 %v2766, %v3132
    %v3229 = vsub.f32 %v2771, %v3133
    %v3230 = vsub.f32 %v2776, %v3134
    %v3231 = vsub.f32 %v2781, %v3135
    %v3232 = vsub.f32 %v2786, %v3136
    %v3233 = vsub.f32 %v2791, %v3137
    %v3234 = vsub.f32 %v2796, %v3138
    %v3235 = vsub.f32 %v2801, %v3139
    %v3236 = vsub.f32 %v2806, %v3140
    %v3237 = vsub.f32 %v2811, %v3141
    %v3238 = vsub.f32 %v2816, %v3142
    %v3239 = vsub.f32 %v2821, %v3143
    %v3240 = vsub.f32 %v2826, %v3144
    %v3241 = vsub.f32 %v2831, %v3145
    %v3242 = vsub.f32 %v2836, %v3146
    %v3243 = vsub.f32 %v2841, %v3147
    %v3244 = vsub.f32 %v2846, %v3148
    %v3245 = vsub.f32 %v2851, %v3149
    %v3246 = vsub.f32 %v2856, %v3150
    %v3247 = vsub.f32 %v2861, %v3151
    %v3248 = vsub.f32 %v2866, %v3152
    %v3249 = vsub.f32 %v2871, %v3153
    %v3250 = vsub.f32 %v2876, %v3154
    %v3251 = vsub.f32 %v2881, %v3155
    %v3252 = vsub.f32 %v2886, %v3156
    %v3253 = vsub.f32 %v2891, %v3157
    %v3254 = vsub.f32 %v2896, %v3158
    %v3255 = vsub.f32 %v2901, %v3159
    %v3256 = vsub.f32 %v2906, %v3160
    %v3257 = vsub.f32 %v2911, %v3161
    %v3258 = vsub.f32 %v2916, %v3162
    %v3259 = vsub.f32 %v2921, %v3163
    %v3260 = vsub.f32 %v2926, %v3164
    %v3261 = vsub.f32 %v2931, %v3165
    %v3262 = vsub.f32 %v2936, %v3166
    %v3263 = vsub.f32 %v2941, %v3167
    %v3264 = vsub.f32 %v2946, %v3136
    %v3265 = vsub.f32 %v2951, %v3137
    %v3266 = vsub.f32 %v2956, %v3138
    %v3267 = vsub.f32 %v2961, %v3139
    %v3268 = vsub.f32 %v2966, %v3140
    %v3269 = vsub.f32 %v2971, %v3141
    %v3270 = vsub.f32 %v2976, %v3142
    %v3271 = vsub.f32 %v2981, %v3143
    %v3272 = vsub.f32 %v2986, %v3144
    %v3273 = vsub.f32 %v2991, %v3145
    %v3274 = vsub.f32 %v2996, %v3146
    %v3275 = vsub.f32 %v3001, %v3147
    %v3276 = vsub.f32 %v3006, %v3148
    %v3277 = vsub.f32 %v3011, %v3149
    %v3278 = vsub.f32 %v3016, %v3150
    %v3279 = vsub.f32 %v3021, %v3151
    %v3280 = vsub.f32 %v3026, %v3152
    %v3281 = vsub.f32 %v3031, %v3153
    %v3282 = vsub.f32 %v3036, %v3154
    %v3283 = vsub.f32 %v3041, %v3155
    %v3284 = vsub.f32 %v3046, %v3156
    %v3285 = vsub.f32 %v3051, %v3157
    %v3286 = vsub.f32 %v3056, %v3158
    %v3287 = vsub.f32 %v3061, %v3159
    %v3288 = vsub.f32 %v3066, %v3160
    %v3289 = vsub.f32 %v3071, %v3161
    %v3290 = vsub.f32 %v3076, %v3162
    %v3291 = vsub.f32 %v3081, %v3163
    %v3292 = vsub.f32 %v3086, %v3164
    %v3293 = vsub.f32 %v3091, %v3165
    %v3294 = vsub.f32 %v3096, %v3166
    %v3295 = vsub.f32 %v3101, %v3167
    %v3296 = vmul.f32 %v3168, 1.442695
    %v3297 = vpow.pop %v3296
    %v3298 = vmul.f32 %v3169, 1.442695
    %v3299 = vpow.pop %v3298
    %v3300 = vmul.f32 %v3170, 1.442695
    %v3301 = vpow.pop %v3300
    %v3302 = vmul.f32 %v3171, 1.442695
    %v3303 = vpow.pop %v3302
    %v3304 = vmul.f32 %v3172, 1.442695
    %v3305 = vpow.pop %v3304
    %v3306 = vmul.f32 %v3173, 1.442695
    %v3307 = vpow.pop %v3306
    %v3308 = vmul.f32 %v3174, 1.442695
    %v3309 = vpow.pop %v3308
    %v3310 = vmul.f32 %v3175, 1.442695
    %v3311 = vpow.pop %v3310
    %v3312 = vmul.f32 %v3176, 1.442695
    %v3313 = vpow.pop %v3312
    %v3314 = vmul.f32 %v3177, 1.442695
    %v3315 = vpow.pop %v3314
    %v3316 = vmul.f32 %v3178, 1.442695
    %v3317 = vpow.pop %v3316
    %v3318 = vmul.f32 %v3179, 1.442695
    %v3319 = vpow.pop %v3318
    %v3320 = vmul.f32 %v3180, 1.442695
    %v3321 = vpow.pop %v3320
    %v3322 = vmul.f32 %v3181, 1.442695
    %v3323 = vpow.pop %v3322
    %v3324 = vmul.f32 %v3182, 1.442695
    %v3325 = vpow.pop %v3324
    %v3326 = vmul.f32 %v3183, 1.442695
    %v3327 = vpow.pop %v3326
    %v3328 = vmul.f32 %v3184, 1.442695
    %v3329 = vpow.pop %v3328
    %v3330 = vmul.f32 %v3185, 1.442695
    %v3331 = vpow.pop %v3330
    %v3332 = vmul.f32 %v3186, 1.442695
    %v3333 = vpow.pop %v3332
    %v3334 = vmul.f32 %v3187, 1.442695
    %v3335 = vpow.pop %v3334
    %v3336 = vmul.f32 %v3188, 1.442695
    %v3337 = vpow.pop %v3336
    %v3338 = vmul.f32 %v3189, 1.442695
    %v3339 = vpow.pop %v3338
    %v3340 = vmul.f32 %v3190, 1.442695
    %v3341 = vpow.pop %v3340
    %v3342 = vmul.f32 %v3191, 1.442695
    %v3343 = vpow.pop %v3342
    %v3344 = vmul.f32 %v3192, 1.442695
    %v3345 = vpow.pop %v3344
    %v3346 = vmul.f32 %v3193, 1.442695
    %v3347 = vpow.pop %v3346
    %v3348 = vmul.f32 %v3194, 1.442695
    %v3349 = vpow.pop %v3348
    %v3350 = vmul.f32 %v3195, 1.442695
    %v3351 = vpow.pop %v3350
    %v3352 = vmul.f32 %v3196, 1.442695
    %v3353 = vpow.pop %v3352
    %v3354 = vmul.f32 %v3197, 1.442695
    %v3355 = vpow.pop %v3354
    %v3356 = vmul.f32 %v3198, 1.442695
    %v3357 = vpow.pop %v3356
    %v3358 = vmul.f32 %v3199, 1.442695
    %v3359 = vpow.pop %v3358
    %v3360 = vmul.f32 %v3200, 1.442695
    %v3361 = vpow.pop %v3360
    %v3362 = vmul.f32 %v3201, 1.442695
    %v3363 = vpow.pop %v3362
    %v3364 = vmul.f32 %v3202, 1.442695
    %v3365 = vpow.pop %v3364
    %v3366 = vmul.f32 %v3203, 1.442695
    %v3367 = vpow.pop %v3366
    %v3368 = vmul.f32 %v3204, 1.442695
    %v3369 = vpow.pop %v3368
    %v3370 = vmul.f32 %v3205, 1.442695
    %v3371 = vpow.pop %v3370
    %v3372 = vmul.f32 %v3206, 1.442695
    %v3373 = vpow.pop %v3372
    %v3374 = vmul.f32 %v3207, 1.442695
    %v3375 = vpow.pop %v3374
    %v3376 = vmul.f32 %v3208, 1.442695
    %v3377 = vpow.pop %v3376
    %v3378 = vmul.f32 %v3209, 1.442695
    %v3379 = vpow.pop %v3378
    %v3380 = vmul.f32 %v3210, 1.442695
    %v3381 = vpow.pop %v3380
    %v3382 = vmul.f32 %v3211, 1.442695
    %v3383 = vpow.pop %v3382
    %v3384 = vmul.f32 %v3212, 1.442695
    %v3385 = vpow.pop %v3384
    %v3386 = vmul.f32 %v3213, 1.442695
    %v3387 = vpow.pop %v3386
    %v3388 = vmul.f32 %v3214, 1.442695
    %v3389 = vpow.pop %v3388
    %v3390 = vmul.f32 %v3215, 1.442695
    %v3391 = vpow.pop %v3390
    %v3392 = vmul.f32 %v3216, 1.442695
    %v3393 = vpow.pop %v3392
    %v3394 = vmul.f32 %v3217, 1.442695
    %v3395 = vpow.pop %v3394
    %v3396 = vmul.f32 %v3218, 1.442695
    %v3397 = vpow.pop %v3396
    %v3398 = vmul.f32 %v3219, 1.442695
    %v3399 = vpow.pop %v3398
    %v3400 = vmul.f32 %v3220, 1.442695
    %v3401 = vpow.pop %v3400
    %v3402 = vmul.f32 %v3221, 1.442695
    %v3403 = vpow.pop %v3402
    %v3404 = vmul.f32 %v3222, 1.442695
    %v3405 = vpow.pop %v3404
    %v3406 = vmul.f32 %v3223, 1.442695
    %v3407 = vpow.pop %v3406
    %v3408 = vmul.f32 %v3224, 1.442695
    %v3409 = vpow.pop %v3408
    %v3410 = vmul.f32 %v3225, 1.442695
    %v3411 = vpow.pop %v3410
    %v3412 = vmul.f32 %v3226, 1.442695
    %v3413 = vpow.pop %v3412
    %v3414 = vmul.f32 %v3227, 1.442695
    %v3415 = vpow.pop %v3414
    %v3416 = vmul.f32 %v3228, 1.442695
    %v3417 = vpow.pop %v3416
    %v3418 = vmul.f32 %v3229, 1.442695
    %v3419 = vpow.pop %v3418
    %v3420 = vmul.f32 %v3230, 1.442695
    %v3421 = vpow.pop %v3420
    %v3422 = vmul.f32 %v3231, 1.442695
    %v3423 = vpow.pop %v3422
    %v3424 = vmul.f32 %v3232, 1.442695
    %v3425 = vpow.pop %v3424
    %v3426 = vmul.f32 %v3233, 1.442695
    %v3427 = vpow.pop %v3426
    %v3428 = vmul.f32 %v3234, 1.442695
    %v3429 = vpow.pop %v3428
    %v3430 = vmul.f32 %v3235, 1.442695
    %v3431 = vpow.pop %v3430
    %v3432 = vmul.f32 %v3236, 1.442695
    %v3433 = vpow.pop %v3432
    %v3434 = vmul.f32 %v3237, 1.442695
    %v3435 = vpow.pop %v3434
    %v3436 = vmul.f32 %v3238, 1.442695
    %v3437 = vpow.pop %v3436
    %v3438 = vmul.f32 %v3239, 1.442695
    %v3439 = vpow.pop %v3438
    %v3440 = vmul.f32 %v3240, 1.442695
    %v3441 = vpow.pop %v3440
    %v3442 = vmul.f32 %v3241, 1.442695
    %v3443 = vpow.pop %v3442
    %v3444 = vmul.f32 %v3242, 1.442695
    %v3445 = vpow.pop %v3444
    %v3446 = vmul.f32 %v3243, 1.442695
    %v3447 = vpow.pop %v3446
    %v3448 = vmul.f32 %v3244, 1.442695
    %v3449 = vpow.pop %v3448
    %v3450 = vmul.f32 %v3245, 1.442695
    %v3451 = vpow.pop %v3450
    %v3452 = vmul.f32 %v3246, 1.442695
    %v3453 = vpow.pop %v3452
    %v3454 = vmul.f32 %v3247, 1.442695
    %v3455 = vpow.pop %v3454
    %v3456 = vmul.f32 %v3248, 1.442695
    %v3457 = vpow.pop %v3456
    %v3458 = vmul.f32 %v3249, 1.442695
    %v3459 = vpow.pop %v3458
    %v3460 = vmul.f32 %v3250, 1.442695
    %v3461 = vpow.pop %v3460
    %v3462 = vmul.f32 %v3251, 1.442695
    %v3463 = vpow.pop %v3462
    %v3464 = vmul.f32 %v3252, 1.442695
    %v3465 = vpow.pop %v3464
    %v3466 = vmul.f32 %v3253, 1.442695
    %v3467 = vpow.pop %v3466
    %v3468 = vmul.f32 %v3254, 1.442695
    %v3469 = vpow.pop %v3468
    %v3470 = vmul.f32 %v3255, 1.442695
    %v3471 = vpow.pop %v3470
    %v3472 = vmul.f32 %v3256, 1.442695
    %v3473 = vpow.pop %v3472
    %v3474 = vmul.f32 %v3257, 1.442695
    %v3475 = vpow.pop %v3474
    %v3476 = vmul.f32 %v3258, 1.442695
    %v3477 = vpow.pop %v3476
    %v3478 = vmul.f32 %v3259, 1.442695
    %v3479 = vpow.pop %v3478
    %v3480 = vmul.f32 %v3260, 1.442695
    %v3481 = vpow.pop %v3480
    %v3482 = vmul.f32 %v3261, 1.442695
    %v3483 = vpow.pop %v3482
    %v3484 = vmul.f32 %v3262, 1.442695
    %v3485 = vpow.pop %v3484
    %v3486 = vmul.f32 %v3263, 1.442695
    %v3487 = vpow.pop %v3486
    %v3488 = vmul.f32 %v3264, 1.442695
    %v3489 = vpow.pop %v3488
    %v3490 = vmul.f32 %v3265, 1.442695
    %v3491 = vpow.pop %v3490
    %v3492 = vmul.f32 %v3266, 1.442695
    %v3493 = vpow.pop %v3492
    %v3494 = vmul.f32 %v3267, 1.442695
    %v3495 = vpow.pop %v3494
    %v3496 = vmul.f32 %v3268, 1.442695
    %v3497 = vpow.pop %v3496
    %v3498 = vmul.f32 %v3269, 1.442695
    %v3499 = vpow.pop %v3498
    %v3500 = vmul.f32 %v3270, 1.442695
    %v3501 = vpow.pop %v3500
    %v3502 = vmul.f32 %v3271, 1.442695
    %v3503 = vpow.pop %v3502
    %v3504 = vmul.f32 %v3272, 1.442695
    %v3505 = vpow.pop %v3504
    %v3506 = vmul.f32 %v3273, 1.442695
    %v3507 = vpow.pop %v3506
    %v3508 = vmul.f32 %v3274, 1.442695
    %v3509 = vpow.pop %v3508
    %v3510 = vmul.f32 %v3275, 1.442695
    %v3511 = vpow.pop %v3510
    %v3512 = vmul.f32 %v3276, 1.442695
    %v3513 = vpow.pop %v3512
    %v3514 = vmul.f32 %v3277, 1.442695
    %v3515 = vpow.pop %v3514
    %v3516 = vmul.f32 %v3278, 1.442695
    %v3517 = vpow.pop %v3516
    %v3518 = vmul.f32 %v3279, 1.442695
    %v3519 = vpow.pop %v3518
    %v3520 = vmul.f32 %v3280, 1.442695
    %v3521 = vpow.pop %v3520
    %v3522 = vmul.f32 %v3281, 1.442695
    %v3523 = vpow.pop %v3522
    %v3524 = vmul.f32 %v3282, 1.442695
    %v3525 = vpow.pop %v3524
    %v3526 = vmul.f32 %v3283, 1.442695
    %v3527 = vpow.pop %v3526
    %v3528 = vmul.f32 %v3284, 1.442695
    %v3529 = vpow.pop %v3528
    %v3530 = vmul.f32 %v3285, 1.442695
    %v3531 = vpow.pop %v3530
    %v3532 = vmul.f32 %v3286, 1.442695
    %v3533 = vpow.pop %v3532
    %v3534 = vmul.f32 %v3287, 1.442695
    %v3535 = vpow.pop %v3534
    %v3536 = vmul.f32 %v3288, 1.442695
    %v3537 = vpow.pop %v3536
    %v3538 = vmul.f32 %v3289, 1.442695
    %v3539 = vpow.pop %v3538
    %v3540 = vmul.f32 %v3290, 1.442695
    %v3541 = vpow.pop %v3540
    %v3542 = vmul.f32 %v3291, 1.442695
    %v3543 = vpow.pop %v3542
    %v3544 = vmul.f32 %v3292, 1.442695
    %v3545 = vpow.pop %v3544
    %v3546 = vmul.f32 %v3293, 1.442695
    %v3547 = vpow.pop %v3546
    %v3548 = vmul.f32 %v3294, 1.442695
    %v3549 = vpow.pop %v3548
    %v3550 = vmul.f32 %v3295, 1.442695
    %v3551 = vpow.pop %v3550
    %v3552 = vadd.f32 %v3297, %v3361
    %v3553 = vadd.f32 %v3299, %v3363
    %v3554 = vadd.f32 %v3301, %v3365
    %v3555 = vadd.f32 %v3303, %v3367
    %v3556 = vadd.f32 %v3305, %v3369
    %v3557 = vadd.f32 %v3307, %v3371
    %v3558 = vadd.f32 %v3309, %v3373
    %v3559 = vadd.f32 %v3311, %v3375
    %v3560 = vadd.f32 %v3313, %v3377
    %v3561 = vadd.f32 %v3315, %v3379
    %v3562 = vadd.f32 %v3317, %v3381
    %v3563 = vadd.f32 %v3319, %v3383
    %v3564 = vadd.f32 %v3321, %v3385
    %v3565 = vadd.f32 %v3323, %v3387
    %v3566 = vadd.f32 %v3325, %v3389
    %v3567 = vadd.f32 %v3327, %v3391
    %v3568 = vadd.f32 %v3329, %v3393
    %v3569 = vadd.f32 %v3331, %v3395
    %v3570 = vadd.f32 %v3333, %v3397
    %v3571 = vadd.f32 %v3335, %v3399
    %v3572 = vadd.f32 %v3337, %v3401
    %v3573 = vadd.f32 %v3339, %v3403
    %v3574 = vadd.f32 %v3341, %v3405
    %v3575 = vadd.f32 %v3343, %v3407
    %v3576 = vadd.f32 %v3345, %v3409
    %v3577 = vadd.f32 %v3347, %v3411
    %v3578 = vadd.f32 %v3349, %v3413
    %v3579 = vadd.f32 %v3351, %v3415
    %v3580 = vadd.f32 %v3353, %v3417
    %v3581 = vadd.f32 %v3355, %v3419
    %v3582 = vadd.f32 %v3357, %v3421
    %v3583 = vadd.f32 %v3359, %v3423
    %v3584 = vadd.f32 %v3425, %v3489
    %v3585 = vadd.f32 %v3427, %v3491
    %v3586 = vadd.f32 %v3429, %v3493
    %v3587 = vadd.f32 %v3431, %v3495
    %v3588 = vadd.f32 %v3433, %v3497
    %v3589 = vadd.f32 %v3435, %v3499
    %v3590 = vadd.f32 %v3437, %v3501
    %v3591 = vadd.f32 %v3439, %v3503
    %v3592 = vadd.f32 %v3441, %v3505
    %v3593 = vadd.f32 %v3443, %v3507
    %v3594 = vadd.f32 %v3445, %v3509
    %v3595 = vadd.f32 %v3447, %v3511
    %v3596 = vadd.f32 %v3449, %v3513
    %v3597 = vadd.f32 %v3451, %v3515
    %v3598 = vadd.f32 %v3453, %v3517
    %v3599 = vadd.f32 %v3455, %v3519
    %v3600 = vadd.f32 %v3457, %v3521
    %v3601 = vadd.f32 %v3459, %v3523
    %v3602 = vadd.f32 %v3461, %v3525
    %v3603 = vadd.f32 %v3463, %v3527
    %v3604 = vadd.f32 %v3465, %v3529
    %v3605 = vadd.f32 %v3467, %v3531
    %v3606 = vadd.f32 %v3469, %v3533
    %v3607 = vadd.f32 %v3471, %v3535
    %v3608 = vadd.f32 %v3473, %v3537
    %v3609 = vadd.f32 %v3475, %v3539
    %v3610 = vadd.f32 %v3477, %v3541
    %v3611 = vadd.f32 %v3479, %v3543
    %v3612 = vadd.f32 %v3481, %v3545
    %v3613 = vadd.f32 %v3483, %v3547
    %v3614 = vadd.f32 %v3485, %v3549
    %v3615 = vadd.f32 %v3487, %v3551
    %v3616 = vmul.f32 %v3297, %v1734
    %v3617 = vmul.f32 %v3299, %v1739
    %v3618 = vmul.f32 %v3301, %v1744
    %v3619 = vmul.f32 %v3303, %v1749
    %v3620 = vmul.f32 %v3305, %v1754
    %v3621 = vmul.f32 %v3307, %v1759
    %v3622 = vmul.f32 %v3309, %v1764
    %v3623 = vmul.f32 %v3311, %v1769
    %v3624 = vmul.f32 %v3313, %v1774
    %v3625 = vmul.f32 %v3315, %v1779
    %v3626 = vmul.f32 %v3317, %v1784
    %v3627 = vmul.f32 %v3319, %v1789
    %v3628 = vmul.f32 %v3321, %v1794
    %v3629 = vmul.f32 %v3323, %v1799
    %v3630 = vmul.f32 %v3325, %v1804
    %v3631 = vmul.f32 %v3327, %v1809
    %v3632 = vmul.f32 %v3329, %v1814
    %v3633 = vmul.f32 %v3331, %v1819
    %v3634 = vmul.f32 %v3333, %v1824
    %v3635 = vmul.f32 %v3335, %v1829
    %v3636 = vmul.f32 %v3337, %v1834
    %v3637 = vmul.f32 %v3339, %v1839
    %v3638 = vmul.f32 %v3341, %v1844
    %v3639 = vmul.f32 %v3343, %v1849
    %v3640 = vmul.f32 %v3345, %v1854
    %v3641 = vmul.f32 %v3347, %v1859
    %v3642 = vmul.f32 %v3349, %v1864
    %v3643 = vmul.f32 %v3351, %v1869
    %v3644 = vmul.f32 %v3353, %v1874
    %v3645 = vmul.f32 %v3355, %v1879
    %v3646 = vmul.f32 %v3357, %v1884
    %v3647 = vmul.f32 %v3359, %v1889
    %v3648 = vmul.f32 %v3361, %v1894
    %v3649 = vmul.f32 %v3363, %v1899
    %v3650 = vmul.f32 %v3365, %v1904
    %v3651 = vmul.f32 %v3367, %v1909
    %v3652 = vmul.f32 %v3369, %v1914
    %v3653 = vmul.f32 %v3371, %v1919
    %v3654 = vmul.f32 %v3373, %v1924
    %v3655 = vmul.f32 %v3375, %v1929
    %v3656 = vmul.f32 %v3377, %v1934
    %v3657 = vmul.f32 %v3379, %v1939
    %v3658 = vmul.f32 %v3381, %v1944
    %v3659 = vmul.f32 %v3383, %v1949
    %v3660 = vmul.f32 %v3385, %v1954
    %v3661 = vmul.f32 %v3387, %v1959
    %v3662 = vmul.f32 %v3389, %v1964
    %v3663 = vmul.f32 %v3391, %v1969
    %v3664 = vmul.f32 %v3393, %v1974
    %v3665 = vmul.f32 %v3395, %v1979
    %v3666 = vmul.f32 %v3397, %v1984
    %v3667 = vmul.f32 %v3399, %v1989
    %v3668 = vmul.f32 %v3401, %v1994
    %v3669 = vmul.f32 %v3403, %v1999
    %v3670 = vmul.f32 %v3405, %v2004
    %v3671 = vmul.f32 %v3407, %v2009
    %v3672 = vmul.f32 %v3409, %v2014
    %v3673 = vmul.f32 %v3411, %v2019
    %v3674 = vmul.f32 %v3413, %v2024
    %v3675 = vmul.f32 %v3415, %v2029
    %v3676 = vmul.f32 %v3417, %v2034
    %v3677 = vmul.f32 %v3419, %v2039
    %v3678 = vmul.f32 %v3421, %v2044
    %v3679 = vmul.f32 %v3423, %v2049
    %v3680 = vmul.f32 %v3425, %v1734
    %v3681 = vmul.f32 %v3427, %v1739
    %v3682 = vmul.f32 %v3429, %v1744
    %v3683 = vmul.f32 %v3431, %v1749
    %v3684 = vmul.f32 %v3433, %v1754
    %v3685 = vmul.f32 %v3435, %v1759
    %v3686 = vmul.f32 %v3437, %v1764
    %v3687 = vmul.f32 %v3439, %v1769
    %v3688 = vmul.f32 %v3441, %v1774
    %v3689 = vmul.f32 %v3443, %v1779
    %v3690 = vmul.f32 %v3445, %v1784
    %v3691 = vmul.f32 %v3447, %v1789
    %v3692 = vmul.f32 %v3449, %v1794
    %v3693 = vmul.f32 %v3451, %v1799
    %v3694 = vmul.f32 %v3453, %v1804
    %v3695 = vmul.f32 %v3455, %v1809
    %v3696 = vmul.f32 %v3457, %v1814
    %v3697 = vmul.f32 %v3459, %v1819
    %v3698 = vmul.f32 %v3461, %v1824
    %v3699 = vmul.f32 %v3463, %v1829
    %v3700 = vmul.f32 %v3465, %v1834
    %v3701 = vmul.f32 %v3467, %v1839
    %v3702 = vmul.f32 %v3469, %v1844
    %v3703 = vmul.f32 %v3471, %v1849
    %v3704 = vmul.f32 %v3473, %v1854
    %v3705 = vmul.f32 %v3475, %v1859
    %v3706 = vmul.f32 %v3477, %v1864
    %v3707 = vmul.f32 %v3479, %v1869
    %v3708 = vmul.f32 %v3481, %v1874
    %v3709 = vmul.f32 %v3483, %v1879
    %v3710 = vmul.f32 %v3485, %v1884
    %v3711 = vmul.f32 %v3487, %v1889
    %v3712 = vmul.f32 %v3489, %v1894
    %v3713 = vmul.f32 %v3491, %v1899
    %v3714 = vmul.f32 %v3493, %v1904
    %v3715 = vmul.f32 %v3495, %v1909
    %v3716 = vmul.f32 %v3497, %v1914
    %v3717 = vmul.f32 %v3499, %v1919
    %v3718 = vmul.f32 %v3501, %v1924
    %v3719 = vmul.f32 %v3503, %v1929
    %v3720 = vmul.f32 %v3505, %v1934
    %v3721 = vmul.f32 %v3507, %v1939
    %v3722 = vmul.f32 %v3509, %v1944
    %v3723 = vmul.f32 %v3511, %v1949
    %v3724 = vmul.f32 %v3513, %v1954
    %v3725 = vmul.f32 %v3515, %v1959
    %v3726 = vmul.f32 %v3517, %v1964
    %v3727 = vmul.f32 %v3519, %v1969
    %v3728 = vmul.f32 %v3521, %v1974
    %v3729 = vmul.f32 %v3523, %v1979
    %v3730 = vmul.f32 %v3525, %v1984
    %v3731 = vmul.f32 %v3527, %v1989
    %v3732 = vmul.f32 %v3529, %v1994
    %v3733 = vmul.f32 %v3531, %v1999
    %v3734 = vmul.f32 %v3533, %v2004
    %v3735 = vmul.f32 %v3535, %v2009
    %v3736 = vmul.f32 %v3537, %v2014
    %v3737 = vmul.f32 %v3539, %v2019
    %v3738 = vmul.f32 %v3541, %v2024
    %v3739 = vmul.f32 %v3543, %v2029
    %v3740 = vmul.f32 %v3545, %v2034
    %v3741 = vmul.f32 %v3547, %v2039
    %v3742 = vmul.f32 %v3549, %v2044
    %v3743 = vmul.f32 %v3551, %v2049
    %v3744 = vadd.f32 %v3616, %v3648
    %v3745 = vadd.f32 %v3617, %v3649
    %v3746 = vadd.f32 %v3618, %v3650
    %v3747 = vadd.f32 %v3619, %v3651
    %v3748 = vadd.f32 %v3620, %v3652
    %v3749 = vadd.f32 %v3621, %v3653
    %v3750 = vadd.f32 %v3622, %v3654
    %v3751 = vadd.f32 %v3623, %v3655
    %v3752 = vadd.f32 %v3624, %v3656
    %v3753 = vadd.f32 %v3625, %v3657
    %v3754 = vadd.f32 %v3626, %v3658
    %v3755 = vadd.f32 %v3627, %v3659
    %v3756 = vadd.f32 %v3628, %v3660
    %v3757 = vadd.f32 %v3629, %v3661
    %v3758 = vadd.f32 %v3630, %v3662
    %v3759 = vadd.f32 %v3631, %v3663
    %v3760 = vadd.f32 %v3632, %v3664
    %v3761 = vadd.f32 %v3633, %v3665
    %v3762 = vadd.f32 %v3634, %v3666
    %v3763 = vadd.f32 %v3635, %v3667
    %v3764 = vadd.f32 %v3636, %v3668
    %v3765 = vadd.f32 %v3637, %v3669
    %v3766 = vadd.f32 %v3638, %v3670
    %v3767 = vadd.f32 %v3639, %v3671
    %v3768 = vadd.f32 %v3640, %v3672
    %v3769 = vadd.f32 %v3641, %v3673
    %v3770 = vadd.f32 %v3642, %v3674
    %v3771 = vadd.f32 %v3643, %v3675
    %v3772 = vadd.f32 %v3644, %v3676
    %v3773 = vadd.f32 %v3645, %v3677
    %v3774 = vadd.f32 %v3646, %v3678
    %v3775 = vadd.f32 %v3647, %v3679
    %v3776 = vadd.f32 %v3680, %v3712
    %v3777 = vadd.f32 %v3681, %v3713
    %v3778 = vadd.f32 %v3682, %v3714
    %v3779 = vadd.f32 %v3683, %v3715
    %v3780 = vadd.f32 %v3684, %v3716
    %v3781 = vadd.f32 %v3685, %v3717
    %v3782 = vadd.f32 %v3686, %v3718
    %v3783 = vadd.f32 %v3687, %v3719
    %v3784 = vadd.f32 %v3688, %v3720
    %v3785 = vadd.f32 %v3689, %v3721
    %v3786 = vadd.f32 %v3690, %v3722
    %v3787 = vadd.f32 %v3691, %v3723
    %v3788 = vadd.f32 %v3692, %v3724
    %v3789 = vadd.f32 %v3693, %v3725
    %v3790 = vadd.f32 %v3694, %v3726
    %v3791 = vadd.f32 %v3695, %v3727
    %v3792 = vadd.f32 %v3696, %v3728
    %v3793 = vadd.f32 %v3697, %v3729
    %v3794 = vadd.f32 %v3698, %v3730
    %v3795 = vadd.f32 %v3699, %v3731
    %v3796 = vadd.f32 %v3700, %v3732
    %v3797 = vadd.f32 %v3701, %v3733
    %v3798 = vadd.f32 %v3702, %v3734
    %v3799 = vadd.f32 %v3703, %v3735
    %v3800 = vadd.f32 %v3704, %v3736
    %v3801 = vadd.f32 %v3705, %v3737
    %v3802 = vadd.f32 %v3706, %v3738
    %v3803 = vadd.f32 %v3707, %v3739
    %v3804 = vadd.f32 %v3708, %v3740
    %v3805 = vadd.f32 %v3709, %v3741
    %v3806 = vadd.f32 %v3710, %v3742
    %v3807 = vadd.f32 %v3711, %v3743
    %v3808 = vrcp.pop %v3552
    %v3809 = vrcp.pop %v3553
    %v3810 = vrcp.pop %v3554
    %v3811 = vrcp.pop %v3555
    %v3812 = vrcp.pop %v3556
    %v3813 = vrcp.pop %v3557
    %v3814 = vrcp.pop %v3558
    %v3815 = vrcp.pop %v3559
    %v3816 = vrcp.pop %v3560
    %v3817 = vrcp.pop %v3561
    %v3818 = vrcp.pop %v3562
    %v3819 = vrcp.pop %v3563
    %v3820 = vrcp.pop %v3564
    %v3821 = vrcp.pop %v3565
    %v3822 = vrcp.pop %v3566
    %v3823 = vrcp.pop %v3567
    %v3824 = vrcp.pop %v3568
    %v3825 = vrcp.pop %v3569
    %v3826 = vrcp.pop %v3570
    %v3827 = vrcp.pop %v3571
    %v3828 = vrcp.pop %v3572
    %v3829 = vrcp.pop %v3573
    %v3830 = vrcp.pop %v3574
    %v3831 = vrcp.pop %v3575
    %v3832 = vrcp.pop %v3576
    %v3833 = vrcp.pop %v3577
    %v3834 = vrcp.pop %v3578
    %v3835 = vrcp.pop %v3579
    %v3836 = vrcp.pop %v3580
    %v3837 = vrcp.pop %v3581
    %v3838 = vrcp.pop %v3582
    %v3839 = vrcp.pop %v3583
    %v3840 = vrcp.pop %v3584
    %v3841 = vrcp.pop %v3585
    %v3842 = vrcp.pop %v3586
    %v3843 = vrcp.pop %v3587
    %v3844 = vrcp.pop %v3588
    %v3845 = vrcp.pop %v3589
    %v3846 = vrcp.pop %v3590
    %v3847 = vrcp.pop %v3591
    %v3848 = vrcp.pop %v3592
    %v3849 = vrcp.pop %v3593
    %v3850 = vrcp.pop %v3594
    %v3851 = vrcp.pop %v3595
    %v3852 = vrcp.pop %v3596
    %v3853 = vrcp.pop %v3597
    %v3854 = vrcp.pop %v3598
    %v3855 = vrcp.pop %v3599
    %v3856 = vrcp.pop %v3600
    %v3857 = vrcp.pop %v3601
    %v3858 = vrcp.pop %v3602
    %v3859 = vrcp.pop %v3603
    %v3860 = vrcp.pop %v3604
    %v3861 = vrcp.pop %v3605
    %v3862 = vrcp.pop %v3606
    %v3863 = vrcp.pop %v3607
    %v3864 = vrcp.pop %v3608
    %v3865 = vrcp.pop %v3609
    %v3866 = vrcp.pop %v3610
    %v3867 = vrcp.pop %v3611
    %v3868 = vrcp.pop %v3612
    %v3869 = vrcp.pop %v3613
    %v3870 = vrcp.pop %v3614
    %v3871 = vrcp.pop %v3615
    %v3872 = vmul.f32 %v3744, %v3808
    %v3873 = vmul.f32 %v3745, %v3809
    %v3874 = vmul.f32 %v3746, %v3810
    %v3875 = vmul.f32 %v3747, %v3811
    %v3876 = vmul.f32 %v3748, %v3812
    %v3877 = vmul.f32 %v3749, %v3813
    %v3878 = vmul.f32 %v3750, %v3814
    %v3879 = vmul.f32 %v3751, %v3815
    %v3880 = vmul.f32 %v3752, %v3816
    %v3881 = vmul.f32 %v3753, %v3817
    %v3882 = vmul.f32 %v3754, %v3818
    %v3883 = vmul.f32 %v3755, %v3819
    %v3884 = vmul.f32 %v3756, %v3820
    %v3885 = vmul.f32 %v3757, %v3821
    %v3886 = vmul.f32 %v3758, %v3822
    %v3887 = vmul.f32 %v3759, %v3823
    %v3888 = vmul.f32 %v3760, %v3824
    %v3889 = vmul.f32 %v3761, %v3825
    %v3890 = vmul.f32 %v3762, %v3826
    %v3891 = vmul.f32 %v3763, %v3827
    %v3892 = vmul.f32 %v3764, %v3828
    %v3893 = vmul.f32 %v3765, %v3829
    %v3894 = vmul.f32 %v3766, %v3830
    %v3895 = vmul.f32 %v3767, %v3831
    %v3896 = vmul.f32 %v3768, %v3832
    %v3897 = vmul.f32 %v3769, %v3833
    %v3898 = vmul.f32 %v3770, %v3834
    %v3899 = vmul.f32 %v3771, %v3835
    %v3900 = vmul.f32 %v3772, %v3836
    %v3901 = vmul.f32 %v3773, %v3837
    %v3902 = vmul.f32 %v3774, %v3838
    %v3903 = vmul.f32 %v3775, %v3839
    %v3904 = vmul.f32 %v3776, %v3840
    %v3905 = vmul.f32 %v3777, %v3841
    %v3906 = vmul.f32 %v3778, %v3842
    %v3907 = vmul.f32 %v3779, %v3843
    %v3908 = vmul.f32 %v3780, %v3844
    %v3909 = vmul.f32 %v3781, %v3845
    %v3910 = vmul.f32 %v3782, %v3846
    %v3911 = vmul.f32 %v3783, %v3847
    %v3912 = vmul.f32 %v3784, %v3848
    %v3913 = vmul.f32 %v3785, %v3849
    %v3914 = vmul.f32 %v3786, %v3850
    %v3915 = vmul.f32 %v3787, %v3851
    %v3916 = vmul.f32 %v3788, %v3852
    %v3917 = vmul.f32 %v3789, %v3853
    %v3918 = vmul.f32 %v3790, %v3854
    %v3919 = vmul.f32 %v3791, %v3855
    %v3920 = vmul.f32 %v3792, %v3856
    %v3921 = vmul.f32 %v3793, %v3857
    %v3922 = vmul.f32 %v3794, %v3858
    %v3923 = vmul.f32 %v3795, %v3859
    %v3924 = vmul.f32 %v3796, %v3860
    %v3925 = vmul.f32 %v3797, %v3861
    %v3926 = vmul.f32 %v3798, %v3862
    %v3927 = vmul.f32 %v3799, %v3863
    %v3928 = vmul.f32 %v3800, %v3864
    %v3929 = vmul.f32 %v3801, %v3865
    %v3930 = vmul.f32 %v3802, %v3866
    %v3931 = vmul.f32 %v3803, %v3867
    %v3932 = vmul.f32 %v3804, %v3868
    %v3933 = vmul.f32 %v3805, %v3869
    %v3934 = vmul.f32 %v3806, %v3870
    %v3935 = vmul.f32 %v3807, %v3871
    %v3936 = vld [vmem:[#allocation7] sm:$0xff]
    %v3937 = vld [vmem:[#allocation7 + $0x8] sm:$0xff]
    %v3938 = vld [vmem:[#allocation7 + $0x10] sm:$0xff]
    %v3939 = vld [vmem:[#allocation7 + $0x18] sm:$0xff]
    %v3940 = vld [vmem:[#allocation7 + $0x20] sm:$0xff]
    %v3941 = vld [vmem:[#allocation7 + $0x28] sm:$0xff]
    %v3942 = vld [vmem:[#allocation7 + $0x30] sm:$0xff]
    %v3943 = vld [vmem:[#allocation7 + $0x38] sm:$0xff]
    %v3944 = vld [vmem:[#allocation7 + $0x40] sm:$0xff]
    %v3945 = vld [vmem:[#allocation7 + $0x48] sm:$0xff]
    %v3946 = vld [vmem:[#allocation7 + $0x50] sm:$0xff]
    %v3947 = vld [vmem:[#allocation7 + $0x58] sm:$0xff]
    %v3948 = vld [vmem:[#allocation7 + $0x60] sm:$0xff]
    %v3949 = vld [vmem:[#allocation7 + $0x68] sm:$0xff]
    %v3950 = vld [vmem:[#allocation7 + $0x70] sm:$0xff]
    %v3951 = vld [vmem:[#allocation7 + $0x78] sm:$0xff]
    %v3952 = vld [vmem:[%s6] sm:$0x1]
    %v3954 = vlaneseq
    %v3955 = vshrl.u32 %v3954, 7
    %v3956 = vsub.s32 0, %v3955
    %v3957 = vrot.slane %v3952, %v3956
    %3959 = vmatprep.subr.mxu0 0.0
    %3960 = vmatpush1.msra.mxu0 %v3936
    %3961 = vmatprep.subr.mxu0 0.0
    %3962 = vmatpush1.msra.mxu0 %v3937
    %3963 = vmatprep.subr.mxu0 0.0
    %3964 = vmatpush1.msra.mxu0 %v3938
    %3965 = vmatprep.subr.mxu0 0.0
    %3966 = vmatpush1.msra.mxu0 %v3939
    %3967 = vmatprep.subr.mxu0 0.0
    %3968 = vmatpush1.msra.mxu0 %v3940
    %3969 = vmatprep.subr.mxu0 0.0
    %3970 = vmatpush1.msra.mxu0 %v3941
    %3971 = vmatprep.subr.mxu0 0.0
    %3972 = vmatpush1.msra.mxu0 %v3942
    %3973 = vmatprep.subr.mxu0 0.0
    %3974 = vmatpush1.msra.mxu0 %v3943
    %3975 = vmatprep.subr.mxu0 0.0
    %3976 = vmatpush1.msra.mxu0 %v3944
    %3977 = vmatprep.subr.mxu0 0.0
    %3978 = vmatpush1.msra.mxu0 %v3945
    %3979 = vmatprep.subr.mxu0 0.0
    %3980 = vmatpush1.msra.mxu0 %v3946
    %3981 = vmatprep.subr.mxu0 0.0
    %3982 = vmatpush1.msra.mxu0 %v3947
    %3983 = vmatprep.subr.mxu0 0.0
    %3984 = vmatpush1.msra.mxu0 %v3948
    %3985 = vmatprep.subr.mxu0 0.0
    %3986 = vmatpush1.msra.mxu0 %v3949
    %3987 = vmatprep.subr.mxu0 0.0
    %3988 = vmatpush1.msra.mxu0 %v3950
    %3989 = vmatprep.subr.mxu0 0.0
    %3990 = vmatpush1.msra.mxu0 %v3951
    %3991 = vmatprep.subr.mxu0 0.0
    %3992 = vmatpush1.msra.mxu0 0.0
    %3993 = vmatprep.subr.mxu0 0.0
    %3994 = vmatpush1.msra.mxu0 0.0
    %3995 = vmatprep.subr.mxu0 0.0
    %3996 = vmatpush1.msra.mxu0 0.0
    %3997 = vmatprep.subr.mxu0 0.0
    %3998 = vmatpush1.msra.mxu0 0.0
    %3999 = vmatprep.subr.mxu0 0.0
    %4000 = vmatpush1.msra.mxu0 0.0
    %4001 = vmatprep.subr.mxu0 0.0
    %4002 = vmatpush1.msra.mxu0 0.0
    %4003 = vmatprep.subr.mxu0 0.0
    %4004 = vmatpush1.msra.mxu0 0.0
    %4005 = vmatprep.subr.mxu0 0.0
    %4006 = vmatpush1.msra.mxu0 0.0
    %4007 = vmatprep.subr.mxu0 0.0
    %4008 = vmatpush1.msra.mxu0 0.0
    %4009 = vmatprep.subr.mxu0 0.0
    %4010 = vmatpush1.msra.mxu0 0.0
    %4011 = vmatprep.subr.mxu0 0.0
    %4012 = vmatpush1.msra.mxu0 0.0
    %4013 = vmatprep.subr.mxu0 0.0
    %4014 = vmatpush1.msra.mxu0 0.0
    %4015 = vmatprep.subr.mxu0 0.0
    %4016 = vmatpush1.msra.mxu0 0.0
    %4017 = vmatprep.subr.mxu0 0.0
    %4018 = vmatpush1.msra.mxu0 0.0
    %4019 = vmatprep.subr.mxu0 0.0
    %4020 = vmatpush1.msra.mxu0 0.0
    %4021 = vmatprep.subr.mxu0 0.0
    %4022 = vmatpush1.msra.mxu0 0.0
    %4023 = vmatprep.mubr.f32.mxu0 0.0
    %4024 = vmatmul.mubr.f32.gmra.mrb[0].mxu0 %v3872
    %v4025 = vpop.f32.mrb[0].mxu0
    %v4026 = vadd.f32 %v3957, %v4025
    %v4027 = vpop.f32.mrb[0].mxu0
    %4028 = vmatprep.mubr.f32.mxu0 0.0
    %4029 = vmatmul.mubr.f32.gmra.mrb[0].mxu0 %v3873
    %v4030 = vpop.f32.mrb[0].mxu0
    %v4031 = vadd.f32 %v3957, %v4030
    %v4032 = vpop.f32.mrb[0].mxu0
    %4033 = vmatprep.mubr.f32.mxu0 0.0
    %4034 = vmatmul.mubr.f32.gmra.mrb[0].mxu0 %v3874
    %v4035 = vpop.f32.mrb[0].mxu0
    %v4036 = vadd.f32 %v3957, %v4035
    %v4037 = vpop.f32.mrb[0].mxu0
    %4038 = vmatprep.mubr.f32.mxu0 0.0
    %4039 = vmatmul.mubr.f32.gmra.mrb[0].mxu0 %v3875
    %v4040 = vpop.f32.mrb[0].mxu0
    %v4041 = vadd.f32 %v3957, %v4040
    %v4042 = vpop.f32.mrb[0].mxu0
    %4043 = vmatprep.mubr.f32.mxu0 0.0
    %4044 = vmatmul.mubr.f32.gmra.mrb[0].mxu0 %v3876
    %v4045 = vpop.f32.mrb[0].mxu0
    %v4046 = vadd.f32 %v3957, %v4045
    %v4047 = vpop.f32.mrb[0].mxu0
    %4048 = vmatprep.mubr.f32.mxu0 0.0
    %4049 = vmatmul.mubr.f32.gmra.mrb[0].mxu0 %v3877
    %v4050 = vpop.f32.mrb[0].mxu0
    %v4051 = vadd.f32 %v3957, %v4050
    %v4052 = vpop.f32.mrb[0].mxu0
    %4053 = vmatprep.mubr.f32.mxu0 0.0
    %4054 = vmatmul.mubr.f32.gmra.mrb[0].mxu0 %v3878
    %v4055 = vpop.f32.mrb[0].mxu0
    %v4056 = vadd.f32 %v3957, %v4055
    %v4057 = vpop.f32.mrb[0].mxu0
    %4058 = vmatprep.mubr.f32.mxu0 0.0
    %4059 = vmatmul.mubr.f32.gmra.mrb[0].mxu0 %v3879
    %v4060 = vpop.f32.mrb[0].mxu0
    %v4061 = vadd.f32 %v3957, %v4060
    %v4062 = vpop.f32.mrb[0].mxu0
    %4063 = vmatprep.mubr.f32.mxu0 0.0
    %4064 = vmatmul.mubr.f32.gmra.mrb[0].mxu0 %v3880
    %v4065 = vpop.f32.mrb[0].mxu0
    %v4066 = vadd.f32 %v3957, %v4065
    %v4067 = vpop.f32.mrb[0].mxu0
    %4068 = vmatprep.mubr.f32.mxu0 0.0
    %4069 = vmatmul.mubr.f32.gmra.mrb[0].mxu0 %v3881
    %v4070 = vpop.f32.mrb[0].mxu0
    %v4071 = vadd.f32 %v3957, %v4070
    %v4072 = vpop.f32.mrb[0].mxu0
    %4073 = vmatprep.mubr.f32.mxu0 0.0
    %4074 = vmatmul.mubr.f32.gmra.mrb[0].mxu0 %v3882
    %v4075 = vpop.f32.mrb[0].mxu0
    %v4076 = vadd.f32 %v3957, %v4075
    %v4077 = vpop.f32.mrb[0].mxu0
    %4078 = vmatprep.mubr.f32.mxu0 0.0
    %4079 = vmatmul.mubr.f32.gmra.mrb[0].mxu0 %v3883
    %v4080 = vpop.f32.mrb[0].mxu0
    %v4081 = vadd.f32 %v3957, %v4080
    %v4082 = vpop.f32.mrb[0].mxu0
    %4083 = vmatprep.mubr.f32.mxu0 0.0
    %4084 = vmatmul.mubr.f32.gmra.mrb[0].mxu0 %v3884
    %v4085 = vpop.f32.mrb[0].mxu0
    %v4086 = vadd.f32 %v3957, %v4085
    %v4087 = vpop.f32.mrb[0].mxu0
    %4088 = vmatprep.mubr.f32.mxu0 0.0
    %4089 = vmatmul.mubr.f32.gmra.mrb[0].mxu0 %v3885
    %v4090 = vpop.f32.mrb[0].mxu0
    %v4091 = vadd.f32 %v3957, %v4090
    %v4092 = vpop.f32.mrb[0].mxu0
    %4093 = vmatprep.mubr.f32.mxu0 0.0
    %4094 = vmatmul.mubr.f32.gmra.mrb[0].mxu0 %v3886
    %v4095 = vpop.f32.mrb[0].mxu0
    %v4096 = vadd.f32 %v3957, %v4095
    %v4097 = vpop.f32.mrb[0].mxu0
    %4098 = vmatprep.mubr.f32.mxu0 0.0
    %4099 = vmatmul.mubr.f32.gmra.mrb[0].mxu0 %v3887
    %v4100 = vpop.f32.mrb[0].mxu0
    %v4101 = vadd.f32 %v3957, %v4100
    %v4102 = vpop.f32.mrb[0].mxu0
    %4103 = vmatprep.mubr.f32.mxu0 0.0
    %4104 = vmatmul.mubr.f32.gmra.mrb[0].mxu0 %v3888
    %v4105 = vpop.f32.mrb[0].mxu0
    %v4106 = vadd.f32 %v3957, %v4105
    %v4107 = vpop.f32.mrb[0].mxu0
    %4108 = vmatprep.mubr.f32.mxu0 0.0
    %4109 = vmatmul.mubr.f32.gmra.mrb[0].mxu0 %v3889
    %v4110 = vpop.f32.mrb[0].mxu0
    %v4111 = vadd.f32 %v3957, %v4110
    %v4112 = vpop.f32.mrb[0].mxu0
    %4113 = vmatprep.mubr.f32.mxu0 0.0
    %4114 = vmatmul.mubr.f32.gmra.mrb[0].mxu0 %v3890
    %v4115 = vpop.f32.mrb[0].mxu0
    %v4116 = vadd.f32 %v3957, %v4115
    %v4117 = vpop.f32.mrb[0].mxu0
    %4118 = vmatprep.mubr.f32.mxu0 0.0
    %4119 = vmatmul.mubr.f32.gmra.mrb[0].mxu0 %v3891
    %v4120 = vpop.f32.mrb[0].mxu0
    %v4121 = vadd.f32 %v3957, %v4120
    %v4122 = vpop.f32.mrb[0].mxu0
    %4123 = vmatprep.mubr.f32.mxu0 0.0
    %4124 = vmatmul.mubr.f32.gmra.mrb[0].mxu0 %v3892
    %v4125 = vpop.f32.mrb[0].mxu0
    %v4126 = vadd.f32 %v3957, %v4125
    %v4127 = vpop.f32.mrb[0].mxu0
    %4128 = vmatprep.mubr.f32.mxu0 0.0
    %4129 = vmatmul.mubr.f32.gmra.mrb[0].mxu0 %v3893
    %v4130 = vpop.f32.mrb[0].mxu0
    %v4131 = vadd.f32 %v3957, %v4130
    %v4132 = vpop.f32.mrb[0].mxu0
    %4133 = vmatprep.mubr.f32.mxu0 0.0
    %4134 = vmatmul.mubr.f32.gmra.mrb[0].mxu0 %v3894
    %v4135 = vpop.f32.mrb[0].mxu0
    %v4136 = vadd.f32 %v3957, %v4135
    %v4137 = vpop.f32.mrb[0].mxu0
    %4138 = vmatprep.mubr.f32.mxu0 0.0
    %4139 = vmatmul.mubr.f32.gmra.mrb[0].mxu0 %v3895
    %v4140 = vpop.f32.mrb[0].mxu0
    %v4141 = vadd.f32 %v3957, %v4140
    %v4142 = vpop.f32.mrb[0].mxu0
    %4143 = vmatprep.mubr.f32.mxu0 0.0
    %4144 = vmatmul.mubr.f32.gmra.mrb[0].mxu0 %v3896
    %v4145 = vpop.f32.mrb[0].mxu0
    %v4146 = vadd.f32 %v3957, %v4145
    %v4147 = vpop.f32.mrb[0].mxu0
    %4148 = vmatprep.mubr.f32.mxu0 0.0
    %4149 = vmatmul.mubr.f32.gmra.mrb[0].mxu0 %v3897
    %v4150 = vpop.f32.mrb[0].mxu0
    %v4151 = vadd.f32 %v3957, %v4150
    %v4152 = vpop.f32.mrb[0].mxu0
    %4153 = vmatprep.mubr.f32.mxu0 0.0
    %4154 = vmatmul.mubr.f32.gmra.mrb[0].mxu0 %v3898
    %v4155 = vpop.f32.mrb[0].mxu0
    %v4156 = vadd.f32 %v3957, %v4155
    %v4157 = vpop.f32.mrb[0].mxu0
    %4158 = vmatprep.mubr.f32.mxu0 0.0
    %4159 = vmatmul.mubr.f32.gmra.mrb[0].mxu0 %v3899
    %v4160 = vpop.f32.mrb[0].mxu0
    %v4161 = vadd.f32 %v3957, %v4160
    %v4162 = vpop.f32.mrb[0].mxu0
    %4163 = vmatprep.mubr.f32.mxu0 0.0
    %4164 = vmatmul.mubr.f32.gmra.mrb[0].mxu0 %v3900
    %v4165 = vpop.f32.mrb[0].mxu0
    %v4166 = vadd.f32 %v3957, %v4165
    %v4167 = vpop.f32.mrb[0].mxu0
    %4168 = vmatprep.mubr.f32.mxu0 0.0
    %4169 = vmatmul.mubr.f32.gmra.mrb[0].mxu0 %v3901
    %v4170 = vpop.f32.mrb[0].mxu0
    %v4171 = vadd.f32 %v3957, %v4170
    %v4172 = vpop.f32.mrb[0].mxu0
    %4173 = vmatprep.mubr.f32.mxu0 0.0
    %4174 = vmatmul.mubr.f32.gmra.mrb[0].mxu0 %v3902
    %v4175 = vpop.f32.mrb[0].mxu0
    %v4176 = vadd.f32 %v3957, %v4175
    %v4177 = vpop.f32.mrb[0].mxu0
    %4178 = vmatprep.mubr.f32.mxu0 0.0
    %4179 = vmatmul.mubr.f32.gmra.mrb[0].mxu0 %v3903
    %v4180 = vpop.f32.mrb[0].mxu0
    %v4181 = vadd.f32 %v3957, %v4180
    %v4182 = vpop.f32.mrb[0].mxu0
    %4183 = vmatprep.mubr.f32.mxu0 0.0
    %4184 = vmatmul.mubr.f32.gmra.mrb[0].mxu0 %v3904
    %v4185 = vpop.f32.mrb[0].mxu0
    %v4186 = vadd.f32 %v3957, %v4185
    %v4187 = vpop.f32.mrb[0].mxu0
    %4188 = vmatprep.mubr.f32.mxu0 0.0
    %4189 = vmatmul.mubr.f32.gmra.mrb[0].mxu0 %v3905
    %v4190 = vpop.f32.mrb[0].mxu0
    %v4191 = vadd.f32 %v3957, %v4190
    %v4192 = vpop.f32.mrb[0].mxu0
    %4193 = vmatprep.mubr.f32.mxu0 0.0
    %4194 = vmatmul.mubr.f32.gmra.mrb[0].mxu0 %v3906
    %v4195 = vpop.f32.mrb[0].mxu0
    %v4196 = vadd.f32 %v3957, %v4195
    %v4197 = vpop.f32.mrb[0].mxu0
    %4198 = vmatprep.mubr.f32.mxu0 0.0
    %4199 = vmatmul.mubr.f32.gmra.mrb[0].mxu0 %v3907
    %v4200 = vpop.f32.mrb[0].mxu0
    %v4201 = vadd.f32 %v3957, %v4200
    %v4202 = vpop.f32.mrb[0].mxu0
    %4203 = vmatprep.mubr.f32.mxu0 0.0
    %4204 = vmatmul.mubr.f32.gmra.mrb[0].mxu0 %v3908
    %v4205 = vpop.f32.mrb[0].mxu0
    %v4206 = vadd.f32 %v3957, %v4205
    %v4207 = vpop.f32.mrb[0].mxu0
    %4208 = vmatprep.mubr.f32.mxu0 0.0
    %4209 = vmatmul.mubr.f32.gmra.mrb[0].mxu0 %v3909
    %v4210 = vpop.f32.mrb[0].mxu0
    %v4211 = vadd.f32 %v3957, %v4210
    %v4212 = vpop.f32.mrb[0].mxu0
    %4213 = vmatprep.mubr.f32.mxu0 0.0
    %4214 = vmatmul.mubr.f32.gmra.mrb[0].mxu0 %v3910
    %v4215 = vpop.f32.mrb[0].mxu0
    %v4216 = vadd.f32 %v3957, %v4215
    %v4217 = vpop.f32.mrb[0].mxu0
    %4218 = vmatprep.mubr.f32.mxu0 0.0
    %4219 = vmatmul.mubr.f32.gmra.mrb[0].mxu0 %v3911
    %v4220 = vpop.f32.mrb[0].mxu0
    %v4221 = vadd.f32 %v3957, %v4220
    %v4222 = vpop.f32.mrb[0].mxu0
    %4223 = vmatprep.mubr.f32.mxu0 0.0
    %4224 = vmatmul.mubr.f32.gmra.mrb[0].mxu0 %v3912
    %v4225 = vpop.f32.mrb[0].mxu0
    %v4226 = vadd.f32 %v3957, %v4225
    %v4227 = vpop.f32.mrb[0].mxu0
    %4228 = vmatprep.mubr.f32.mxu0 0.0
    %4229 = vmatmul.mubr.f32.gmra.mrb[0].mxu0 %v3913
    %v4230 = vpop.f32.mrb[0].mxu0
    %v4231 = vadd.f32 %v3957, %v4230
    %v4232 = vpop.f32.mrb[0].mxu0
    %4233 = vmatprep.mubr.f32.mxu0 0.0
    %4234 = vmatmul.mubr.f32.gmra.mrb[0].mxu0 %v3914
    %v4235 = vpop.f32.mrb[0].mxu0
    %v4236 = vadd.f32 %v3957, %v4235
    %v4237 = vpop.f32.mrb[0].mxu0
    %4238 = vmatprep.mubr.f32.mxu0 0.0
    %4239 = vmatmul.mubr.f32.gmra.mrb[0].mxu0 %v3915
    %v4240 = vpop.f32.mrb[0].mxu0
    %v4241 = vadd.f32 %v3957, %v4240
    %v4242 = vpop.f32.mrb[0].mxu0
    %4243 = vmatprep.mubr.f32.mxu0 0.0
    %4244 = vmatmul.mubr.f32.gmra.mrb[0].mxu0 %v3916
    %v4245 = vpop.f32.mrb[0].mxu0
    %v4246 = vadd.f32 %v3957, %v4245
    %v4247 = vpop.f32.mrb[0].mxu0
    %4248 = vmatprep.mubr.f32.mxu0 0.0
    %4249 = vmatmul.mubr.f32.gmra.mrb[0].mxu0 %v3917
    %v4250 = vpop.f32.mrb[0].mxu0
    %v4251 = vadd.f32 %v3957, %v4250
    %v4252 = vpop.f32.mrb[0].mxu0
    %4253 = vmatprep.mubr.f32.mxu0 0.0
    %4254 = vmatmul.mubr.f32.gmra.mrb[0].mxu0 %v3918
    %v4255 = vpop.f32.mrb[0].mxu0
    %v4256 = vadd.f32 %v3957, %v4255
    %v4257 = vpop.f32.mrb[0].mxu0
    %4258 = vmatprep.mubr.f32.mxu0 0.0
    %4259 = vmatmul.mubr.f32.gmra.mrb[0].mxu0 %v3919
    %v4260 = vpop.f32.mrb[0].mxu0
    %v4261 = vadd.f32 %v3957, %v4260
    %v4262 = vpop.f32.mrb[0].mxu0
    %4263 = vmatprep.mubr.f32.mxu0 0.0
    %4264 = vmatmul.mubr.f32.gmra.mrb[0].mxu0 %v3920
    %v4265 = vpop.f32.mrb[0].mxu0
    %v4266 = vadd.f32 %v3957, %v4265
    %v4267 = vpop.f32.mrb[0].mxu0
    %4268 = vmatprep.mubr.f32.mxu0 0.0
    %4269 = vmatmul.mubr.f32.gmra.mrb[0].mxu0 %v3921
    %v4270 = vpop.f32.mrb[0].mxu0
    %v4271 = vadd.f32 %v3957, %v4270
    %v4272 = vpop.f32.mrb[0].mxu0
    %4273 = vmatprep.mubr.f32.mxu0 0.0
    %4274 = vmatmul.mubr.f32.gmra.mrb[0].mxu0 %v3922
    %v4275 = vpop.f32.mrb[0].mxu0
    %v4276 = vadd.f32 %v3957, %v4275
    %v4277 = vpop.f32.mrb[0].mxu0
    %4278 = vmatprep.mubr.f32.mxu0 0.0
    %4279 = vmatmul.mubr.f32.gmra.mrb[0].mxu0 %v3923
    %v4280 = vpop.f32.mrb[0].mxu0
    %v4281 = vadd.f32 %v3957, %v4280
    %v4282 = vpop.f32.mrb[0].mxu0
    %4283 = vmatprep.mubr.f32.mxu0 0.0
    %4284 = vmatmul.mubr.f32.gmra.mrb[0].mxu0 %v3924
    %v4285 = vpop.f32.mrb[0].mxu0
    %v4286 = vadd.f32 %v3957, %v4285
    %v4287 = vpop.f32.mrb[0].mxu0
    %4288 = vmatprep.mubr.f32.mxu0 0.0
    %4289 = vmatmul.mubr.f32.gmra.mrb[0].mxu0 %v3925
    %v4290 = vpop.f32.mrb[0].mxu0
    %v4291 = vadd.f32 %v3957, %v4290
    %v4292 = vpop.f32.mrb[0].mxu0
    %4293 = vmatprep.mubr.f32.mxu0 0.0
    %4294 = vmatmul.mubr.f32.gmra.mrb[0].mxu0 %v3926
    %v4295 = vpop.f32.mrb[0].mxu0
    %v4296 = vadd.f32 %v3957, %v4295
    %v4297 = vpop.f32.mrb[0].mxu0
    %4298 = vmatprep.mubr.f32.mxu0 0.0
    %4299 = vmatmul.mubr.f32.gmra.mrb[0].mxu0 %v3927
    %v4300 = vpop.f32.mrb[0].mxu0
    %v4301 = vadd.f32 %v3957, %v4300
    %v4302 = vpop.f32.mrb[0].mxu0
    %4303 = vmatprep.mubr.f32.mxu0 0.0
    %4304 = vmatmul.mubr.f32.gmra.mrb[0].mxu0 %v3928
    %v4305 = vpop.f32.mrb[0].mxu0
    %v4306 = vadd.f32 %v3957, %v4305
    %v4307 = vpop.f32.mrb[0].mxu0
    %4308 = vmatprep.mubr.f32.mxu0 0.0
    %4309 = vmatmul.mubr.f32.gmra.mrb[0].mxu0 %v3929
    %v4310 = vpop.f32.mrb[0].mxu0
    %v4311 = vadd.f32 %v3957, %v4310
    %v4312 = vpop.f32.mrb[0].mxu0
    %4313 = vmatprep.mubr.f32.mxu0 0.0
    %4314 = vmatmul.mubr.f32.gmra.mrb[0].mxu0 %v3930
    %v4315 = vpop.f32.mrb[0].mxu0
    %v4316 = vadd.f32 %v3957, %v4315
    %v4317 = vpop.f32.mrb[0].mxu0
    %4318 = vmatprep.mubr.f32.mxu0 0.0
    %4319 = vmatmul.mubr.f32.gmra.mrb[0].mxu0 %v3931
    %v4320 = vpop.f32.mrb[0].mxu0
    %v4321 = vadd.f32 %v3957, %v4320
    %v4322 = vpop.f32.mrb[0].mxu0
    %4323 = vmatprep.mubr.f32.mxu0 0.0
    %4324 = vmatmul.mubr.f32.gmra.mrb[0].mxu0 %v3932
    %v4325 = vpop.f32.mrb[0].mxu0
    %v4326 = vadd.f32 %v3957, %v4325
    %v4327 = vpop.f32.mrb[0].mxu0
    %4328 = vmatprep.mubr.f32.mxu0 0.0
    %4329 = vmatmul.mubr.f32.gmra.mrb[0].mxu0 %v3933
    %v4330 = vpop.f32.mrb[0].mxu0
    %v4331 = vadd.f32 %v3957, %v4330
    %v4332 = vpop.f32.mrb[0].mxu0
    %4333 = vmatprep.mubr.f32.mxu0 0.0
    %4334 = vmatmul.mubr.f32.gmra.mrb[0].mxu0 %v3934
    %v4335 = vpop.f32.mrb[0].mxu0
    %v4336 = vadd.f32 %v3957, %v4335
    %v4337 = vpop.f32.mrb[0].mxu0
    %4338 = vmatprep.mubr.f32.mxu0 0.0
    %4339 = vmatmul.mubr.f32.gmra.mrb[0].mxu0 %v3935
    %v4340 = vpop.f32.mrb[0].mxu0
    %v4341 = vadd.f32 %v3957, %v4340
    %v4342 = vpop.f32.mrb[0].mxu0
    %4343 = vdwg.mxu0
    %v4344 = vadd.f32 %v1089, %v4026
    %v4345 = vadd.f32 %v1090, %v4031
    %v4346 = vadd.f32 %v1091, %v4036
    %v4347 = vadd.f32 %v1092, %v4041
    %v4348 = vadd.f32 %v1093, %v4046
    %v4349 = vadd.f32 %v1094, %v4051
    %v4350 = vadd.f32 %v1095, %v4056
    %v4351 = vadd.f32 %v1096, %v4061
    %v4352 = vadd.f32 %v1097, %v4066
    %v4353 = vadd.f32 %v1098, %v4071
    %v4354 = vadd.f32 %v1099, %v4076
    %v4355 = vadd.f32 %v1100, %v4081
    %v4356 = vadd.f32 %v1101, %v4086
    %v4357 = vadd.f32 %v1102, %v4091
    %v4358 = vadd.f32 %v1103, %v4096
    %v4359 = vadd.f32 %v1104, %v4101
    %v4360 = vadd.f32 %v1105, %v4106
    %v4361 = vadd.f32 %v1106, %v4111
    %v4362 = vadd.f32 %v1107, %v4116
    %v4363 = vadd.f32 %v1108, %v4121
    %v4364 = vadd.f32 %v1109, %v4126
    %v4365 = vadd.f32 %v1110, %v4131
    %v4366 = vadd.f32 %v1111, %v4136
    %v4367 = vadd.f32 %v1112, %v4141
    %v4368 = vadd.f32 %v1113, %v4146
    %v4369 = vadd.f32 %v1114, %v4151
    %v4370 = vadd.f32 %v1115, %v4156
    %v4371 = vadd.f32 %v1116, %v4161
    %v4372 = vadd.f32 %v1117, %v4166
    %v4373 = vadd.f32 %v1118, %v4171
    %v4374 = vadd.f32 %v1119, %v4176
    %v4375 = vadd.f32 %v1120, %v4181
    %v4376 = vadd.f32 %v1121, %v4186
    %v4377 = vadd.f32 %v1122, %v4191
    %v4378 = vadd.f32 %v1123, %v4196
    %v4379 = vadd.f32 %v1124, %v4201
    %v4380 = vadd.f32 %v1125, %v4206
    %v4381 = vadd.f32 %v1126, %v4211
    %v4382 = vadd.f32 %v1127, %v4216
    %v4383 = vadd.f32 %v1128, %v4221
    %v4384 = vadd.f32 %v1129, %v4226
    %v4385 = vadd.f32 %v1130, %v4231
    %v4386 = vadd.f32 %v1131, %v4236
    %v4387 = vadd.f32 %v1132, %v4241
    %v4388 = vadd.f32 %v1133, %v4246
    %v4389 = vadd.f32 %v1134, %v4251
    %v4390 = vadd.f32 %v1135, %v4256
    %v4391 = vadd.f32 %v1136, %v4261
    %v4392 = vadd.f32 %v1137, %v4266
    %v4393 = vadd.f32 %v1138, %v4271
    %v4394 = vadd.f32 %v1139, %v4276
    %v4395 = vadd.f32 %v1140, %v4281
    %v4396 = vadd.f32 %v1141, %v4286
    %v4397 = vadd.f32 %v1142, %v4291
    %v4398 = vadd.f32 %v1143, %v4296
    %v4399 = vadd.f32 %v1144, %v4301
    %v4400 = vadd.f32 %v1145, %v4306
    %v4401 = vadd.f32 %v1146, %v4311
    %v4402 = vadd.f32 %v1147, %v4316
    %v4403 = vadd.f32 %v1148, %v4321
    %v4404 = vadd.f32 %v1149, %v4326
    %v4405 = vadd.f32 %v1150, %v4331
    %v4406 = vadd.f32 %v1151, %v4336
    %v4407 = vadd.f32 %v1152, %v4341
    %v4408 = vld [vmem:[%s7] sm:$0x1]
    %v4409 = vld [vmem:[%s8] sm:$0x1]
    %4410 = vadd.xlane.f32.xlu0 %v4344
    %v4411 = vpop.xlane.xlu0 %4410
    %4412 = vadd.xlane.f32.xlu0 %v4345
    %v4413 = vpop.xlane.xlu0 %4412
    %4414 = vadd.xlane.f32.xlu0 %v4346
    %v4415 = vpop.xlane.xlu0 %4414
    %4416 = vadd.xlane.f32.xlu0 %v4347
    %v4417 = vpop.xlane.xlu0 %4416
    %4418 = vadd.xlane.f32.xlu0 %v4348
    %v4419 = vpop.xlane.xlu0 %4418
    %4420 = vadd.xlane.f32.xlu0 %v4349
    %v4421 = vpop.xlane.xlu0 %4420
    %4422 = vadd.xlane.f32.xlu0 %v4350
    %v4423 = vpop.xlane.xlu0 %4422
    %4424 = vadd.xlane.f32.xlu0 %v4351
    %v4425 = vpop.xlane.xlu0 %4424
    %4426 = vadd.xlane.f32.xlu0 %v4352
    %v4427 = vpop.xlane.xlu0 %4426
    %4428 = vadd.xlane.f32.xlu0 %v4353
    %v4429 = vpop.xlane.xlu0 %4428
    %4430 = vadd.xlane.f32.xlu0 %v4354
    %v4431 = vpop.xlane.xlu0 %4430
    %4432 = vadd.xlane.f32.xlu0 %v4355
    %v4433 = vpop.xlane.xlu0 %4432
    %4434 = vadd.xlane.f32.xlu0 %v4356
    %v4435 = vpop.xlane.xlu0 %4434
    %4436 = vadd.xlane.f32.xlu0 %v4357
    %v4437 = vpop.xlane.xlu0 %4436
    %4438 = vadd.xlane.f32.xlu0 %v4358
    %v4439 = vpop.xlane.xlu0 %4438
    %4440 = vadd.xlane.f32.xlu0 %v4359
    %v4441 = vpop.xlane.xlu0 %4440
    %4442 = vadd.xlane.f32.xlu0 %v4360
    %v4443 = vpop.xlane.xlu0 %4442
    %4444 = vadd.xlane.f32.xlu0 %v4361
    %v4445 = vpop.xlane.xlu0 %4444
    %4446 = vadd.xlane.f32.xlu0 %v4362
    %v4447 = vpop.xlane.xlu0 %4446
    %4448 = vadd.xlane.f32.xlu0 %v4363
    %v4449 = vpop.xlane.xlu0 %4448
    %4450 = vadd.xlane.f32.xlu0 %v4364
    %v4451 = vpop.xlane.xlu0 %4450
    %4452 = vadd.xlane.f32.xlu0 %v4365
    %v4453 = vpop.xlane.xlu0 %4452
    %4454 = vadd.xlane.f32.xlu0 %v4366
    %v4455 = vpop.xlane.xlu0 %4454
    %4456 = vadd.xlane.f32.xlu0 %v4367
    %v4457 = vpop.xlane.xlu0 %4456
    %4458 = vadd.xlane.f32.xlu0 %v4368
    %v4459 = vpop.xlane.xlu0 %4458
    %4460 = vadd.xlane.f32.xlu0 %v4369
    %v4461 = vpop.xlane.xlu0 %4460
    %4462 = vadd.xlane.f32.xlu0 %v4370
    %v4463 = vpop.xlane.xlu0 %4462
    %4464 = vadd.xlane.f32.xlu0 %v4371
    %v4465 = vpop.xlane.xlu0 %4464
    %4466 = vadd.xlane.f32.xlu0 %v4372
    %v4467 = vpop.xlane.xlu0 %4466
    %4468 = vadd.xlane.f32.xlu0 %v4373
    %v4469 = vpop.xlane.xlu0 %4468
    %4470 = vadd.xlane.f32.xlu0 %v4374
    %v4471 = vpop.xlane.xlu0 %4470
    %4472 = vadd.xlane.f32.xlu0 %v4375
    %v4473 = vpop.xlane.xlu0 %4472
    %4474 = vadd.xlane.f32.xlu0 %v4376
    %v4475 = vpop.xlane.xlu0 %4474
    %4476 = vadd.xlane.f32.xlu0 %v4377
    %v4477 = vpop.xlane.xlu0 %4476
    %4478 = vadd.xlane.f32.xlu0 %v4378
    %v4479 = vpop.xlane.xlu0 %4478
    %4480 = vadd.xlane.f32.xlu0 %v4379
    %v4481 = vpop.xlane.xlu0 %4480
    %4482 = vadd.xlane.f32.xlu0 %v4380
    %v4483 = vpop.xlane.xlu0 %4482
    %4484 = vadd.xlane.f32.xlu0 %v4381
    %v4485 = vpop.xlane.xlu0 %4484
    %4486 = vadd.xlane.f32.xlu0 %v4382
    %v4487 = vpop.xlane.xlu0 %4486
    %4488 = vadd.xlane.f32.xlu0 %v4383
    %v4489 = vpop.xlane.xlu0 %4488
    %4490 = vadd.xlane.f32.xlu0 %v4384
    %v4491 = vpop.xlane.xlu0 %4490
    %4492 = vadd.xlane.f32.xlu0 %v4385
    %v4493 = vpop.xlane.xlu0 %4492
    %4494 = vadd.xlane.f32.xlu0 %v4386
    %v4495 = vpop.xlane.xlu0 %4494
    %4496 = vadd.xlane.f32.xlu0 %v4387
    %v4497 = vpop.xlane.xlu0 %4496
    %4498 = vadd.xlane.f32.xlu0 %v4388
    %v4499 = vpop.xlane.xlu0 %4498
    %4500 = vadd.xlane.f32.xlu0 %v4389
    %v4501 = vpop.xlane.xlu0 %4500
    %4502 = vadd.xlane.f32.xlu0 %v4390
    %v4503 = vpop.xlane.xlu0 %4502
    %4504 = vadd.xlane.f32.xlu0 %v4391
    %v4505 = vpop.xlane.xlu0 %4504
    %4506 = vadd.xlane.f32.xlu0 %v4392
    %v4507 = vpop.xlane.xlu0 %4506
    %4508 = vadd.xlane.f32.xlu0 %v4393
    %v4509 = vpop.xlane.xlu0 %4508
    %4510 = vadd.xlane.f32.xlu0 %v4394
    %v4511 = vpop.xlane.xlu0 %4510
    %4512 = vadd.xlane.f32.xlu0 %v4395
    %v4513 = vpop.xlane.xlu0 %4512
    %4514 = vadd.xlane.f32.xlu0 %v4396
    %v4515 = vpop.xlane.xlu0 %4514
    %4516 = vadd.xlane.f32.xlu0 %v4397
    %v4517 = vpop.xlane.xlu0 %4516
    %4518 = vadd.xlane.f32.xlu0 %v4398
    %v4519 = vpop.xlane.xlu0 %4518
    %4520 = vadd.xlane.f32.xlu0 %v4399
    %v4521 = vpop.xlane.xlu0 %4520
    %4522 = vadd.xlane.f32.xlu0 %v4400
    %v4523 = vpop.xlane.xlu0 %4522
    %4524 = vadd.xlane.f32.xlu0 %v4401
    %v4525 = vpop.xlane.xlu0 %4524
    %4526 = vadd.xlane.f32.xlu0 %v4402
    %v4527 = vpop.xlane.xlu0 %4526
    %4528 = vadd.xlane.f32.xlu0 %v4403
    %v4529 = vpop.xlane.xlu0 %4528
    %4530 = vadd.xlane.f32.xlu0 %v4404
    %v4531 = vpop.xlane.xlu0 %4530
    %4532 = vadd.xlane.f32.xlu0 %v4405
    %v4533 = vpop.xlane.xlu0 %4532
    %4534 = vadd.xlane.f32.xlu0 %v4406
    %v4535 = vpop.xlane.xlu0 %4534
    %4536 = vadd.xlane.f32.xlu0 %v4407
    %v4537 = vpop.xlane.xlu0 %4536
    %v4538 = vmul.f32 %v4411, %v436
    %v4539 = vmul.f32 %v4413, %v436
    %v4540 = vmul.f32 %v4415, %v436
    %v4541 = vmul.f32 %v4417, %v436
    %v4542 = vmul.f32 %v4419, %v436
    %v4543 = vmul.f32 %v4421, %v436
    %v4544 = vmul.f32 %v4423, %v436
    %v4545 = vmul.f32 %v4425, %v436
    %v4546 = vmul.f32 %v4427, %v436
    %v4547 = vmul.f32 %v4429, %v436
    %v4548 = vmul.f32 %v4431, %v436
    %v4549 = vmul.f32 %v4433, %v436
    %v4550 = vmul.f32 %v4435, %v436
    %v4551 = vmul.f32 %v4437, %v436
    %v4552 = vmul.f32 %v4439, %v436
    %v4553 = vmul.f32 %v4441, %v436
    %v4554 = vmul.f32 %v4443, %v436
    %v4555 = vmul.f32 %v4445, %v436
    %v4556 = vmul.f32 %v4447, %v436
    %v4557 = vmul.f32 %v4449, %v436
    %v4558 = vmul.f32 %v4451, %v436
    %v4559 = vmul.f32 %v4453, %v436
    %v4560 = vmul.f32 %v4455, %v436
    %v4561 = vmul.f32 %v4457, %v436
    %v4562 = vmul.f32 %v4459, %v436
    %v4563 = vmul.f32 %v4461, %v436
    %v4564 = vmul.f32 %v4463, %v436
    %v4565 = vmul.f32 %v4465, %v436
    %v4566 = vmul.f32 %v4467, %v436
    %v4567 = vmul.f32 %v4469, %v436
    %v4568 = vmul.f32 %v4471, %v436
    %v4569 = vmul.f32 %v4473, %v436
    %v4570 = vmul.f32 %v4475, %v436
    %v4571 = vmul.f32 %v4477, %v436
    %v4572 = vmul.f32 %v4479, %v436
    %v4573 = vmul.f32 %v4481, %v436
    %v4574 = vmul.f32 %v4483, %v436
    %v4575 = vmul.f32 %v4485, %v436
    %v4576 = vmul.f32 %v4487, %v436
    %v4577 = vmul.f32 %v4489, %v436
    %v4578 = vmul.f32 %v4491, %v436
    %v4579 = vmul.f32 %v4493, %v436
    %v4580 = vmul.f32 %v4495, %v436
    %v4581 = vmul.f32 %v4497, %v436
    %v4582 = vmul.f32 %v4499, %v436
    %v4583 = vmul.f32 %v4501, %v436
    %v4584 = vmul.f32 %v4503, %v436
    %v4585 = vmul.f32 %v4505, %v436
    %v4586 = vmul.f32 %v4507, %v436
    %v4587 = vmul.f32 %v4509, %v436
    %v4588 = vmul.f32 %v4511, %v436
    %v4589 = vmul.f32 %v4513, %v436
    %v4590 = vmul.f32 %v4515, %v436
    %v4591 = vmul.f32 %v4517, %v436
    %v4592 = vmul.f32 %v4519, %v436
    %v4593 = vmul.f32 %v4521, %v436
    %v4594 = vmul.f32 %v4523, %v436
    %v4595 = vmul.f32 %v4525, %v436
    %v4596 = vmul.f32 %v4527, %v436
    %v4597 = vmul.f32 %v4529, %v436
    %v4598 = vmul.f32 %v4531, %v436
    %v4599 = vmul.f32 %v4533, %v436
    %v4600 = vmul.f32 %v4535, %v436
    %v4601 = vmul.f32 %v4537, %v436
    %v4602 = vsub.f32 %v4344, %v4538
    %v4603 = vsub.f32 %v4345, %v4539
    %v4604 = vsub.f32 %v4346, %v4540
    %v4605 = vsub.f32 %v4347, %v4541
    %v4606 = vsub.f32 %v4348, %v4542
    %v4607 = vsub.f32 %v4349, %v4543
    %v4608 = vsub.f32 %v4350, %v4544
    %v4609 = vsub.f32 %v4351, %v4545
    %v4610 = vsub.f32 %v4352, %v4546
    %v4611 = vsub.f32 %v4353, %v4547
    %v4612 = vsub.f32 %v4354, %v4548
    %v4613 = vsub.f32 %v4355, %v4549
    %v4614 = vsub.f32 %v4356, %v4550
    %v4615 = vsub.f32 %v4357, %v4551
    %v4616 = vsub.f32 %v4358, %v4552
    %v4617 = vsub.f32 %v4359, %v4553
    %v4618 = vsub.f32 %v4360, %v4554
    %v4619 = vsub.f32 %v4361, %v4555
    %v4620 = vsub.f32 %v4362, %v4556
    %v4621 = vsub.f32 %v4363, %v4557
    %v4622 = vsub.f32 %v4364, %v4558
    %v4623 = vsub.f32 %v4365, %v4559
    %v4624 = vsub.f32 %v4366, %v4560
    %v4625 = vsub.f32 %v4367, %v4561
    %v4626 = vsub.f32 %v4368, %v4562
    %v4627 = vsub.f32 %v4369, %v4563
    %v4628 = vsub.f32 %v4370, %v4564
    %v4629 = vsub.f32 %v4371, %v4565
    %v4630 = vsub.f32 %v4372, %v4566
    %v4631 = vsub.f32 %v4373, %v4567
    %v4632 = vsub.f32 %v4374, %v4568
    %v4633 = vsub.f32 %v4375, %v4569
    %v4634 = vsub.f32 %v4376, %v4570
    %v4635 = vsub.f32 %v4377, %v4571
    %v4636 = vsub.f32 %v4378, %v4572
    %v4637 = vsub.f32 %v4379, %v4573
    %v4638 = vsub.f32 %v4380, %v4574
    %v4639 = vsub.f32 %v4381, %v4575
    %v4640 = vsub.f32 %v4382, %v4576
    %v4641 = vsub.f32 %v4383, %v4577
    %v4642 = vsub.f32 %v4384, %v4578
    %v4643 = vsub.f32 %v4385, %v4579
    %v4644 = vsub.f32 %v4386, %v4580
    %v4645 = vsub.f32 %v4387, %v4581
    %v4646 = vsub.f32 %v4388, %v4582
    %v4647 = vsub.f32 %v4389, %v4583
    %v4648 = vsub.f32 %v4390, %v4584
    %v4649 = vsub.f32 %v4391, %v4585
    %v4650 = vsub.f32 %v4392, %v4586
    %v4651 = vsub.f32 %v4393, %v4587
    %v4652 = vsub.f32 %v4394, %v4588
    %v4653 = vsub.f32 %v4395, %v4589
    %v4654 = vsub.f32 %v4396, %v4590
    %v4655 = vsub.f32 %v4397, %v4591
    %v4656 = vsub.f32 %v4398, %v4592
    %v4657 = vsub.f32 %v4399, %v4593
    %v4658 = vsub.f32 %v4400, %v4594
    %v4659 = vsub.f32 %v4401, %v4595
    %v4660 = vsub.f32 %v4402, %v4596
    %v4661 = vsub.f32 %v4403, %v4597
    %v4662 = vsub.f32 %v4404, %v4598
    %v4663 = vsub.f32 %v4405, %v4599
    %v4664 = vsub.f32 %v4406, %v4600
    %v4665 = vsub.f32 %v4407, %v4601
    %v4666 = vmul.f32 %v4602, %v4602
    %v4667 = vmul.f32 %v4603, %v4603
    %v4668 = vmul.f32 %v4604, %v4604
    %v4669 = vmul.f32 %v4605, %v4605
    %v4670 = vmul.f32 %v4606, %v4606
    %v4671 = vmul.f32 %v4607, %v4607
    %v4672 = vmul.f32 %v4608, %v4608
    %v4673 = vmul.f32 %v4609, %v4609
    %v4674 = vmul.f32 %v4610, %v4610
    %v4675 = vmul.f32 %v4611, %v4611
    %v4676 = vmul.f32 %v4612, %v4612
    %v4677 = vmul.f32 %v4613, %v4613
    %v4678 = vmul.f32 %v4614, %v4614
    %v4679 = vmul.f32 %v4615, %v4615
    %v4680 = vmul.f32 %v4616, %v4616
    %v4681 = vmul.f32 %v4617, %v4617
    %v4682 = vmul.f32 %v4618, %v4618
    %v4683 = vmul.f32 %v4619, %v4619
    %v4684 = vmul.f32 %v4620, %v4620
    %v4685 = vmul.f32 %v4621, %v4621
    %v4686 = vmul.f32 %v4622, %v4622
    %v4687 = vmul.f32 %v4623, %v4623
    %v4688 = vmul.f32 %v4624, %v4624
    %v4689 = vmul.f32 %v4625, %v4625
    %v4690 = vmul.f32 %v4626, %v4626
    %v4691 = vmul.f32 %v4627, %v4627
    %v4692 = vmul.f32 %v4628, %v4628
    %v4693 = vmul.f32 %v4629, %v4629
    %v4694 = vmul.f32 %v4630, %v4630
    %v4695 = vmul.f32 %v4631, %v4631
    %v4696 = vmul.f32 %v4632, %v4632
    %v4697 = vmul.f32 %v4633, %v4633
    %v4698 = vmul.f32 %v4634, %v4634
    %v4699 = vmul.f32 %v4635, %v4635
    %v4700 = vmul.f32 %v4636, %v4636
    %v4701 = vmul.f32 %v4637, %v4637
    %v4702 = vmul.f32 %v4638, %v4638
    %v4703 = vmul.f32 %v4639, %v4639
    %v4704 = vmul.f32 %v4640, %v4640
    %v4705 = vmul.f32 %v4641, %v4641
    %v4706 = vmul.f32 %v4642, %v4642
    %v4707 = vmul.f32 %v4643, %v4643
    %v4708 = vmul.f32 %v4644, %v4644
    %v4709 = vmul.f32 %v4645, %v4645
    %v4710 = vmul.f32 %v4646, %v4646
    %v4711 = vmul.f32 %v4647, %v4647
    %v4712 = vmul.f32 %v4648, %v4648
    %v4713 = vmul.f32 %v4649, %v4649
    %v4714 = vmul.f32 %v4650, %v4650
    %v4715 = vmul.f32 %v4651, %v4651
    %v4716 = vmul.f32 %v4652, %v4652
    %v4717 = vmul.f32 %v4653, %v4653
    %v4718 = vmul.f32 %v4654, %v4654
    %v4719 = vmul.f32 %v4655, %v4655
    %v4720 = vmul.f32 %v4656, %v4656
    %v4721 = vmul.f32 %v4657, %v4657
    %v4722 = vmul.f32 %v4658, %v4658
    %v4723 = vmul.f32 %v4659, %v4659
    %v4724 = vmul.f32 %v4660, %v4660
    %v4725 = vmul.f32 %v4661, %v4661
    %v4726 = vmul.f32 %v4662, %v4662
    %v4727 = vmul.f32 %v4663, %v4663
    %v4728 = vmul.f32 %v4664, %v4664
    %v4729 = vmul.f32 %v4665, %v4665
    %4730 = vadd.xlane.f32.xlu0 %v4666
    %v4731 = vpop.xlane.xlu0 %4730
    %4732 = vadd.xlane.f32.xlu0 %v4667
    %v4733 = vpop.xlane.xlu0 %4732
    %4734 = vadd.xlane.f32.xlu0 %v4668
    %v4735 = vpop.xlane.xlu0 %4734
    %4736 = vadd.xlane.f32.xlu0 %v4669
    %v4737 = vpop.xlane.xlu0 %4736
    %4738 = vadd.xlane.f32.xlu0 %v4670
    %v4739 = vpop.xlane.xlu0 %4738
    %4740 = vadd.xlane.f32.xlu0 %v4671
    %v4741 = vpop.xlane.xlu0 %4740
    %4742 = vadd.xlane.f32.xlu0 %v4672
    %v4743 = vpop.xlane.xlu0 %4742
    %4744 = vadd.xlane.f32.xlu0 %v4673
    %v4745 = vpop.xlane.xlu0 %4744
    %4746 = vadd.xlane.f32.xlu0 %v4674
    %v4747 = vpop.xlane.xlu0 %4746
    %4748 = vadd.xlane.f32.xlu0 %v4675
    %v4749 = vpop.xlane.xlu0 %4748
    %4750 = vadd.xlane.f32.xlu0 %v4676
    %v4751 = vpop.xlane.xlu0 %4750
    %4752 = vadd.xlane.f32.xlu0 %v4677
    %v4753 = vpop.xlane.xlu0 %4752
    %4754 = vadd.xlane.f32.xlu0 %v4678
    %v4755 = vpop.xlane.xlu0 %4754
    %4756 = vadd.xlane.f32.xlu0 %v4679
    %v4757 = vpop.xlane.xlu0 %4756
    %4758 = vadd.xlane.f32.xlu0 %v4680
    %v4759 = vpop.xlane.xlu0 %4758
    %4760 = vadd.xlane.f32.xlu0 %v4681
    %v4761 = vpop.xlane.xlu0 %4760
    %4762 = vadd.xlane.f32.xlu0 %v4682
    %v4763 = vpop.xlane.xlu0 %4762
    %4764 = vadd.xlane.f32.xlu0 %v4683
    %v4765 = vpop.xlane.xlu0 %4764
    %4766 = vadd.xlane.f32.xlu0 %v4684
    %v4767 = vpop.xlane.xlu0 %4766
    %4768 = vadd.xlane.f32.xlu0 %v4685
    %v4769 = vpop.xlane.xlu0 %4768
    %4770 = vadd.xlane.f32.xlu0 %v4686
    %v4771 = vpop.xlane.xlu0 %4770
    %4772 = vadd.xlane.f32.xlu0 %v4687
    %v4773 = vpop.xlane.xlu0 %4772
    %4774 = vadd.xlane.f32.xlu0 %v4688
    %v4775 = vpop.xlane.xlu0 %4774
    %4776 = vadd.xlane.f32.xlu0 %v4689
    %v4777 = vpop.xlane.xlu0 %4776
    %4778 = vadd.xlane.f32.xlu0 %v4690
    %v4779 = vpop.xlane.xlu0 %4778
    %4780 = vadd.xlane.f32.xlu0 %v4691
    %v4781 = vpop.xlane.xlu0 %4780
    %4782 = vadd.xlane.f32.xlu0 %v4692
    %v4783 = vpop.xlane.xlu0 %4782
    %4784 = vadd.xlane.f32.xlu0 %v4693
    %v4785 = vpop.xlane.xlu0 %4784
    %4786 = vadd.xlane.f32.xlu0 %v4694
    %v4787 = vpop.xlane.xlu0 %4786
    %4788 = vadd.xlane.f32.xlu0 %v4695
    %v4789 = vpop.xlane.xlu0 %4788
    %4790 = vadd.xlane.f32.xlu0 %v4696
    %v4791 = vpop.xlane.xlu0 %4790
    %4792 = vadd.xlane.f32.xlu0 %v4697
    %v4793 = vpop.xlane.xlu0 %4792
    %4794 = vadd.xlane.f32.xlu0 %v4698
    %v4795 = vpop.xlane.xlu0 %4794
    %4796 = vadd.xlane.f32.xlu0 %v4699
    %v4797 = vpop.xlane.xlu0 %4796
    %4798 = vadd.xlane.f32.xlu0 %v4700
    %v4799 = vpop.xlane.xlu0 %4798
    %4800 = vadd.xlane.f32.xlu0 %v4701
    %v4801 = vpop.xlane.xlu0 %4800
    %4802 = vadd.xlane.f32.xlu0 %v4702
    %v4803 = vpop.xlane.xlu0 %4802
    %4804 = vadd.xlane.f32.xlu0 %v4703
    %v4805 = vpop.xlane.xlu0 %4804
    %4806 = vadd.xlane.f32.xlu0 %v4704
    %v4807 = vpop.xlane.xlu0 %4806
    %4808 = vadd.xlane.f32.xlu0 %v4705
    %v4809 = vpop.xlane.xlu0 %4808
    %4810 = vadd.xlane.f32.xlu0 %v4706
    %v4811 = vpop.xlane.xlu0 %4810
    %4812 = vadd.xlane.f32.xlu0 %v4707
    %v4813 = vpop.xlane.xlu0 %4812
    %4814 = vadd.xlane.f32.xlu0 %v4708
    %v4815 = vpop.xlane.xlu0 %4814
    %4816 = vadd.xlane.f32.xlu0 %v4709
    %v4817 = vpop.xlane.xlu0 %4816
    %4818 = vadd.xlane.f32.xlu0 %v4710
    %v4819 = vpop.xlane.xlu0 %4818
    %4820 = vadd.xlane.f32.xlu0 %v4711
    %v4821 = vpop.xlane.xlu0 %4820
    %4822 = vadd.xlane.f32.xlu0 %v4712
    %v4823 = vpop.xlane.xlu0 %4822
    %4824 = vadd.xlane.f32.xlu0 %v4713
    %v4825 = vpop.xlane.xlu0 %4824
    %4826 = vadd.xlane.f32.xlu0 %v4714
    %v4827 = vpop.xlane.xlu0 %4826
    %4828 = vadd.xlane.f32.xlu0 %v4715
    %v4829 = vpop.xlane.xlu0 %4828
    %4830 = vadd.xlane.f32.xlu0 %v4716
    %v4831 = vpop.xlane.xlu0 %4830
    %4832 = vadd.xlane.f32.xlu0 %v4717
    %v4833 = vpop.xlane.xlu0 %4832
    %4834 = vadd.xlane.f32.xlu0 %v4718
    %v4835 = vpop.xlane.xlu0 %4834
    %4836 = vadd.xlane.f32.xlu0 %v4719
    %v4837 = vpop.xlane.xlu0 %4836
    %4838 = vadd.xlane.f32.xlu0 %v4720
    %v4839 = vpop.xlane.xlu0 %4838
    %4840 = vadd.xlane.f32.xlu0 %v4721
    %v4841 = vpop.xlane.xlu0 %4840
    %4842 = vadd.xlane.f32.xlu0 %v4722
    %v4843 = vpop.xlane.xlu0 %4842
    %4844 = vadd.xlane.f32.xlu0 %v4723
    %v4845 = vpop.xlane.xlu0 %4844
    %4846 = vadd.xlane.f32.xlu0 %v4724
    %v4847 = vpop.xlane.xlu0 %4846
    %4848 = vadd.xlane.f32.xlu0 %v4725
    %v4849 = vpop.xlane.xlu0 %4848
    %4850 = vadd.xlane.f32.xlu0 %v4726
    %v4851 = vpop.xlane.xlu0 %4850
    %4852 = vadd.xlane.f32.xlu0 %v4727
    %v4853 = vpop.xlane.xlu0 %4852
    %4854 = vadd.xlane.f32.xlu0 %v4728
    %v4855 = vpop.xlane.xlu0 %4854
    %4856 = vadd.xlane.f32.xlu0 %v4729
    %v4857 = vpop.xlane.xlu0 %4856
    %v4858 = vmul.f32 %v4731, %v436
    %v4859 = vmul.f32 %v4733, %v436
    %v4860 = vmul.f32 %v4735, %v436
    %v4861 = vmul.f32 %v4737, %v436
    %v4862 = vmul.f32 %v4739, %v436
    %v4863 = vmul.f32 %v4741, %v436
    %v4864 = vmul.f32 %v4743, %v436
    %v4865 = vmul.f32 %v4745, %v436
    %v4866 = vmul.f32 %v4747, %v436
    %v4867 = vmul.f32 %v4749, %v436
    %v4868 = vmul.f32 %v4751, %v436
    %v4869 = vmul.f32 %v4753, %v436
    %v4870 = vmul.f32 %v4755, %v436
    %v4871 = vmul.f32 %v4757, %v436
    %v4872 = vmul.f32 %v4759, %v436
    %v4873 = vmul.f32 %v4761, %v436
    %v4874 = vmul.f32 %v4763, %v436
    %v4875 = vmul.f32 %v4765, %v436
    %v4876 = vmul.f32 %v4767, %v436
    %v4877 = vmul.f32 %v4769, %v436
    %v4878 = vmul.f32 %v4771, %v436
    %v4879 = vmul.f32 %v4773, %v436
    %v4880 = vmul.f32 %v4775, %v436
    %v4881 = vmul.f32 %v4777, %v436
    %v4882 = vmul.f32 %v4779, %v436
    %v4883 = vmul.f32 %v4781, %v436
    %v4884 = vmul.f32 %v4783, %v436
    %v4885 = vmul.f32 %v4785, %v436
    %v4886 = vmul.f32 %v4787, %v436
    %v4887 = vmul.f32 %v4789, %v436
    %v4888 = vmul.f32 %v4791, %v436
    %v4889 = vmul.f32 %v4793, %v436
    %v4890 = vmul.f32 %v4795, %v436
    %v4891 = vmul.f32 %v4797, %v436
    %v4892 = vmul.f32 %v4799, %v436
    %v4893 = vmul.f32 %v4801, %v436
    %v4894 = vmul.f32 %v4803, %v436
    %v4895 = vmul.f32 %v4805, %v436
    %v4896 = vmul.f32 %v4807, %v436
    %v4897 = vmul.f32 %v4809, %v436
    %v4898 = vmul.f32 %v4811, %v436
    %v4899 = vmul.f32 %v4813, %v436
    %v4900 = vmul.f32 %v4815, %v436
    %v4901 = vmul.f32 %v4817, %v436
    %v4902 = vmul.f32 %v4819, %v436
    %v4903 = vmul.f32 %v4821, %v436
    %v4904 = vmul.f32 %v4823, %v436
    %v4905 = vmul.f32 %v4825, %v436
    %v4906 = vmul.f32 %v4827, %v436
    %v4907 = vmul.f32 %v4829, %v436
    %v4908 = vmul.f32 %v4831, %v436
    %v4909 = vmul.f32 %v4833, %v436
    %v4910 = vmul.f32 %v4835, %v436
    %v4911 = vmul.f32 %v4837, %v436
    %v4912 = vmul.f32 %v4839, %v436
    %v4913 = vmul.f32 %v4841, %v436
    %v4914 = vmul.f32 %v4843, %v436
    %v4915 = vmul.f32 %v4845, %v436
    %v4916 = vmul.f32 %v4847, %v436
    %v4917 = vmul.f32 %v4849, %v436
    %v4918 = vmul.f32 %v4851, %v436
    %v4919 = vmul.f32 %v4853, %v436
    %v4920 = vmul.f32 %v4855, %v436
    %v4921 = vmul.f32 %v4857, %v436
    %v4922 = vadd.f32 %v4858, 1e-05
    %v4923 = vadd.f32 %v4859, 1e-05
    %v4924 = vadd.f32 %v4860, 1e-05
    %v4925 = vadd.f32 %v4861, 1e-05
    %v4926 = vadd.f32 %v4862, 1e-05
    %v4927 = vadd.f32 %v4863, 1e-05
    %v4928 = vadd.f32 %v4864, 1e-05
    %v4929 = vadd.f32 %v4865, 1e-05
    %v4930 = vadd.f32 %v4866, 1e-05
    %v4931 = vadd.f32 %v4867, 1e-05
    %v4932 = vadd.f32 %v4868, 1e-05
    %v4933 = vadd.f32 %v4869, 1e-05
    %v4934 = vadd.f32 %v4870, 1e-05
    %v4935 = vadd.f32 %v4871, 1e-05
    %v4936 = vadd.f32 %v4872, 1e-05
    %v4937 = vadd.f32 %v4873, 1e-05
    %v4938 = vadd.f32 %v4874, 1e-05
    %v4939 = vadd.f32 %v4875, 1e-05
    %v4940 = vadd.f32 %v4876, 1e-05
    %v4941 = vadd.f32 %v4877, 1e-05
    %v4942 = vadd.f32 %v4878, 1e-05
    %v4943 = vadd.f32 %v4879, 1e-05
    %v4944 = vadd.f32 %v4880, 1e-05
    %v4945 = vadd.f32 %v4881, 1e-05
    %v4946 = vadd.f32 %v4882, 1e-05
    %v4947 = vadd.f32 %v4883, 1e-05
    %v4948 = vadd.f32 %v4884, 1e-05
    %v4949 = vadd.f32 %v4885, 1e-05
    %v4950 = vadd.f32 %v4886, 1e-05
    %v4951 = vadd.f32 %v4887, 1e-05
    %v4952 = vadd.f32 %v4888, 1e-05
    %v4953 = vadd.f32 %v4889, 1e-05
    %v4954 = vadd.f32 %v4890, 1e-05
    %v4955 = vadd.f32 %v4891, 1e-05
    %v4956 = vadd.f32 %v4892, 1e-05
    %v4957 = vadd.f32 %v4893, 1e-05
    %v4958 = vadd.f32 %v4894, 1e-05
    %v4959 = vadd.f32 %v4895, 1e-05
    %v4960 = vadd.f32 %v4896, 1e-05
    %v4961 = vadd.f32 %v4897, 1e-05
    %v4962 = vadd.f32 %v4898, 1e-05
    %v4963 = vadd.f32 %v4899, 1e-05
    %v4964 = vadd.f32 %v4900, 1e-05
    %v4965 = vadd.f32 %v4901, 1e-05
    %v4966 = vadd.f32 %v4902, 1e-05
    %v4967 = vadd.f32 %v4903, 1e-05
    %v4968 = vadd.f32 %v4904, 1e-05
    %v4969 = vadd.f32 %v4905, 1e-05
    %v4970 = vadd.f32 %v4906, 1e-05
    %v4971 = vadd.f32 %v4907, 1e-05
    %v4972 = vadd.f32 %v4908, 1e-05
    %v4973 = vadd.f32 %v4909, 1e-05
    %v4974 = vadd.f32 %v4910, 1e-05
    %v4975 = vadd.f32 %v4911, 1e-05
    %v4976 = vadd.f32 %v4912, 1e-05
    %v4977 = vadd.f32 %v4913, 1e-05
    %v4978 = vadd.f32 %v4914, 1e-05
    %v4979 = vadd.f32 %v4915, 1e-05
    %v4980 = vadd.f32 %v4916, 1e-05
    %v4981 = vadd.f32 %v4917, 1e-05
    %v4982 = vadd.f32 %v4918, 1e-05
    %v4983 = vadd.f32 %v4919, 1e-05
    %v4984 = vadd.f32 %v4920, 1e-05
    %v4985 = vadd.f32 %v4921, 1e-05
    %v4986 = vrsqrt.pop %v4922
    %v4987 = vrsqrt.pop %v4923
    %v4988 = vrsqrt.pop %v4924
    %v4989 = vrsqrt.pop %v4925
    %v4990 = vrsqrt.pop %v4926
    %v4991 = vrsqrt.pop %v4927
    %v4992 = vrsqrt.pop %v4928
    %v4993 = vrsqrt.pop %v4929
    %v4994 = vrsqrt.pop %v4930
    %v4995 = vrsqrt.pop %v4931
    %v4996 = vrsqrt.pop %v4932
    %v4997 = vrsqrt.pop %v4933
    %v4998 = vrsqrt.pop %v4934
    %v4999 = vrsqrt.pop %v4935
    %v5000 = vrsqrt.pop %v4936
    %v5001 = vrsqrt.pop %v4937
    %v5002 = vrsqrt.pop %v4938
    %v5003 = vrsqrt.pop %v4939
    %v5004 = vrsqrt.pop %v4940
    %v5005 = vrsqrt.pop %v4941
    %v5006 = vrsqrt.pop %v4942
    %v5007 = vrsqrt.pop %v4943
    %v5008 = vrsqrt.pop %v4944
    %v5009 = vrsqrt.pop %v4945
    %v5010 = vrsqrt.pop %v4946
    %v5011 = vrsqrt.pop %v4947
    %v5012 = vrsqrt.pop %v4948
    %v5013 = vrsqrt.pop %v4949
    %v5014 = vrsqrt.pop %v4950
    %v5015 = vrsqrt.pop %v4951
    %v5016 = vrsqrt.pop %v4952
    %v5017 = vrsqrt.pop %v4953
    %v5018 = vrsqrt.pop %v4954
    %v5019 = vrsqrt.pop %v4955
    %v5020 = vrsqrt.pop %v4956
    %v5021 = vrsqrt.pop %v4957
    %v5022 = vrsqrt.pop %v4958
    %v5023 = vrsqrt.pop %v4959
    %v5024 = vrsqrt.pop %v4960
    %v5025 = vrsqrt.pop %v4961
    %v5026 = vrsqrt.pop %v4962
    %v5027 = vrsqrt.pop %v4963
    %v5028 = vrsqrt.pop %v4964
    %v5029 = vrsqrt.pop %v4965
    %v5030 = vrsqrt.pop %v4966
    %v5031 = vrsqrt.pop %v4967
    %v5032 = vrsqrt.pop %v4968
    %v5033 = vrsqrt.pop %v4969
    %v5034 = vrsqrt.pop %v4970
    %v5035 = vrsqrt.pop %v4971
    %v5036 = vrsqrt.pop %v4972
    %v5037 = vrsqrt.pop %v4973
    %v5038 = vrsqrt.pop %v4974
    %v5039 = vrsqrt.pop %v4975
    %v5040 = vrsqrt.pop %v4976
    %v5041 = vrsqrt.pop %v4977
    %v5042 = vrsqrt.pop %v4978
    %v5043 = vrsqrt.pop %v4979
    %v5044 = vrsqrt.pop %v4980
    %v5045 = vrsqrt.pop %v4981
    %v5046 = vrsqrt.pop %v4982
    %v5047 = vrsqrt.pop %v4983
    %v5048 = vrsqrt.pop %v4984
    %v5049 = vrsqrt.pop %v4985
    %v5050 = vmul.f32 %v4602, %v4986
    %v5051 = vmul.f32 %v4603, %v4987
    %v5052 = vmul.f32 %v4604, %v4988
    %v5053 = vmul.f32 %v4605, %v4989
    %v5054 = vmul.f32 %v4606, %v4990
    %v5055 = vmul.f32 %v4607, %v4991
    %v5056 = vmul.f32 %v4608, %v4992
    %v5057 = vmul.f32 %v4609, %v4993
    %v5058 = vmul.f32 %v4610, %v4994
    %v5059 = vmul.f32 %v4611, %v4995
    %v5060 = vmul.f32 %v4612, %v4996
    %v5061 = vmul.f32 %v4613, %v4997
    %v5062 = vmul.f32 %v4614, %v4998
    %v5063 = vmul.f32 %v4615, %v4999
    %v5064 = vmul.f32 %v4616, %v5000
    %v5065 = vmul.f32 %v4617, %v5001
    %v5066 = vmul.f32 %v4618, %v5002
    %v5067 = vmul.f32 %v4619, %v5003
    %v5068 = vmul.f32 %v4620, %v5004
    %v5069 = vmul.f32 %v4621, %v5005
    %v5070 = vmul.f32 %v4622, %v5006
    %v5071 = vmul.f32 %v4623, %v5007
    %v5072 = vmul.f32 %v4624, %v5008
    %v5073 = vmul.f32 %v4625, %v5009
    %v5074 = vmul.f32 %v4626, %v5010
    %v5075 = vmul.f32 %v4627, %v5011
    %v5076 = vmul.f32 %v4628, %v5012
    %v5077 = vmul.f32 %v4629, %v5013
    %v5078 = vmul.f32 %v4630, %v5014
    %v5079 = vmul.f32 %v4631, %v5015
    %v5080 = vmul.f32 %v4632, %v5016
    %v5081 = vmul.f32 %v4633, %v5017
    %v5082 = vmul.f32 %v4634, %v5018
    %v5083 = vmul.f32 %v4635, %v5019
    %v5084 = vmul.f32 %v4636, %v5020
    %v5085 = vmul.f32 %v4637, %v5021
    %v5086 = vmul.f32 %v4638, %v5022
    %v5087 = vmul.f32 %v4639, %v5023
    %v5088 = vmul.f32 %v4640, %v5024
    %v5089 = vmul.f32 %v4641, %v5025
    %v5090 = vmul.f32 %v4642, %v5026
    %v5091 = vmul.f32 %v4643, %v5027
    %v5092 = vmul.f32 %v4644, %v5028
    %v5093 = vmul.f32 %v4645, %v5029
    %v5094 = vmul.f32 %v4646, %v5030
    %v5095 = vmul.f32 %v4647, %v5031
    %v5096 = vmul.f32 %v4648, %v5032
    %v5097 = vmul.f32 %v4649, %v5033
    %v5098 = vmul.f32 %v4650, %v5034
    %v5099 = vmul.f32 %v4651, %v5035
    %v5100 = vmul.f32 %v4652, %v5036
    %v5101 = vmul.f32 %v4653, %v5037
    %v5102 = vmul.f32 %v4654, %v5038
    %v5103 = vmul.f32 %v4655, %v5039
    %v5104 = vmul.f32 %v4656, %v5040
    %v5105 = vmul.f32 %v4657, %v5041
    %v5106 = vmul.f32 %v4658, %v5042
    %v5107 = vmul.f32 %v4659, %v5043
    %v5108 = vmul.f32 %v4660, %v5044
    %v5109 = vmul.f32 %v4661, %v5045
    %v5110 = vmul.f32 %v4662, %v5046
    %v5111 = vmul.f32 %v4663, %v5047
    %v5112 = vmul.f32 %v4664, %v5048
    %v5113 = vmul.f32 %v4665, %v5049
    %v5115 = vlaneseq
    %v5116 = vshrl.u32 %v5115, 7
    %v5117 = vsub.s32 0, %v5116
    %v5118 = vrot.slane %v4408, %v5117
    %v5120 = vmul.f32 %v5050, %v5118
    %v5121 = vmul.f32 %v5051, %v5118
    %v5122 = vmul.f32 %v5052, %v5118
    %v5123 = vmul.f32 %v5053, %v5118
    %v5124 = vmul.f32 %v5054, %v5118
    %v5125 = vmul.f32 %v5055, %v5118
    %v5126 = vmul.f32 %v5056, %v5118
    %v5127 = vmul.f32 %v5057, %v5118
    %v5128 = vmul.f32 %v5058, %v5118
    %v5129 = vmul.f32 %v5059, %v5118
    %v5130 = vmul.f32 %v5060, %v5118
    %v5131 = vmul.f32 %v5061, %v5118
    %v5132 = vmul.f32 %v5062, %v5118
    %v5133 = vmul.f32 %v5063, %v5118
    %v5134 = vmul.f32 %v5064, %v5118
    %v5135 = vmul.f32 %v5065, %v5118
    %v5136 = vmul.f32 %v5066, %v5118
    %v5137 = vmul.f32 %v5067, %v5118
    %v5138 = vmul.f32 %v5068, %v5118
    %v5139 = vmul.f32 %v5069, %v5118
    %v5140 = vmul.f32 %v5070, %v5118
    %v5141 = vmul.f32 %v5071, %v5118
    %v5142 = vmul.f32 %v5072, %v5118
    %v5143 = vmul.f32 %v5073, %v5118
    %v5144 = vmul.f32 %v5074, %v5118
    %v5145 = vmul.f32 %v5075, %v5118
    %v5146 = vmul.f32 %v5076, %v5118
    %v5147 = vmul.f32 %v5077, %v5118
    %v5148 = vmul.f32 %v5078, %v5118
    %v5149 = vmul.f32 %v5079, %v5118
    %v5150 = vmul.f32 %v5080, %v5118
    %v5151 = vmul.f32 %v5081, %v5118
    %v5152 = vmul.f32 %v5082, %v5118
    %v5153 = vmul.f32 %v5083, %v5118
    %v5154 = vmul.f32 %v5084, %v5118
    %v5155 = vmul.f32 %v5085, %v5118
    %v5156 = vmul.f32 %v5086, %v5118
    %v5157 = vmul.f32 %v5087, %v5118
    %v5158 = vmul.f32 %v5088, %v5118
    %v5159 = vmul.f32 %v5089, %v5118
    %v5160 = vmul.f32 %v5090, %v5118
    %v5161 = vmul.f32 %v5091, %v5118
    %v5162 = vmul.f32 %v5092, %v5118
    %v5163 = vmul.f32 %v5093, %v5118
    %v5164 = vmul.f32 %v5094, %v5118
    %v5165 = vmul.f32 %v5095, %v5118
    %v5166 = vmul.f32 %v5096, %v5118
    %v5167 = vmul.f32 %v5097, %v5118
    %v5168 = vmul.f32 %v5098, %v5118
    %v5169 = vmul.f32 %v5099, %v5118
    %v5170 = vmul.f32 %v5100, %v5118
    %v5171 = vmul.f32 %v5101, %v5118
    %v5172 = vmul.f32 %v5102, %v5118
    %v5173 = vmul.f32 %v5103, %v5118
    %v5174 = vmul.f32 %v5104, %v5118
    %v5175 = vmul.f32 %v5105, %v5118
    %v5176 = vmul.f32 %v5106, %v5118
    %v5177 = vmul.f32 %v5107, %v5118
    %v5178 = vmul.f32 %v5108, %v5118
    %v5179 = vmul.f32 %v5109, %v5118
    %v5180 = vmul.f32 %v5110, %v5118
    %v5181 = vmul.f32 %v5111, %v5118
    %v5182 = vmul.f32 %v5112, %v5118
    %v5183 = vmul.f32 %v5113, %v5118
    %v5185 = vlaneseq
    %v5186 = vshrl.u32 %v5185, 7
    %v5187 = vsub.s32 0, %v5186
    %v5188 = vrot.slane %v4409, %v5187
    %v5190 = vadd.f32 %v5120, %v5188
    %v5191 = vadd.f32 %v5121, %v5188
    %v5192 = vadd.f32 %v5122, %v5188
    %v5193 = vadd.f32 %v5123, %v5188
    %v5194 = vadd.f32 %v5124, %v5188
    %v5195 = vadd.f32 %v5125, %v5188
    %v5196 = vadd.f32 %v5126, %v5188
    %v5197 = vadd.f32 %v5127, %v5188
    %v5198 = vadd.f32 %v5128, %v5188
    %v5199 = vadd.f32 %v5129, %v5188
    %v5200 = vadd.f32 %v5130, %v5188
    %v5201 = vadd.f32 %v5131, %v5188
    %v5202 = vadd.f32 %v5132, %v5188
    %v5203 = vadd.f32 %v5133, %v5188
    %v5204 = vadd.f32 %v5134, %v5188
    %v5205 = vadd.f32 %v5135, %v5188
    %v5206 = vadd.f32 %v5136, %v5188
    %v5207 = vadd.f32 %v5137, %v5188
    %v5208 = vadd.f32 %v5138, %v5188
    %v5209 = vadd.f32 %v5139, %v5188
    %v5210 = vadd.f32 %v5140, %v5188
    %v5211 = vadd.f32 %v5141, %v5188
    %v5212 = vadd.f32 %v5142, %v5188
    %v5213 = vadd.f32 %v5143, %v5188
    %v5214 = vadd.f32 %v5144, %v5188
    %v5215 = vadd.f32 %v5145, %v5188
    %v5216 = vadd.f32 %v5146, %v5188
    %v5217 = vadd.f32 %v5147, %v5188
    %v5218 = vadd.f32 %v5148, %v5188
    %v5219 = vadd.f32 %v5149, %v5188
    %v5220 = vadd.f32 %v5150, %v5188
    %v5221 = vadd.f32 %v5151, %v5188
    %v5222 = vadd.f32 %v5152, %v5188
    %v5223 = vadd.f32 %v5153, %v5188
    %v5224 = vadd.f32 %v5154, %v5188
    %v5225 = vadd.f32 %v5155, %v5188
    %v5226 = vadd.f32 %v5156, %v5188
    %v5227 = vadd.f32 %v5157, %v5188
    %v5228 = vadd.f32 %v5158, %v5188
    %v5229 = vadd.f32 %v5159, %v5188
    %v5230 = vadd.f32 %v5160, %v5188
    %v5231 = vadd.f32 %v5161, %v5188
    %v5232 = vadd.f32 %v5162, %v5188
    %v5233 = vadd.f32 %v5163, %v5188
    %v5234 = vadd.f32 %v5164, %v5188
    %v5235 = vadd.f32 %v5165, %v5188
    %v5236 = vadd.f32 %v5166, %v5188
    %v5237 = vadd.f32 %v5167, %v5188
    %v5238 = vadd.f32 %v5168, %v5188
    %v5239 = vadd.f32 %v5169, %v5188
    %v5240 = vadd.f32 %v5170, %v5188
    %v5241 = vadd.f32 %v5171, %v5188
    %v5242 = vadd.f32 %v5172, %v5188
    %v5243 = vadd.f32 %v5173, %v5188
    %v5244 = vadd.f32 %v5174, %v5188
    %v5245 = vadd.f32 %v5175, %v5188
    %v5246 = vadd.f32 %v5176, %v5188
    %v5247 = vadd.f32 %v5177, %v5188
    %v5248 = vadd.f32 %v5178, %v5188
    %v5249 = vadd.f32 %v5179, %v5188
    %v5250 = vadd.f32 %v5180, %v5188
    %v5251 = vadd.f32 %v5181, %v5188
    %v5252 = vadd.f32 %v5182, %v5188
    %v5253 = vadd.f32 %v5183, %v5188
    %v5254 = vld [vmem:[#allocation8] sm:$0xff]
    %v5255 = vld [vmem:[#allocation8 + $0x8] sm:$0xff]
    %v5256 = vld [vmem:[#allocation8 + $0x10] sm:$0xff]
    %v5257 = vld [vmem:[#allocation8 + $0x18] sm:$0xff]
    %v5258 = vld [vmem:[#allocation8 + $0x20] sm:$0xff]
    %v5259 = vld [vmem:[#allocation8 + $0x28] sm:$0xff]
    %v5260 = vld [vmem:[#allocation8 + $0x30] sm:$0xff]
    %v5261 = vld [vmem:[#allocation8 + $0x38] sm:$0xff]
    %v5262 = vld [vmem:[#allocation8 + $0x40] sm:$0xff]
    %v5263 = vld [vmem:[#allocation8 + $0x48] sm:$0xff]
    %v5264 = vld [vmem:[#allocation8 + $0x50] sm:$0xff]
    %v5265 = vld [vmem:[#allocation8 + $0x58] sm:$0xff]
    %v5266 = vld [vmem:[#allocation8 + $0x60] sm:$0xff]
    %v5267 = vld [vmem:[#allocation8 + $0x68] sm:$0xff]
    %v5268 = vld [vmem:[#allocation8 + $0x70] sm:$0xff]
    %v5269 = vld [vmem:[#allocation8 + $0x78] sm:$0xff]
    %v5270 = vld [vmem:[%s10] sm:$0x1]
    %v5272 = vlaneseq
    %v5273 = vshrl.u32 %v5272, 7
    %v5274 = vsub.s32 0, %v5273
    %v5275 = vrot.slane %v5270, %v5274
    %5277 = vmatprep.subr.mxu0 0.0
    %5278 = vmatpush1.msra.mxu0 %v5254
    %5279 = vmatprep.subr.mxu0 0.0
    %5280 = vmatpush1.msra.mxu0 %v5255
    %5281 = vmatprep.subr.mxu0 0.0
    %5282 = vmatpush1.msra.mxu0 %v5256
    %5283 = vmatprep.subr.mxu0 0.0
    %5284 = vmatpush1.msra.mxu0 %v5257
    %5285 = vmatprep.subr.mxu0 0.0
    %5286 = vmatpush1.msra.mxu0 %v5258
    %5287 = vmatprep.subr.mxu0 0.0
    %5288 = vmatpush1.msra.mxu0 %v5259
    %5289 = vmatprep.subr.mxu0 0.0
    %5290 = vmatpush1.msra.mxu0 %v5260
    %5291 = vmatprep.subr.mxu0 0.0
    %5292 = vmatpush1.msra.mxu0 %v5261
    %5293 = vmatprep.subr.mxu0 0.0
    %5294 = vmatpush1.msra.mxu0 %v5262
    %5295 = vmatprep.subr.mxu0 0.0
    %5296 = vmatpush1.msra.mxu0 %v5263
    %5297 = vmatprep.subr.mxu0 0.0
    %5298 = vmatpush1.msra.mxu0 %v5264
    %5299 = vmatprep.subr.mxu0 0.0
    %5300 = vmatpush1.msra.mxu0 %v5265
    %5301 = vmatprep.subr.mxu0 0.0
    %5302 = vmatpush1.msra.mxu0 %v5266
    %5303 = vmatprep.subr.mxu0 0.0
    %5304 = vmatpush1.msra.mxu0 %v5267
    %5305 = vmatprep.subr.mxu0 0.0
    %5306 = vmatpush1.msra.mxu0 %v5268
    %5307 = vmatprep.subr.mxu0 0.0
    %5308 = vmatpush1.msra.mxu0 %v5269
    %5309 = vmatprep.subr.mxu0 0.0
    %5310 = vmatpush1.msra.mxu0 0.0
    %5311 = vmatprep.subr.mxu0 0.0
    %5312 = vmatpush1.msra.mxu0 0.0
    %5313 = vmatprep.subr.mxu0 0.0
    %5314 = vmatpush1.msra.mxu0 0.0
    %5315 = vmatprep.subr.mxu0 0.0
    %5316 = vmatpush1.msra.mxu0 0.0
    %5317 = vmatprep.subr.mxu0 0.0
    %5318 = vmatpush1.msra.mxu0 0.0
    %5319 = vmatprep.subr.mxu0 0.0
    %5320 = vmatpush1.msra.mxu0 0.0
    %5321 = vmatprep.subr.mxu0 0.0
    %5322 = vmatpush1.msra.mxu0 0.0
    %5323 = vmatprep.subr.mxu0 0.0
    %5324 = vmatpush1.msra.mxu0 0.0
    %5325 = vmatprep.subr.mxu0 0.0
    %5326 = vmatpush1.msra.mxu0 0.0
    %5327 = vmatprep.subr.mxu0 0.0
    %5328 = vmatpush1.msra.mxu0 0.0
    %5329 = vmatprep.subr.mxu0 0.0
    %5330 = vmatpush1.msra.mxu0 0.0
    %5331 = vmatprep.subr.mxu0 0.0
    %5332 = vmatpush1.msra.mxu0 0.0
    %5333 = vmatprep.subr.mxu0 0.0
    %5334 = vmatpush1.msra.mxu0 0.0
    %5335 = vmatprep.subr.mxu0 0.0
    %5336 = vmatpush1.msra.mxu0 0.0
    %5337 = vmatprep.subr.mxu0 0.0
    %5338 = vmatpush1.msra.mxu0 0.0
    %5339 = vmatprep.subr.mxu0 0.0
    %5340 = vmatpush1.msra.mxu0 0.0
    %5341 = vmatprep.mubr.f32.mxu0 0.0
    %5342 = vmatmul.mubr.f32.gmra.mrb[0].mxu0 %v5190
    %v5343 = vpop.f32.mrb[0].mxu0
    %v5344 = vadd.f32 %v5275, %v5343
    %v5345 = vpop.f32.mrb[0].mxu0
    %5346 = vmatprep.mubr.f32.mxu0 0.0
    %5347 = vmatmul.mubr.f32.gmra.mrb[0].mxu0 %v5191
    %v5348 = vpop.f32.mrb[0].mxu0
    %v5349 = vadd.f32 %v5275, %v5348
    %v5350 = vpop.f32.mrb[0].mxu0
    %5351 = vmatprep.mubr.f32.mxu0 0.0
    %5352 = vmatmul.mubr.f32.gmra.mrb[0].mxu0 %v5192
    %v5353 = vpop.f32.mrb[0].mxu0
    %v5354 = vadd.f32 %v5275, %v5353
    %v5355 = vpop.f32.mrb[0].mxu0
    %5356 = vmatprep.mubr.f32.mxu0 0.0
    %5357 = vmatmul.mubr.f32.gmra.mrb[0].mxu0 %v5193
    %v5358 = vpop.f32.mrb[0].mxu0
    %v5359 = vadd.f32 %v5275, %v5358
    %v5360 = vpop.f32.mrb[0].mxu0
    %5361 = vmatprep.mubr.f32.mxu0 0.0
    %5362 = vmatmul.mubr.f32.gmra.mrb[0].mxu0 %v5194
    %v5363 = vpop.f32.mrb[0].mxu0
    %v5364 = vadd.f32 %v5275, %v5363
    %v5365 = vpop.f32.mrb[0].mxu0
    %5366 = vmatprep.mubr.f32.mxu0 0.0
    %5367 = vmatmul.mubr.f32.gmra.mrb[0].mxu0 %v5195
    %v5368 = vpop.f32.mrb[0].mxu0
    %v5369 = vadd.f32 %v5275, %v5368
    %v5370 = vpop.f32.mrb[0].mxu0
    %5371 = vmatprep.mubr.f32.mxu0 0.0
    %5372 = vmatmul.mubr.f32.gmra.mrb[0].mxu0 %v5196
    %v5373 = vpop.f32.mrb[0].mxu0
    %v5374 = vadd.f32 %v5275, %v5373
    %v5375 = vpop.f32.mrb[0].mxu0
    %5376 = vmatprep.mubr.f32.mxu0 0.0
    %5377 = vmatmul.mubr.f32.gmra.mrb[0].mxu0 %v5197
    %v5378 = vpop.f32.mrb[0].mxu0
    %v5379 = vadd.f32 %v5275, %v5378
    %v5380 = vpop.f32.mrb[0].mxu0
    %5381 = vmatprep.mubr.f32.mxu0 0.0
    %5382 = vmatmul.mubr.f32.gmra.mrb[0].mxu0 %v5198
    %v5383 = vpop.f32.mrb[0].mxu0
    %v5384 = vadd.f32 %v5275, %v5383
    %v5385 = vpop.f32.mrb[0].mxu0
    %5386 = vmatprep.mubr.f32.mxu0 0.0
    %5387 = vmatmul.mubr.f32.gmra.mrb[0].mxu0 %v5199
    %v5388 = vpop.f32.mrb[0].mxu0
    %v5389 = vadd.f32 %v5275, %v5388
    %v5390 = vpop.f32.mrb[0].mxu0
    %5391 = vmatprep.mubr.f32.mxu0 0.0
    %5392 = vmatmul.mubr.f32.gmra.mrb[0].mxu0 %v5200
    %v5393 = vpop.f32.mrb[0].mxu0
    %v5394 = vadd.f32 %v5275, %v5393
    %v5395 = vpop.f32.mrb[0].mxu0
    %5396 = vmatprep.mubr.f32.mxu0 0.0
    %5397 = vmatmul.mubr.f32.gmra.mrb[0].mxu0 %v5201
    %v5398 = vpop.f32.mrb[0].mxu0
    %v5399 = vadd.f32 %v5275, %v5398
    %v5400 = vpop.f32.mrb[0].mxu0
    %5401 = vmatprep.mubr.f32.mxu0 0.0
    %5402 = vmatmul.mubr.f32.gmra.mrb[0].mxu0 %v5202
    %v5403 = vpop.f32.mrb[0].mxu0
    %v5404 = vadd.f32 %v5275, %v5403
    %v5405 = vpop.f32.mrb[0].mxu0
    %5406 = vmatprep.mubr.f32.mxu0 0.0
    %5407 = vmatmul.mubr.f32.gmra.mrb[0].mxu0 %v5203
    %v5408 = vpop.f32.mrb[0].mxu0
    %v5409 = vadd.f32 %v5275, %v5408
    %v5410 = vpop.f32.mrb[0].mxu0
    %5411 = vmatprep.mubr.f32.mxu0 0.0
    %5412 = vmatmul.mubr.f32.gmra.mrb[0].mxu0 %v5204
    %v5413 = vpop.f32.mrb[0].mxu0
    %v5414 = vadd.f32 %v5275, %v5413
    %v5415 = vpop.f32.mrb[0].mxu0
    %5416 = vmatprep.mubr.f32.mxu0 0.0
    %5417 = vmatmul.mubr.f32.gmra.mrb[0].mxu0 %v5205
    %v5418 = vpop.f32.mrb[0].mxu0
    %v5419 = vadd.f32 %v5275, %v5418
    %v5420 = vpop.f32.mrb[0].mxu0
    %5421 = vmatprep.mubr.f32.mxu0 0.0
    %5422 = vmatmul.mubr.f32.gmra.mrb[0].mxu0 %v5206
    %v5423 = vpop.f32.mrb[0].mxu0
    %v5424 = vadd.f32 %v5275, %v5423
    %v5425 = vpop.f32.mrb[0].mxu0
    %5426 = vmatprep.mubr.f32.mxu0 0.0
    %5427 = vmatmul.mubr.f32.gmra.mrb[0].mxu0 %v5207
    %v5428 = vpop.f32.mrb[0].mxu0
    %v5429 = vadd.f32 %v5275, %v5428
    %v5430 = vpop.f32.mrb[0].mxu0
    %5431 = vmatprep.mubr.f32.mxu0 0.0
    %5432 = vmatmul.mubr.f32.gmra.mrb[0].mxu0 %v5208
    %v5433 = vpop.f32.mrb[0].mxu0
    %v5434 = vadd.f32 %v5275, %v5433
    %v5435 = vpop.f32.mrb[0].mxu0
    %5436 = vmatprep.mubr.f32.mxu0 0.0
    %5437 = vmatmul.mubr.f32.gmra.mrb[0].mxu0 %v5209
    %v5438 = vpop.f32.mrb[0].mxu0
    %v5439 = vadd.f32 %v5275, %v5438
    %v5440 = vpop.f32.mrb[0].mxu0
    %5441 = vmatprep.mubr.f32.mxu0 0.0
    %5442 = vmatmul.mubr.f32.gmra.mrb[0].mxu0 %v5210
    %v5443 = vpop.f32.mrb[0].mxu0
    %v5444 = vadd.f32 %v5275, %v5443
    %v5445 = vpop.f32.mrb[0].mxu0
    %5446 = vmatprep.mubr.f32.mxu0 0.0
    %5447 = vmatmul.mubr.f32.gmra.mrb[0].mxu0 %v5211
    %v5448 = vpop.f32.mrb[0].mxu0
    %v5449 = vadd.f32 %v5275, %v5448
    %v5450 = vpop.f32.mrb[0].mxu0
    %5451 = vmatprep.mubr.f32.mxu0 0.0
    %5452 = vmatmul.mubr.f32.gmra.mrb[0].mxu0 %v5212
    %v5453 = vpop.f32.mrb[0].mxu0
    %v5454 = vadd.f32 %v5275, %v5453
    %v5455 = vpop.f32.mrb[0].mxu0
    %5456 = vmatprep.mubr.f32.mxu0 0.0
    %5457 = vmatmul.mubr.f32.gmra.mrb[0].mxu0 %v5213
    %v5458 = vpop.f32.mrb[0].mxu0
    %v5459 = vadd.f32 %v5275, %v5458
    %v5460 = vpop.f32.mrb[0].mxu0
    %5461 = vmatprep.mubr.f32.mxu0 0.0
    %5462 = vmatmul.mubr.f32.gmra.mrb[0].mxu0 %v5214
    %v5463 = vpop.f32.mrb[0].mxu0
    %v5464 = vadd.f32 %v5275, %v5463
    %v5465 = vpop.f32.mrb[0].mxu0
    %5466 = vmatprep.mubr.f32.mxu0 0.0
    %5467 = vmatmul.mubr.f32.gmra.mrb[0].mxu0 %v5215
    %v5468 = vpop.f32.mrb[0].mxu0
    %v5469 = vadd.f32 %v5275, %v5468
    %v5470 = vpop.f32.mrb[0].mxu0
    %5471 = vmatprep.mubr.f32.mxu0 0.0
    %5472 = vmatmul.mubr.f32.gmra.mrb[0].mxu0 %v5216
    %v5473 = vpop.f32.mrb[0].mxu0
    %v5474 = vadd.f32 %v5275, %v5473
    %v5475 = vpop.f32.mrb[0].mxu0
    %5476 = vmatprep.mubr.f32.mxu0 0.0
    %5477 = vmatmul.mubr.f32.gmra.mrb[0].mxu0 %v5217
    %v5478 = vpop.f32.mrb[0].mxu0
    %v5479 = vadd.f32 %v5275, %v5478
    %v5480 = vpop.f32.mrb[0].mxu0
    %5481 = vmatprep.mubr.f32.mxu0 0.0
    %5482 = vmatmul.mubr.f32.gmra.mrb[0].mxu0 %v5218
    %v5483 = vpop.f32.mrb[0].mxu0
    %v5484 = vadd.f32 %v5275, %v5483
    %v5485 = vpop.f32.mrb[0].mxu0
    %5486 = vmatprep.mubr.f32.mxu0 0.0
    %5487 = vmatmul.mubr.f32.gmra.mrb[0].mxu0 %v5219
    %v5488 = vpop.f32.mrb[0].mxu0
    %v5489 = vadd.f32 %v5275, %v5488
    %v5490 = vpop.f32.mrb[0].mxu0
    %5491 = vmatprep.mubr.f32.mxu0 0.0
    %5492 = vmatmul.mubr.f32.gmra.mrb[0].mxu0 %v5220
    %v5493 = vpop.f32.mrb[0].mxu0
    %v5494 = vadd.f32 %v5275, %v5493
    %v5495 = vpop.f32.mrb[0].mxu0
    %5496 = vmatprep.mubr.f32.mxu0 0.0
    %5497 = vmatmul.mubr.f32.gmra.mrb[0].mxu0 %v5221
    %v5498 = vpop.f32.mrb[0].mxu0
    %v5499 = vadd.f32 %v5275, %v5498
    %v5500 = vpop.f32.mrb[0].mxu0
    %5501 = vmatprep.mubr.f32.mxu0 0.0
    %5502 = vmatmul.mubr.f32.gmra.mrb[0].mxu0 %v5222
    %v5503 = vpop.f32.mrb[0].mxu0
    %v5504 = vadd.f32 %v5275, %v5503
    %v5505 = vpop.f32.mrb[0].mxu0
    %5506 = vmatprep.mubr.f32.mxu0 0.0
    %5507 = vmatmul.mubr.f32.gmra.mrb[0].mxu0 %v5223
    %v5508 = vpop.f32.mrb[0].mxu0
    %v5509 = vadd.f32 %v5275, %v5508
    %v5510 = vpop.f32.mrb[0].mxu0
    %5511 = vmatprep.mubr.f32.mxu0 0.0
    %5512 = vmatmul.mubr.f32.gmra.mrb[0].mxu0 %v5224
    %v5513 = vpop.f32.mrb[0].mxu0
    %v5514 = vadd.f32 %v5275, %v5513
    %v5515 = vpop.f32.mrb[0].mxu0
    %5516 = vmatprep.mubr.f32.mxu0 0.0
    %5517 = vmatmul.mubr.f32.gmra.mrb[0].mxu0 %v5225
    %v5518 = vpop.f32.mrb[0].mxu0
    %v5519 = vadd.f32 %v5275, %v5518
    %v5520 = vpop.f32.mrb[0].mxu0
    %5521 = vmatprep.mubr.f32.mxu0 0.0
    %5522 = vmatmul.mubr.f32.gmra.mrb[0].mxu0 %v5226
    %v5523 = vpop.f32.mrb[0].mxu0
    %v5524 = vadd.f32 %v5275, %v5523
    %v5525 = vpop.f32.mrb[0].mxu0
    %5526 = vmatprep.mubr.f32.mxu0 0.0
    %5527 = vmatmul.mubr.f32.gmra.mrb[0].mxu0 %v5227
    %v5528 = vpop.f32.mrb[0].mxu0
    %v5529 = vadd.f32 %v5275, %v5528
    %v5530 = vpop.f32.mrb[0].mxu0
    %5531 = vmatprep.mubr.f32.mxu0 0.0
    %5532 = vmatmul.mubr.f32.gmra.mrb[0].mxu0 %v5228
    %v5533 = vpop.f32.mrb[0].mxu0
    %v5534 = vadd.f32 %v5275, %v5533
    %v5535 = vpop.f32.mrb[0].mxu0
    %5536 = vmatprep.mubr.f32.mxu0 0.0
    %5537 = vmatmul.mubr.f32.gmra.mrb[0].mxu0 %v5229
    %v5538 = vpop.f32.mrb[0].mxu0
    %v5539 = vadd.f32 %v5275, %v5538
    %v5540 = vpop.f32.mrb[0].mxu0
    %5541 = vmatprep.mubr.f32.mxu0 0.0
    %5542 = vmatmul.mubr.f32.gmra.mrb[0].mxu0 %v5230
    %v5543 = vpop.f32.mrb[0].mxu0
    %v5544 = vadd.f32 %v5275, %v5543
    %v5545 = vpop.f32.mrb[0].mxu0
    %5546 = vmatprep.mubr.f32.mxu0 0.0
    %5547 = vmatmul.mubr.f32.gmra.mrb[0].mxu0 %v5231
    %v5548 = vpop.f32.mrb[0].mxu0
    %v5549 = vadd.f32 %v5275, %v5548
    %v5550 = vpop.f32.mrb[0].mxu0
    %5551 = vmatprep.mubr.f32.mxu0 0.0
    %5552 = vmatmul.mubr.f32.gmra.mrb[0].mxu0 %v5232
    %v5553 = vpop.f32.mrb[0].mxu0
    %v5554 = vadd.f32 %v5275, %v5553
    %v5555 = vpop.f32.mrb[0].mxu0
    %5556 = vmatprep.mubr.f32.mxu0 0.0
    %5557 = vmatmul.mubr.f32.gmra.mrb[0].mxu0 %v5233
    %v5558 = vpop.f32.mrb[0].mxu0
    %v5559 = vadd.f32 %v5275, %v5558
    %v5560 = vpop.f32.mrb[0].mxu0
    %5561 = vmatprep.mubr.f32.mxu0 0.0
    %5562 = vmatmul.mubr.f32.gmra.mrb[0].mxu0 %v5234
    %v5563 = vpop.f32.mrb[0].mxu0
    %v5564 = vadd.f32 %v5275, %v5563
    %v5565 = vpop.f32.mrb[0].mxu0
    %5566 = vmatprep.mubr.f32.mxu0 0.0
    %5567 = vmatmul.mubr.f32.gmra.mrb[0].mxu0 %v5235
    %v5568 = vpop.f32.mrb[0].mxu0
    %v5569 = vadd.f32 %v5275, %v5568
    %v5570 = vpop.f32.mrb[0].mxu0
    %5571 = vmatprep.mubr.f32.mxu0 0.0
    %5572 = vmatmul.mubr.f32.gmra.mrb[0].mxu0 %v5236
    %v5573 = vpop.f32.mrb[0].mxu0
    %v5574 = vadd.f32 %v5275, %v5573
    %v5575 = vpop.f32.mrb[0].mxu0
    %5576 = vmatprep.mubr.f32.mxu0 0.0
    %5577 = vmatmul.mubr.f32.gmra.mrb[0].mxu0 %v5237
    %v5578 = vpop.f32.mrb[0].mxu0
    %v5579 = vadd.f32 %v5275, %v5578
    %v5580 = vpop.f32.mrb[0].mxu0
    %5581 = vmatprep.mubr.f32.mxu0 0.0
    %5582 = vmatmul.mubr.f32.gmra.mrb[0].mxu0 %v5238
    %v5583 = vpop.f32.mrb[0].mxu0
    %v5584 = vadd.f32 %v5275, %v5583
    %v5585 = vpop.f32.mrb[0].mxu0
    %5586 = vmatprep.mubr.f32.mxu0 0.0
    %5587 = vmatmul.mubr.f32.gmra.mrb[0].mxu0 %v5239
    %v5588 = vpop.f32.mrb[0].mxu0
    %v5589 = vadd.f32 %v5275, %v5588
    %v5590 = vpop.f32.mrb[0].mxu0
    %5591 = vmatprep.mubr.f32.mxu0 0.0
    %5592 = vmatmul.mubr.f32.gmra.mrb[0].mxu0 %v5240
    %v5593 = vpop.f32.mrb[0].mxu0
    %v5594 = vadd.f32 %v5275, %v5593
    %v5595 = vpop.f32.mrb[0].mxu0
    %5596 = vmatprep.mubr.f32.mxu0 0.0
    %5597 = vmatmul.mubr.f32.gmra.mrb[0].mxu0 %v5241
    %v5598 = vpop.f32.mrb[0].mxu0
    %v5599 = vadd.f32 %v5275, %v5598
    %v5600 = vpop.f32.mrb[0].mxu0
    %5601 = vmatprep.mubr.f32.mxu0 0.0
    %5602 = vmatmul.mubr.f32.gmra.mrb[0].mxu0 %v5242
    %v5603 = vpop.f32.mrb[0].mxu0
    %v5604 = vadd.f32 %v5275, %v5603
    %v5605 = vpop.f32.mrb[0].mxu0
    %5606 = vmatprep.mubr.f32.mxu0 0.0
    %5607 = vmatmul.mubr.f32.gmra.mrb[0].mxu0 %v5243
    %v5608 = vpop.f32.mrb[0].mxu0
    %v5609 = vadd.f32 %v5275, %v5608
    %v5610 = vpop.f32.mrb[0].mxu0
    %5611 = vmatprep.mubr.f32.mxu0 0.0
    %5612 = vmatmul.mubr.f32.gmra.mrb[0].mxu0 %v5244
    %v5613 = vpop.f32.mrb[0].mxu0
    %v5614 = vadd.f32 %v5275, %v5613
    %v5615 = vpop.f32.mrb[0].mxu0
    %5616 = vmatprep.mubr.f32.mxu0 0.0
    %5617 = vmatmul.mubr.f32.gmra.mrb[0].mxu0 %v5245
    %v5618 = vpop.f32.mrb[0].mxu0
    %v5619 = vadd.f32 %v5275, %v5618
    %v5620 = vpop.f32.mrb[0].mxu0
    %5621 = vmatprep.mubr.f32.mxu0 0.0
    %5622 = vmatmul.mubr.f32.gmra.mrb[0].mxu0 %v5246
    %v5623 = vpop.f32.mrb[0].mxu0
    %v5624 = vadd.f32 %v5275, %v5623
    %v5625 = vpop.f32.mrb[0].mxu0
    %5626 = vmatprep.mubr.f32.mxu0 0.0
    %5627 = vmatmul.mubr.f32.gmra.mrb[0].mxu0 %v5247
    %v5628 = vpop.f32.mrb[0].mxu0
    %v5629 = vadd.f32 %v5275, %v5628
    %v5630 = vpop.f32.mrb[0].mxu0
    %5631 = vmatprep.mubr.f32.mxu0 0.0
    %5632 = vmatmul.mubr.f32.gmra.mrb[0].mxu0 %v5248
    %v5633 = vpop.f32.mrb[0].mxu0
    %v5634 = vadd.f32 %v5275, %v5633
    %v5635 = vpop.f32.mrb[0].mxu0
    %5636 = vmatprep.mubr.f32.mxu0 0.0
    %5637 = vmatmul.mubr.f32.gmra.mrb[0].mxu0 %v5249
    %v5638 = vpop.f32.mrb[0].mxu0
    %v5639 = vadd.f32 %v5275, %v5638
    %v5640 = vpop.f32.mrb[0].mxu0
    %5641 = vmatprep.mubr.f32.mxu0 0.0
    %5642 = vmatmul.mubr.f32.gmra.mrb[0].mxu0 %v5250
    %v5643 = vpop.f32.mrb[0].mxu0
    %v5644 = vadd.f32 %v5275, %v5643
    %v5645 = vpop.f32.mrb[0].mxu0
    %5646 = vmatprep.mubr.f32.mxu0 0.0
    %5647 = vmatmul.mubr.f32.gmra.mrb[0].mxu0 %v5251
    %v5648 = vpop.f32.mrb[0].mxu0
    %v5649 = vadd.f32 %v5275, %v5648
    %v5650 = vpop.f32.mrb[0].mxu0
    %5651 = vmatprep.mubr.f32.mxu0 0.0
    %5652 = vmatmul.mubr.f32.gmra.mrb[0].mxu0 %v5252
    %v5653 = vpop.f32.mrb[0].mxu0
    %v5654 = vadd.f32 %v5275, %v5653
    %v5655 = vpop.f32.mrb[0].mxu0
    %5656 = vmatprep.mubr.f32.mxu0 0.0
    %5657 = vmatmul.mubr.f32.gmra.mrb[0].mxu0 %v5253
    %v5658 = vpop.f32.mrb[0].mxu0
    %v5659 = vadd.f32 %v5275, %v5658
    %v5660 = vpop.f32.mrb[0].mxu0
    %5661 = vdwg.mxu0
    %v5662 = vmul.f32 %v5344, 0.5
    %v5663 = vmul.f32 %v5349, 0.5
    %v5664 = vmul.f32 %v5354, 0.5
    %v5665 = vmul.f32 %v5359, 0.5
    %v5666 = vmul.f32 %v5364, 0.5
    %v5667 = vmul.f32 %v5369, 0.5
    %v5668 = vmul.f32 %v5374, 0.5
    %v5669 = vmul.f32 %v5379, 0.5
    %v5670 = vmul.f32 %v5384, 0.5
    %v5671 = vmul.f32 %v5389, 0.5
    %v5672 = vmul.f32 %v5394, 0.5
    %v5673 = vmul.f32 %v5399, 0.5
    %v5674 = vmul.f32 %v5404, 0.5
    %v5675 = vmul.f32 %v5409, 0.5
    %v5676 = vmul.f32 %v5414, 0.5
    %v5677 = vmul.f32 %v5419, 0.5
    %v5678 = vmul.f32 %v5424, 0.5
    %v5679 = vmul.f32 %v5429, 0.5
    %v5680 = vmul.f32 %v5434, 0.5
    %v5681 = vmul.f32 %v5439, 0.5
    %v5682 = vmul.f32 %v5444, 0.5
    %v5683 = vmul.f32 %v5449, 0.5
    %v5684 = vmul.f32 %v5454, 0.5
    %v5685 = vmul.f32 %v5459, 0.5
    %v5686 = vmul.f32 %v5464, 0.5
    %v5687 = vmul.f32 %v5469, 0.5
    %v5688 = vmul.f32 %v5474, 0.5
    %v5689 = vmul.f32 %v5479, 0.5
    %v5690 = vmul.f32 %v5484, 0.5
    %v5691 = vmul.f32 %v5489, 0.5
    %v5692 = vmul.f32 %v5494, 0.5
    %v5693 = vmul.f32 %v5499, 0.5
    %v5694 = vmul.f32 %v5504, 0.5
    %v5695 = vmul.f32 %v5509, 0.5
    %v5696 = vmul.f32 %v5514, 0.5
    %v5697 = vmul.f32 %v5519, 0.5
    %v5698 = vmul.f32 %v5524, 0.5
    %v5699 = vmul.f32 %v5529, 0.5
    %v5700 = vmul.f32 %v5534, 0.5
    %v5701 = vmul.f32 %v5539, 0.5
    %v5702 = vmul.f32 %v5544, 0.5
    %v5703 = vmul.f32 %v5549, 0.5
    %v5704 = vmul.f32 %v5554, 0.5
    %v5705 = vmul.f32 %v5559, 0.5
    %v5706 = vmul.f32 %v5564, 0.5
    %v5707 = vmul.f32 %v5569, 0.5
    %v5708 = vmul.f32 %v5574, 0.5
    %v5709 = vmul.f32 %v5579, 0.5
    %v5710 = vmul.f32 %v5584, 0.5
    %v5711 = vmul.f32 %v5589, 0.5
    %v5712 = vmul.f32 %v5594, 0.5
    %v5713 = vmul.f32 %v5599, 0.5
    %v5714 = vmul.f32 %v5604, 0.5
    %v5715 = vmul.f32 %v5609, 0.5
    %v5716 = vmul.f32 %v5614, 0.5
    %v5717 = vmul.f32 %v5619, 0.5
    %v5718 = vmul.f32 %v5624, 0.5
    %v5719 = vmul.f32 %v5629, 0.5
    %v5720 = vmul.f32 %v5634, 0.5
    %v5721 = vmul.f32 %v5639, 0.5
    %v5722 = vmul.f32 %v5644, 0.5
    %v5723 = vmul.f32 %v5649, 0.5
    %v5724 = vmul.f32 %v5654, 0.5
    %v5725 = vmul.f32 %v5659, 0.5
    %v5726 = vmul.f32 %v5344, 0.70710677
    %v5727 = vmul.f32 %v5349, 0.70710677
    %v5728 = vmul.f32 %v5354, 0.70710677
    %v5729 = vmul.f32 %v5359, 0.70710677
    %v5730 = vmul.f32 %v5364, 0.70710677
    %v5731 = vmul.f32 %v5369, 0.70710677
    %v5732 = vmul.f32 %v5374, 0.70710677
    %v5733 = vmul.f32 %v5379, 0.70710677
    %v5734 = vmul.f32 %v5384, 0.70710677
    %v5735 = vmul.f32 %v5389, 0.70710677
    %v5736 = vmul.f32 %v5394, 0.70710677
    %v5737 = vmul.f32 %v5399, 0.70710677
    %v5738 = vmul.f32 %v5404, 0.70710677
    %v5739 = vmul.f32 %v5409, 0.70710677
    %v5740 = vmul.f32 %v5414, 0.70710677
    %v5741 = vmul.f32 %v5419, 0.70710677
    %v5742 = vmul.f32 %v5424, 0.70710677
    %v5743 = vmul.f32 %v5429, 0.70710677
    %v5744 = vmul.f32 %v5434, 0.70710677
    %v5745 = vmul.f32 %v5439, 0.70710677
    %v5746 = vmul.f32 %v5444, 0.70710677
    %v5747 = vmul.f32 %v5449, 0.70710677
    %v5748 = vmul.f32 %v5454, 0.70710677
    %v5749 = vmul.f32 %v5459, 0.70710677
    %v5750 = vmul.f32 %v5464, 0.70710677
    %v5751 = vmul.f32 %v5469, 0.70710677
    %v5752 = vmul.f32 %v5474, 0.70710677
    %v5753 = vmul.f32 %v5479, 0.70710677
    %v5754 = vmul.f32 %v5484, 0.70710677
    %v5755 = vmul.f32 %v5489, 0.70710677
    %v5756 = vmul.f32 %v5494, 0.70710677
    %v5757 = vmul.f32 %v5499, 0.70710677
    %v5758 = vmul.f32 %v5504, 0.70710677
    %v5759 = vmul.f32 %v5509, 0.70710677
    %v5760 = vmul.f32 %v5514, 0.70710677
    %v5761 = vmul.f32 %v5519, 0.70710677
    %v5762 = vmul.f32 %v5524, 0.70710677
    %v5763 = vmul.f32 %v5529, 0.70710677
    %v5764 = vmul.f32 %v5534, 0.70710677
    %v5765 = vmul.f32 %v5539, 0.70710677
    %v5766 = vmul.f32 %v5544, 0.70710677
    %v5767 = vmul.f32 %v5549, 0.70710677
    %v5768 = vmul.f32 %v5554, 0.70710677
    %v5769 = vmul.f32 %v5559, 0.70710677
    %v5770 = vmul.f32 %v5564, 0.70710677
    %v5771 = vmul.f32 %v5569, 0.70710677
    %v5772 = vmul.f32 %v5574, 0.70710677
    %v5773 = vmul.f32 %v5579, 0.70710677
    %v5774 = vmul.f32 %v5584, 0.70710677
    %v5775 = vmul.f32 %v5589, 0.70710677
    %v5776 = vmul.f32 %v5594, 0.70710677
    %v5777 = vmul.f32 %v5599, 0.70710677
    %v5778 = vmul.f32 %v5604, 0.70710677
    %v5779 = vmul.f32 %v5609, 0.70710677
    %v5780 = vmul.f32 %v5614, 0.70710677
    %v5781 = vmul.f32 %v5619, 0.70710677
    %v5782 = vmul.f32 %v5624, 0.70710677
    %v5783 = vmul.f32 %v5629, 0.70710677
    %v5784 = vmul.f32 %v5634, 0.70710677
    %v5785 = vmul.f32 %v5639, 0.70710677
    %v5786 = vmul.f32 %v5644, 0.70710677
    %v5787 = vmul.f32 %v5649, 0.70710677
    %v5788 = vmul.f32 %v5654, 0.70710677
    %v5789 = vmul.f32 %v5659, 0.70710677
    %vm5790 = vcmp.ge.f32.partialorder %v5726, 0.0
    %vm5791 = vcmp.ge.f32.partialorder %v5727, 0.0
    %vm5792 = vcmp.ge.f32.partialorder %v5728, 0.0
    %vm5793 = vcmp.ge.f32.partialorder %v5729, 0.0
    %vm5794 = vcmp.ge.f32.partialorder %v5730, 0.0
    %vm5795 = vcmp.ge.f32.partialorder %v5731, 0.0
    %vm5796 = vcmp.ge.f32.partialorder %v5732, 0.0
    %vm5797 = vcmp.ge.f32.partialorder %v5733, 0.0
    %vm5798 = vcmp.ge.f32.partialorder %v5734, 0.0
    %vm5799 = vcmp.ge.f32.partialorder %v5735, 0.0
    %vm5800 = vcmp.ge.f32.partialorder %v5736, 0.0
    %vm5801 = vcmp.ge.f32.partialorder %v5737, 0.0
    %vm5802 = vcmp.ge.f32.partialorder %v5738, 0.0
    %vm5803 = vcmp.ge.f32.partialorder %v5739, 0.0
    %vm5804 = vcmp.ge.f32.partialorder %v5740, 0.0
    %vm5805 = vcmp.ge.f32.partialorder %v5741, 0.0
    %vm5806 = vcmp.ge.f32.partialorder %v5742, 0.0
    %vm5807 = vcmp.ge.f32.partialorder %v5743, 0.0
    %vm5808 = vcmp.ge.f32.partialorder %v5744, 0.0
    %vm5809 = vcmp.ge.f32.partialorder %v5745, 0.0
    %vm5810 = vcmp.ge.f32.partialorder %v5746, 0.0
    %vm5811 = vcmp.ge.f32.partialorder %v5747, 0.0
    %vm5812 = vcmp.ge.f32.partialorder %v5748, 0.0
    %vm5813 = vcmp.ge.f32.partialorder %v5749, 0.0
    %vm5814 = vcmp.ge.f32.partialorder %v5750, 0.0
    %vm5815 = vcmp.ge.f32.partialorder %v5751, 0.0
    %vm5816 = vcmp.ge.f32.partialorder %v5752, 0.0
    %vm5817 = vcmp.ge.f32.partialorder %v5753, 0.0
    %vm5818 = vcmp.ge.f32.partialorder %v5754, 0.0
    %vm5819 = vcmp.ge.f32.partialorder %v5755, 0.0
    %vm5820 = vcmp.ge.f32.partialorder %v5756, 0.0
    %vm5821 = vcmp.ge.f32.partialorder %v5757, 0.0
    %vm5822 = vcmp.ge.f32.partialorder %v5758, 0.0
    %vm5823 = vcmp.ge.f32.partialorder %v5759, 0.0
    %vm5824 = vcmp.ge.f32.partialorder %v5760, 0.0
    %vm5825 = vcmp.ge.f32.partialorder %v5761, 0.0
    %vm5826 = vcmp.ge.f32.partialorder %v5762, 0.0
    %vm5827 = vcmp.ge.f32.partialorder %v5763, 0.0
    %vm5828 = vcmp.ge.f32.partialorder %v5764, 0.0
    %vm5829 = vcmp.ge.f32.partialorder %v5765, 0.0
    %vm5830 = vcmp.ge.f32.partialorder %v5766, 0.0
    %vm5831 = vcmp.ge.f32.partialorder %v5767, 0.0
    %vm5832 = vcmp.ge.f32.partialorder %v5768, 0.0
    %vm5833 = vcmp.ge.f32.partialorder %v5769, 0.0
    %vm5834 = vcmp.ge.f32.partialorder %v5770, 0.0
    %vm5835 = vcmp.ge.f32.partialorder %v5771, 0.0
    %vm5836 = vcmp.ge.f32.partialorder %v5772, 0.0
    %vm5837 = vcmp.ge.f32.partialorder %v5773, 0.0
    %vm5838 = vcmp.ge.f32.partialorder %v5774, 0.0
    %vm5839 = vcmp.ge.f32.partialorder %v5775, 0.0
    %vm5840 = vcmp.ge.f32.partialorder %v5776, 0.0
    %vm5841 = vcmp.ge.f32.partialorder %v5777, 0.0
    %vm5842 = vcmp.ge.f32.partialorder %v5778, 0.0
    %vm5843 = vcmp.ge.f32.partialorder %v5779, 0.0
    %vm5844 = vcmp.ge.f32.partialorder %v5780, 0.0
    %vm5845 = vcmp.ge.f32.partialorder %v5781, 0.0
    %vm5846 = vcmp.ge.f32.partialorder %v5782, 0.0
    %vm5847 = vcmp.ge.f32.partialorder %v5783, 0.0
    %vm5848 = vcmp.ge.f32.partialorder %v5784, 0.0
    %vm5849 = vcmp.ge.f32.partialorder %v5785, 0.0
    %vm5850 = vcmp.ge.f32.partialorder %v5786, 0.0
    %vm5851 = vcmp.ge.f32.partialorder %v5787, 0.0
    %vm5852 = vcmp.ge.f32.partialorder %v5788, 0.0
    %vm5853 = vcmp.ge.f32.partialorder %v5789, 0.0
    %v5854 = vsel %vm5790, 1.0, -1.0
    %v5855 = vsel %vm5791, 1.0, -1.0
    %v5856 = vsel %vm5792, 1.0, -1.0
    %v5857 = vsel %vm5793, 1.0, -1.0
    %v5858 = vsel %vm5794, 1.0, -1.0
    %v5859 = vsel %vm5795, 1.0, -1.0
    %v5860 = vsel %vm5796, 1.0, -1.0
    %v5861 = vsel %vm5797, 1.0, -1.0
    %v5862 = vsel %vm5798, 1.0, -1.0
    %v5863 = vsel %vm5799, 1.0, -1.0
    %v5864 = vsel %vm5800, 1.0, -1.0
    %v5865 = vsel %vm5801, 1.0, -1.0
    %v5866 = vsel %vm5802, 1.0, -1.0
    %v5867 = vsel %vm5803, 1.0, -1.0
    %v5868 = vsel %vm5804, 1.0, -1.0
    %v5869 = vsel %vm5805, 1.0, -1.0
    %v5870 = vsel %vm5806, 1.0, -1.0
    %v5871 = vsel %vm5807, 1.0, -1.0
    %v5872 = vsel %vm5808, 1.0, -1.0
    %v5873 = vsel %vm5809, 1.0, -1.0
    %v5874 = vsel %vm5810, 1.0, -1.0
    %v5875 = vsel %vm5811, 1.0, -1.0
    %v5876 = vsel %vm5812, 1.0, -1.0
    %v5877 = vsel %vm5813, 1.0, -1.0
    %v5878 = vsel %vm5814, 1.0, -1.0
    %v5879 = vsel %vm5815, 1.0, -1.0
    %v5880 = vsel %vm5816, 1.0, -1.0
    %v5881 = vsel %vm5817, 1.0, -1.0
    %v5882 = vsel %vm5818, 1.0, -1.0
    %v5883 = vsel %vm5819, 1.0, -1.0
    %v5884 = vsel %vm5820, 1.0, -1.0
    %v5885 = vsel %vm5821, 1.0, -1.0
    %v5886 = vsel %vm5822, 1.0, -1.0
    %v5887 = vsel %vm5823, 1.0, -1.0
    %v5888 = vsel %vm5824, 1.0, -1.0
    %v5889 = vsel %vm5825, 1.0, -1.0
    %v5890 = vsel %vm5826, 1.0, -1.0
    %v5891 = vsel %vm5827, 1.0, -1.0
    %v5892 = vsel %vm5828, 1.0, -1.0
    %v5893 = vsel %vm5829, 1.0, -1.0
    %v5894 = vsel %vm5830, 1.0, -1.0
    %v5895 = vsel %vm5831, 1.0, -1.0
    %v5896 = vsel %vm5832, 1.0, -1.0
    %v5897 = vsel %vm5833, 1.0, -1.0
    %v5898 = vsel %vm5834, 1.0, -1.0
    %v5899 = vsel %vm5835, 1.0, -1.0
    %v5900 = vsel %vm5836, 1.0, -1.0
    %v5901 = vsel %vm5837, 1.0, -1.0
    %v5902 = vsel %vm5838, 1.0, -1.0
    %v5903 = vsel %vm5839, 1.0, -1.0
    %v5904 = vsel %vm5840, 1.0, -1.0
    %v5905 = vsel %vm5841, 1.0, -1.0
    %v5906 = vsel %vm5842, 1.0, -1.0
    %v5907 = vsel %vm5843, 1.0, -1.0
    %v5908 = vsel %vm5844, 1.0, -1.0
    %v5909 = vsel %vm5845, 1.0, -1.0
    %v5910 = vsel %vm5846, 1.0, -1.0
    %v5911 = vsel %vm5847, 1.0, -1.0
    %v5912 = vsel %vm5848, 1.0, -1.0
    %v5913 = vsel %vm5849, 1.0, -1.0
    %v5914 = vsel %vm5850, 1.0, -1.0
    %v5915 = vsel %vm5851, 1.0, -1.0
    %v5916 = vsel %vm5852, 1.0, -1.0
    %v5917 = vsel %vm5853, 1.0, -1.0
    %v5918 = vand.u32 2147483647, %v5726
    %v5919 = vand.u32 2147483647, %v5727
    %v5920 = vand.u32 2147483647, %v5728
    %v5921 = vand.u32 2147483647, %v5729
    %v5922 = vand.u32 2147483647, %v5730
    %v5923 = vand.u32 2147483647, %v5731
    %v5924 = vand.u32 2147483647, %v5732
    %v5925 = vand.u32 2147483647, %v5733
    %v5926 = vand.u32 2147483647, %v5734
    %v5927 = vand.u32 2147483647, %v5735
    %v5928 = vand.u32 2147483647, %v5736
    %v5929 = vand.u32 2147483647, %v5737
    %v5930 = vand.u32 2147483647, %v5738
    %v5931 = vand.u32 2147483647, %v5739
    %v5932 = vand.u32 2147483647, %v5740
    %v5933 = vand.u32 2147483647, %v5741
    %v5934 = vand.u32 2147483647, %v5742
    %v5935 = vand.u32 2147483647, %v5743
    %v5936 = vand.u32 2147483647, %v5744
    %v5937 = vand.u32 2147483647, %v5745
    %v5938 = vand.u32 2147483647, %v5746
    %v5939 = vand.u32 2147483647, %v5747
    %v5940 = vand.u32 2147483647, %v5748
    %v5941 = vand.u32 2147483647, %v5749
    %v5942 = vand.u32 2147483647, %v5750
    %v5943 = vand.u32 2147483647, %v5751
    %v5944 = vand.u32 2147483647, %v5752
    %v5945 = vand.u32 2147483647, %v5753
    %v5946 = vand.u32 2147483647, %v5754
    %v5947 = vand.u32 2147483647, %v5755
    %v5948 = vand.u32 2147483647, %v5756
    %v5949 = vand.u32 2147483647, %v5757
    %v5950 = vand.u32 2147483647, %v5758
    %v5951 = vand.u32 2147483647, %v5759
    %v5952 = vand.u32 2147483647, %v5760
    %v5953 = vand.u32 2147483647, %v5761
    %v5954 = vand.u32 2147483647, %v5762
    %v5955 = vand.u32 2147483647, %v5763
    %v5956 = vand.u32 2147483647, %v5764
    %v5957 = vand.u32 2147483647, %v5765
    %v5958 = vand.u32 2147483647, %v5766
    %v5959 = vand.u32 2147483647, %v5767
    %v5960 = vand.u32 2147483647, %v5768
    %v5961 = vand.u32 2147483647, %v5769
    %v5962 = vand.u32 2147483647, %v5770
    %v5963 = vand.u32 2147483647, %v5771
    %v5964 = vand.u32 2147483647, %v5772
    %v5965 = vand.u32 2147483647, %v5773
    %v5966 = vand.u32 2147483647, %v5774
    %v5967 = vand.u32 2147483647, %v5775
    %v5968 = vand.u32 2147483647, %v5776
    %v5969 = vand.u32 2147483647, %v5777
    %v5970 = vand.u32 2147483647, %v5778
    %v5971 = vand.u32 2147483647, %v5779
    %v5972 = vand.u32 2147483647, %v5780
    %v5973 = vand.u32 2147483647, %v5781
    %v5974 = vand.u32 2147483647, %v5782
    %v5975 = vand.u32 2147483647, %v5783
    %v5976 = vand.u32 2147483647, %v5784
    %v5977 = vand.u32 2147483647, %v5785
    %v5978 = vand.u32 2147483647, %v5786
    %v5979 = vand.u32 2147483647, %v5787
    %v5980 = vand.u32 2147483647, %v5788
    %v5981 = vand.u32 2147483647, %v5789
    %v5982 = vmul.f32 %v5918, 0.3275911
    %v5983 = vmul.f32 %v5919, 0.3275911
    %v5984 = vmul.f32 %v5920, 0.3275911
    %v5985 = vmul.f32 %v5921, 0.3275911
    %v5986 = vmul.f32 %v5922, 0.3275911
    %v5987 = vmul.f32 %v5923, 0.3275911
    %v5988 = vmul.f32 %v5924, 0.3275911
    %v5989 = vmul.f32 %v5925, 0.3275911
    %v5990 = vmul.f32 %v5926, 0.3275911
    %v5991 = vmul.f32 %v5927, 0.3275911
    %v5992 = vmul.f32 %v5928, 0.3275911
    %v5993 = vmul.f32 %v5929, 0.3275911
    %v5994 = vmul.f32 %v5930, 0.3275911
    %v5995 = vmul.f32 %v5931, 0.3275911
    %v5996 = vmul.f32 %v5932, 0.3275911
    %v5997 = vmul.f32 %v5933, 0.3275911
    %v5998 = vmul.f32 %v5934, 0.3275911
    %v5999 = vmul.f32 %v5935, 0.3275911
    %v6000 = vmul.f32 %v5936, 0.3275911
    %v6001 = vmul.f32 %v5937, 0.3275911
    %v6002 = vmul.f32 %v5938, 0.3275911
    %v6003 = vmul.f32 %v5939, 0.3275911
    %v6004 = vmul.f32 %v5940, 0.3275911
    %v6005 = vmul.f32 %v5941, 0.3275911
    %v6006 = vmul.f32 %v5942, 0.3275911
    %v6007 = vmul.f32 %v5943, 0.3275911
    %v6008 = vmul.f32 %v5944, 0.3275911
    %v6009 = vmul.f32 %v5945, 0.3275911
    %v6010 = vmul.f32 %v5946, 0.3275911
    %v6011 = vmul.f32 %v5947, 0.3275911
    %v6012 = vmul.f32 %v5948, 0.3275911
    %v6013 = vmul.f32 %v5949, 0.3275911
    %v6014 = vmul.f32 %v5950, 0.3275911
    %v6015 = vmul.f32 %v5951, 0.3275911
    %v6016 = vmul.f32 %v5952, 0.3275911
    %v6017 = vmul.f32 %v5953, 0.3275911
    %v6018 = vmul.f32 %v5954, 0.3275911
    %v6019 = vmul.f32 %v5955, 0.3275911
    %v6020 = vmul.f32 %v5956, 0.3275911
    %v6021 = vmul.f32 %v5957, 0.3275911
    %v6022 = vmul.f32 %v5958, 0.3275911
    %v6023 = vmul.f32 %v5959, 0.3275911
    %v6024 = vmul.f32 %v5960, 0.3275911
    %v6025 = vmul.f32 %v5961, 0.3275911
    %v6026 = vmul.f32 %v5962, 0.3275911
    %v6027 = vmul.f32 %v5963, 0.3275911
    %v6028 = vmul.f32 %v5964, 0.3275911
    %v6029 = vmul.f32 %v5965, 0.3275911
    %v6030 = vmul.f32 %v5966, 0.3275911
    %v6031 = vmul.f32 %v5967, 0.3275911
    %v6032 = vmul.f32 %v5968, 0.3275911
    %v6033 = vmul.f32 %v5969, 0.3275911
    %v6034 = vmul.f32 %v5970, 0.3275911
    %v6035 = vmul.f32 %v5971, 0.3275911
    %v6036 = vmul.f32 %v5972, 0.3275911
    %v6037 = vmul.f32 %v5973, 0.3275911
    %v6038 = vmul.f32 %v5974, 0.3275911
    %v6039 = vmul.f32 %v5975, 0.3275911
    %v6040 = vmul.f32 %v5976, 0.3275911
    %v6041 = vmul.f32 %v5977, 0.3275911
    %v6042 = vmul.f32 %v5978, 0.3275911
    %v6043 = vmul.f32 %v5979, 0.3275911
    %v6044 = vmul.f32 %v5980, 0.3275911
    %v6045 = vmul.f32 %v5981, 0.3275911
    %v6046 = vadd.f32 %v5982, 1.0
    %v6047 = vadd.f32 %v5983, 1.0
    %v6048 = vadd.f32 %v5984, 1.0
    %v6049 = vadd.f32 %v5985, 1.0
    %v6050 = vadd.f32 %v5986, 1.0
    %v6051 = vadd.f32 %v5987, 1.0
    %v6052 = vadd.f32 %v5988, 1.0
    %v6053 = vadd.f32 %v5989, 1.0
    %v6054 = vadd.f32 %v5990, 1.0
    %v6055 = vadd.f32 %v5991, 1.0
    %v6056 = vadd.f32 %v5992, 1.0
    %v6057 = vadd.f32 %v5993, 1.0
    %v6058 = vadd.f32 %v5994, 1.0
    %v6059 = vadd.f32 %v5995, 1.0
    %v6060 = vadd.f32 %v5996, 1.0
    %v6061 = vadd.f32 %v5997, 1.0
    %v6062 = vadd.f32 %v5998, 1.0
    %v6063 = vadd.f32 %v5999, 1.0
    %v6064 = vadd.f32 %v6000, 1.0
    %v6065 = vadd.f32 %v6001, 1.0
    %v6066 = vadd.f32 %v6002, 1.0
    %v6067 = vadd.f32 %v6003, 1.0
    %v6068 = vadd.f32 %v6004, 1.0
    %v6069 = vadd.f32 %v6005, 1.0
    %v6070 = vadd.f32 %v6006, 1.0
    %v6071 = vadd.f32 %v6007, 1.0
    %v6072 = vadd.f32 %v6008, 1.0
    %v6073 = vadd.f32 %v6009, 1.0
    %v6074 = vadd.f32 %v6010, 1.0
    %v6075 = vadd.f32 %v6011, 1.0
    %v6076 = vadd.f32 %v6012, 1.0
    %v6077 = vadd.f32 %v6013, 1.0
    %v6078 = vadd.f32 %v6014, 1.0
    %v6079 = vadd.f32 %v6015, 1.0
    %v6080 = vadd.f32 %v6016, 1.0
    %v6081 = vadd.f32 %v6017, 1.0
    %v6082 = vadd.f32 %v6018, 1.0
    %v6083 = vadd.f32 %v6019, 1.0
    %v6084 = vadd.f32 %v6020, 1.0
    %v6085 = vadd.f32 %v6021, 1.0
    %v6086 = vadd.f32 %v6022, 1.0
    %v6087 = vadd.f32 %v6023, 1.0
    %v6088 = vadd.f32 %v6024, 1.0
    %v6089 = vadd.f32 %v6025, 1.0
    %v6090 = vadd.f32 %v6026, 1.0
    %v6091 = vadd.f32 %v6027, 1.0
    %v6092 = vadd.f32 %v6028, 1.0
    %v6093 = vadd.f32 %v6029, 1.0
    %v6094 = vadd.f32 %v6030, 1.0
    %v6095 = vadd.f32 %v6031, 1.0
    %v6096 = vadd.f32 %v6032, 1.0
    %v6097 = vadd.f32 %v6033, 1.0
    %v6098 = vadd.f32 %v6034, 1.0
    %v6099 = vadd.f32 %v6035, 1.0
    %v6100 = vadd.f32 %v6036, 1.0
    %v6101 = vadd.f32 %v6037, 1.0
    %v6102 = vadd.f32 %v6038, 1.0
    %v6103 = vadd.f32 %v6039, 1.0
    %v6104 = vadd.f32 %v6040, 1.0
    %v6105 = vadd.f32 %v6041, 1.0
    %v6106 = vadd.f32 %v6042, 1.0
    %v6107 = vadd.f32 %v6043, 1.0
    %v6108 = vadd.f32 %v6044, 1.0
    %v6109 = vadd.f32 %v6045, 1.0
    %v6110 = vrcp.pop %v6046
    %v6111 = vmul.f32 1.0, %v6110
    %v6112 = vrcp.pop %v6047
    %v6113 = vmul.f32 1.0, %v6112
    %v6114 = vrcp.pop %v6048
    %v6115 = vmul.f32 1.0, %v6114
    %v6116 = vrcp.pop %v6049
    %v6117 = vmul.f32 1.0, %v6116
    %v6118 = vrcp.pop %v6050
    %v6119 = vmul.f32 1.0, %v6118
    %v6120 = vrcp.pop %v6051
    %v6121 = vmul.f32 1.0, %v6120
    %v6122 = vrcp.pop %v6052
    %v6123 = vmul.f32 1.0, %v6122
    %v6124 = vrcp.pop %v6053
    %v6125 = vmul.f32 1.0, %v6124
    %v6126 = vrcp.pop %v6054
    %v6127 = vmul.f32 1.0, %v6126
    %v6128 = vrcp.pop %v6055
    %v6129 = vmul.f32 1.0, %v6128
    %v6130 = vrcp.pop %v6056
    %v6131 = vmul.f32 1.0, %v6130
    %v6132 = vrcp.pop %v6057
    %v6133 = vmul.f32 1.0, %v6132
    %v6134 = vrcp.pop %v6058
    %v6135 = vmul.f32 1.0, %v6134
    %v6136 = vrcp.pop %v6059
    %v6137 = vmul.f32 1.0, %v6136
    %v6138 = vrcp.pop %v6060
    %v6139 = vmul.f32 1.0, %v6138
    %v6140 = vrcp.pop %v6061
    %v6141 = vmul.f32 1.0, %v6140
    %v6142 = vrcp.pop %v6062
    %v6143 = vmul.f32 1.0, %v6142
    %v6144 = vrcp.pop %v6063
    %v6145 = vmul.f32 1.0, %v6144
    %v6146 = vrcp.pop %v6064
    %v6147 = vmul.f32 1.0, %v6146
    %v6148 = vrcp.pop %v6065
    %v6149 = vmul.f32 1.0, %v6148
    %v6150 = vrcp.pop %v6066
    %v6151 = vmul.f32 1.0, %v6150
    %v6152 = vrcp.pop %v6067
    %v6153 = vmul.f32 1.0, %v6152
    %v6154 = vrcp.pop %v6068
    %v6155 = vmul.f32 1.0, %v6154
    %v6156 = vrcp.pop %v6069
    %v6157 = vmul.f32 1.0, %v6156
    %v6158 = vrcp.pop %v6070
    %v6159 = vmul.f32 1.0, %v6158
    %v6160 = vrcp.pop %v6071
    %v6161 = vmul.f32 1.0, %v6160
    %v6162 = vrcp.pop %v6072
    %v6163 = vmul.f32 1.0, %v6162
    %v6164 = vrcp.pop %v6073
    %v6165 = vmul.f32 1.0, %v6164
    %v6166 = vrcp.pop %v6074
    %v6167 = vmul.f32 1.0, %v6166
    %v6168 = vrcp.pop %v6075
    %v6169 = vmul.f32 1.0, %v6168
    %v6170 = vrcp.pop %v6076
    %v6171 = vmul.f32 1.0, %v6170
    %v6172 = vrcp.pop %v6077
    %v6173 = vmul.f32 1.0, %v6172
    %v6174 = vrcp.pop %v6078
    %v6175 = vmul.f32 1.0, %v6174
    %v6176 = vrcp.pop %v6079
    %v6177 = vmul.f32 1.0, %v6176
    %v6178 = vrcp.pop %v6080
    %v6179 = vmul.f32 1.0, %v6178
    %v6180 = vrcp.pop %v6081
    %v6181 = vmul.f32 1.0, %v6180
    %v6182 = vrcp.pop %v6082
    %v6183 = vmul.f32 1.0, %v6182
    %v6184 = vrcp.pop %v6083
    %v6185 = vmul.f32 1.0, %v6184
    %v6186 = vrcp.pop %v6084
    %v6187 = vmul.f32 1.0, %v6186
    %v6188 = vrcp.pop %v6085
    %v6189 = vmul.f32 1.0, %v6188
    %v6190 = vrcp.pop %v6086
    %v6191 = vmul.f32 1.0, %v6190
    %v6192 = vrcp.pop %v6087
    %v6193 = vmul.f32 1.0, %v6192
    %v6194 = vrcp.pop %v6088
    %v6195 = vmul.f32 1.0, %v6194
    %v6196 = vrcp.pop %v6089
    %v6197 = vmul.f32 1.0, %v6196
    %v6198 = vrcp.pop %v6090
    %v6199 = vmul.f32 1.0, %v6198
    %v6200 = vrcp.pop %v6091
    %v6201 = vmul.f32 1.0, %v6200
    %v6202 = vrcp.pop %v6092
    %v6203 = vmul.f32 1.0, %v6202
    %v6204 = vrcp.pop %v6093
    %v6205 = vmul.f32 1.0, %v6204
    %v6206 = vrcp.pop %v6094
    %v6207 = vmul.f32 1.0, %v6206
    %v6208 = vrcp.pop %v6095
    %v6209 = vmul.f32 1.0, %v6208
    %v6210 = vrcp.pop %v6096
    %v6211 = vmul.f32 1.0, %v6210
    %v6212 = vrcp.pop %v6097
    %v6213 = vmul.f32 1.0, %v6212
    %v6214 = vrcp.pop %v6098
    %v6215 = vmul.f32 1.0, %v6214
    %v6216 = vrcp.pop %v6099
    %v6217 = vmul.f32 1.0, %v6216
    %v6218 = vrcp.pop %v6100
    %v6219 = vmul.f32 1.0, %v6218
    %v6220 = vrcp.pop %v6101
    %v6221 = vmul.f32 1.0, %v6220
    %v6222 = vrcp.pop %v6102
    %v6223 = vmul.f32 1.0, %v6222
    %v6224 = vrcp.pop %v6103
    %v6225 = vmul.f32 1.0, %v6224
    %v6226 = vrcp.pop %v6104
    %v6227 = vmul.f32 1.0, %v6226
    %v6228 = vrcp.pop %v6105
    %v6229 = vmul.f32 1.0, %v6228
    %v6230 = vrcp.pop %v6106
    %v6231 = vmul.f32 1.0, %v6230
    %v6232 = vrcp.pop %v6107
    %v6233 = vmul.f32 1.0, %v6232
    %v6234 = vrcp.pop %v6108
    %v6235 = vmul.f32 1.0, %v6234
    %v6236 = vrcp.pop %v6109
    %v6237 = vmul.f32 1.0, %v6236
    %v6238 = vmul.f32 %v6111, 1.0614054
    %v6239 = vmul.f32 %v6113, 1.0614054
    %v6240 = vmul.f32 %v6115, 1.0614054
    %v6241 = vmul.f32 %v6117, 1.0614054
    %v6242 = vmul.f32 %v6119, 1.0614054
    %v6243 = vmul.f32 %v6121, 1.0614054
    %v6244 = vmul.f32 %v6123, 1.0614054
    %v6245 = vmul.f32 %v6125, 1.0614054
    %v6246 = vmul.f32 %v6127, 1.0614054
    %v6247 = vmul.f32 %v6129, 1.0614054
    %v6248 = vmul.f32 %v6131, 1.0614054
    %v6249 = vmul.f32 %v6133, 1.0614054
    %v6250 = vmul.f32 %v6135, 1.0614054
    %v6251 = vmul.f32 %v6137, 1.0614054
    %v6252 = vmul.f32 %v6139, 1.0614054
    %v6253 = vmul.f32 %v6141, 1.0614054
    %v6254 = vmul.f32 %v6143, 1.0614054
    %v6255 = vmul.f32 %v6145, 1.0614054
    %v6256 = vmul.f32 %v6147, 1.0614054
    %v6257 = vmul.f32 %v6149, 1.0614054
    %v6258 = vmul.f32 %v6151, 1.0614054
    %v6259 = vmul.f32 %v6153, 1.0614054
    %v6260 = vmul.f32 %v6155, 1.0614054
    %v6261 = vmul.f32 %v6157, 1.0614054
    %v6262 = vmul.f32 %v6159, 1.0614054
    %v6263 = vmul.f32 %v6161, 1.0614054
    %v6264 = vmul.f32 %v6163, 1.0614054
    %v6265 = vmul.f32 %v6165, 1.0614054
    %v6266 = vmul.f32 %v6167, 1.0614054
    %v6267 = vmul.f32 %v6169, 1.0614054
    %v6268 = vmul.f32 %v6171, 1.0614054
    %v6269 = vmul.f32 %v6173, 1.0614054
    %v6270 = vmul.f32 %v6175, 1.0614054
    %v6271 = vmul.f32 %v6177, 1.0614054
    %v6272 = vmul.f32 %v6179, 1.0614054
    %v6273 = vmul.f32 %v6181, 1.0614054
    %v6274 = vmul.f32 %v6183, 1.0614054
    %v6275 = vmul.f32 %v6185, 1.0614054
    %v6276 = vmul.f32 %v6187, 1.0614054
    %v6277 = vmul.f32 %v6189, 1.0614054
    %v6278 = vmul.f32 %v6191, 1.0614054
    %v6279 = vmul.f32 %v6193, 1.0614054
    %v6280 = vmul.f32 %v6195, 1.0614054
    %v6281 = vmul.f32 %v6197, 1.0614054
    %v6282 = vmul.f32 %v6199, 1.0614054
    %v6283 = vmul.f32 %v6201, 1.0614054
    %v6284 = vmul.f32 %v6203, 1.0614054
    %v6285 = vmul.f32 %v6205, 1.0614054
    %v6286 = vmul.f32 %v6207, 1.0614054
    %v6287 = vmul.f32 %v6209, 1.0614054
    %v6288 = vmul.f32 %v6211, 1.0614054
    %v6289 = vmul.f32 %v6213, 1.0614054
    %v6290 = vmul.f32 %v6215, 1.0614054
    %v6291 = vmul.f32 %v6217, 1.0614054
    %v6292 = vmul.f32 %v6219, 1.0614054
    %v6293 = vmul.f32 %v6221, 1.0614054
    %v6294 = vmul.f32 %v6223, 1.0614054
    %v6295 = vmul.f32 %v6225, 1.0614054
    %v6296 = vmul.f32 %v6227, 1.0614054
    %v6297 = vmul.f32 %v6229, 1.0614054
    %v6298 = vmul.f32 %v6231, 1.0614054
    %v6299 = vmul.f32 %v6233, 1.0614054
    %v6300 = vmul.f32 %v6235, 1.0614054
    %v6301 = vmul.f32 %v6237, 1.0614054
    %v6302 = vadd.f32 %v6238, -1.4531521
    %v6303 = vadd.f32 %v6239, -1.4531521
    %v6304 = vadd.f32 %v6240, -1.4531521
    %v6305 = vadd.f32 %v6241, -1.4531521
    %v6306 = vadd.f32 %v6242, -1.4531521
    %v6307 = vadd.f32 %v6243, -1.4531521
    %v6308 = vadd.f32 %v6244, -1.4531521
    %v6309 = vadd.f32 %v6245, -1.4531521
    %v6310 = vadd.f32 %v6246, -1.4531521
    %v6311 = vadd.f32 %v6247, -1.4531521
    %v6312 = vadd.f32 %v6248, -1.4531521
    %v6313 = vadd.f32 %v6249, -1.4531521
    %v6314 = vadd.f32 %v6250, -1.4531521
    %v6315 = vadd.f32 %v6251, -1.4531521
    %v6316 = vadd.f32 %v6252, -1.4531521
    %v6317 = vadd.f32 %v6253, -1.4531521
    %v6318 = vadd.f32 %v6254, -1.4531521
    %v6319 = vadd.f32 %v6255, -1.4531521
    %v6320 = vadd.f32 %v6256, -1.4531521
    %v6321 = vadd.f32 %v6257, -1.4531521
    %v6322 = vadd.f32 %v6258, -1.4531521
    %v6323 = vadd.f32 %v6259, -1.4531521
    %v6324 = vadd.f32 %v6260, -1.4531521
    %v6325 = vadd.f32 %v6261, -1.4531521
    %v6326 = vadd.f32 %v6262, -1.4531521
    %v6327 = vadd.f32 %v6263, -1.4531521
    %v6328 = vadd.f32 %v6264, -1.4531521
    %v6329 = vadd.f32 %v6265, -1.4531521
    %v6330 = vadd.f32 %v6266, -1.4531521
    %v6331 = vadd.f32 %v6267, -1.4531521
    %v6332 = vadd.f32 %v6268, -1.4531521
    %v6333 = vadd.f32 %v6269, -1.4531521
    %v6334 = vadd.f32 %v6270, -1.4531521
    %v6335 = vadd.f32 %v6271, -1.4531521
    %v6336 = vadd.f32 %v6272, -1.4531521
    %v6337 = vadd.f32 %v6273, -1.4531521
    %v6338 = vadd.f32 %v6274, -1.4531521
    %v6339 = vadd.f32 %v6275, -1.4531521
    %v6340 = vadd.f32 %v6276, -1.4531521
    %v6341 = vadd.f32 %v6277, -1.4531521
    %v6342 = vadd.f32 %v6278, -1.4531521
    %v6343 = vadd.f32 %v6279, -1.4531521
    %v6344 = vadd.f32 %v6280, -1.4531521
    %v6345 = vadd.f32 %v6281, -1.4531521
    %v6346 = vadd.f32 %v6282, -1.4531521
    %v6347 = vadd.f32 %v6283, -1.4531521
    %v6348 = vadd.f32 %v6284, -1.4531521
    %v6349 = vadd.f32 %v6285, -1.4531521
    %v6350 = vadd.f32 %v6286, -1.4531521
    %v6351 = vadd.f32 %v6287, -1.4531521
    %v6352 = vadd.f32 %v6288, -1.4531521
    %v6353 = vadd.f32 %v6289, -1.4531521
    %v6354 = vadd.f32 %v6290, -1.4531521
    %v6355 = vadd.f32 %v6291, -1.4531521
    %v6356 = vadd.f32 %v6292, -1.4531521
    %v6357 = vadd.f32 %v6293, -1.4531521
    %v6358 = vadd.f32 %v6294, -1.4531521
    %v6359 = vadd.f32 %v6295, -1.4531521
    %v6360 = vadd.f32 %v6296, -1.4531521
    %v6361 = vadd.f32 %v6297, -1.4531521
    %v6362 = vadd.f32 %v6298, -1.4531521
    %v6363 = vadd.f32 %v6299, -1.4531521
    %v6364 = vadd.f32 %v6300, -1.4531521
    %v6365 = vadd.f32 %v6301, -1.4531521
    %v6366 = vmul.f32 %v6302, %v6111
    %v6367 = vmul.f32 %v6303, %v6113
    %v6368 = vmul.f32 %v6304, %v6115
    %v6369 = vmul.f32 %v6305, %v6117
    %v6370 = vmul.f32 %v6306, %v6119
    %v6371 = vmul.f32 %v6307, %v6121
    %v6372 = vmul.f32 %v6308, %v6123
    %v6373 = vmul.f32 %v6309, %v6125
    %v6374 = vmul.f32 %v6310, %v6127
    %v6375 = vmul.f32 %v6311, %v6129
    %v6376 = vmul.f32 %v6312, %v6131
    %v6377 = vmul.f32 %v6313, %v6133
    %v6378 = vmul.f32 %v6314, %v6135
    %v6379 = vmul.f32 %v6315, %v6137
    %v6380 = vmul.f32 %v6316, %v6139
    %v6381 = vmul.f32 %v6317, %v6141
    %v6382 = vmul.f32 %v6318, %v6143
    %v6383 = vmul.f32 %v6319, %v6145
    %v6384 = vmul.f32 %v6320, %v6147
    %v6385 = vmul.f32 %v6321, %v6149
    %v6386 = vmul.f32 %v6322, %v6151
    %v6387 = vmul.f32 %v6323, %v6153
    %v6388 = vmul.f32 %v6324, %v6155
    %v6389 = vmul.f32 %v6325, %v6157
    %v6390 = vmul.f32 %v6326, %v6159
    %v6391 = vmul.f32 %v6327, %v6161
    %v6392 = vmul.f32 %v6328, %v6163
    %v6393 = vmul.f32 %v6329, %v6165
    %v6394 = vmul.f32 %v6330, %v6167
    %v6395 = vmul.f32 %v6331, %v6169
    %v6396 = vmul.f32 %v6332, %v6171
    %v6397 = vmul.f32 %v6333, %v6173
    %v6398 = vmul.f32 %v6334, %v6175
    %v6399 = vmul.f32 %v6335, %v6177
    %v6400 = vmul.f32 %v6336, %v6179
    %v6401 = vmul.f32 %v6337, %v6181
    %v6402 = vmul.f32 %v6338, %v6183
    %v6403 = vmul.f32 %v6339, %v6185
    %v6404 = vmul.f32 %v6340, %v6187
    %v6405 = vmul.f32 %v6341, %v6189
    %v6406 = vmul.f32 %v6342, %v6191
    %v6407 = vmul.f32 %v6343, %v6193
    %v6408 = vmul.f32 %v6344, %v6195
    %v6409 = vmul.f32 %v6345, %v6197
    %v6410 = vmul.f32 %v6346, %v6199
    %v6411 = vmul.f32 %v6347, %v6201
    %v6412 = vmul.f32 %v6348, %v6203
    %v6413 = vmul.f32 %v6349, %v6205
    %v6414 = vmul.f32 %v6350, %v6207
    %v6415 = vmul.f32 %v6351, %v6209
    %v6416 = vmul.f32 %v6352, %v6211
    %v6417 = vmul.f32 %v6353, %v6213
    %v6418 = vmul.f32 %v6354, %v6215
    %v6419 = vmul.f32 %v6355, %v6217
    %v6420 = vmul.f32 %v6356, %v6219
    %v6421 = vmul.f32 %v6357, %v6221
    %v6422 = vmul.f32 %v6358, %v6223
    %v6423 = vmul.f32 %v6359, %v6225
    %v6424 = vmul.f32 %v6360, %v6227
    %v6425 = vmul.f32 %v6361, %v6229
    %v6426 = vmul.f32 %v6362, %v6231
    %v6427 = vmul.f32 %v6363, %v6233
    %v6428 = vmul.f32 %v6364, %v6235
    %v6429 = vmul.f32 %v6365, %v6237
    %v6430 = vadd.f32 %v6366, 1.4214138
    %v6431 = vadd.f32 %v6367, 1.4214138
    %v6432 = vadd.f32 %v6368, 1.4214138
    %v6433 = vadd.f32 %v6369, 1.4214138
    %v6434 = vadd.f32 %v6370, 1.4214138
    %v6435 = vadd.f32 %v6371, 1.4214138
    %v6436 = vadd.f32 %v6372, 1.4214138
    %v6437 = vadd.f32 %v6373, 1.4214138
    %v6438 = vadd.f32 %v6374, 1.4214138
    %v6439 = vadd.f32 %v6375, 1.4214138
    %v6440 = vadd.f32 %v6376, 1.4214138
    %v6441 = vadd.f32 %v6377, 1.4214138
    %v6442 = vadd.f32 %v6378, 1.4214138
    %v6443 = vadd.f32 %v6379, 1.4214138
    %v6444 = vadd.f32 %v6380, 1.4214138
    %v6445 = vadd.f32 %v6381, 1.4214138
    %v6446 = vadd.f32 %v6382, 1.4214138
    %v6447 = vadd.f32 %v6383, 1.4214138
    %v6448 = vadd.f32 %v6384, 1.4214138
    %v6449 = vadd.f32 %v6385, 1.4214138
    %v6450 = vadd.f32 %v6386, 1.4214138
    %v6451 = vadd.f32 %v6387, 1.4214138
    %v6452 = vadd.f32 %v6388, 1.4214138
    %v6453 = vadd.f32 %v6389, 1.4214138
    %v6454 = vadd.f32 %v6390, 1.4214138
    %v6455 = vadd.f32 %v6391, 1.4214138
    %v6456 = vadd.f32 %v6392, 1.4214138
    %v6457 = vadd.f32 %v6393, 1.4214138
    %v6458 = vadd.f32 %v6394, 1.4214138
    %v6459 = vadd.f32 %v6395, 1.4214138
    %v6460 = vadd.f32 %v6396, 1.4214138
    %v6461 = vadd.f32 %v6397, 1.4214138
    %v6462 = vadd.f32 %v6398, 1.4214138
    %v6463 = vadd.f32 %v6399, 1.4214138
    %v6464 = vadd.f32 %v6400, 1.4214138
    %v6465 = vadd.f32 %v6401, 1.4214138
    %v6466 = vadd.f32 %v6402, 1.4214138
    %v6467 = vadd.f32 %v6403, 1.4214138
    %v6468 = vadd.f32 %v6404, 1.4214138
    %v6469 = vadd.f32 %v6405, 1.4214138
    %v6470 = vadd.f32 %v6406, 1.4214138
    %v6471 = vadd.f32 %v6407, 1.4214138
    %v6472 = vadd.f32 %v6408, 1.4214138
    %v6473 = vadd.f32 %v6409, 1.4214138
    %v6474 = vadd.f32 %v6410, 1.4214138
    %v6475 = vadd.f32 %v6411, 1.4214138
    %v6476 = vadd.f32 %v6412, 1.4214138
    %v6477 = vadd.f32 %v6413, 1.4214138
    %v6478 = vadd.f32 %v6414, 1.4214138
    %v6479 = vadd.f32 %v6415, 1.4214138
    %v6480 = vadd.f32 %v6416, 1.4214138
    %v6481 = vadd.f32 %v6417, 1.4214138
    %v6482 = vadd.f32 %v6418, 1.4214138
    %v6483 = vadd.f32 %v6419, 1.4214138
    %v6484 = vadd.f32 %v6420, 1.4214138
    %v6485 = vadd.f32 %v6421, 1.4214138
    %v6486 = vadd.f32 %v6422, 1.4214138
    %v6487 = vadd.f32 %v6423, 1.4214138
    %v6488 = vadd.f32 %v6424, 1.4214138
    %v6489 = vadd.f32 %v6425, 1.4214138
    %v6490 = vadd.f32 %v6426, 1.4214138
    %v6491 = vadd.f32 %v6427, 1.4214138
    %v6492 = vadd.f32 %v6428, 1.4214138
    %v6493 = vadd.f32 %v6429, 1.4214138
    %v6494 = vmul.f32 %v6430, %v6111
    %v6495 = vmul.f32 %v6431, %v6113
    %v6496 = vmul.f32 %v6432, %v6115
    %v6497 = vmul.f32 %v6433, %v6117
    %v6498 = vmul.f32 %v6434, %v6119
    %v6499 = vmul.f32 %v6435, %v6121
    %v6500 = vmul.f32 %v6436, %v6123
    %v6501 = vmul.f32 %v6437, %v6125
    %v6502 = vmul.f32 %v6438, %v6127
    %v6503 = vmul.f32 %v6439, %v6129
    %v6504 = vmul.f32 %v6440, %v6131
    %v6505 = vmul.f32 %v6441, %v6133
    %v6506 = vmul.f32 %v6442, %v6135
    %v6507 = vmul.f32 %v6443, %v6137
    %v6508 = vmul.f32 %v6444, %v6139
    %v6509 = vmul.f32 %v6445, %v6141
    %v6510 = vmul.f32 %v6446, %v6143
    %v6511 = vmul.f32 %v6447, %v6145
    %v6512 = vmul.f32 %v6448, %v6147
    %v6513 = vmul.f32 %v6449, %v6149
    %v6514 = vmul.f32 %v6450, %v6151
    %v6515 = vmul.f32 %v6451, %v6153
    %v6516 = vmul.f32 %v6452, %v6155
    %v6517 = vmul.f32 %v6453, %v6157
    %v6518 = vmul.f32 %v6454, %v6159
    %v6519 = vmul.f32 %v6455, %v6161
    %v6520 = vmul.f32 %v6456, %v6163
    %v6521 = vmul.f32 %v6457, %v6165
    %v6522 = vmul.f32 %v6458, %v6167
    %v6523 = vmul.f32 %v6459, %v6169
    %v6524 = vmul.f32 %v6460, %v6171
    %v6525 = vmul.f32 %v6461, %v6173
    %v6526 = vmul.f32 %v6462, %v6175
    %v6527 = vmul.f32 %v6463, %v6177
    %v6528 = vmul.f32 %v6464, %v6179
    %v6529 = vmul.f32 %v6465, %v6181
    %v6530 = vmul.f32 %v6466, %v6183
    %v6531 = vmul.f32 %v6467, %v6185
    %v6532 = vmul.f32 %v6468, %v6187
    %v6533 = vmul.f32 %v6469, %v6189
    %v6534 = vmul.f32 %v6470, %v6191
    %v6535 = vmul.f32 %v6471, %v6193
    %v6536 = vmul.f32 %v6472, %v6195
    %v6537 = vmul.f32 %v6473, %v6197
    %v6538 = vmul.f32 %v6474, %v6199
    %v6539 = vmul.f32 %v6475, %v6201
    %v6540 = vmul.f32 %v6476, %v6203
    %v6541 = vmul.f32 %v6477, %v6205
    %v6542 = vmul.f32 %v6478, %v6207
    %v6543 = vmul.f32 %v6479, %v6209
    %v6544 = vmul.f32 %v6480, %v6211
    %v6545 = vmul.f32 %v6481, %v6213
    %v6546 = vmul.f32 %v6482, %v6215
    %v6547 = vmul.f32 %v6483, %v6217
    %v6548 = vmul.f32 %v6484, %v6219
    %v6549 = vmul.f32 %v6485, %v6221
    %v6550 = vmul.f32 %v6486, %v6223
    %v6551 = vmul.f32 %v6487, %v6225
    %v6552 = vmul.f32 %v6488, %v6227
    %v6553 = vmul.f32 %v6489, %v6229
    %v6554 = vmul.f32 %v6490, %v6231
    %v6555 = vmul.f32 %v6491, %v6233
    %v6556 = vmul.f32 %v6492, %v6235
    %v6557 = vmul.f32 %v6493, %v6237
    %v6558 = vadd.f32 %v6494, -0.28449672
    %v6559 = vadd.f32 %v6495, -0.28449672
    %v6560 = vadd.f32 %v6496, -0.28449672
    %v6561 = vadd.f32 %v6497, -0.28449672
    %v6562 = vadd.f32 %v6498, -0.28449672
    %v6563 = vadd.f32 %v6499, -0.28449672
    %v6564 = vadd.f32 %v6500, -0.28449672
    %v6565 = vadd.f32 %v6501, -0.28449672
    %v6566 = vadd.f32 %v6502, -0.28449672
    %v6567 = vadd.f32 %v6503, -0.28449672
    %v6568 = vadd.f32 %v6504, -0.28449672
    %v6569 = vadd.f32 %v6505, -0.28449672
    %v6570 = vadd.f32 %v6506, -0.28449672
    %v6571 = vadd.f32 %v6507, -0.28449672
    %v6572 = vadd.f32 %v6508, -0.28449672
    %v6573 = vadd.f32 %v6509, -0.28449672
    %v6574 = vadd.f32 %v6510, -0.28449672
    %v6575 = vadd.f32 %v6511, -0.28449672
    %v6576 = vadd.f32 %v6512, -0.28449672
    %v6577 = vadd.f32 %v6513, -0.28449672
    %v6578 = vadd.f32 %v6514, -0.28449672
    %v6579 = vadd.f32 %v6515, -0.28449672
    %v6580 = vadd.f32 %v6516, -0.28449672
    %v6581 = vadd.f32 %v6517, -0.28449672
    %v6582 = vadd.f32 %v6518, -0.28449672
    %v6583 = vadd.f32 %v6519, -0.28449672
    %v6584 = vadd.f32 %v6520, -0.28449672
    %v6585 = vadd.f32 %v6521, -0.28449672
    %v6586 = vadd.f32 %v6522, -0.28449672
    %v6587 = vadd.f32 %v6523, -0.28449672
    %v6588 = vadd.f32 %v6524, -0.28449672
    %v6589 = vadd.f32 %v6525, -0.28449672
    %v6590 = vadd.f32 %v6526, -0.28449672
    %v6591 = vadd.f32 %v6527, -0.28449672
    %v6592 = vadd.f32 %v6528, -0.28449672
    %v6593 = vadd.f32 %v6529, -0.28449672
    %v6594 = vadd.f32 %v6530, -0.28449672
    %v6595 = vadd.f32 %v6531, -0.28449672
    %v6596 = vadd.f32 %v6532, -0.28449672
    %v6597 = vadd.f32 %v6533, -0.28449672
    %v6598 = vadd.f32 %v6534, -0.28449672
    %v6599 = vadd.f32 %v6535, -0.28449672
    %v6600 = vadd.f32 %v6536, -0.28449672
    %v6601 = vadd.f32 %v6537, -0.28449672
    %v6602 = vadd.f32 %v6538, -0.28449672
    %v6603 = vadd.f32 %v6539, -0.28449672
    %v6604 = vadd.f32 %v6540, -0.28449672
    %v6605 = vadd.f32 %v6541, -0.28449672
    %v6606 = vadd.f32 %v6542, -0.28449672
    %v6607 = vadd.f32 %v6543, -0.28449672
    %v6608 = vadd.f32 %v6544, -0.28449672
    %v6609 = vadd.f32 %v6545, -0.28449672
    %v6610 = vadd.f32 %v6546, -0.28449672
    %v6611 = vadd.f32 %v6547, -0.28449672
    %v6612 = vadd.f32 %v6548, -0.28449672
    %v6613 = vadd.f32 %v6549, -0.28449672
    %v6614 = vadd.f32 %v6550, -0.28449672
    %v6615 = vadd.f32 %v6551, -0.28449672
    %v6616 = vadd.f32 %v6552, -0.28449672
    %v6617 = vadd.f32 %v6553, -0.28449672
    %v6618 = vadd.f32 %v6554, -0.28449672
    %v6619 = vadd.f32 %v6555, -0.28449672
    %v6620 = vadd.f32 %v6556, -0.28449672
    %v6621 = vadd.f32 %v6557, -0.28449672
    %v6622 = vmul.f32 %v6558, %v6111
    %v6623 = vmul.f32 %v6559, %v6113
    %v6624 = vmul.f32 %v6560, %v6115
    %v6625 = vmul.f32 %v6561, %v6117
    %v6626 = vmul.f32 %v6562, %v6119
    %v6627 = vmul.f32 %v6563, %v6121
    %v6628 = vmul.f32 %v6564, %v6123
    %v6629 = vmul.f32 %v6565, %v6125
    %v6630 = vmul.f32 %v6566, %v6127
    %v6631 = vmul.f32 %v6567, %v6129
    %v6632 = vmul.f32 %v6568, %v6131
    %v6633 = vmul.f32 %v6569, %v6133
    %v6634 = vmul.f32 %v6570, %v6135
    %v6635 = vmul.f32 %v6571, %v6137
    %v6636 = vmul.f32 %v6572, %v6139
    %v6637 = vmul.f32 %v6573, %v6141
    %v6638 = vmul.f32 %v6574, %v6143
    %v6639 = vmul.f32 %v6575, %v6145
    %v6640 = vmul.f32 %v6576, %v6147
    %v6641 = vmul.f32 %v6577, %v6149
    %v6642 = vmul.f32 %v6578, %v6151
    %v6643 = vmul.f32 %v6579, %v6153
    %v6644 = vmul.f32 %v6580, %v6155
    %v6645 = vmul.f32 %v6581, %v6157
    %v6646 = vmul.f32 %v6582, %v6159
    %v6647 = vmul.f32 %v6583, %v6161
    %v6648 = vmul.f32 %v6584, %v6163
    %v6649 = vmul.f32 %v6585, %v6165
    %v6650 = vmul.f32 %v6586, %v6167
    %v6651 = vmul.f32 %v6587, %v6169
    %v6652 = vmul.f32 %v6588, %v6171
    %v6653 = vmul.f32 %v6589, %v6173
    %v6654 = vmul.f32 %v6590, %v6175
    %v6655 = vmul.f32 %v6591, %v6177
    %v6656 = vmul.f32 %v6592, %v6179
    %v6657 = vmul.f32 %v6593, %v6181
    %v6658 = vmul.f32 %v6594, %v6183
    %v6659 = vmul.f32 %v6595, %v6185
    %v6660 = vmul.f32 %v6596, %v6187
    %v6661 = vmul.f32 %v6597, %v6189
    %v6662 = vmul.f32 %v6598, %v6191
    %v6663 = vmul.f32 %v6599, %v6193
    %v6664 = vmul.f32 %v6600, %v6195
    %v6665 = vmul.f32 %v6601, %v6197
    %v6666 = vmul.f32 %v6602, %v6199
    %v6667 = vmul.f32 %v6603, %v6201
    %v6668 = vmul.f32 %v6604, %v6203
    %v6669 = vmul.f32 %v6605, %v6205
    %v6670 = vmul.f32 %v6606, %v6207
    %v6671 = vmul.f32 %v6607, %v6209
    %v6672 = vmul.f32 %v6608, %v6211
    %v6673 = vmul.f32 %v6609, %v6213
    %v6674 = vmul.f32 %v6610, %v6215
    %v6675 = vmul.f32 %v6611, %v6217
    %v6676 = vmul.f32 %v6612, %v6219
    %v6677 = vmul.f32 %v6613, %v6221
    %v6678 = vmul.f32 %v6614, %v6223
    %v6679 = vmul.f32 %v6615, %v6225
    %v6680 = vmul.f32 %v6616, %v6227
    %v6681 = vmul.f32 %v6617, %v6229
    %v6682 = vmul.f32 %v6618, %v6231
    %v6683 = vmul.f32 %v6619, %v6233
    %v6684 = vmul.f32 %v6620, %v6235
    %v6685 = vmul.f32 %v6621, %v6237
    %v6686 = vadd.f32 %v6622, 0.2548296
    %v6687 = vadd.f32 %v6623, 0.2548296
    %v6688 = vadd.f32 %v6624, 0.2548296
    %v6689 = vadd.f32 %v6625, 0.2548296
    %v6690 = vadd.f32 %v6626, 0.2548296
    %v6691 = vadd.f32 %v6627, 0.2548296
    %v6692 = vadd.f32 %v6628, 0.2548296
    %v6693 = vadd.f32 %v6629, 0.2548296
    %v6694 = vadd.f32 %v6630, 0.2548296
    %v6695 = vadd.f32 %v6631, 0.2548296
    %v6696 = vadd.f32 %v6632, 0.2548296
    %v6697 = vadd.f32 %v6633, 0.2548296
    %v6698 = vadd.f32 %v6634, 0.2548296
    %v6699 = vadd.f32 %v6635, 0.2548296
    %v6700 = vadd.f32 %v6636, 0.2548296
    %v6701 = vadd.f32 %v6637, 0.2548296
    %v6702 = vadd.f32 %v6638, 0.2548296
    %v6703 = vadd.f32 %v6639, 0.2548296
    %v6704 = vadd.f32 %v6640, 0.2548296
    %v6705 = vadd.f32 %v6641, 0.2548296
    %v6706 = vadd.f32 %v6642, 0.2548296
    %v6707 = vadd.f32 %v6643, 0.2548296
    %v6708 = vadd.f32 %v6644, 0.2548296
    %v6709 = vadd.f32 %v6645, 0.2548296
    %v6710 = vadd.f32 %v6646, 0.2548296
    %v6711 = vadd.f32 %v6647, 0.2548296
    %v6712 = vadd.f32 %v6648, 0.2548296
    %v6713 = vadd.f32 %v6649, 0.2548296
    %v6714 = vadd.f32 %v6650, 0.2548296
    %v6715 = vadd.f32 %v6651, 0.2548296
    %v6716 = vadd.f32 %v6652, 0.2548296
    %v6717 = vadd.f32 %v6653, 0.2548296
    %v6718 = vadd.f32 %v6654, 0.2548296
    %v6719 = vadd.f32 %v6655, 0.2548296
    %v6720 = vadd.f32 %v6656, 0.2548296
    %v6721 = vadd.f32 %v6657, 0.2548296
    %v6722 = vadd.f32 %v6658, 0.2548296
    %v6723 = vadd.f32 %v6659, 0.2548296
    %v6724 = vadd.f32 %v6660, 0.2548296
    %v6725 = vadd.f32 %v6661, 0.2548296
    %v6726 = vadd.f32 %v6662, 0.2548296
    %v6727 = vadd.f32 %v6663, 0.2548296
    %v6728 = vadd.f32 %v6664, 0.2548296
    %v6729 = vadd.f32 %v6665, 0.2548296
    %v6730 = vadd.f32 %v6666, 0.2548296
    %v6731 = vadd.f32 %v6667, 0.2548296
    %v6732 = vadd.f32 %v6668, 0.2548296
    %v6733 = vadd.f32 %v6669, 0.2548296
    %v6734 = vadd.f32 %v6670, 0.2548296
    %v6735 = vadd.f32 %v6671, 0.2548296
    %v6736 = vadd.f32 %v6672, 0.2548296
    %v6737 = vadd.f32 %v6673, 0.2548296
    %v6738 = vadd.f32 %v6674, 0.2548296
    %v6739 = vadd.f32 %v6675, 0.2548296
    %v6740 = vadd.f32 %v6676, 0.2548296
    %v6741 = vadd.f32 %v6677, 0.2548296
    %v6742 = vadd.f32 %v6678, 0.2548296
    %v6743 = vadd.f32 %v6679, 0.2548296
    %v6744 = vadd.f32 %v6680, 0.2548296
    %v6745 = vadd.f32 %v6681, 0.2548296
    %v6746 = vadd.f32 %v6682, 0.2548296
    %v6747 = vadd.f32 %v6683, 0.2548296
    %v6748 = vadd.f32 %v6684, 0.2548296
    %v6749 = vadd.f32 %v6685, 0.2548296
    %v6750 = vmul.f32 %v6686, %v6111
    %v6751 = vmul.f32 %v6687, %v6113
    %v6752 = vmul.f32 %v6688, %v6115
    %v6753 = vmul.f32 %v6689, %v6117
    %v6754 = vmul.f32 %v6690, %v6119
    %v6755 = vmul.f32 %v6691, %v6121
    %v6756 = vmul.f32 %v6692, %v6123
    %v6757 = vmul.f32 %v6693, %v6125
    %v6758 = vmul.f32 %v6694, %v6127
    %v6759 = vmul.f32 %v6695, %v6129
    %v6760 = vmul.f32 %v6696, %v6131
    %v6761 = vmul.f32 %v6697, %v6133
    %v6762 = vmul.f32 %v6698, %v6135
    %v6763 = vmul.f32 %v6699, %v6137
    %v6764 = vmul.f32 %v6700, %v6139
    %v6765 = vmul.f32 %v6701, %v6141
    %v6766 = vmul.f32 %v6702, %v6143
    %v6767 = vmul.f32 %v6703, %v6145
    %v6768 = vmul.f32 %v6704, %v6147
    %v6769 = vmul.f32 %v6705, %v6149
    %v6770 = vmul.f32 %v6706, %v6151
    %v6771 = vmul.f32 %v6707, %v6153
    %v6772 = vmul.f32 %v6708, %v6155
    %v6773 = vmul.f32 %v6709, %v6157
    %v6774 = vmul.f32 %v6710, %v6159
    %v6775 = vmul.f32 %v6711, %v6161
    %v6776 = vmul.f32 %v6712, %v6163
    %v6777 = vmul.f32 %v6713, %v6165
    %v6778 = vmul.f32 %v6714, %v6167
    %v6779 = vmul.f32 %v6715, %v6169
    %v6780 = vmul.f32 %v6716, %v6171
    %v6781 = vmul.f32 %v6717, %v6173
    %v6782 = vmul.f32 %v6718, %v6175
    %v6783 = vmul.f32 %v6719, %v6177
    %v6784 = vmul.f32 %v6720, %v6179
    %v6785 = vmul.f32 %v6721, %v6181
    %v6786 = vmul.f32 %v6722, %v6183
    %v6787 = vmul.f32 %v6723, %v6185
    %v6788 = vmul.f32 %v6724, %v6187
    %v6789 = vmul.f32 %v6725, %v6189
    %v6790 = vmul.f32 %v6726, %v6191
    %v6791 = vmul.f32 %v6727, %v6193
    %v6792 = vmul.f32 %v6728, %v6195
    %v6793 = vmul.f32 %v6729, %v6197
    %v6794 = vmul.f32 %v6730, %v6199
    %v6795 = vmul.f32 %v6731, %v6201
    %v6796 = vmul.f32 %v6732, %v6203
    %v6797 = vmul.f32 %v6733, %v6205
    %v6798 = vmul.f32 %v6734, %v6207
    %v6799 = vmul.f32 %v6735, %v6209
    %v6800 = vmul.f32 %v6736, %v6211
    %v6801 = vmul.f32 %v6737, %v6213
    %v6802 = vmul.f32 %v6738, %v6215
    %v6803 = vmul.f32 %v6739, %v6217
    %v6804 = vmul.f32 %v6740, %v6219
    %v6805 = vmul.f32 %v6741, %v6221
    %v6806 = vmul.f32 %v6742, %v6223
    %v6807 = vmul.f32 %v6743, %v6225
    %v6808 = vmul.f32 %v6744, %v6227
    %v6809 = vmul.f32 %v6745, %v6229
    %v6810 = vmul.f32 %v6746, %v6231
    %v6811 = vmul.f32 %v6747, %v6233
    %v6812 = vmul.f32 %v6748, %v6235
    %v6813 = vmul.f32 %v6749, %v6237
    %v6814 = vsub.f32 0.0, %v5918
    %v6815 = vsub.f32 0.0, %v5919
    %v6816 = vsub.f32 0.0, %v5920
    %v6817 = vsub.f32 0.0, %v5921
    %v6818 = vsub.f32 0.0, %v5922
    %v6819 = vsub.f32 0.0, %v5923
    %v6820 = vsub.f32 0.0, %v5924
    %v6821 = vsub.f32 0.0, %v5925
    %v6822 = vsub.f32 0.0, %v5926
    %v6823 = vsub.f32 0.0, %v5927
    %v6824 = vsub.f32 0.0, %v5928
    %v6825 = vsub.f32 0.0, %v5929
    %v6826 = vsub.f32 0.0, %v5930
    %v6827 = vsub.f32 0.0, %v5931
    %v6828 = vsub.f32 0.0, %v5932
    %v6829 = vsub.f32 0.0, %v5933
    %v6830 = vsub.f32 0.0, %v5934
    %v6831 = vsub.f32 0.0, %v5935
    %v6832 = vsub.f32 0.0, %v5936
    %v6833 = vsub.f32 0.0, %v5937
    %v6834 = vsub.f32 0.0, %v5938
    %v6835 = vsub.f32 0.0, %v5939
    %v6836 = vsub.f32 0.0, %v5940
    %v6837 = vsub.f32 0.0, %v5941
    %v6838 = vsub.f32 0.0, %v5942
    %v6839 = vsub.f32 0.0, %v5943
    %v6840 = vsub.f32 0.0, %v5944
    %v6841 = vsub.f32 0.0, %v5945
    %v6842 = vsub.f32 0.0, %v5946
    %v6843 = vsub.f32 0.0, %v5947
    %v6844 = vsub.f32 0.0, %v5948
    %v6845 = vsub.f32 0.0, %v5949
    %v6846 = vsub.f32 0.0, %v5950
    %v6847 = vsub.f32 0.0, %v5951
    %v6848 = vsub.f32 0.0, %v5952
    %v6849 = vsub.f32 0.0, %v5953
    %v6850 = vsub.f32 0.0, %v5954
    %v6851 = vsub.f32 0.0, %v5955
    %v6852 = vsub.f32 0.0, %v5956
    %v6853 = vsub.f32 0.0, %v5957
    %v6854 = vsub.f32 0.0, %v5958
    %v6855 = vsub.f32 0.0, %v5959
    %v6856 = vsub.f32 0.0, %v5960
    %v6857 = vsub.f32 0.0, %v5961
    %v6858 = vsub.f32 0.0, %v5962
    %v6859 = vsub.f32 0.0, %v5963
    %v6860 = vsub.f32 0.0, %v5964
    %v6861 = vsub.f32 0.0, %v5965
    %v6862 = vsub.f32 0.0, %v5966
    %v6863 = vsub.f32 0.0, %v5967
    %v6864 = vsub.f32 0.0, %v5968
    %v6865 = vsub.f32 0.0, %v5969
    %v6866 = vsub.f32 0.0, %v5970
    %v6867 = vsub.f32 0.0, %v5971
    %v6868 = vsub.f32 0.0, %v5972
    %v6869 = vsub.f32 0.0, %v5973
    %v6870 = vsub.f32 0.0, %v5974
    %v6871 = vsub.f32 0.0, %v5975
    %v6872 = vsub.f32 0.0, %v5976
    %v6873 = vsub.f32 0.0, %v5977
    %v6874 = vsub.f32 0.0, %v5978
    %v6875 = vsub.f32 0.0, %v5979
    %v6876 = vsub.f32 0.0, %v5980
    %v6877 = vsub.f32 0.0, %v5981
    %v6878 = vmul.f32 %v6814, %v5918
    %v6879 = vmul.f32 %v6815, %v5919
    %v6880 = vmul.f32 %v6816, %v5920
    %v6881 = vmul.f32 %v6817, %v5921
    %v6882 = vmul.f32 %v6818, %v5922
    %v6883 = vmul.f32 %v6819, %v5923
    %v6884 = vmul.f32 %v6820, %v5924
    %v6885 = vmul.f32 %v6821, %v5925
    %v6886 = vmul.f32 %v6822, %v5926
    %v6887 = vmul.f32 %v6823, %v5927
    %v6888 = vmul.f32 %v6824, %v5928
    %v6889 = vmul.f32 %v6825, %v5929
    %v6890 = vmul.f32 %v6826, %v5930
    %v6891 = vmul.f32 %v6827, %v5931
    %v6892 = vmul.f32 %v6828, %v5932
    %v6893 = vmul.f32 %v6829, %v5933
    %v6894 = vmul.f32 %v6830, %v5934
    %v6895 = vmul.f32 %v6831, %v5935
    %v6896 = vmul.f32 %v6832, %v5936
    %v6897 = vmul.f32 %v6833, %v5937
    %v6898 = vmul.f32 %v6834, %v5938
    %v6899 = vmul.f32 %v6835, %v5939
    %v6900 = vmul.f32 %v6836, %v5940
    %v6901 = vmul.f32 %v6837, %v5941
    %v6902 = vmul.f32 %v6838, %v5942
    %v6903 = vmul.f32 %v6839, %v5943
    %v6904 = vmul.f32 %v6840, %v5944
    %v6905 = vmul.f32 %v6841, %v5945
    %v6906 = vmul.f32 %v6842, %v5946
    %v6907 = vmul.f32 %v6843, %v5947
    %v6908 = vmul.f32 %v6844, %v5948
    %v6909 = vmul.f32 %v6845, %v5949
    %v6910 = vmul.f32 %v6846, %v5950
    %v6911 = vmul.f32 %v6847, %v5951
    %v6912 = vmul.f32 %v6848, %v5952
    %v6913 = vmul.f32 %v6849, %v5953
    %v6914 = vmul.f32 %v6850, %v5954
    %v6915 = vmul.f32 %v6851, %v5955
    %v6916 = vmul.f32 %v6852, %v5956
    %v6917 = vmul.f32 %v6853, %v5957
    %v6918 = vmul.f32 %v6854, %v5958
    %v6919 = vmul.f32 %v6855, %v5959
    %v6920 = vmul.f32 %v6856, %v5960
    %v6921 = vmul.f32 %v6857, %v5961
    %v6922 = vmul.f32 %v6858, %v5962
    %v6923 = vmul.f32 %v6859, %v5963
    %v6924 = vmul.f32 %v6860, %v5964
    %v6925 = vmul.f32 %v6861, %v5965
    %v6926 = vmul.f32 %v6862, %v5966
    %v6927 = vmul.f32 %v6863, %v5967
    %v6928 = vmul.f32 %v6864, %v5968
    %v6929 = vmul.f32 %v6865, %v5969
    %v6930 = vmul.f32 %v6866, %v5970
    %v6931 = vmul.f32 %v6867, %v5971
    %v6932 = vmul.f32 %v6868, %v5972
    %v6933 = vmul.f32 %v6869, %v5973
    %v6934 = vmul.f32 %v6870, %v5974
    %v6935 = vmul.f32 %v6871, %v5975
    %v6936 = vmul.f32 %v6872, %v5976
    %v6937 = vmul.f32 %v6873, %v5977
    %v6938 = vmul.f32 %v6874, %v5978
    %v6939 = vmul.f32 %v6875, %v5979
    %v6940 = vmul.f32 %v6876, %v5980
    %v6941 = vmul.f32 %v6877, %v5981
    %v6942 = vmul.f32 %v6878, 1.442695
    %v6943 = vpow.pop %v6942
    %v6944 = vmul.f32 %v6879, 1.442695
    %v6945 = vpow.pop %v6944
    %v6946 = vmul.f32 %v6880, 1.442695
    %v6947 = vpow.pop %v6946
    %v6948 = vmul.f32 %v6881, 1.442695
    %v6949 = vpow.pop %v6948
    %v6950 = vmul.f32 %v6882, 1.442695
    %v6951 = vpow.pop %v6950
    %v6952 = vmul.f32 %v6883, 1.442695
    %v6953 = vpow.pop %v6952
    %v6954 = vmul.f32 %v6884, 1.442695
    %v6955 = vpow.pop %v6954
    %v6956 = vmul.f32 %v6885, 1.442695
    %v6957 = vpow.pop %v6956
    %v6958 = vmul.f32 %v6886, 1.442695
    %v6959 = vpow.pop %v6958
    %v6960 = vmul.f32 %v6887, 1.442695
    %v6961 = vpow.pop %v6960
    %v6962 = vmul.f32 %v6888, 1.442695
    %v6963 = vpow.pop %v6962
    %v6964 = vmul.f32 %v6889, 1.442695
    %v6965 = vpow.pop %v6964
    %v6966 = vmul.f32 %v6890, 1.442695
    %v6967 = vpow.pop %v6966
    %v6968 = vmul.f32 %v6891, 1.442695
    %v6969 = vpow.pop %v6968
    %v6970 = vmul.f32 %v6892, 1.442695
    %v6971 = vpow.pop %v6970
    %v6972 = vmul.f32 %v6893, 1.442695
    %v6973 = vpow.pop %v6972
    %v6974 = vmul.f32 %v6894, 1.442695
    %v6975 = vpow.pop %v6974
    %v6976 = vmul.f32 %v6895, 1.442695
    %v6977 = vpow.pop %v6976
    %v6978 = vmul.f32 %v6896, 1.442695
    %v6979 = vpow.pop %v6978
    %v6980 = vmul.f32 %v6897, 1.442695
    %v6981 = vpow.pop %v6980
    %v6982 = vmul.f32 %v6898, 1.442695
    %v6983 = vpow.pop %v6982
    %v6984 = vmul.f32 %v6899, 1.442695
    %v6985 = vpow.pop %v6984
    %v6986 = vmul.f32 %v6900, 1.442695
    %v6987 = vpow.pop %v6986
    %v6988 = vmul.f32 %v6901, 1.442695
    %v6989 = vpow.pop %v6988
    %v6990 = vmul.f32 %v6902, 1.442695
    %v6991 = vpow.pop %v6990
    %v6992 = vmul.f32 %v6903, 1.442695
    %v6993 = vpow.pop %v6992
    %v6994 = vmul.f32 %v6904, 1.442695
    %v6995 = vpow.pop %v6994
    %v6996 = vmul.f32 %v6905, 1.442695
    %v6997 = vpow.pop %v6996
    %v6998 = vmul.f32 %v6906, 1.442695
    %v6999 = vpow.pop %v6998
    %v7000 = vmul.f32 %v6907, 1.442695
    %v7001 = vpow.pop %v7000
    %v7002 = vmul.f32 %v6908, 1.442695
    %v7003 = vpow.pop %v7002
    %v7004 = vmul.f32 %v6909, 1.442695
    %v7005 = vpow.pop %v7004
    %v7006 = vmul.f32 %v6910, 1.442695
    %v7007 = vpow.pop %v7006
    %v7008 = vmul.f32 %v6911, 1.442695
    %v7009 = vpow.pop %v7008
    %v7010 = vmul.f32 %v6912, 1.442695
    %v7011 = vpow.pop %v7010
    %v7012 = vmul.f32 %v6913, 1.442695
    %v7013 = vpow.pop %v7012
    %v7014 = vmul.f32 %v6914, 1.442695
    %v7015 = vpow.pop %v7014
    %v7016 = vmul.f32 %v6915, 1.442695
    %v7017 = vpow.pop %v7016
    %v7018 = vmul.f32 %v6916, 1.442695
    %v7019 = vpow.pop %v7018
    %v7020 = vmul.f32 %v6917, 1.442695
    %v7021 = vpow.pop %v7020
    %v7022 = vmul.f32 %v6918, 1.442695
    %v7023 = vpow.pop %v7022
    %v7024 = vmul.f32 %v6919, 1.442695
    %v7025 = vpow.pop %v7024
    %v7026 = vmul.f32 %v6920, 1.442695
    %v7027 = vpow.pop %v7026
    %v7028 = vmul.f32 %v6921, 1.442695
    %v7029 = vpow.pop %v7028
    %v7030 = vmul.f32 %v6922, 1.442695
    %v7031 = vpow.pop %v7030
    %v7032 = vmul.f32 %v6923, 1.442695
    %v7033 = vpow.pop %v7032
    %v7034 = vmul.f32 %v6924, 1.442695
    %v7035 = vpow.pop %v7034
    %v7036 = vmul.f32 %v6925, 1.442695
    %v7037 = vpow.pop %v7036
    %v7038 = vmul.f32 %v6926, 1.442695
    %v7039 = vpow.pop %v7038
    %v7040 = vmul.f32 %v6927, 1.442695
    %v7041 = vpow.pop %v7040
    %v7042 = vmul.f32 %v6928, 1.442695
    %v7043 = vpow.pop %v7042
    %v7044 = vmul.f32 %v6929, 1.442695
    %v7045 = vpow.pop %v7044
    %v7046 = vmul.f32 %v6930, 1.442695
    %v7047 = vpow.pop %v7046
    %v7048 = vmul.f32 %v6931, 1.442695
    %v7049 = vpow.pop %v7048
    %v7050 = vmul.f32 %v6932, 1.442695
    %v7051 = vpow.pop %v7050
    %v7052 = vmul.f32 %v6933, 1.442695
    %v7053 = vpow.pop %v7052
    %v7054 = vmul.f32 %v6934, 1.442695
    %v7055 = vpow.pop %v7054
    %v7056 = vmul.f32 %v6935, 1.442695
    %v7057 = vpow.pop %v7056
    %v7058 = vmul.f32 %v6936, 1.442695
    %v7059 = vpow.pop %v7058
    %v7060 = vmul.f32 %v6937, 1.442695
    %v7061 = vpow.pop %v7060
    %v7062 = vmul.f32 %v6938, 1.442695
    %v7063 = vpow.pop %v7062
    %v7064 = vmul.f32 %v6939, 1.442695
    %v7065 = vpow.pop %v7064
    %v7066 = vmul.f32 %v6940, 1.442695
    %v7067 = vpow.pop %v7066
    %v7068 = vmul.f32 %v6941, 1.442695
    %v7069 = vpow.pop %v7068
    %v7070 = vmul.f32 %v6750, %v6943
    %v7071 = vmul.f32 %v6751, %v6945
    %v7072 = vmul.f32 %v6752, %v6947
    %v7073 = vmul.f32 %v6753, %v6949
    %v7074 = vmul.f32 %v6754, %v6951
    %v7075 = vmul.f32 %v6755, %v6953
    %v7076 = vmul.f32 %v6756, %v6955
    %v7077 = vmul.f32 %v6757, %v6957
    %v7078 = vmul.f32 %v6758, %v6959
    %v7079 = vmul.f32 %v6759, %v6961
    %v7080 = vmul.f32 %v6760, %v6963
    %v7081 = vmul.f32 %v6761, %v6965
    %v7082 = vmul.f32 %v6762, %v6967
    %v7083 = vmul.f32 %v6763, %v6969
    %v7084 = vmul.f32 %v6764, %v6971
    %v7085 = vmul.f32 %v6765, %v6973
    %v7086 = vmul.f32 %v6766, %v6975
    %v7087 = vmul.f32 %v6767, %v6977
    %v7088 = vmul.f32 %v6768, %v6979
    %v7089 = vmul.f32 %v6769, %v6981
    %v7090 = vmul.f32 %v6770, %v6983
    %v7091 = vmul.f32 %v6771, %v6985
    %v7092 = vmul.f32 %v6772, %v6987
    %v7093 = vmul.f32 %v6773, %v6989
    %v7094 = vmul.f32 %v6774, %v6991
    %v7095 = vmul.f32 %v6775, %v6993
    %v7096 = vmul.f32 %v6776, %v6995
    %v7097 = vmul.f32 %v6777, %v6997
    %v7098 = vmul.f32 %v6778, %v6999
    %v7099 = vmul.f32 %v6779, %v7001
    %v7100 = vmul.f32 %v6780, %v7003
    %v7101 = vmul.f32 %v6781, %v7005
    %v7102 = vmul.f32 %v6782, %v7007
    %v7103 = vmul.f32 %v6783, %v7009
    %v7104 = vmul.f32 %v6784, %v7011
    %v7105 = vmul.f32 %v6785, %v7013
    %v7106 = vmul.f32 %v6786, %v7015
    %v7107 = vmul.f32 %v6787, %v7017
    %v7108 = vmul.f32 %v6788, %v7019
    %v7109 = vmul.f32 %v6789, %v7021
    %v7110 = vmul.f32 %v6790, %v7023
    %v7111 = vmul.f32 %v6791, %v7025
    %v7112 = vmul.f32 %v6792, %v7027
    %v7113 = vmul.f32 %v6793, %v7029
    %v7114 = vmul.f32 %v6794, %v7031
    %v7115 = vmul.f32 %v6795, %v7033
    %v7116 = vmul.f32 %v6796, %v7035
    %v7117 = vmul.f32 %v6797, %v7037
    %v7118 = vmul.f32 %v6798, %v7039
    %v7119 = vmul.f32 %v6799, %v7041
    %v7120 = vmul.f32 %v6800, %v7043
    %v7121 = vmul.f32 %v6801, %v7045
    %v7122 = vmul.f32 %v6802, %v7047
    %v7123 = vmul.f32 %v6803, %v7049
    %v7124 = vmul.f32 %v6804, %v7051
    %v7125 = vmul.f32 %v6805, %v7053
    %v7126 = vmul.f32 %v6806, %v7055
    %v7127 = vmul.f32 %v6807, %v7057
    %v7128 = vmul.f32 %v6808, %v7059
    %v7129 = vmul.f32 %v6809, %v7061
    %v7130 = vmul.f32 %v6810, %v7063
    %v7131 = vmul.f32 %v6811, %v7065
    %v7132 = vmul.f32 %v6812, %v7067
    %v7133 = vmul.f32 %v6813, %v7069
    %v7134 = vsub.f32 1.0, %v7070
    %v7135 = vsub.f32 1.0, %v7071
    %v7136 = vsub.f32 1.0, %v7072
    %v7137 = vsub.f32 1.0, %v7073
    %v7138 = vsub.f32 1.0, %v7074
    %v7139 = vsub.f32 1.0, %v7075
    %v7140 = vsub.f32 1.0, %v7076
    %v7141 = vsub.f32 1.0, %v7077
    %v7142 = vsub.f32 1.0, %v7078
    %v7143 = vsub.f32 1.0, %v7079
    %v7144 = vsub.f32 1.0, %v7080
    %v7145 = vsub.f32 1.0, %v7081
    %v7146 = vsub.f32 1.0, %v7082
    %v7147 = vsub.f32 1.0, %v7083
    %v7148 = vsub.f32 1.0, %v7084
    %v7149 = vsub.f32 1.0, %v7085
    %v7150 = vsub.f32 1.0, %v7086
    %v7151 = vsub.f32 1.0, %v7087
    %v7152 = vsub.f32 1.0, %v7088
    %v7153 = vsub.f32 1.0, %v7089
    %v7154 = vsub.f32 1.0, %v7090
    %v7155 = vsub.f32 1.0, %v7091
    %v7156 = vsub.f32 1.0, %v7092
    %v7157 = vsub.f32 1.0, %v7093
    %v7158 = vsub.f32 1.0, %v7094
    %v7159 = vsub.f32 1.0, %v7095
    %v7160 = vsub.f32 1.0, %v7096
    %v7161 = vsub.f32 1.0, %v7097
    %v7162 = vsub.f32 1.0, %v7098
    %v7163 = vsub.f32 1.0, %v7099
    %v7164 = vsub.f32 1.0, %v7100
    %v7165 = vsub.f32 1.0, %v7101
    %v7166 = vsub.f32 1.0, %v7102
    %v7167 = vsub.f32 1.0, %v7103
    %v7168 = vsub.f32 1.0, %v7104
    %v7169 = vsub.f32 1.0, %v7105
    %v7170 = vsub.f32 1.0, %v7106
    %v7171 = vsub.f32 1.0, %v7107
    %v7172 = vsub.f32 1.0, %v7108
    %v7173 = vsub.f32 1.0, %v7109
    %v7174 = vsub.f32 1.0, %v7110
    %v7175 = vsub.f32 1.0, %v7111
    %v7176 = vsub.f32 1.0, %v7112
    %v7177 = vsub.f32 1.0, %v7113
    %v7178 = vsub.f32 1.0, %v7114
    %v7179 = vsub.f32 1.0, %v7115
    %v7180 = vsub.f32 1.0, %v7116
    %v7181 = vsub.f32 1.0, %v7117
    %v7182 = vsub.f32 1.0, %v7118
    %v7183 = vsub.f32 1.0, %v7119
    %v7184 = vsub.f32 1.0, %v7120
    %v7185 = vsub.f32 1.0, %v7121
    %v7186 = vsub.f32 1.0, %v7122
    %v7187 = vsub.f32 1.0, %v7123
    %v7188 = vsub.f32 1.0, %v7124
    %v7189 = vsub.f32 1.0, %v7125
    %v7190 = vsub.f32 1.0, %v7126
    %v7191 = vsub.f32 1.0, %v7127
    %v7192 = vsub.f32 1.0, %v7128
    %v7193 = vsub.f32 1.0, %v7129
    %v7194 = vsub.f32 1.0, %v7130
    %v7195 = vsub.f32 1.0, %v7131
    %v7196 = vsub.f32 1.0, %v7132
    %v7197 = vsub.f32 1.0, %v7133
    %v7198 = vmul.f32 %v5854, %v7134
    %v7199 = vmul.f32 %v5855, %v7135
    %v7200 = vmul.f32 %v5856, %v7136
    %v7201 = vmul.f32 %v5857, %v7137
    %v7202 = vmul.f32 %v5858, %v7138
    %v7203 = vmul.f32 %v5859, %v7139
    %v7204 = vmul.f32 %v5860, %v7140
    %v7205 = vmul.f32 %v5861, %v7141
    %v7206 = vmul.f32 %v5862, %v7142
    %v7207 = vmul.f32 %v5863, %v7143
    %v7208 = vmul.f32 %v5864, %v7144
    %v7209 = vmul.f32 %v5865, %v7145
    %v7210 = vmul.f32 %v5866, %v7146
    %v7211 = vmul.f32 %v5867, %v7147
    %v7212 = vmul.f32 %v5868, %v7148
    %v7213 = vmul.f32 %v5869, %v7149
    %v7214 = vmul.f32 %v5870, %v7150
    %v7215 = vmul.f32 %v5871, %v7151
    %v7216 = vmul.f32 %v5872, %v7152
    %v7217 = vmul.f32 %v5873, %v7153
    %v7218 = vmul.f32 %v5874, %v7154
    %v7219 = vmul.f32 %v5875, %v7155
    %v7220 = vmul.f32 %v5876, %v7156
    %v7221 = vmul.f32 %v5877, %v7157
    %v7222 = vmul.f32 %v5878, %v7158
    %v7223 = vmul.f32 %v5879, %v7159
    %v7224 = vmul.f32 %v5880, %v7160
    %v7225 = vmul.f32 %v5881, %v7161
    %v7226 = vmul.f32 %v5882, %v7162
    %v7227 = vmul.f32 %v5883, %v7163
    %v7228 = vmul.f32 %v5884, %v7164
    %v7229 = vmul.f32 %v5885, %v7165
    %v7230 = vmul.f32 %v5886, %v7166
    %v7231 = vmul.f32 %v5887, %v7167
    %v7232 = vmul.f32 %v5888, %v7168
    %v7233 = vmul.f32 %v5889, %v7169
    %v7234 = vmul.f32 %v5890, %v7170
    %v7235 = vmul.f32 %v5891, %v7171
    %v7236 = vmul.f32 %v5892, %v7172
    %v7237 = vmul.f32 %v5893, %v7173
    %v7238 = vmul.f32 %v5894, %v7174
    %v7239 = vmul.f32 %v5895, %v7175
    %v7240 = vmul.f32 %v5896, %v7176
    %v7241 = vmul.f32 %v5897, %v7177
    %v7242 = vmul.f32 %v5898, %v7178
    %v7243 = vmul.f32 %v5899, %v7179
    %v7244 = vmul.f32 %v5900, %v7180
    %v7245 = vmul.f32 %v5901, %v7181
    %v7246 = vmul.f32 %v5902, %v7182
    %v7247 = vmul.f32 %v5903, %v7183
    %v7248 = vmul.f32 %v5904, %v7184
    %v7249 = vmul.f32 %v5905, %v7185
    %v7250 = vmul.f32 %v5906, %v7186
    %v7251 = vmul.f32 %v5907, %v7187
    %v7252 = vmul.f32 %v5908, %v7188
    %v7253 = vmul.f32 %v5909, %v7189
    %v7254 = vmul.f32 %v5910, %v7190
    %v7255 = vmul.f32 %v5911, %v7191
    %v7256 = vmul.f32 %v5912, %v7192
    %v7257 = vmul.f32 %v5913, %v7193
    %v7258 = vmul.f32 %v5914, %v7194
    %v7259 = vmul.f32 %v5915, %v7195
    %v7260 = vmul.f32 %v5916, %v7196
    %v7261 = vmul.f32 %v5917, %v7197
    %v7262 = vadd.f32 %v7198, 1.0
    %v7263 = vadd.f32 %v7199, 1.0
    %v7264 = vadd.f32 %v7200, 1.0
    %v7265 = vadd.f32 %v7201, 1.0
    %v7266 = vadd.f32 %v7202, 1.0
    %v7267 = vadd.f32 %v7203, 1.0
    %v7268 = vadd.f32 %v7204, 1.0
    %v7269 = vadd.f32 %v7205, 1.0
    %v7270 = vadd.f32 %v7206, 1.0
    %v7271 = vadd.f32 %v7207, 1.0
    %v7272 = vadd.f32 %v7208, 1.0
    %v7273 = vadd.f32 %v7209, 1.0
    %v7274 = vadd.f32 %v7210, 1.0
    %v7275 = vadd.f32 %v7211, 1.0
    %v7276 = vadd.f32 %v7212, 1.0
    %v7277 = vadd.f32 %v7213, 1.0
    %v7278 = vadd.f32 %v7214, 1.0
    %v7279 = vadd.f32 %v7215, 1.0
    %v7280 = vadd.f32 %v7216, 1.0
    %v7281 = vadd.f32 %v7217, 1.0
    %v7282 = vadd.f32 %v7218, 1.0
    %v7283 = vadd.f32 %v7219, 1.0
    %v7284 = vadd.f32 %v7220, 1.0
    %v7285 = vadd.f32 %v7221, 1.0
    %v7286 = vadd.f32 %v7222, 1.0
    %v7287 = vadd.f32 %v7223, 1.0
    %v7288 = vadd.f32 %v7224, 1.0
    %v7289 = vadd.f32 %v7225, 1.0
    %v7290 = vadd.f32 %v7226, 1.0
    %v7291 = vadd.f32 %v7227, 1.0
    %v7292 = vadd.f32 %v7228, 1.0
    %v7293 = vadd.f32 %v7229, 1.0
    %v7294 = vadd.f32 %v7230, 1.0
    %v7295 = vadd.f32 %v7231, 1.0
    %v7296 = vadd.f32 %v7232, 1.0
    %v7297 = vadd.f32 %v7233, 1.0
    %v7298 = vadd.f32 %v7234, 1.0
    %v7299 = vadd.f32 %v7235, 1.0
    %v7300 = vadd.f32 %v7236, 1.0
    %v7301 = vadd.f32 %v7237, 1.0
    %v7302 = vadd.f32 %v7238, 1.0
    %v7303 = vadd.f32 %v7239, 1.0
    %v7304 = vadd.f32 %v7240, 1.0
    %v7305 = vadd.f32 %v7241, 1.0
    %v7306 = vadd.f32 %v7242, 1.0
    %v7307 = vadd.f32 %v7243, 1.0
    %v7308 = vadd.f32 %v7244, 1.0
    %v7309 = vadd.f32 %v7245, 1.0
    %v7310 = vadd.f32 %v7246, 1.0
    %v7311 = vadd.f32 %v7247, 1.0
    %v7312 = vadd.f32 %v7248, 1.0
    %v7313 = vadd.f32 %v7249, 1.0
    %v7314 = vadd.f32 %v7250, 1.0
    %v7315 = vadd.f32 %v7251, 1.0
    %v7316 = vadd.f32 %v7252, 1.0
    %v7317 = vadd.f32 %v7253, 1.0
    %v7318 = vadd.f32 %v7254, 1.0
    %v7319 = vadd.f32 %v7255, 1.0
    %v7320 = vadd.f32 %v7256, 1.0
    %v7321 = vadd.f32 %v7257, 1.0
    %v7322 = vadd.f32 %v7258, 1.0
    %v7323 = vadd.f32 %v7259, 1.0
    %v7324 = vadd.f32 %v7260, 1.0
    %v7325 = vadd.f32 %v7261, 1.0
    %v7326 = vmul.f32 %v5662, %v7262
    %v7327 = vmul.f32 %v5663, %v7263
    %v7328 = vmul.f32 %v5664, %v7264
    %v7329 = vmul.f32 %v5665, %v7265
    %v7330 = vmul.f32 %v5666, %v7266
    %v7331 = vmul.f32 %v5667, %v7267
    %v7332 = vmul.f32 %v5668, %v7268
    %v7333 = vmul.f32 %v5669, %v7269
    %v7334 = vmul.f32 %v5670, %v7270
    %v7335 = vmul.f32 %v5671, %v7271
    %v7336 = vmul.f32 %v5672, %v7272
    %v7337 = vmul.f32 %v5673, %v7273
    %v7338 = vmul.f32 %v5674, %v7274
    %v7339 = vmul.f32 %v5675, %v7275
    %v7340 = vmul.f32 %v5676, %v7276
    %v7341 = vmul.f32 %v5677, %v7277
    %v7342 = vmul.f32 %v5678, %v7278
    %v7343 = vmul.f32 %v5679, %v7279
    %v7344 = vmul.f32 %v5680, %v7280
    %v7345 = vmul.f32 %v5681, %v7281
    %v7346 = vmul.f32 %v5682, %v7282
    %v7347 = vmul.f32 %v5683, %v7283
    %v7348 = vmul.f32 %v5684, %v7284
    %v7349 = vmul.f32 %v5685, %v7285
    %v7350 = vmul.f32 %v5686, %v7286
    %v7351 = vmul.f32 %v5687, %v7287
    %v7352 = vmul.f32 %v5688, %v7288
    %v7353 = vmul.f32 %v5689, %v7289
    %v7354 = vmul.f32 %v5690, %v7290
    %v7355 = vmul.f32 %v5691, %v7291
    %v7356 = vmul.f32 %v5692, %v7292
    %v7357 = vmul.f32 %v5693, %v7293
    %v7358 = vmul.f32 %v5694, %v7294
    %v7359 = vmul.f32 %v5695, %v7295
    %v7360 = vmul.f32 %v5696, %v7296
    %v7361 = vmul.f32 %v5697, %v7297
    %v7362 = vmul.f32 %v5698, %v7298
    %v7363 = vmul.f32 %v5699, %v7299
    %v7364 = vmul.f32 %v5700, %v7300
    %v7365 = vmul.f32 %v5701, %v7301
    %v7366 = vmul.f32 %v5702, %v7302
    %v7367 = vmul.f32 %v5703, %v7303
    %v7368 = vmul.f32 %v5704, %v7304
    %v7369 = vmul.f32 %v5705, %v7305
    %v7370 = vmul.f32 %v5706, %v7306
    %v7371 = vmul.f32 %v5707, %v7307
    %v7372 = vmul.f32 %v5708, %v7308
    %v7373 = vmul.f32 %v5709, %v7309
    %v7374 = vmul.f32 %v5710, %v7310
    %v7375 = vmul.f32 %v5711, %v7311
    %v7376 = vmul.f32 %v5712, %v7312
    %v7377 = vmul.f32 %v5713, %v7313
    %v7378 = vmul.f32 %v5714, %v7314
    %v7379 = vmul.f32 %v5715, %v7315
    %v7380 = vmul.f32 %v5716, %v7316
    %v7381 = vmul.f32 %v5717, %v7317
    %v7382 = vmul.f32 %v5718, %v7318
    %v7383 = vmul.f32 %v5719, %v7319
    %v7384 = vmul.f32 %v5720, %v7320
    %v7385 = vmul.f32 %v5721, %v7321
    %v7386 = vmul.f32 %v5722, %v7322
    %v7387 = vmul.f32 %v5723, %v7323
    %v7388 = vmul.f32 %v5724, %v7324
    %v7389 = vmul.f32 %v5725, %v7325
    %v7390 = vld [vmem:[#allocation10] sm:$0xff]
    %v7391 = vld [vmem:[#allocation10 + $0x8] sm:$0xff]
    %v7392 = vld [vmem:[#allocation10 + $0x10] sm:$0xff]
    %v7393 = vld [vmem:[#allocation10 + $0x18] sm:$0xff]
    %v7394 = vld [vmem:[#allocation10 + $0x20] sm:$0xff]
    %v7395 = vld [vmem:[#allocation10 + $0x28] sm:$0xff]
    %v7396 = vld [vmem:[#allocation10 + $0x30] sm:$0xff]
    %v7397 = vld [vmem:[#allocation10 + $0x38] sm:$0xff]
    %v7398 = vld [vmem:[#allocation10 + $0x40] sm:$0xff]
    %v7399 = vld [vmem:[#allocation10 + $0x48] sm:$0xff]
    %v7400 = vld [vmem:[#allocation10 + $0x50] sm:$0xff]
    %v7401 = vld [vmem:[#allocation10 + $0x58] sm:$0xff]
    %v7402 = vld [vmem:[#allocation10 + $0x60] sm:$0xff]
    %v7403 = vld [vmem:[#allocation10 + $0x68] sm:$0xff]
    %v7404 = vld [vmem:[#allocation10 + $0x70] sm:$0xff]
    %v7405 = vld [vmem:[#allocation10 + $0x78] sm:$0xff]
    %v7406 = vld [vmem:[%s12] sm:$0x1]
    %v7408 = vlaneseq
    %v7409 = vshrl.u32 %v7408, 7
    %v7410 = vsub.s32 0, %v7409
    %v7411 = vrot.slane %v7406, %v7410
    %7413 = vmatprep.subr.mxu0 0.0
    %7414 = vmatpush1.msra.mxu0 %v7390
    %7415 = vmatprep.subr.mxu0 0.0
    %7416 = vmatpush1.msra.mxu0 %v7391
    %7417 = vmatprep.subr.mxu0 0.0
    %7418 = vmatpush1.msra.mxu0 %v7392
    %7419 = vmatprep.subr.mxu0 0.0
    %7420 = vmatpush1.msra.mxu0 %v7393
    %7421 = vmatprep.subr.mxu0 0.0
    %7422 = vmatpush1.msra.mxu0 %v7394
    %7423 = vmatprep.subr.mxu0 0.0
    %7424 = vmatpush1.msra.mxu0 %v7395
    %7425 = vmatprep.subr.mxu0 0.0
    %7426 = vmatpush1.msra.mxu0 %v7396
    %7427 = vmatprep.subr.mxu0 0.0
    %7428 = vmatpush1.msra.mxu0 %v7397
    %7429 = vmatprep.subr.mxu0 0.0
    %7430 = vmatpush1.msra.mxu0 %v7398
    %7431 = vmatprep.subr.mxu0 0.0
    %7432 = vmatpush1.msra.mxu0 %v7399
    %7433 = vmatprep.subr.mxu0 0.0
    %7434 = vmatpush1.msra.mxu0 %v7400
    %7435 = vmatprep.subr.mxu0 0.0
    %7436 = vmatpush1.msra.mxu0 %v7401
    %7437 = vmatprep.subr.mxu0 0.0
    %7438 = vmatpush1.msra.mxu0 %v7402
    %7439 = vmatprep.subr.mxu0 0.0
    %7440 = vmatpush1.msra.mxu0 %v7403
    %7441 = vmatprep.subr.mxu0 0.0
    %7442 = vmatpush1.msra.mxu0 %v7404
    %7443 = vmatprep.subr.mxu0 0.0
    %7444 = vmatpush1.msra.mxu0 %v7405
    %7445 = vmatprep.subr.mxu0 0.0
    %7446 = vmatpush1.msra.mxu0 0.0
    %7447 = vmatprep.subr.mxu0 0.0
    %7448 = vmatpush1.msra.mxu0 0.0
    %7449 = vmatprep.subr.mxu0 0.0
    %7450 = vmatpush1.msra.mxu0 0.0
    %7451 = vmatprep.subr.mxu0 0.0
    %7452 = vmatpush1.msra.mxu0 0.0
    %7453 = vmatprep.subr.mxu0 0.0
    %7454 = vmatpush1.msra.mxu0 0.0
    %7455 = vmatprep.subr.mxu0 0.0
    %7456 = vmatpush1.msra.mxu0 0.0
    %7457 = vmatprep.subr.mxu0 0.0
    %7458 = vmatpush1.msra.mxu0 0.0
    %7459 = vmatprep.subr.mxu0 0.0
    %7460 = vmatpush1.msra.mxu0 0.0
    %7461 = vmatprep.subr.mxu0 0.0
    %7462 = vmatpush1.msra.mxu0 0.0
    %7463 = vmatprep.subr.mxu0 0.0
    %7464 = vmatpush1.msra.mxu0 0.0
    %7465 = vmatprep.subr.mxu0 0.0
    %7466 = vmatpush1.msra.mxu0 0.0
    %7467 = vmatprep.subr.mxu0 0.0
    %7468 = vmatpush1.msra.mxu0 0.0
    %7469 = vmatprep.subr.mxu0 0.0
    %7470 = vmatpush1.msra.mxu0 0.0
    %7471 = vmatprep.subr.mxu0 0.0
    %7472 = vmatpush1.msra.mxu0 0.0
    %7473 = vmatprep.subr.mxu0 0.0
    %7474 = vmatpush1.msra.mxu0 0.0
    %7475 = vmatprep.subr.mxu0 0.0
    %7476 = vmatpush1.msra.mxu0 0.0
    %7477 = vmatprep.mubr.f32.mxu0 0.0
    %7478 = vmatmul.mubr.f32.gmra.mrb[0].mxu0 %v7326
    %v7479 = vpop.f32.mrb[0].mxu0
    %v7480 = vadd.f32 %v7411, %v7479
    %v7481 = vpop.f32.mrb[0].mxu0
    %7482 = vmatprep.mubr.f32.mxu0 0.0
    %7483 = vmatmul.mubr.f32.gmra.mrb[0].mxu0 %v7327
    %v7484 = vpop.f32.mrb[0].mxu0
    %v7485 = vadd.f32 %v7411, %v7484
    %v7486 = vpop.f32.mrb[0].mxu0
    %7487 = vmatprep.mubr.f32.mxu0 0.0
    %7488 = vmatmul.mubr.f32.gmra.mrb[0].mxu0 %v7328
    %v7489 = vpop.f32.mrb[0].mxu0
    %v7490 = vadd.f32 %v7411, %v7489
    %v7491 = vpop.f32.mrb[0].mxu0
    %7492 = vmatprep.mubr.f32.mxu0 0.0
    %7493 = vmatmul.mubr.f32.gmra.mrb[0].mxu0 %v7329
    %v7494 = vpop.f32.mrb[0].mxu0
    %v7495 = vadd.f32 %v7411, %v7494
    %v7496 = vpop.f32.mrb[0].mxu0
    %7497 = vmatprep.mubr.f32.mxu0 0.0
    %7498 = vmatmul.mubr.f32.gmra.mrb[0].mxu0 %v7330
    %v7499 = vpop.f32.mrb[0].mxu0
    %v7500 = vadd.f32 %v7411, %v7499
    %v7501 = vpop.f32.mrb[0].mxu0
    %7502 = vmatprep.mubr.f32.mxu0 0.0
    %7503 = vmatmul.mubr.f32.gmra.mrb[0].mxu0 %v7331
    %v7504 = vpop.f32.mrb[0].mxu0
    %v7505 = vadd.f32 %v7411, %v7504
    %v7506 = vpop.f32.mrb[0].mxu0
    %7507 = vmatprep.mubr.f32.mxu0 0.0
    %7508 = vmatmul.mubr.f32.gmra.mrb[0].mxu0 %v7332
    %v7509 = vpop.f32.mrb[0].mxu0
    %v7510 = vadd.f32 %v7411, %v7509
    %v7511 = vpop.f32.mrb[0].mxu0
    %7512 = vmatprep.mubr.f32.mxu0 0.0
    %7513 = vmatmul.mubr.f32.gmra.mrb[0].mxu0 %v7333
    %v7514 = vpop.f32.mrb[0].mxu0
    %v7515 = vadd.f32 %v7411, %v7514
    %v7516 = vpop.f32.mrb[0].mxu0
    %7517 = vmatprep.mubr.f32.mxu0 0.0
    %7518 = vmatmul.mubr.f32.gmra.mrb[0].mxu0 %v7334
    %v7519 = vpop.f32.mrb[0].mxu0
    %v7520 = vadd.f32 %v7411, %v7519
    %v7521 = vpop.f32.mrb[0].mxu0
    %7522 = vmatprep.mubr.f32.mxu0 0.0
    %7523 = vmatmul.mubr.f32.gmra.mrb[0].mxu0 %v7335
    %v7524 = vpop.f32.mrb[0].mxu0
    %v7525 = vadd.f32 %v7411, %v7524
    %v7526 = vpop.f32.mrb[0].mxu0
    %7527 = vmatprep.mubr.f32.mxu0 0.0
    %7528 = vmatmul.mubr.f32.gmra.mrb[0].mxu0 %v7336
    %v7529 = vpop.f32.mrb[0].mxu0
    %v7530 = vadd.f32 %v7411, %v7529
    %v7531 = vpop.f32.mrb[0].mxu0
    %7532 = vmatprep.mubr.f32.mxu0 0.0
    %7533 = vmatmul.mubr.f32.gmra.mrb[0].mxu0 %v7337
    %v7534 = vpop.f32.mrb[0].mxu0
    %v7535 = vadd.f32 %v7411, %v7534
    %v7536 = vpop.f32.mrb[0].mxu0
    %7537 = vmatprep.mubr.f32.mxu0 0.0
    %7538 = vmatmul.mubr.f32.gmra.mrb[0].mxu0 %v7338
    %v7539 = vpop.f32.mrb[0].mxu0
    %v7540 = vadd.f32 %v7411, %v7539
    %v7541 = vpop.f32.mrb[0].mxu0
    %7542 = vmatprep.mubr.f32.mxu0 0.0
    %7543 = vmatmul.mubr.f32.gmra.mrb[0].mxu0 %v7339
    %v7544 = vpop.f32.mrb[0].mxu0
    %v7545 = vadd.f32 %v7411, %v7544
    %v7546 = vpop.f32.mrb[0].mxu0
    %7547 = vmatprep.mubr.f32.mxu0 0.0
    %7548 = vmatmul.mubr.f32.gmra.mrb[0].mxu0 %v7340
    %v7549 = vpop.f32.mrb[0].mxu0
    %v7550 = vadd.f32 %v7411, %v7549
    %v7551 = vpop.f32.mrb[0].mxu0
    %7552 = vmatprep.mubr.f32.mxu0 0.0
    %7553 = vmatmul.mubr.f32.gmra.mrb[0].mxu0 %v7341
    %v7554 = vpop.f32.mrb[0].mxu0
    %v7555 = vadd.f32 %v7411, %v7554
    %v7556 = vpop.f32.mrb[0].mxu0
    %7557 = vmatprep.mubr.f32.mxu0 0.0
    %7558 = vmatmul.mubr.f32.gmra.mrb[0].mxu0 %v7342
    %v7559 = vpop.f32.mrb[0].mxu0
    %v7560 = vadd.f32 %v7411, %v7559
    %v7561 = vpop.f32.mrb[0].mxu0
    %7562 = vmatprep.mubr.f32.mxu0 0.0
    %7563 = vmatmul.mubr.f32.gmra.mrb[0].mxu0 %v7343
    %v7564 = vpop.f32.mrb[0].mxu0
    %v7565 = vadd.f32 %v7411, %v7564
    %v7566 = vpop.f32.mrb[0].mxu0
    %7567 = vmatprep.mubr.f32.mxu0 0.0
    %7568 = vmatmul.mubr.f32.gmra.mrb[0].mxu0 %v7344
    %v7569 = vpop.f32.mrb[0].mxu0
    %v7570 = vadd.f32 %v7411, %v7569
    %v7571 = vpop.f32.mrb[0].mxu0
    %7572 = vmatprep.mubr.f32.mxu0 0.0
    %7573 = vmatmul.mubr.f32.gmra.mrb[0].mxu0 %v7345
    %v7574 = vpop.f32.mrb[0].mxu0
    %v7575 = vadd.f32 %v7411, %v7574
    %v7576 = vpop.f32.mrb[0].mxu0
    %7577 = vmatprep.mubr.f32.mxu0 0.0
    %7578 = vmatmul.mubr.f32.gmra.mrb[0].mxu0 %v7346
    %v7579 = vpop.f32.mrb[0].mxu0
    %v7580 = vadd.f32 %v7411, %v7579
    %v7581 = vpop.f32.mrb[0].mxu0
    %7582 = vmatprep.mubr.f32.mxu0 0.0
    %7583 = vmatmul.mubr.f32.gmra.mrb[0].mxu0 %v7347
    %v7584 = vpop.f32.mrb[0].mxu0
    %v7585 = vadd.f32 %v7411, %v7584
    %v7586 = vpop.f32.mrb[0].mxu0
    %7587 = vmatprep.mubr.f32.mxu0 0.0
    %7588 = vmatmul.mubr.f32.gmra.mrb[0].mxu0 %v7348
    %v7589 = vpop.f32.mrb[0].mxu0
    %v7590 = vadd.f32 %v7411, %v7589
    %v7591 = vpop.f32.mrb[0].mxu0
    %7592 = vmatprep.mubr.f32.mxu0 0.0
    %7593 = vmatmul.mubr.f32.gmra.mrb[0].mxu0 %v7349
    %v7594 = vpop.f32.mrb[0].mxu0
    %v7595 = vadd.f32 %v7411, %v7594
    %v7596 = vpop.f32.mrb[0].mxu0
    %7597 = vmatprep.mubr.f32.mxu0 0.0
    %7598 = vmatmul.mubr.f32.gmra.mrb[0].mxu0 %v7350
    %v7599 = vpop.f32.mrb[0].mxu0
    %v7600 = vadd.f32 %v7411, %v7599
    %v7601 = vpop.f32.mrb[0].mxu0
    %7602 = vmatprep.mubr.f32.mxu0 0.0
    %7603 = vmatmul.mubr.f32.gmra.mrb[0].mxu0 %v7351
    %v7604 = vpop.f32.mrb[0].mxu0
    %v7605 = vadd.f32 %v7411, %v7604
    %v7606 = vpop.f32.mrb[0].mxu0
    %7607 = vmatprep.mubr.f32.mxu0 0.0
    %7608 = vmatmul.mubr.f32.gmra.mrb[0].mxu0 %v7352
    %v7609 = vpop.f32.mrb[0].mxu0
    %v7610 = vadd.f32 %v7411, %v7609
    %v7611 = vpop.f32.mrb[0].mxu0
    %7612 = vmatprep.mubr.f32.mxu0 0.0
    %7613 = vmatmul.mubr.f32.gmra.mrb[0].mxu0 %v7353
    %v7614 = vpop.f32.mrb[0].mxu0
    %v7615 = vadd.f32 %v7411, %v7614
    %v7616 = vpop.f32.mrb[0].mxu0
    %7617 = vmatprep.mubr.f32.mxu0 0.0
    %7618 = vmatmul.mubr.f32.gmra.mrb[0].mxu0 %v7354
    %v7619 = vpop.f32.mrb[0].mxu0
    %v7620 = vadd.f32 %v7411, %v7619
    %v7621 = vpop.f32.mrb[0].mxu0
    %7622 = vmatprep.mubr.f32.mxu0 0.0
    %7623 = vmatmul.mubr.f32.gmra.mrb[0].mxu0 %v7355
    %v7624 = vpop.f32.mrb[0].mxu0
    %v7625 = vadd.f32 %v7411, %v7624
    %v7626 = vpop.f32.mrb[0].mxu0
    %7627 = vmatprep.mubr.f32.mxu0 0.0
    %7628 = vmatmul.mubr.f32.gmra.mrb[0].mxu0 %v7356
    %v7629 = vpop.f32.mrb[0].mxu0
    %v7630 = vadd.f32 %v7411, %v7629
    %v7631 = vpop.f32.mrb[0].mxu0
    %7632 = vmatprep.mubr.f32.mxu0 0.0
    %7633 = vmatmul.mubr.f32.gmra.mrb[0].mxu0 %v7357
    %v7634 = vpop.f32.mrb[0].mxu0
    %v7635 = vadd.f32 %v7411, %v7634
    %v7636 = vpop.f32.mrb[0].mxu0
    %7637 = vmatprep.mubr.f32.mxu0 0.0
    %7638 = vmatmul.mubr.f32.gmra.mrb[0].mxu0 %v7358
    %v7639 = vpop.f32.mrb[0].mxu0
    %v7640 = vadd.f32 %v7411, %v7639
    %v7641 = vpop.f32.mrb[0].mxu0
    %7642 = vmatprep.mubr.f32.mxu0 0.0
    %7643 = vmatmul.mubr.f32.gmra.mrb[0].mxu0 %v7359
    %v7644 = vpop.f32.mrb[0].mxu0
    %v7645 = vadd.f32 %v7411, %v7644
    %v7646 = vpop.f32.mrb[0].mxu0
    %7647 = vmatprep.mubr.f32.mxu0 0.0
    %7648 = vmatmul.mubr.f32.gmra.mrb[0].mxu0 %v7360
    %v7649 = vpop.f32.mrb[0].mxu0
    %v7650 = vadd.f32 %v7411, %v7649
    %v7651 = vpop.f32.mrb[0].mxu0
    %7652 = vmatprep.mubr.f32.mxu0 0.0
    %7653 = vmatmul.mubr.f32.gmra.mrb[0].mxu0 %v7361
    %v7654 = vpop.f32.mrb[0].mxu0
    %v7655 = vadd.f32 %v7411, %v7654
    %v7656 = vpop.f32.mrb[0].mxu0
    %7657 = vmatprep.mubr.f32.mxu0 0.0
    %7658 = vmatmul.mubr.f32.gmra.mrb[0].mxu0 %v7362
    %v7659 = vpop.f32.mrb[0].mxu0
    %v7660 = vadd.f32 %v7411, %v7659
    %v7661 = vpop.f32.mrb[0].mxu0
    %7662 = vmatprep.mubr.f32.mxu0 0.0
    %7663 = vmatmul.mubr.f32.gmra.mrb[0].mxu0 %v7363
    %v7664 = vpop.f32.mrb[0].mxu0
    %v7665 = vadd.f32 %v7411, %v7664
    %v7666 = vpop.f32.mrb[0].mxu0
    %7667 = vmatprep.mubr.f32.mxu0 0.0
    %7668 = vmatmul.mubr.f32.gmra.mrb[0].mxu0 %v7364
    %v7669 = vpop.f32.mrb[0].mxu0
    %v7670 = vadd.f32 %v7411, %v7669
    %v7671 = vpop.f32.mrb[0].mxu0
    %7672 = vmatprep.mubr.f32.mxu0 0.0
    %7673 = vmatmul.mubr.f32.gmra.mrb[0].mxu0 %v7365
    %v7674 = vpop.f32.mrb[0].mxu0
    %v7675 = vadd.f32 %v7411, %v7674
    %v7676 = vpop.f32.mrb[0].mxu0
    %7677 = vmatprep.mubr.f32.mxu0 0.0
    %7678 = vmatmul.mubr.f32.gmra.mrb[0].mxu0 %v7366
    %v7679 = vpop.f32.mrb[0].mxu0
    %v7680 = vadd.f32 %v7411, %v7679
    %v7681 = vpop.f32.mrb[0].mxu0
    %7682 = vmatprep.mubr.f32.mxu0 0.0
    %7683 = vmatmul.mubr.f32.gmra.mrb[0].mxu0 %v7367
    %v7684 = vpop.f32.mrb[0].mxu0
    %v7685 = vadd.f32 %v7411, %v7684
    %v7686 = vpop.f32.mrb[0].mxu0
    %7687 = vmatprep.mubr.f32.mxu0 0.0
    %7688 = vmatmul.mubr.f32.gmra.mrb[0].mxu0 %v7368
    %v7689 = vpop.f32.mrb[0].mxu0
    %v7690 = vadd.f32 %v7411, %v7689
    %v7691 = vpop.f32.mrb[0].mxu0
    %7692 = vmatprep.mubr.f32.mxu0 0.0
    %7693 = vmatmul.mubr.f32.gmra.mrb[0].mxu0 %v7369
    %v7694 = vpop.f32.mrb[0].mxu0
    %v7695 = vadd.f32 %v7411, %v7694
    %v7696 = vpop.f32.mrb[0].mxu0
    %7697 = vmatprep.mubr.f32.mxu0 0.0
    %7698 = vmatmul.mubr.f32.gmra.mrb[0].mxu0 %v7370
    %v7699 = vpop.f32.mrb[0].mxu0
    %v7700 = vadd.f32 %v7411, %v7699
    %v7701 = vpop.f32.mrb[0].mxu0
    %7702 = vmatprep.mubr.f32.mxu0 0.0
    %7703 = vmatmul.mubr.f32.gmra.mrb[0].mxu0 %v7371
    %v7704 = vpop.f32.mrb[0].mxu0
    %v7705 = vadd.f32 %v7411, %v7704
    %v7706 = vpop.f32.mrb[0].mxu0
    %7707 = vmatprep.mubr.f32.mxu0 0.0
    %7708 = vmatmul.mubr.f32.gmra.mrb[0].mxu0 %v7372
    %v7709 = vpop.f32.mrb[0].mxu0
    %v7710 = vadd.f32 %v7411, %v7709
    %v7711 = vpop.f32.mrb[0].mxu0
    %7712 = vmatprep.mubr.f32.mxu0 0.0
    %7713 = vmatmul.mubr.f32.gmra.mrb[0].mxu0 %v7373
    %v7714 = vpop.f32.mrb[0].mxu0
    %v7715 = vadd.f32 %v7411, %v7714
    %v7716 = vpop.f32.mrb[0].mxu0
    %7717 = vmatprep.mubr.f32.mxu0 0.0
    %7718 = vmatmul.mubr.f32.gmra.mrb[0].mxu0 %v7374
    %v7719 = vpop.f32.mrb[0].mxu0
    %v7720 = vadd.f32 %v7411, %v7719
    %v7721 = vpop.f32.mrb[0].mxu0
    %7722 = vmatprep.mubr.f32.mxu0 0.0
    %7723 = vmatmul.mubr.f32.gmra.mrb[0].mxu0 %v7375
    %v7724 = vpop.f32.mrb[0].mxu0
    %v7725 = vadd.f32 %v7411, %v7724
    %v7726 = vpop.f32.mrb[0].mxu0
    %7727 = vmatprep.mubr.f32.mxu0 0.0
    %7728 = vmatmul.mubr.f32.gmra.mrb[0].mxu0 %v7376
    %v7729 = vpop.f32.mrb[0].mxu0
    %v7730 = vadd.f32 %v7411, %v7729
    %v7731 = vpop.f32.mrb[0].mxu0
    %7732 = vmatprep.mubr.f32.mxu0 0.0
    %7733 = vmatmul.mubr.f32.gmra.mrb[0].mxu0 %v7377
    %v7734 = vpop.f32.mrb[0].mxu0
    %v7735 = vadd.f32 %v7411, %v7734
    %v7736 = vpop.f32.mrb[0].mxu0
    %7737 = vmatprep.mubr.f32.mxu0 0.0
    %7738 = vmatmul.mubr.f32.gmra.mrb[0].mxu0 %v7378
    %v7739 = vpop.f32.mrb[0].mxu0
    %v7740 = vadd.f32 %v7411, %v7739
    %v7741 = vpop.f32.mrb[0].mxu0
    %7742 = vmatprep.mubr.f32.mxu0 0.0
    %7743 = vmatmul.mubr.f32.gmra.mrb[0].mxu0 %v7379
    %v7744 = vpop.f32.mrb[0].mxu0
    %v7745 = vadd.f32 %v7411, %v7744
    %v7746 = vpop.f32.mrb[0].mxu0
    %7747 = vmatprep.mubr.f32.mxu0 0.0
    %7748 = vmatmul.mubr.f32.gmra.mrb[0].mxu0 %v7380
    %v7749 = vpop.f32.mrb[0].mxu0
    %v7750 = vadd.f32 %v7411, %v7749
    %v7751 = vpop.f32.mrb[0].mxu0
    %7752 = vmatprep.mubr.f32.mxu0 0.0
    %7753 = vmatmul.mubr.f32.gmra.mrb[0].mxu0 %v7381
    %v7754 = vpop.f32.mrb[0].mxu0
    %v7755 = vadd.f32 %v7411, %v7754
    %v7756 = vpop.f32.mrb[0].mxu0
    %7757 = vmatprep.mubr.f32.mxu0 0.0
    %7758 = vmatmul.mubr.f32.gmra.mrb[0].mxu0 %v7382
    %v7759 = vpop.f32.mrb[0].mxu0
    %v7760 = vadd.f32 %v7411, %v7759
    %v7761 = vpop.f32.mrb[0].mxu0
    %7762 = vmatprep.mubr.f32.mxu0 0.0
    %7763 = vmatmul.mubr.f32.gmra.mrb[0].mxu0 %v7383
    %v7764 = vpop.f32.mrb[0].mxu0
    %v7765 = vadd.f32 %v7411, %v7764
    %v7766 = vpop.f32.mrb[0].mxu0
    %7767 = vmatprep.mubr.f32.mxu0 0.0
    %7768 = vmatmul.mubr.f32.gmra.mrb[0].mxu0 %v7384
    %v7769 = vpop.f32.mrb[0].mxu0
    %v7770 = vadd.f32 %v7411, %v7769
    %v7771 = vpop.f32.mrb[0].mxu0
    %7772 = vmatprep.mubr.f32.mxu0 0.0
    %7773 = vmatmul.mubr.f32.gmra.mrb[0].mxu0 %v7385
    %v7774 = vpop.f32.mrb[0].mxu0
    %v7775 = vadd.f32 %v7411, %v7774
    %v7776 = vpop.f32.mrb[0].mxu0
    %7777 = vmatprep.mubr.f32.mxu0 0.0
    %7778 = vmatmul.mubr.f32.gmra.mrb[0].mxu0 %v7386
    %v7779 = vpop.f32.mrb[0].mxu0
    %v7780 = vadd.f32 %v7411, %v7779
    %v7781 = vpop.f32.mrb[0].mxu0
    %7782 = vmatprep.mubr.f32.mxu0 0.0
    %7783 = vmatmul.mubr.f32.gmra.mrb[0].mxu0 %v7387
    %v7784 = vpop.f32.mrb[0].mxu0
    %v7785 = vadd.f32 %v7411, %v7784
    %v7786 = vpop.f32.mrb[0].mxu0
    %7787 = vmatprep.mubr.f32.mxu0 0.0
    %7788 = vmatmul.mubr.f32.gmra.mrb[0].mxu0 %v7388
    %v7789 = vpop.f32.mrb[0].mxu0
    %v7790 = vadd.f32 %v7411, %v7789
    %v7791 = vpop.f32.mrb[0].mxu0
    %7792 = vmatprep.mubr.f32.mxu0 0.0
    %7793 = vmatmul.mubr.f32.gmra.mrb[0].mxu0 %v7389
    %v7794 = vpop.f32.mrb[0].mxu0
    %v7795 = vadd.f32 %v7411, %v7794
    %v7796 = vpop.f32.mrb[0].mxu0
    %7797 = vdwg.mxu0
    %v7798 = vadd.f32 %v4026, %v7480
    %v7799 = vadd.f32 %v4031, %v7485
    %v7800 = vadd.f32 %v4036, %v7490
    %v7801 = vadd.f32 %v4041, %v7495
    %v7802 = vadd.f32 %v4046, %v7500
    %v7803 = vadd.f32 %v4051, %v7505
    %v7804 = vadd.f32 %v4056, %v7510
    %v7805 = vadd.f32 %v4061, %v7515
    %v7806 = vadd.f32 %v4066, %v7520
    %v7807 = vadd.f32 %v4071, %v7525
    %v7808 = vadd.f32 %v4076, %v7530
    %v7809 = vadd.f32 %v4081, %v7535
    %v7810 = vadd.f32 %v4086, %v7540
    %v7811 = vadd.f32 %v4091, %v7545
    %v7812 = vadd.f32 %v4096, %v7550
    %v7813 = vadd.f32 %v4101, %v7555
    %v7814 = vadd.f32 %v4106, %v7560
    %v7815 = vadd.f32 %v4111, %v7565
    %v7816 = vadd.f32 %v4116, %v7570
    %v7817 = vadd.f32 %v4121, %v7575
    %v7818 = vadd.f32 %v4126, %v7580
    %v7819 = vadd.f32 %v4131, %v7585
    %v7820 = vadd.f32 %v4136, %v7590
    %v7821 = vadd.f32 %v4141, %v7595
    %v7822 = vadd.f32 %v4146, %v7600
    %v7823 = vadd.f32 %v4151, %v7605
    %v7824 = vadd.f32 %v4156, %v7610
    %v7825 = vadd.f32 %v4161, %v7615
    %v7826 = vadd.f32 %v4166, %v7620
    %v7827 = vadd.f32 %v4171, %v7625
    %v7828 = vadd.f32 %v4176, %v7630
    %v7829 = vadd.f32 %v4181, %v7635
    %v7830 = vadd.f32 %v4186, %v7640
    %v7831 = vadd.f32 %v4191, %v7645
    %v7832 = vadd.f32 %v4196, %v7650
    %v7833 = vadd.f32 %v4201, %v7655
    %v7834 = vadd.f32 %v4206, %v7660
    %v7835 = vadd.f32 %v4211, %v7665
    %v7836 = vadd.f32 %v4216, %v7670
    %v7837 = vadd.f32 %v4221, %v7675
    %v7838 = vadd.f32 %v4226, %v7680
    %v7839 = vadd.f32 %v4231, %v7685
    %v7840 = vadd.f32 %v4236, %v7690
    %v7841 = vadd.f32 %v4241, %v7695
    %v7842 = vadd.f32 %v4246, %v7700
    %v7843 = vadd.f32 %v4251, %v7705
    %v7844 = vadd.f32 %v4256, %v7710
    %v7845 = vadd.f32 %v4261, %v7715
    %v7846 = vadd.f32 %v4266, %v7720
    %v7847 = vadd.f32 %v4271, %v7725
    %v7848 = vadd.f32 %v4276, %v7730
    %v7849 = vadd.f32 %v4281, %v7735
    %v7850 = vadd.f32 %v4286, %v7740
    %v7851 = vadd.f32 %v4291, %v7745
    %v7852 = vadd.f32 %v4296, %v7750
    %v7853 = vadd.f32 %v4301, %v7755
    %v7854 = vadd.f32 %v4306, %v7760
    %v7855 = vadd.f32 %v4311, %v7765
    %v7856 = vadd.f32 %v4316, %v7770
    %v7857 = vadd.f32 %v4321, %v7775
    %v7858 = vadd.f32 %v4326, %v7780
    %v7859 = vadd.f32 %v4331, %v7785
    %v7860 = vadd.f32 %v4336, %v7790
    %v7861 = vadd.f32 %v4341, %v7795
    %7862 = vxpose.xlu0.b32.start [1/16] %v7798, 128
    %7863 = vxpose.xlu0.b32.cont [2/16] %v7799, 128
    %7864 = vxpose.xlu0.b32.cont [3/16] %v7800, 128
    %7865 = vxpose.xlu0.b32.cont [4/16] %v7801, 128
    %7866 = vxpose.xlu0.b32.cont [5/16] %v7802, 128
    %7867 = vxpose.xlu0.b32.cont [6/16] %v7803, 128
    %7868 = vxpose.xlu0.b32.cont [7/16] %v7804, 128
    %7869 = vxpose.xlu0.b32.cont [8/16] %v7805, 128
    %7870 = vxpose.xlu0.b32.cont [9/16] %v7806, 128
    %7871 = vxpose.xlu0.b32.cont [10/16] %v7807, 128
    %7872 = vxpose.xlu0.b32.cont [11/16] %v7808, 128
    %7873 = vxpose.xlu0.b32.cont [12/16] %v7809, 128
    %7874 = vxpose.xlu0.b32.cont [13/16] %v7810, 128
    %7875 = vxpose.xlu0.b32.cont [14/16] %v7811, 128
    %7876 = vxpose.xlu0.b32.cont [15/16] %v7812, 128
    %7877 = vxpose.xlu0.b32.end [16/16] %v7813, 128
    %v7878 = vpop.trf.xlu0
    %v7879 = vpop.trf.xlu0
    %v7880 = vpop.trf.xlu0
    %v7881 = vpop.trf.xlu0
    %v7882 = vpop.trf.xlu0
    %v7883 = vpop.trf.xlu0
    %v7884 = vpop.trf.xlu0
    %v7885 = vpop.trf.xlu0
    %v7886 = vpop.trf.xlu0
    %v7887 = vpop.trf.xlu0
    %v7888 = vpop.trf.xlu0
    %v7889 = vpop.trf.xlu0
    %v7890 = vpop.trf.xlu0
    %v7891 = vpop.trf.xlu0
    %v7892 = vpop.trf.xlu0
    %v7893 = vpop.trf.xlu0
    %7894 = vxpose.xlu0.b32.start [1/16] %v7814, 128
    %7895 = vxpose.xlu0.b32.cont [2/16] %v7815, 128
    %7896 = vxpose.xlu0.b32.cont [3/16] %v7816, 128
    %7897 = vxpose.xlu0.b32.cont [4/16] %v7817, 128
    %7898 = vxpose.xlu0.b32.cont [5/16] %v7818, 128
    %7899 = vxpose.xlu0.b32.cont [6/16] %v7819, 128
    %7900 = vxpose.xlu0.b32.cont [7/16] %v7820, 128
    %7901 = vxpose.xlu0.b32.cont [8/16] %v7821, 128
    %7902 = vxpose.xlu0.b32.cont [9/16] %v7822, 128
    %7903 = vxpose.xlu0.b32.cont [10/16] %v7823, 128
    %7904 = vxpose.xlu0.b32.cont [11/16] %v7824, 128
    %7905 = vxpose.xlu0.b32.cont [12/16] %v7825, 128
    %7906 = vxpose.xlu0.b32.cont [13/16] %v7826, 128
    %7907 = vxpose.xlu0.b32.cont [14/16] %v7827, 128
    %7908 = vxpose.xlu0.b32.cont [15/16] %v7828, 128
    %7909 = vxpose.xlu0.b32.end [16/16] %v7829, 128
    %v7910 = vpop.trf.xlu0
    %v7911 = vpop.trf.xlu0
    %v7912 = vpop.trf.xlu0
    %v7913 = vpop.trf.xlu0
    %v7914 = vpop.trf.xlu0
    %v7915 = vpop.trf.xlu0
    %v7916 = vpop.trf.xlu0
    %v7917 = vpop.trf.xlu0
    %v7918 = vpop.trf.xlu0
    %v7919 = vpop.trf.xlu0
    %v7920 = vpop.trf.xlu0
    %v7921 = vpop.trf.xlu0
    %v7922 = vpop.trf.xlu0
    %v7923 = vpop.trf.xlu0
    %v7924 = vpop.trf.xlu0
    %v7925 = vpop.trf.xlu0
    %7926 = vst [vmem:[#allocation11] sm:$0xff] %v7878
    %7927 = vst [vmem:[#allocation11 + $0x8] sm:$0xff] %v7910
    %7928 = vst [vmem:[#allocation11 + $0x10] sm:$0xff] %v7879
    %7929 = vst [vmem:[#allocation11 + $0x18] sm:$0xff] %v7911
    %7930 = vst [vmem:[#allocation11 + $0x20] sm:$0xff] %v7880
    %7931 = vst [vmem:[#allocation11 + $0x28] sm:$0xff] %v7912
    %7932 = vst [vmem:[#allocation11 + $0x30] sm:$0xff] %v7881
    %7933 = vst [vmem:[#allocation11 + $0x38] sm:$0xff] %v7913
    %7934 = vst [vmem:[#allocation11 + $0x40] sm:$0xff] %v7882
    %7935 = vst [vmem:[#allocation11 + $0x48] sm:$0xff] %v7914
    %7936 = vst [vmem:[#allocation11 + $0x50] sm:$0xff] %v7883
    %7937 = vst [vmem:[#allocation11 + $0x58] sm:$0xff] %v7915
    %7938 = vst [vmem:[#allocation11 + $0x60] sm:$0xff] %v7884
    %7939 = vst [vmem:[#allocation11 + $0x68] sm:$0xff] %v7916
    %7940 = vst [vmem:[#allocation11 + $0x70] sm:$0xff] %v7885
    %7941 = vst [vmem:[#allocation11 + $0x78] sm:$0xff] %v7917
    %7942 = vst [vmem:[#allocation11 + $0x80] sm:$0xff] %v7886
    %7943 = vst [vmem:[#allocation11 + $0x88] sm:$0xff] %v7918
    %7944 = vst [vmem:[#allocation11 + $0x90] sm:$0xff] %v7887
    %7945 = vst [vmem:[#allocation11 + $0x98] sm:$0xff] %v7919
    %7946 = vst [vmem:[#allocation11 + $0xa0] sm:$0xff] %v7888
    %7947 = vst [vmem:[#allocation11 + $0xa8] sm:$0xff] %v7920
    %7948 = vst [vmem:[#allocation11 + $0xb0] sm:$0xff] %v7889
    %7949 = vst [vmem:[#allocation11 + $0xb8] sm:$0xff] %v7921
    %7950 = vst [vmem:[#allocation11 + $0xc0] sm:$0xff] %v7890
    %7951 = vst [vmem:[#allocation11 + $0xc8] sm:$0xff] %v7922
    %7952 = vst [vmem:[#allocation11 + $0xd0] sm:$0xff] %v7891
    %7953 = vst [vmem:[#allocation11 + $0xd8] sm:$0xff] %v7923
    %7954 = vst [vmem:[#allocation11 + $0xe0] sm:$0xff] %v7892
    %7955 = vst [vmem:[#allocation11 + $0xe8] sm:$0xff] %v7924
    %7956 = vst [vmem:[#allocation11 + $0xf0] sm:$0xff] %v7893
    %7957 = vst [vmem:[#allocation11 + $0xf8] sm:$0xff] %v7925
    %7958 = vxpose.xlu0.b32.start [1/16] %v7830, 128
    %7959 = vxpose.xlu0.b32.cont [2/16] %v7831, 128
    %7960 = vxpose.xlu0.b32.cont [3/16] %v7832, 128
    %7961 = vxpose.xlu0.b32.cont [4/16] %v7833, 128
    %7962 = vxpose.xlu0.b32.cont [5/16] %v7834, 128
    %7963 = vxpose.xlu0.b32.cont [6/16] %v7835, 128
    %7964 = vxpose.xlu0.b32.cont [7/16] %v7836, 128
    %7965 = vxpose.xlu0.b32.cont [8/16] %v7837, 128
    %7966 = vxpose.xlu0.b32.cont [9/16] %v7838, 128
    %7967 = vxpose.xlu0.b32.cont [10/16] %v7839, 128
    %7968 = vxpose.xlu0.b32.cont [11/16] %v7840, 128
    %7969 = vxpose.xlu0.b32.cont [12/16] %v7841, 128
    %7970 = vxpose.xlu0.b32.cont [13/16] %v7842, 128
    %7971 = vxpose.xlu0.b32.cont [14/16] %v7843, 128
    %7972 = vxpose.xlu0.b32.cont [15/16] %v7844, 128
    %7973 = vxpose.xlu0.b32.end [16/16] %v7845, 128
    %v7974 = vpop.trf.xlu0
    %v7975 = vpop.trf.xlu0
    %v7976 = vpop.trf.xlu0
    %v7977 = vpop.trf.xlu0
    %v7978 = vpop.trf.xlu0
    %v7979 = vpop.trf.xlu0
    %v7980 = vpop.trf.xlu0
    %v7981 = vpop.trf.xlu0
    %v7982 = vpop.trf.xlu0
    %v7983 = vpop.trf.xlu0
    %v7984 = vpop.trf.xlu0
    %v7985 = vpop.trf.xlu0
    %v7986 = vpop.trf.xlu0
    %v7987 = vpop.trf.xlu0
    %v7988 = vpop.trf.xlu0
    %v7989 = vpop.trf.xlu0
    %7990 = vxpose.xlu0.b32.start [1/16] %v7846, 128
    %7991 = vxpose.xlu0.b32.cont [2/16] %v7847, 128
    %7992 = vxpose.xlu0.b32.cont [3/16] %v7848, 128
    %7993 = vxpose.xlu0.b32.cont [4/16] %v7849, 128
    %7994 = vxpose.xlu0.b32.cont [5/16] %v7850, 128
    %7995 = vxpose.xlu0.b32.cont [6/16] %v7851, 128
    %7996 = vxpose.xlu0.b32.cont [7/16] %v7852, 128
    %7997 = vxpose.xlu0.b32.cont [8/16] %v7853, 128
    %7998 = vxpose.xlu0.b32.cont [9/16] %v7854, 128
    %7999 = vxpose.xlu0.b32.cont [10/16] %v7855, 128
    %8000 = vxpose.xlu0.b32.cont [11/16] %v7856, 128
    %8001 = vxpose.xlu0.b32.cont [12/16] %v7857, 128
    %8002 = vxpose.xlu0.b32.cont [13/16] %v7858, 128
    %8003 = vxpose.xlu0.b32.cont [14/16] %v7859, 128
    %8004 = vxpose.xlu0.b32.cont [15/16] %v7860, 128
    %8005 = vxpose.xlu0.b32.end [16/16] %v7861, 128
    %v8006 = vpop.trf.xlu0
    %v8007 = vpop.trf.xlu0
    %v8008 = vpop.trf.xlu0
    %v8009 = vpop.trf.xlu0
    %v8010 = vpop.trf.xlu0
    %v8011 = vpop.trf.xlu0
    %v8012 = vpop.trf.xlu0
    %v8013 = vpop.trf.xlu0
    %v8014 = vpop.trf.xlu0
    %v8015 = vpop.trf.xlu0
    %v8016 = vpop.trf.xlu0
    %v8017 = vpop.trf.xlu0
    %v8018 = vpop.trf.xlu0
    %v8019 = vpop.trf.xlu0
    %v8020 = vpop.trf.xlu0
    %v8021 = vpop.trf.xlu0
    %s8022 = scalar_lea.vmem [#allocation11], 256
    %8023 = vst [vmem:[%s8022] sm:$0xff] %v7974
    %8024 = vst [vmem:[%s8022 + $0x8] sm:$0xff] %v8006
    %8025 = vst [vmem:[%s8022 + $0x10] sm:$0xff] %v7975
    %8026 = vst [vmem:[%s8022 + $0x18] sm:$0xff] %v8007
    %8027 = vst [vmem:[%s8022 + $0x20] sm:$0xff] %v7976
    %8028 = vst [vmem:[%s8022 + $0x28] sm:$0xff] %v8008
    %8029 = vst [vmem:[%s8022 + $0x30] sm:$0xff] %v7977
    %8030 = vst [vmem:[%s8022 + $0x38] sm:$0xff] %v8009
    %8031 = vst [vmem:[%s8022 + $0x40] sm:$0xff] %v7978
    %8032 = vst [vmem:[%s8022 + $0x48] sm:$0xff] %v8010
    %8033 = vst [vmem:[%s8022 + $0x50] sm:$0xff] %v7979
    %8034 = vst [vmem:[%s8022 + $0x58] sm:$0xff] %v8011
    %8035 = vst [vmem:[%s8022 + $0x60] sm:$0xff] %v7980
    %8036 = vst [vmem:[%s8022 + $0x68] sm:$0xff] %v8012
    %8037 = vst [vmem:[%s8022 + $0x70] sm:$0xff] %v7981
    %8038 = vst [vmem:[%s8022 + $0x78] sm:$0xff] %v8013
    %8039 = vst [vmem:[%s8022 + $0x80] sm:$0xff] %v7982
    %8040 = vst [vmem:[%s8022 + $0x88] sm:$0xff] %v8014
    %8041 = vst [vmem:[%s8022 + $0x90] sm:$0xff] %v7983
    %8042 = vst [vmem:[%s8022 + $0x98] sm:$0xff] %v8015
    %8043 = vst [vmem:[%s8022 + $0xa0] sm:$0xff] %v7984
    %8044 = vst [vmem:[%s8022 + $0xa8] sm:$0xff] %v8016
    %8045 = vst [vmem:[%s8022 + $0xb0] sm:$0xff] %v7985
    %8046 = vst [vmem:[%s8022 + $0xb8] sm:$0xff] %v8017
    %8047 = vst [vmem:[%s8022 + $0xc0] sm:$0xff] %v7986
    %8048 = vst [vmem:[%s8022 + $0xc8] sm:$0xff] %v8018
    %8049 = vst [vmem:[%s8022 + $0xd0] sm:$0xff] %v7987
    %8050 = vst [vmem:[%s8022 + $0xd8] sm:$0xff] %v8019
    %8051 = vst [vmem:[%s8022 + $0xe0] sm:$0xff] %v7988
    %8052 = vst [vmem:[%s8022 + $0xe8] sm:$0xff] %v8020
    %8053 = vst [vmem:[%s8022 + $0xf0] sm:$0xff] %v7989
    %8054 = vst [vmem:[%s8022 + $0xf8] sm:$0xff] %v8021
    // Predicated region
    $region74: #{tpu_custom_call.1} parent=1 // pred_check
      _
    $region75: #{tpu_custom_call.1} parent=1 // pred_check_branch
      %8056 = sbr.rel (0) target = $region77
    $region76: #{tpu_custom_call.1} parent=1 // pred_region
      %s8058 = ssub.s32 8192, 8192
      %8059 = vsyncadd [#allocation4], %s8058
      %s8060 = sshll.u32 [#allocation11], 4
      %s8061 = int_to_ptr.vmem [resolvable:$true] %s8060
      %8066 = dma.vmem_to_hbm [thread:$0]  %s8061, 8192, %s13, [#allocation4], 256, 256, 16
    $region77: #{tpu_custom_call.1} parent=1 // pred_fallthru
      _
    // Predicated region
    $region78: #{tpu_custom_call.1} parent=1 // pred_check
      _
    $region79: #{tpu_custom_call.1} parent=1 // pred_check_branch
      %8068 = sbr.rel (0) target = $region81
    $region80: #{tpu_custom_call.1} parent=1 // pred_region
      %8069 = dma.done [#allocation4], 8192
    $region81: #{tpu_custom_call.1} parent=1 // pred_fallthru
      _
    %8070 = vsyncpa [#allocation3], 1
    %8071 = vsyncpa [#allocation6], 1
    %8072 = vsyncpa [#allocation9], 1
    %8073 = vsyncpa [#allocation4], 1

</llo_original>
